<compile_context>
chip_gen: v7x
topology: tpu7x:2x2x1
jax: 0.10.0
libtpu: 0.0.40
codegen_flags: <defaults>
</compile_context>

<pallas_src>
import functools
import math

import jax
import jax.numpy as jnp
from jax.experimental import pallas as pl
from jax.experimental.pallas import tpu as pltpu

EPS_FUSED = 1e-3          # FusedConvBN default eps
EPS_BN2D = 1e-5           # nn.BatchNorm2d default eps
TM = 256                  # matmul row tile over the N*Ho*Wo axis
TK_MAX = 2048             # max contraction tile
VMEM_LIMIT = 64 * 1024 * 1024


def _rup(x, m):
    return (x + m - 1) // m * m


# ----------------------------------------------------------------------------
# Kernel 1: tiled conv-as-matmul + per-tile BN moment accumulation
# ----------------------------------------------------------------------------
def _matmul_stats_kernel(a_ref, b_ref, y_ref, st_ref, acc_ref):
    @pl.when(pl.program_id(2) == 0)
    def _init():
        acc_ref[...] = jnp.zeros_like(acc_ref)

    acc_ref[...] += jnp.dot(a_ref[...], b_ref[...],
                            preferred_element_type=jnp.float32)

    @pl.when(pl.program_id(2) == pl.num_programs(2) - 1)
    def _epilogue():
        y = acc_ref[...]                                  # f32 accumulator
        y_ref[...] = y.astype(y_ref.dtype)                # bf16 intermediate
        # partial per-channel moments; rows 2..7 of the stats tile are unused
        st_ref[0:1, :] = jnp.sum(y, axis=0, keepdims=True)
        st_ref[1:2, :] = jnp.sum(y * y, axis=0, keepdims=True)


def _conv_matmul_stats(a, b, tm, tn, tk):
    m, k = a.shape
    c = b.shape[1]
    nm, nn, nk = m // tm, c // tn, k // tk
    return pl.pallas_call(
        _matmul_stats_kernel,
        out_shape=(jax.ShapeDtypeStruct((m, c), jnp.bfloat16),
                   jax.ShapeDtypeStruct((nm * 8, c), jnp.float32)),
        grid=(nm, nn, nk),
        in_specs=[pl.BlockSpec((tm, tk), lambda i, j, kk: (i, kk)),
                  pl.BlockSpec((tk, tn), lambda i, j, kk: (kk, j))],
        out_specs=(pl.BlockSpec((tm, tn), lambda i, j, kk: (i, j)),
                   pl.BlockSpec((8, tn), lambda i, j, kk: (i, j))),
        scratch_shapes=[pltpu.VMEM((tm, tn), jnp.float32)],
        compiler_params=pltpu.CompilerParams(
            dimension_semantics=("parallel", "parallel", "arbitrary"),
            vmem_limit_bytes=VMEM_LIMIT),
    )(a, b)


# ----------------------------------------------------------------------------
# Kernel 2: normalize (+ optional residual add) (+ optional ReLU)
# ----------------------------------------------------------------------------
def _bn_apply_kernel(y_ref, mean_ref, scale_ref, *rest, relu, has_res):
    o_ref = rest[-1]
    out = (y_ref[...].astype(jnp.float32) - mean_ref[...]) * scale_ref[...]
    if has_res:
        out = out + rest[0][...].astype(jnp.float32)
    if relu:
        out = jnp.maximum(out, 0.0)
    o_ref[...] = out.astype(o_ref.dtype)


def _bn_apply(y, mean, scale, residual, relu, out_dtype, tm_bn):
    m, c = y.shape
    nm = m // tm_bn
    args = [y, mean.reshape(1, c).astype(jnp.float32),
            scale.reshape(1, c).astype(jnp.float32)]
    in_specs = [pl.BlockSpec((tm_bn, c), lambda i: (i, 0)),
                pl.BlockSpec((1, c), lambda i: (0, 0)),
                pl.BlockSpec((1, c), lambda i: (0, 0))]
    if residual is not None:
        args.append(residual)
        in_specs.append(pl.BlockSpec((tm_bn, c), lambda i: (i, 0)))
    kern = functools.partial(_bn_apply_kernel, relu=relu,
                             has_res=residual is not None)
    return pl.pallas_call(
        kern,
        out_shape=jax.ShapeDtypeStruct((m, c), out_dtype),
        grid=(nm,),
        in_specs=in_specs,
        out_specs=pl.BlockSpec((tm_bn, c), lambda i: (i, 0)),
        compiler_params=pltpu.CompilerParams(
            dimension_semantics=("parallel",),
            vmem_limit_bytes=VMEM_LIMIT),
    )(*args)


# ----------------------------------------------------------------------------
# Glue: im2col (3x3 only), tiling choices, conv + BN wrapper
# ----------------------------------------------------------------------------
def _im2col(x, k, stride, padding):
    n, h, w, c = x.shape
    ho = (h + 2 * padding - k) // stride + 1
    wo = (w + 2 * padding - k) // stride + 1
    xp = jnp.pad(x, ((0, 0), (padding, padding), (padding, padding), (0, 0)))
    cols = [xp[:, di:di + stride * ho:stride, dj:dj + stride * wo:stride, :]
            for di in range(k) for dj in range(k)]
    a = jnp.stack(cols, axis=3)                        # (N, Ho, Wo, k*k, C)
    return a.reshape(n * ho * wo, k * k * c), ho, wo


def _choose_tk(k):
    if k <= TK_MAX:
        return k
    for cand in range(TK_MAX, 255, -128):              # lane-aligned divisor
        if k % cand == 0:
            return cand
    for cand in range(TK_MAX, 15, -16):
        if k % cand == 0:
            return cand
    return k


def _choose_tn(c):
    # c is always a multiple of 128 here; only tile when wide (deep stages)
    if c <= 512:
        return c
    for cand in (512, 384, 256, 128):
        if c % cand == 0:
            return cand
    return c


def _choose_tm(m):
    if m >= 2 * TM:
        return _rup(m, TM), TM
    # small layer: split into 2 row tiles so both v7x TensorCores get work;
    # rows padded to a multiple of 16 (bf16 packed sublane tile).
    half = _rup(max(m // 2, 16), 16)
    return 2 * half, half


def _choose_tm_bn(m_pad, tm, c, out_bytes):
    # Kernel 2 is HBM-bound: grow the row tile (power-of-two multiples of the
    # matmul tile) as long as double-buffered y + residual + out fit a budget.
    per_row = c * (2 + 2 + out_bytes)                  # bf16 y, bf16 res, out
    t = tm
    while (t * 2 <= 4096 and m_pad % (t * 2) == 0
           and 2 * (t * 2) * per_row <= (20 << 20)):
        t *= 2
    return t


def _conv2d_bn(x, w2d, kernel_size, stride, padding, bn, relu,
               residual=None, out_dtype=jnp.bfloat16):
    """Bias-free conv + batch norm (+ optional residual add) (+ optional ReLU).

    x:    (N, H, W, Cpad_in) bf16 activations, channels padded to 128 multiple.
    w2d:  (kernel_size**2 * Cpad_in, Cpad_out) bf16 weights in im2col order.
    bn:   "fused" -> FusedConvBN: (y - mean) / (sqrt(unbiased var) + 1e-3)
          "bn2d"  -> training-mode BatchNorm2d: (y - mean)/sqrt(biased var+1e-5)
    residual: optional (N, Ho, Wo, Cpad_out), added AFTER normalization and
              before the ReLU (fuses the block's residual+shortcut add).
    """
    n, h, w, _ = x.shape
    if kernel_size == 1:
        xs = x if stride == 1 else x[:, ::stride, ::stride, :]
        ho, wo = xs.shape[1], xs.shape[2]
        a = xs.reshape(n * ho * wo, xs.shape[3])
    else:
        # TODO(synk): the single 3x3 conv still materializes a bf16 im2col
        # matrix in HBM; an in-kernel shifted-view / halo-DMA conv would
        # remove the 9x inflation for large spatial sizes.
        a, ho, wo = _im2col(x, kernel_size, stride, padding)

    m_true = n * ho * wo
    c = w2d.shape[1]
    m_pad, tm = _choose_tm(m_true)
    if m_pad != m_true:                                 # zero rows: sums unaffected
        a = jnp.pad(a, ((0, m_pad - m_true), (0, 0)))
    tk = _choose_tk(a.shape[1])
    tn = _choose_tn(c)

    y2d, st = _conv_matmul_stats(a.astype(jnp.bfloat16), w2d, tm, tn, tk)

    # tiny (C,)-sized glue: reduce per-tile moments, build mean / scale
    stp = st.reshape(m_pad // tm, 8, c)
    s = jnp.sum(stp[:, 0, :], axis=0)
    ss = jnp.sum(stp[:, 1, :], axis=0)
    nfl = float(m_true)                                 # N = numel / C
    mean = s / nfl
    # TODO(synk): E[x^2]-E[x]^2 in f32 can cancel for very large-magnitude
    # activations; PyTorch's var() is two-pass.  Acceptable here (f32 acc).
    if bn == "fused":                                   # FusedConvBN rule
        var = jnp.maximum(ss - nfl * mean * mean, 0.0) / (nfl - 1.0)  # unbiased
        denom = jnp.sqrt(var) + EPS_FUSED               # sqrt(var) + eps
    else:                                               # nn.BatchNorm2d (train)
        var = jnp.maximum(ss / nfl - mean * mean, 0.0)  # biased
        denom = jnp.sqrt(var + EPS_BN2D)
    scale = 1.0 / denom                                 # exact f32, once per C

    res2d = None
    if residual is not None:
        res2d = residual.reshape(m_true, c)
        if m_pad != m_true:
            res2d = jnp.pad(res2d, ((0, m_pad - m_true), (0, 0)))

    tm_bn = _choose_tm_bn(m_pad, tm, c, jnp.dtype(out_dtype).itemsize)
    out2d = _bn_apply(y2d, mean, scale, res2d, relu, out_dtype, tm_bn)
    if m_pad != m_true:
        out2d = out2d[:m_true]
    return out2d.reshape(n, ho, wo, c)


# ----------------------------------------------------------------------------
# BottleNeck forward (expansion = 4)
# ----------------------------------------------------------------------------
@functools.partial(jax.jit, static_argnames=("stride", "out_channels"))
def bottleneck_forward(x_nchw, weights, stride, out_channels):
    exp_ch = out_channels * 4
    # NCHW -> NHWC, cast once to bf16, pad channels to a lane-dense multiple
    x = jnp.transpose(x_nchw, (0, 2, 3, 1)).astype(jnp.bfloat16)
    cin = x.shape[-1]
    cpin = _rup(cin, 128)
    if cpin != cin:
        x = jnp.pad(x, ((0, 0), (0, 0), (0, 0), (0, cpin - cin)))

    # shortcut branch (bf16 output: halves residual read in the final kernel)
    if weights["ws"] is not None:                        # Conv2d 1x1 + BatchNorm2d
        sc = _conv2d_bn(x, weights["ws"], 1, stride, 0, "bn2d",
                        relu=False, out_dtype=jnp.bfloat16)
    else:
        sc = x                                           # identity shortcut

    # residual branch
    y = _conv2d_bn(x, weights["w1"], 1, 1, 0, "fused", relu=True)
    if stride == 1:
        y = _conv2d_bn(y, weights["w2"], 3, 1, 1, "fused", relu=True)
    else:                                                # Conv2d 3x3 stride + BN2d
        y = _conv2d_bn(y, weights["w2"], 3, stride, 1, "bn2d", relu=True)
    out = _conv2d_bn(y, weights["w3"], 1, 1, 0, "fused", relu=True,
                     residual=sc, out_dtype=jnp.float32)  # fused add + final ReLU

    out = out[..., :exp_ch]                               # drop channel padding
    return jnp.transpose(out, (0, 3, 1, 2))               # NHWC -> NCHW


# ----------------------------------------------------------------------------
# Parameter init (matches FusedConvBN.reset_parameters / nn.Conv2d default)
# ----------------------------------------------------------------------------
def _uniform_conv_w(key, cout, cin, k):
    bound = 1.0 / math.sqrt(cin * k * k)
    return jax.random.uniform(key, (cout, cin, k, k), jnp.float32, -bound, bound)


def _conv_w_to_2d(w, cpin, cpout):
    # torch (Cout, Cin, kh, kw) -> (kh*kw*Cpad_in, Cpad_out), im2col tap order
    cout, cin, kh, kw = w.shape
    wt = jnp.transpose(w, (2, 3, 1, 0))
    wt = jnp.pad(wt, ((0, 0), (0, 0), (0, cpin - cin), (0, cpout - cout)))
    return wt.reshape(kh * kw * cpin, cpout).astype(jnp.bfloat16)


def init_bottleneck_weights(key, in_channels, out_channels, stride=1):
    exp_ch = out_channels * 4
    cpin = _rup(in_channels, 128)
    cp1 = _rup(out_channels, 128)
    cp3 = _rup(exp_ch, 128)
    k1, k2, k3, k4 = jax.random.split(key, 4)
    return {
        "w1": _conv_w_to_2d(_uniform_conv_w(k1, out_channels, in_channels, 1), cpin, cp1),
        "w2": _conv_w_to_2d(_uniform_conv_w(k2, out_channels, out_channels, 3), cp1, cp1),
        "w3": _conv_w_to_2d(_uniform_conv_w(k3, exp_ch, out_channels, 1), cp1, cp3),
        "ws": (_conv_w_to_2d(_uniform_conv_w(k4, exp_ch, in_channels, 1), cpin, cp3)
               if (stride != 1 or in_channels != exp_ch) else None),
    }


if __name__ == "__main__":
    key = jax.random.PRNGKey(0)
    kx, kw1, kw2 = jax.random.split(key, 3)
    in_ch, out_ch = 64, 64
    x = jax.random.normal(kx, (2, in_ch, 16, 16), jnp.float32)    # NCHW like PyTorch

    # stride=1 block: FusedConvBN 1x1 / 3x3 / 1x1 + (conv+BN) shortcut, fused add+ReLU
    w1 = init_bottleneck_weights(kw1, in_ch, out_ch, stride=1)
    out1 = jax.block_until_ready(bottleneck_forward(x, w1, stride=1, out_channels=out_ch))
    assert out1.shape == (2, out_ch * 4, 16, 16), out1.shape
    assert bool(jnp.all(jnp.isfinite(out1)))

    # stride=2 block: FusedConvBN 1x1 / strided Conv2d 3x3 + BatchNorm2d / FusedConvBN 1x1
    w2 = init_bottleneck_weights(kw2, in_ch, out_ch, stride=2)
    out2 = jax.block_until_ready(bottleneck_forward(x, w2, stride=2, out_channels=out_ch))
    assert out2.shape == (2, out_ch * 4, 8, 8), out2.shape
    assert bool(jnp.all(jnp.isfinite(out2)))

    print("KERNEL_OK")
</pallas_src>

<mosaic_0001>
module attributes {stable_mosaic.version = 11 : i64} {
  func.func @_matmul_stats_kernel(%arg0: i32, %arg1: i32, %arg2: i32, %arg3: memref<256x128xbf16, #tpu.memory_space<vmem>>, %arg4: memref<128x128xbf16, #tpu.memory_space<vmem>>, %arg5: memref<256x128xbf16, #tpu.memory_space<vmem>>, %arg6: memref<8x128xf32, #tpu.memory_space<vmem>>, %arg7: memref<256x128xf32, #tpu.memory_space<vmem>>) attributes {dimension_semantics = [#tpu.dimension_semantics<parallel>, #tpu.dimension_semantics<parallel>, #tpu.dimension_semantics<arbitrary>], iteration_bounds = array<i64: 2, 1, 1>, scalar_prefetch = 0 : i64, scratch_operands = 1 : i64, tpu.core_type = #tpu.core_type<tc>, window_params = [{transform_indices = @transform_0, window_bounds = array<i64: 256, 128>}, {transform_indices = @transform_1, window_bounds = array<i64: 128, 128>}, {transform_indices = @transform_2, window_bounds = array<i64: 256, 128>}, {transform_indices = @transform_3, window_bounds = array<i64: 8, 128>}]} {
    %c0_i32 = arith.constant 0 : i32
    %0 = arith.cmpi eq, %arg2, %c0_i32 : i32
    %1 = arith.extui %0 : i1 to i32
    %c0_i32_0 = arith.constant 0 : i32
    %2 = arith.cmpi ne, %1, %c0_i32_0 : i32
    scf.if %2 {
      %cst_10 = arith.constant 0.000000e+00 : f32
      %12 = vector.broadcast %cst_10 : f32 to vector<256x128xf32>
      %c0_11 = arith.constant 0 : index
      %c0_12 = arith.constant 0 : index
      %13 = vector.load %arg7[%c0_11, %c0_12] : memref<256x128xf32, #tpu.memory_space<vmem>>, vector<256x128xf32>
      tpu.vector_store %arg7[%c0_11, %c0_12], %12 {strides = array<i32>} : memref<256x128xf32, #tpu.memory_space<vmem>>, vector<256x128xf32>,
    } else {
    }
    %c0 = arith.constant 0 : index
    %c0_1 = arith.constant 0 : index
    %3 = vector.load %arg7[%c0, %c0_1] : memref<256x128xf32, #tpu.memory_space<vmem>>, vector<256x128xf32>
    %c0_2 = arith.constant 0 : index
    %c0_3 = arith.constant 0 : index
    %4 = vector.load %arg3[%c0_2, %c0_3] : memref<256x128xbf16, #tpu.memory_space<vmem>>, vector<256x128xbf16>
    %c0_4 = arith.constant 0 : index
    %c0_5 = arith.constant 0 : index
    %5 = vector.load %arg4[%c0_4, %c0_5] : memref<128x128xbf16, #tpu.memory_space<vmem>>, vector<128x128xbf16>
    %cst = arith.constant dense<0.000000e+00> : vector<256x128xf32>
    %6 = tpu.matmul %4, %5, %cst {dimension_numbers = #tpu.dot_dimension_numbers<[1], [0], [0], [1], [0, 0, 1, 1], [], []>} : vector<256x128xbf16>, vector<128x128xbf16>, vector<256x128xf32> -> vector<256x128xf32>
    %7 = arith.addf %3, %6 : vector<256x128xf32>
    %c0_6 = arith.constant 0 : index
    %c0_7 = arith.constant 0 : index
    %8 = vector.load %arg7[%c0_6, %c0_7] : memref<256x128xf32, #tpu.memory_space<vmem>>, vector<256x128xf32>
    tpu.vector_store %arg7[%c0_6, %c0_7], %7 {strides = array<i32>} : memref<256x128xf32, #tpu.memory_space<vmem>>, vector<256x128xf32>,
    %c0_i32_8 = arith.constant 0 : i32
    %9 = arith.cmpi eq, %arg2, %c0_i32_8 : i32
    %10 = arith.extui %9 : i1 to i32
    %c0_i32_9 = arith.constant 0 : i32
    %11 = arith.cmpi ne, %10, %c0_i32_9 : i32
    scf.if %11 {
      %c0_10 = arith.constant 0 : index
      %c0_11 = arith.constant 0 : index
      %12 = vector.load %arg7[%c0_10, %c0_11] : memref<256x128xf32, #tpu.memory_space<vmem>>, vector<256x128xf32>
      %13 = arith.truncf %12 : vector<256x128xf32> to vector<256x128xbf16>
      %c0_12 = arith.constant 0 : index
      %c0_13 = arith.constant 0 : index
      %14 = vector.load %arg5[%c0_12, %c0_13] : memref<256x128xbf16, #tpu.memory_space<vmem>>, vector<256x128xbf16>
      tpu.vector_store %arg5[%c0_12, %c0_13], %13 {strides = array<i32>} : memref<256x128xbf16, #tpu.memory_space<vmem>>, vector<256x128xbf16>,
      %cst_14 = arith.constant dense<0.000000e+00> : vector<128xf32>
      %15 = vector.multi_reduction <add>, %12, %cst_14 [0] : vector<256x128xf32> to vector<128xf32>
      %16 = vector.shape_cast %15 : vector<128xf32> to vector<1x128xf32>
      %c0_15 = arith.constant 0 : index
      %c0_16 = arith.constant 0 : index
      %17 = vector.load %arg6[%c0_15, %c0_16] : memref<8x128xf32, #tpu.memory_space<vmem>>, vector<1x128xf32>
      tpu.vector_store %arg6[%c0_15, %c0_16], %16 {strides = array<i32>} : memref<8x128xf32, #tpu.memory_space<vmem>>, vector<1x128xf32>,
      %18 = arith.mulf %12, %12 : vector<256x128xf32>
      %cst_17 = arith.constant dense<0.000000e+00> : vector<128xf32>
      %19 = vector.multi_reduction <add>, %18, %cst_17 [0] : vector<256x128xf32> to vector<128xf32>
      %20 = vector.shape_cast %19 : vector<128xf32> to vector<1x128xf32>
      %c1 = arith.constant 1 : index
      %c0_18 = arith.constant 0 : index
      %21 = vector.load %arg6[%c1, %c0_18] : memref<8x128xf32, #tpu.memory_space<vmem>>, vector<1x128xf32>
      tpu.vector_store %arg6[%c1, %c0_18], %20 {strides = array<i32>} : memref<8x128xf32, #tpu.memory_space<vmem>>, vector<1x128xf32>,
    } else {
    }
    return
  }
  func.func @transform_0(%arg0: i32, %arg1: i32, %arg2: i32) -> (i32, i32) {
    %c0_i32 = arith.constant 0 : i32
    return %arg0, %arg2 : i32, i32
  }
  func.func @transform_1(%arg0: i32, %arg1: i32, %arg2: i32) -> (i32, i32) {
    %c0_i32 = arith.constant 0 : i32
    return %arg2, %arg1 : i32, i32
  }
  func.func @transform_2(%arg0: i32, %arg1: i32, %arg2: i32) -> (i32, i32) {
    %c0_i32 = arith.constant 0 : i32
    return %arg0, %arg1 : i32, i32
  }
  func.func @transform_3(%arg0: i32, %arg1: i32, %arg2: i32) -> (i32, i32) {
    %c0_i32 = arith.constant 0 : i32
    return %arg0, %arg1 : i32, i32
  }
}

module attributes {stable_mosaic.version = 11 : i64} {
  func.func @_bn_apply_kernel(%arg0: i32, %arg1: memref<512x128xbf16, #tpu.memory_space<vmem>>, %arg2: memref<1x128xf32, #tpu.memory_space<vmem>>, %arg3: memref<1x128xf32, #tpu.memory_space<vmem>>, %arg4: memref<512x128xbf16, #tpu.memory_space<vmem>>) attributes {dimension_semantics = [#tpu.dimension_semantics<parallel>], iteration_bounds = array<i64: 1>, scalar_prefetch = 0 : i64, scratch_operands = 0 : i64, tpu.core_type = #tpu.core_type<tc>, window_params = [{transform_indices = @transform_0, window_bounds = array<i64: 512, 128>}, {pipeline_mode = #tpu.pipeline_mode<synchronous>, transform_indices = @transform_1, window_bounds = array<i64: 1, 128>}, {pipeline_mode = #tpu.pipeline_mode<synchronous>, transform_indices = @transform_2, window_bounds = array<i64: 1, 128>}, {transform_indices = @transform_3, window_bounds = array<i64: 512, 128>}]} {
    %c0 = arith.constant 0 : index
    %c0_0 = arith.constant 0 : index
    %0 = vector.load %arg1[%c0, %c0_0] : memref<512x128xbf16, #tpu.memory_space<vmem>>, vector<512x128xbf16>
    %1 = arith.extf %0 : vector<512x128xbf16> to vector<512x128xf32>
    %c0_1 = arith.constant 0 : index
    %c0_2 = arith.constant 0 : index
    %2 = vector.load %arg2[%c0_1, %c0_2] : memref<1x128xf32, #tpu.memory_space<vmem>>, vector<1x128xf32>
    %3 = vector.broadcast %2 : vector<1x128xf32> to vector<512x128xf32>
    %4 = arith.subf %1, %3 : vector<512x128xf32>
    %c0_3 = arith.constant 0 : index
    %c0_4 = arith.constant 0 : index
    %5 = vector.load %arg3[%c0_3, %c0_4] : memref<1x128xf32, #tpu.memory_space<vmem>>, vector<1x128xf32>
    %6 = vector.broadcast %5 : vector<1x128xf32> to vector<512x128xf32>
    %7 = arith.mulf %4, %6 : vector<512x128xf32>
    %cst = arith.constant 0.000000e+00 : f32
    %8 = vector.broadcast %cst : f32 to vector<512x128xf32>
    %9 = arith.maximumf %7, %8 : vector<512x128xf32>
    %10 = arith.truncf %9 : vector<512x128xf32> to vector<512x128xbf16>
    %c0_5 = arith.constant 0 : index
    %c0_6 = arith.constant 0 : index
    %11 = vector.load %arg4[%c0_5, %c0_6] : memref<512x128xbf16, #tpu.memory_space<vmem>>, vector<512x128xbf16>
    tpu.vector_store %arg4[%c0_5, %c0_6], %10 {strides = array<i32>} : memref<512x128xbf16, #tpu.memory_space<vmem>>, vector<512x128xbf16>,
    return
  }
  func.func @transform_0(%arg0: i32) -> (i32, i32) {
    %c0_i32 = arith.constant 0 : i32
    %c0_i32_0 = arith.constant 0 : i32
    return %arg0, %c0_i32 : i32, i32
  }
  func.func @transform_1(%arg0: i32) -> (i32, i32) {
    %c0_i32 = arith.constant 0 : i32
    %c0_i32_0 = arith.constant 0 : i32
    %c0_i32_1 = arith.constant 0 : i32
    return %c0_i32, %c0_i32_0 : i32, i32
  }
  func.func @transform_2(%arg0: i32) -> (i32, i32) {
    %c0_i32 = arith.constant 0 : i32
    %c0_i32_0 = arith.constant 0 : i32
    %c0_i32_1 = arith.constant 0 : i32
    return %c0_i32, %c0_i32_0 : i32, i32
  }
  func.func @transform_3(%arg0: i32) -> (i32, i32) {
    %c0_i32 = arith.constant 0 : i32
    %c0_i32_0 = arith.constant 0 : i32
    return %arg0, %c0_i32 : i32, i32
  }
}

module attributes {stable_mosaic.version = 11 : i64} {
  func.func @_matmul_stats_kernel(%arg0: i32, %arg1: i32, %arg2: i32, %arg3: memref<256x128xbf16, #tpu.memory_space<vmem>>, %arg4: memref<128x256xbf16, #tpu.memory_space<vmem>>, %arg5: memref<256x256xbf16, #tpu.memory_space<vmem>>, %arg6: memref<8x256xf32, #tpu.memory_space<vmem>>, %arg7: memref<256x256xf32, #tpu.memory_space<vmem>>) attributes {dimension_semantics = [#tpu.dimension_semantics<parallel>, #tpu.dimension_semantics<parallel>, #tpu.dimension_semantics<arbitrary>], iteration_bounds = array<i64: 2, 1, 1>, scalar_prefetch = 0 : i64, scratch_operands = 1 : i64, tpu.core_type = #tpu.core_type<tc>, window_params = [{transform_indices = @transform_0, window_bounds = array<i64: 256, 128>}, {transform_indices = @transform_1, window_bounds = array<i64: 128, 256>}, {transform_indices = @transform_2, window_bounds = array<i64: 256, 256>}, {transform_indices = @transform_3, window_bounds = array<i64: 8, 256>}]} {
    %c0_i32 = arith.constant 0 : i32
    %0 = arith.cmpi eq, %arg2, %c0_i32 : i32
    %1 = arith.extui %0 : i1 to i32
    %c0_i32_0 = arith.constant 0 : i32
    %2 = arith.cmpi ne, %1, %c0_i32_0 : i32
    scf.if %2 {
      %cst_10 = arith.constant 0.000000e+00 : f32
      %12 = vector.broadcast %cst_10 : f32 to vector<256x256xf32>
      %c0_11 = arith.constant 0 : index
      %c0_12 = arith.constant 0 : index
      %13 = vector.load %arg7[%c0_11, %c0_12] : memref<256x256xf32, #tpu.memory_space<vmem>>, vector<256x256xf32>
      tpu.vector_store %arg7[%c0_11, %c0_12], %12 {strides = array<i32>} : memref<256x256xf32, #tpu.memory_space<vmem>>, vector<256x256xf32>,
    } else {
    }
    %c0 = arith.constant 0 : index
    %c0_1 = arith.constant 0 : index
    %3 = vector.load %arg7[%c0, %c0_1] : memref<256x256xf32, #tpu.memory_space<vmem>>, vector<256x256xf32>
    %c0_2 = arith.constant 0 : index
    %c0_3 = arith.constant 0 : index
    %4 = vector.load %arg3[%c0_2, %c0_3] : memref<256x128xbf16, #tpu.memory_space<vmem>>, vector<256x128xbf16>
    %c0_4 = arith.constant 0 : index
    %c0_5 = arith.constant 0 : index
    %5 = vector.load %arg4[%c0_4, %c0_5] : memref<128x256xbf16, #tpu.memory_space<vmem>>, vector<128x256xbf16>
    %cst = arith.constant dense<0.000000e+00> : vector<256x256xf32>
    %6 = tpu.matmul %4, %5, %cst {dimension_numbers = #tpu.dot_dimension_numbers<[1], [0], [0], [1], [0, 0, 1, 1], [], []>} : vector<256x128xbf16>, vector<128x256xbf16>, vector<256x256xf32> -> vector<256x256xf32>
    %7 = arith.addf %3, %6 : vector<256x256xf32>
    %c0_6 = arith.constant 0 : index
    %c0_7 = arith.constant 0 : index
    %8 = vector.load %arg7[%c0_6, %c0_7] : memref<256x256xf32, #tpu.memory_space<vmem>>, vector<256x256xf32>
    tpu.vector_store %arg7[%c0_6, %c0_7], %7 {strides = array<i32>} : memref<256x256xf32, #tpu.memory_space<vmem>>, vector<256x256xf32>,
    %c0_i32_8 = arith.constant 0 : i32
    %9 = arith.cmpi eq, %arg2, %c0_i32_8 : i32
    %10 = arith.extui %9 : i1 to i32
    %c0_i32_9 = arith.constant 0 : i32
    %11 = arith.cmpi ne, %10, %c0_i32_9 : i32
    scf.if %11 {
      %c0_10 = arith.constant 0 : index
      %c0_11 = arith.constant 0 : index
      %12 = vector.load %arg7[%c0_10, %c0_11] : memref<256x256xf32, #tpu.memory_space<vmem>>, vector<256x256xf32>
      %13 = arith.truncf %12 : vector<256x256xf32> to vector<256x256xbf16>
      %c0_12 = arith.constant 0 : index
      %c0_13 = arith.constant 0 : index
      %14 = vector.load %arg5[%c0_12, %c0_13] : memref<256x256xbf16, #tpu.memory_space<vmem>>, vector<256x256xbf16>
      tpu.vector_store %arg5[%c0_12, %c0_13], %13 {strides = array<i32>} : memref<256x256xbf16, #tpu.memory_space<vmem>>, vector<256x256xbf16>,
      %cst_14 = arith.constant dense<0.000000e+00> : vector<256xf32>
      %15 = vector.multi_reduction <add>, %12, %cst_14 [0] : vector<256x256xf32> to vector<256xf32>
      %16 = vector.shape_cast %15 : vector<256xf32> to vector<1x256xf32>
      %c0_15 = arith.constant 0 : index
      %c0_16 = arith.constant 0 : index
      %17 = vector.load %arg6[%c0_15, %c0_16] : memref<8x256xf32, #tpu.memory_space<vmem>>, vector<1x256xf32>
      tpu.vector_store %arg6[%c0_15, %c0_16], %16 {strides = array<i32>} : memref<8x256xf32, #tpu.memory_space<vmem>>, vector<1x256xf32>,
      %18 = arith.mulf %12, %12 : vector<256x256xf32>
      %cst_17 = arith.constant dense<0.000000e+00> : vector<256xf32>
      %19 = vector.multi_reduction <add>, %18, %cst_17 [0] : vector<256x256xf32> to vector<256xf32>
      %20 = vector.shape_cast %19 : vector<256xf32> to vector<1x256xf32>
      %c1 = arith.constant 1 : index
      %c0_18 = arith.constant 0 : index
      %21 = vector.load %arg6[%c1, %c0_18] : memref<8x256xf32, #tpu.memory_space<vmem>>, vector<1x256xf32>
      tpu.vector_store %arg6[%c1, %c0_18], %20 {strides = array<i32>} : memref<8x256xf32, #tpu.memory_space<vmem>>, vector<1x256xf32>,
    } else {
    }
    return
  }
  func.func @transform_0(%arg0: i32, %arg1: i32, %arg2: i32) -> (i32, i32) {
    %c0_i32 = arith.constant 0 : i32
    return %arg0, %arg2 : i32, i32
  }
  func.func @transform_1(%arg0: i32, %arg1: i32, %arg2: i32) -> (i32, i32) {
    %c0_i32 = arith.constant 0 : i32
    return %arg2, %arg1 : i32, i32
  }
  func.func @transform_2(%arg0: i32, %arg1: i32, %arg2: i32) -> (i32, i32) {
    %c0_i32 = arith.constant 0 : i32
    return %arg0, %arg1 : i32, i32
  }
  func.func @transform_3(%arg0: i32, %arg1: i32, %arg2: i32) -> (i32, i32) {
    %c0_i32 = arith.constant 0 : i32
    return %arg0, %arg1 : i32, i32
  }
}

module attributes {stable_mosaic.version = 11 : i64} {
  func.func @_matmul_stats_kernel(%arg0: i32, %arg1: i32, %arg2: i32, %arg3: memref<256x1152xbf16, #tpu.memory_space<vmem>>, %arg4: memref<1152x128xbf16, #tpu.memory_space<vmem>>, %arg5: memref<256x128xbf16, #tpu.memory_space<vmem>>, %arg6: memref<8x128xf32, #tpu.memory_space<vmem>>, %arg7: memref<256x128xf32, #tpu.memory_space<vmem>>) attributes {dimension_semantics = [#tpu.dimension_semantics<parallel>, #tpu.dimension_semantics<parallel>, #tpu.dimension_semantics<arbitrary>], iteration_bounds = array<i64: 2, 1, 1>, scalar_prefetch = 0 : i64, scratch_operands = 1 : i64, tpu.core_type = #tpu.core_type<tc>, window_params = [{transform_indices = @transform_0, window_bounds = array<i64: 256, 1152>}, {transform_indices = @transform_1, window_bounds = array<i64: 1152, 128>}, {transform_indices = @transform_2, window_bounds = array<i64: 256, 128>}, {transform_indices = @transform_3, window_bounds = array<i64: 8, 128>}]} {
    %c0_i32 = arith.constant 0 : i32
    %0 = arith.cmpi eq, %arg2, %c0_i32 : i32
    %1 = arith.extui %0 : i1 to i32
    %c0_i32_0 = arith.constant 0 : i32
    %2 = arith.cmpi ne, %1, %c0_i32_0 : i32
    scf.if %2 {
      %cst_10 = arith.constant 0.000000e+00 : f32
      %12 = vector.broadcast %cst_10 : f32 to vector<256x128xf32>
      %c0_11 = arith.constant 0 : index
      %c0_12 = arith.constant 0 : index
      %13 = vector.load %arg7[%c0_11, %c0_12] : memref<256x128xf32, #tpu.memory_space<vmem>>, vector<256x128xf32>
      tpu.vector_store %arg7[%c0_11, %c0_12], %12 {strides = array<i32>} : memref<256x128xf32, #tpu.memory_space<vmem>>, vector<256x128xf32>,
    } else {
    }
    %c0 = arith.constant 0 : index
    %c0_1 = arith.constant 0 : index
    %3 = vector.load %arg7[%c0, %c0_1] : memref<256x128xf32, #tpu.memory_space<vmem>>, vector<256x128xf32>
    %c0_2 = arith.constant 0 : index
    %c0_3 = arith.constant 0 : index
    %4 = vector.load %arg3[%c0_2, %c0_3] : memref<256x1152xbf16, #tpu.memory_space<vmem>>, vector<256x1152xbf16>
    %c0_4 = arith.constant 0 : index
    %c0_5 = arith.constant 0 : index
    %5 = vector.load %arg4[%c0_4, %c0_5] : memref<1152x128xbf16, #tpu.memory_space<vmem>>, vector<1152x128xbf16>
    %cst = arith.constant dense<0.000000e+00> : vector<256x128xf32>
    %6 = tpu.matmul %4, %5, %cst {dimension_numbers = #tpu.dot_dimension_numbers<[1], [0], [0], [1], [0, 0, 1, 1], [], []>} : vector<256x1152xbf16>, vector<1152x128xbf16>, vector<256x128xf32> -> vector<256x128xf32>
    %7 = arith.addf %3, %6 : vector<256x128xf32>
    %c0_6 = arith.constant 0 : index
    %c0_7 = arith.constant 0 : index
    %8 = vector.load %arg7[%c0_6, %c0_7] : memref<256x128xf32, #tpu.memory_space<vmem>>, vector<256x128xf32>
    tpu.vector_store %arg7[%c0_6, %c0_7], %7 {strides = array<i32>} : memref<256x128xf32, #tpu.memory_space<vmem>>, vector<256x128xf32>,
    %c0_i32_8 = arith.constant 0 : i32
    %9 = arith.cmpi eq, %arg2, %c0_i32_8 : i32
    %10 = arith.extui %9 : i1 to i32
    %c0_i32_9 = arith.constant 0 : i32
    %11 = arith.cmpi ne, %10, %c0_i32_9 : i32
    scf.if %11 {
      %c0_10 = arith.constant 0 : index
      %c0_11 = arith.constant 0 : index
      %12 = vector.load %arg7[%c0_10, %c0_11] : memref<256x128xf32, #tpu.memory_space<vmem>>, vector<256x128xf32>
      %13 = arith.truncf %12 : vector<256x128xf32> to vector<256x128xbf16>
      %c0_12 = arith.constant 0 : index
      %c0_13 = arith.constant 0 : index
      %14 = vector.load %arg5[%c0_12, %c0_13] : memref<256x128xbf16, #tpu.memory_space<vmem>>, vector<256x128xbf16>
      tpu.vector_store %arg5[%c0_12, %c0_13], %13 {strides = array<i32>} : memref<256x128xbf16, #tpu.memory_space<vmem>>, vector<256x128xbf16>,
      %cst_14 = arith.constant dense<0.000000e+00> : vector<128xf32>
      %15 = vector.multi_reduction <add>, %12, %cst_14 [0] : vector<256x128xf32> to vector<128xf32>
      %16 = vector.shape_cast %15 : vector<128xf32> to vector<1x128xf32>
      %c0_15 = arith.constant 0 : index
      %c0_16 = arith.constant 0 : index
      %17 = vector.load %arg6[%c0_15, %c0_16] : memref<8x128xf32, #tpu.memory_space<vmem>>, vector<1x128xf32>
      tpu.vector_store %arg6[%c0_15, %c0_16], %16 {strides = array<i32>} : memref<8x128xf32, #tpu.memory_space<vmem>>, vector<1x128xf32>,
      %18 = arith.mulf %12, %12 : vector<256x128xf32>
      %cst_17 = arith.constant dense<0.000000e+00> : vector<128xf32>
      %19 = vector.multi_reduction <add>, %18, %cst_17 [0] : vector<256x128xf32> to vector<128xf32>
      %20 = vector.shape_cast %19 : vector<128xf32> to vector<1x128xf32>
      %c1 = arith.constant 1 : index
      %c0_18 = arith.constant 0 : index
      %21 = vector.load %arg6[%c1, %c0_18] : memref<8x128xf32, #tpu.memory_space<vmem>>, vector<1x128xf32>
      tpu.vector_store %arg6[%c1, %c0_18], %20 {strides = array<i32>} : memref<8x128xf32, #tpu.memory_space<vmem>>, vector<1x128xf32>,
    } else {
    }
    return
  }
  func.func @transform_0(%arg0: i32, %arg1: i32, %arg2: i32) -> (i32, i32) {
    %c0_i32 = arith.constant 0 : i32
    return %arg0, %arg2 : i32, i32
  }
  func.func @transform_1(%arg0: i32, %arg1: i32, %arg2: i32) -> (i32, i32) {
    %c0_i32 = arith.constant 0 : i32
    return %arg2, %arg1 : i32, i32
  }
  func.func @transform_2(%arg0: i32, %arg1: i32, %arg2: i32) -> (i32, i32) {
    %c0_i32 = arith.constant 0 : i32
    return %arg0, %arg1 : i32, i32
  }
  func.func @transform_3(%arg0: i32, %arg1: i32, %arg2: i32) -> (i32, i32) {
    %c0_i32 = arith.constant 0 : i32
    return %arg0, %arg1 : i32, i32
  }
}

module attributes {stable_mosaic.version = 11 : i64} {
  func.func @_bn_apply_kernel(%arg0: i32, %arg1: memref<512x256xbf16, #tpu.memory_space<vmem>>, %arg2: memref<1x256xf32, #tpu.memory_space<vmem>>, %arg3: memref<1x256xf32, #tpu.memory_space<vmem>>, %arg4: memref<512x256xbf16, #tpu.memory_space<vmem>>) attributes {dimension_semantics = [#tpu.dimension_semantics<parallel>], iteration_bounds = array<i64: 1>, scalar_prefetch = 0 : i64, scratch_operands = 0 : i64, tpu.core_type = #tpu.core_type<tc>, window_params = [{transform_indices = @transform_0, window_bounds = array<i64: 512, 256>}, {pipeline_mode = #tpu.pipeline_mode<synchronous>, transform_indices = @transform_1, window_bounds = array<i64: 1, 256>}, {pipeline_mode = #tpu.pipeline_mode<synchronous>, transform_indices = @transform_2, window_bounds = array<i64: 1, 256>}, {transform_indices = @transform_3, window_bounds = array<i64: 512, 256>}]} {
    %c0 = arith.constant 0 : index
    %c0_0 = arith.constant 0 : index
    %0 = vector.load %arg1[%c0, %c0_0] : memref<512x256xbf16, #tpu.memory_space<vmem>>, vector<512x256xbf16>
    %1 = arith.extf %0 : vector<512x256xbf16> to vector<512x256xf32>
    %c0_1 = arith.constant 0 : index
    %c0_2 = arith.constant 0 : index
    %2 = vector.load %arg2[%c0_1, %c0_2] : memref<1x256xf32, #tpu.memory_space<vmem>>, vector<1x256xf32>
    %3 = vector.broadcast %2 : vector<1x256xf32> to vector<512x256xf32>
    %4 = arith.subf %1, %3 : vector<512x256xf32>
    %c0_3 = arith.constant 0 : index
    %c0_4 = arith.constant 0 : index
    %5 = vector.load %arg3[%c0_3, %c0_4] : memref<1x256xf32, #tpu.memory_space<vmem>>, vector<1x256xf32>
    %6 = vector.broadcast %5 : vector<1x256xf32> to vector<512x256xf32>
    %7 = arith.mulf %4, %6 : vector<512x256xf32>
    %8 = arith.truncf %7 : vector<512x256xf32> to vector<512x256xbf16>
    %c0_5 = arith.constant 0 : index
    %c0_6 = arith.constant 0 : index
    %9 = vector.load %arg4[%c0_5, %c0_6] : memref<512x256xbf16, #tpu.memory_space<vmem>>, vector<512x256xbf16>
    tpu.vector_store %arg4[%c0_5, %c0_6], %8 {strides = array<i32>} : memref<512x256xbf16, #tpu.memory_space<vmem>>, vector<512x256xbf16>,
    return
  }
  func.func @transform_0(%arg0: i32) -> (i32, i32) {
    %c0_i32 = arith.constant 0 : i32
    %c0_i32_0 = arith.constant 0 : i32
    return %arg0, %c0_i32 : i32, i32
  }
  func.func @transform_1(%arg0: i32) -> (i32, i32) {
    %c0_i32 = arith.constant 0 : i32
    %c0_i32_0 = arith.constant 0 : i32
    %c0_i32_1 = arith.constant 0 : i32
    return %c0_i32, %c0_i32_0 : i32, i32
  }
  func.func @transform_2(%arg0: i32) -> (i32, i32) {
    %c0_i32 = arith.constant 0 : i32
    %c0_i32_0 = arith.constant 0 : i32
    %c0_i32_1 = arith.constant 0 : i32
    return %c0_i32, %c0_i32_0 : i32, i32
  }
  func.func @transform_3(%arg0: i32) -> (i32, i32) {
    %c0_i32 = arith.constant 0 : i32
    %c0_i32_0 = arith.constant 0 : i32
    return %arg0, %c0_i32 : i32, i32
  }
}

module attributes {stable_mosaic.version = 11 : i64} {
  func.func @_bn_apply_kernel(%arg0: i32, %arg1: memref<512x256xbf16, #tpu.memory_space<vmem>>, %arg2: memref<1x256xf32, #tpu.memory_space<vmem>>, %arg3: memref<1x256xf32, #tpu.memory_space<vmem>>, %arg4: memref<512x256xbf16, #tpu.memory_space<vmem>>, %arg5: memref<512x256xf32, #tpu.memory_space<vmem>>) attributes {dimension_semantics = [#tpu.dimension_semantics<parallel>], iteration_bounds = array<i64: 1>, scalar_prefetch = 0 : i64, scratch_operands = 0 : i64, tpu.core_type = #tpu.core_type<tc>, window_params = [{transform_indices = @transform_0, window_bounds = array<i64: 512, 256>}, {pipeline_mode = #tpu.pipeline_mode<synchronous>, transform_indices = @transform_1, window_bounds = array<i64: 1, 256>}, {pipeline_mode = #tpu.pipeline_mode<synchronous>, transform_indices = @transform_2, window_bounds = array<i64: 1, 256>}, {transform_indices = @transform_3, window_bounds = array<i64: 512, 256>}, {transform_indices = @transform_4, window_bounds = array<i64: 512, 256>}]} {
    %c0 = arith.constant 0 : index
    %c0_0 = arith.constant 0 : index
    %0 = vector.load %arg1[%c0, %c0_0] : memref<512x256xbf16, #tpu.memory_space<vmem>>, vector<512x256xbf16>
    %1 = arith.extf %0 : vector<512x256xbf16> to vector<512x256xf32>
    %c0_1 = arith.constant 0 : index
    %c0_2 = arith.constant 0 : index
    %2 = vector.load %arg2[%c0_1, %c0_2] : memref<1x256xf32, #tpu.memory_space<vmem>>, vector<1x256xf32>
    %3 = vector.broadcast %2 : vector<1x256xf32> to vector<512x256xf32>
    %4 = arith.subf %1, %3 : vector<512x256xf32>
    %c0_3 = arith.constant 0 : index
    %c0_4 = arith.constant 0 : index
    %5 = vector.load %arg3[%c0_3, %c0_4] : memref<1x256xf32, #tpu.memory_space<vmem>>, vector<1x256xf32>
    %6 = vector.broadcast %5 : vector<1x256xf32> to vector<512x256xf32>
    %7 = arith.mulf %4, %6 : vector<512x256xf32>
    %c0_5 = arith.constant 0 : index
    %c0_6 = arith.constant 0 : index
    %8 = vector.load %arg4[%c0_5, %c0_6] : memref<512x256xbf16, #tpu.memory_space<vmem>>, vector<512x256xbf16>
    %9 = arith.extf %8 : vector<512x256xbf16> to vector<512x256xf32>
    %10 = arith.addf %7, %9 : vector<512x256xf32>
    %cst = arith.constant 0.000000e+00 : f32
    %11 = vector.broadcast %cst : f32 to vector<512x256xf32>
    %12 = arith.maximumf %10, %11 : vector<512x256xf32>
    %c0_7 = arith.constant 0 : index
    %c0_8 = arith.constant 0 : index
    %13 = vector.load %arg5[%c0_7, %c0_8] : memref<512x256xf32, #tpu.memory_space<vmem>>, vector<512x256xf32>
    tpu.vector_store %arg5[%c0_7, %c0_8], %12 {strides = array<i32>} : memref<512x256xf32, #tpu.memory_space<vmem>>, vector<512x256xf32>,
    return
  }
  func.func @transform_0(%arg0: i32) -> (i32, i32) {
    %c0_i32 = arith.constant 0 : i32
    %c0_i32_0 = arith.constant 0 : i32
    return %arg0, %c0_i32 : i32, i32
  }
  func.func @transform_1(%arg0: i32) -> (i32, i32) {
    %c0_i32 = arith.constant 0 : i32
    %c0_i32_0 = arith.constant 0 : i32
    %c0_i32_1 = arith.constant 0 : i32
    return %c0_i32, %c0_i32_0 : i32, i32
  }
  func.func @transform_2(%arg0: i32) -> (i32, i32) {
    %c0_i32 = arith.constant 0 : i32
    %c0_i32_0 = arith.constant 0 : i32
    %c0_i32_1 = arith.constant 0 : i32
    return %c0_i32, %c0_i32_0 : i32, i32
  }
  func.func @transform_3(%arg0: i32) -> (i32, i32) {
    %c0_i32 = arith.constant 0 : i32
    %c0_i32_0 = arith.constant 0 : i32
    return %arg0, %c0_i32 : i32, i32
  }
  func.func @transform_4(%arg0: i32) -> (i32, i32) {
    %c0_i32 = arith.constant 0 : i32
    %c0_i32_0 = arith.constant 0 : i32
    return %arg0, %c0_i32 : i32, i32
  }
}

</mosaic_0001>

<llo_original>
// kernel: bottleneck_forward.10
$region0: #{bottleneck_forward.10}
  #allocation0 [shape = 'u32[]', space=smem, size = 0x4, offset = 0x4, fixed_abs, tag = 'smem constant byte address 0x4 - core index']
  #allocation1 [shape = 'u32[144,128]{1,0:T(1,128)}', space=vmem, size = 0x12000, scoped, tag = 'internal scratch']
  #allocation2 [shape = 'f32[256,128]{1,0:T(8,128)}', space=vmem, size = 0x20000, scoped, tag = 'scratch operand']
  %s0 = inlined_call_operand.hbm [shape: bf16[512,128], index: 0, kind: input, shape index: {}]
  %s1 = inlined_call_operand.hbm [shape: bf16[128,128], index: 1, kind: input, shape index: {}]
  %s2 = inlined_call_operand.hbm [shape: bf16[512,128], index: 2, kind: output, shape index: {0}]
  %s3 = inlined_call_operand.hbm [shape: f32[16,128], index: 3, kind: output, shape index: {1}]
  %4 = xla_tuple %s2, %s3
  %s5 = sld [smem:[#allocation0]]
  $region65: #{bottleneck_forward.10} parent=0
    _
  %s7 = ssub.s32 1, %s5
  %s8 = scalar_select 0, %s7, %s5
  $region1: #{bottleneck_forward.10} parent=0
    #allocation3 [shape = 'u8[131072]{0}', space=vmem, size = 0x20000, scoped, tag = 'input window, operand 0']
    #allocation4 [shape = 's32[2]{0}', space=sflag, size = 0x8, scoped, tag = 'scoped memory for bottleneck_forward.10']
    #allocation5 [shape = 's32[2]{0}', space=sflag, size = 0x8, scoped, tag = 'scoped memory for bottleneck_forward.10']
    #allocation6 [shape = 'u8[32768]{0}', space=vmem, size = 0x8000, scoped, tag = 'input window, operand 1, single buffered']
    #allocation7 [shape = 's32[1]{0}', space=sflag, size = 0x4, scoped, tag = 'scoped memory for bottleneck_forward.10']
    #allocation8 [shape = 'u8[131072]{0}', space=vmem, size = 0x20000, scoped, tag = 'output window, operand 0']
    #allocation9 [shape = 'u8[8192]{0}', space=vmem, size = 0x2000, scoped, tag = 'output window, operand 1']
    #allocation10 [shape = 's32[2]{0}', space=sflag, size = 0x8, scoped, tag = 'scoped memory for bottleneck_forward.10']
    %9 = vsyncpa [#allocation4], 0
    %s10 = scalar_lea.sflag [#allocation4], 1
    %11 = vsyncpa %s10, 0
    %12 = vsyncpa [#allocation7], 0
    %13 = vsyncpa [#allocation5], 0
    %s14 = scalar_lea.sflag [#allocation5], 1
    %15 = vsyncpa %s14, 0
    %16 = vsyncpa [#allocation10], 0
    %s17 = scalar_lea.sflag [#allocation10], 1
    %18 = vsyncpa %s17, 0
    loop: start=0, step=1, limit=4
    $region2: #{bottleneck_forward.10} parent=1 // loop_pre_header
      _
    $region3: #{bottleneck_forward.10} parent=1 // loop_header
      %s20 = sphi 0, %s24
      %p21 = scmp.ge.s32.totalorder %s20, 4
      %s27 = sphi 0, %s46
      %s28 = sphi 0, %s42
      %s29 = sphi 0, %s38
      %s30 = sphi 0, %s27
      %s31 = sphi 0, %s28
      %s32 = sphi 0, %s29
      %s33 = sphi 0, %s30
      %s34 = sphi 0, %s31
      %s35 = sphi 0, %s32
      %s51 = sphi 0, %s53
      %s54 = sphi 0, %s51
      %s55 = sphi 0, %s54
      %s71 = sphi 0, %s55
      %s79 = sphi 0, %s81
      %s82 = sphi 0, %s79
      %s83 = sphi 0, %s82
      %s99 = sphi 0, %s83
      %s107 = sphi 0, %s109
      %s110 = sphi 0, %s107
      %s111 = sphi 0, %s110
      %s127 = sphi 0, %s111
      %s135 = sphi 0, %s137
      %s138 = sphi 0, %s135
      %s139 = sphi 0, %s138
      %s155 = sphi 0, %s139
    $region4: #{bottleneck_forward.10} parent=1 // loop_header_branch
      %23 = sbr.rel (%p21) target = $region8
    $region5: #{bottleneck_forward.10} parent=1 // loop_body
      %s25 = ssub.s32 %s20, 1
      %s26 = ssub.s32 %s20, 2
      %s36 = sadd.s32 1, %s29
      %p37 = scmp.ge.s32.totalorder %s36, 1
      %s38 = scalar_select %p37, 0, %s36
      %s39 = sadd.s32 1, %s28
      %s40 = scalar_select %p37, %s39, %s28
      %p41 = scmp.ge.s32.totalorder %s40, 1
      %s42 = scalar_select %p41, 0, %s40
      %s43 = sadd.s32 1, %s27
      %s44 = scalar_select %p41, %s43, %s27
      %p45 = scmp.ge.s32.totalorder %s44, 2
      %s46 = scalar_select %p45, 0, %s44
      %s47 = ssub.s32 %s27, %s46
      %s48 = ssub.s32 %s29, %s38
      %s49 = sor.u32 %s47, %s48
      %p50 = scmp.eq.s32.totalorder %s49, 0
      %s52 = sadd.s32 %s51, 1
      %s53 = scalar_select %p50, %s51, %s52
      %p56 = pneg %p50
      %p57 = scmp.eq.s32.totalorder %s20, 1
      %p58 = por %p56, %p57
      %p59 = scmp.ne.s32.totalorder %s51, %s54
      %p60 = scmp.eq.s32.totalorder %s20, 0
      %p61 = por %p59, %p60
      %p62 = scmp.ne.s32.totalorder %s51, %s54
      %p63 = scmp.eq.s32.totalorder %s25, 1
      %p64 = por %p62, %p63
      %p65 = scmp.ne.s32.totalorder %s54, %s55
      %p66 = scmp.eq.s32.totalorder %s25, 0
      %p67 = por %p65, %p66
      %p68 = scmp.ne.s32.totalorder %s54, %s55
      %p69 = scmp.eq.s32.totalorder %s26, 1
      %p70 = por %p68, %p69
      %p72 = scmp.ne.s32.totalorder %s55, %s71
      %p73 = scmp.eq.s32.totalorder %s26, 0
      %p74 = por %p72, %p73
      %s75 = ssub.s32 %s29, %s38
      %s76 = ssub.s32 %s28, %s42
      %s77 = sor.u32 %s75, %s76
      %p78 = scmp.eq.s32.totalorder %s77, 0
      %s80 = sadd.s32 %s79, 1
      %s81 = scalar_select %p78, %s79, %s80
      %p84 = pneg %p78
      %p85 = scmp.eq.s32.totalorder %s20, 1
      %p86 = por %p84, %p85
      %p87 = scmp.ne.s32.totalorder %s79, %s82
      %p88 = scmp.eq.s32.totalorder %s20, 0
      %p89 = por %p87, %p88
      %p90 = scmp.ne.s32.totalorder %s79, %s82
      %p91 = scmp.eq.s32.totalorder %s25, 1
      %p92 = por %p90, %p91
      %p93 = scmp.ne.s32.totalorder %s82, %s83
      %p94 = scmp.eq.s32.totalorder %s25, 0
      %p95 = por %p93, %p94
      %p96 = scmp.ne.s32.totalorder %s82, %s83
      %p97 = scmp.eq.s32.totalorder %s26, 1
      %p98 = por %p96, %p97
      %p100 = scmp.ne.s32.totalorder %s83, %s99
      %p101 = scmp.eq.s32.totalorder %s26, 0
      %p102 = por %p100, %p101
      %s103 = ssub.s32 %s27, %s46
      %s104 = ssub.s32 %s28, %s42
      %s105 = sor.u32 %s103, %s104
      %p106 = scmp.eq.s32.totalorder %s105, 0
      %s108 = sadd.s32 %s107, 1
      %s109 = scalar_select %p106, %s107, %s108
      %p112 = pneg %p106
      %p113 = scmp.eq.s32.totalorder %s20, 1
      %p114 = por %p112, %p113
      %p115 = scmp.ne.s32.totalorder %s107, %s110
      %p116 = scmp.eq.s32.totalorder %s20, 0
      %p117 = por %p115, %p116
      %p118 = scmp.ne.s32.totalorder %s107, %s110
      %p119 = scmp.eq.s32.totalorder %s25, 1
      %p120 = por %p118, %p119
      %p121 = scmp.ne.s32.totalorder %s110, %s111
      %p122 = scmp.eq.s32.totalorder %s25, 0
      %p123 = por %p121, %p122
      %p124 = scmp.ne.s32.totalorder %s110, %s111
      %p125 = scmp.eq.s32.totalorder %s26, 1
      %p126 = por %p124, %p125
      %p128 = scmp.ne.s32.totalorder %s111, %s127
      %p129 = scmp.eq.s32.totalorder %s26, 0
      %p130 = por %p128, %p129
      %s131 = ssub.s32 %s27, %s46
      %s132 = ssub.s32 %s28, %s42
      %s133 = sor.u32 %s131, %s132
      %p134 = scmp.eq.s32.totalorder %s133, 0
      %s136 = sadd.s32 %s135, 1
      %s137 = scalar_select %p134, %s135, %s136
      %p140 = pneg %p134
      %p141 = scmp.eq.s32.totalorder %s20, 1
      %p142 = por %p140, %p141
      %p143 = scmp.ne.s32.totalorder %s135, %s138
      %p144 = scmp.eq.s32.totalorder %s20, 0
      %p145 = por %p143, %p144
      %p146 = scmp.ne.s32.totalorder %s135, %s138
      %p147 = scmp.eq.s32.totalorder %s25, 1
      %p148 = por %p146, %p147
      %p149 = scmp.ne.s32.totalorder %s138, %s139
      %p150 = scmp.eq.s32.totalorder %s25, 0
      %p151 = por %p149, %p150
      %p152 = scmp.ne.s32.totalorder %s138, %s139
      %p153 = scmp.eq.s32.totalorder %s26, 1
      %p154 = por %p152, %p153
      %p156 = scmp.ne.s32.totalorder %s139, %s155
      %p157 = scmp.eq.s32.totalorder %s26, 0
      %p158 = por %p156, %p157
      %p159 = scmp.le.s32.totalorder 1, %s20
      %p160 = scmp.lt.s32.totalorder %s20, 3
      %p161 = pnand %p159, %p160
      %p162 = pneg %p161
      // Predicated region
      $region9: #{bottleneck_forward.10} parent=5 // pred_check
        _
      $region10: #{bottleneck_forward.10} parent=5 // pred_check_branch
        %164 = sbr.rel (%p161) target = $region12
      $region11: #{bottleneck_forward.10} parent=5 // pred_region
        %s165 = ssub.s32 %s20, 1
        // Predicated region
        $region13: #{bottleneck_forward.10} parent=11 // pred_check
          %p166 = pneg %p95
        $region14: #{bottleneck_forward.10} parent=11 // pred_check_branch
          %168 = sbr.rel (%p166) target = $region16
        $region15: #{bottleneck_forward.10} parent=11 // pred_region
          %s169 = smul.u32 16, %s32
          %s171 = ssub.s32 1024, 1024
          %172 = vsyncadd [#allocation7], %s171
          %s173 = sadd.s32 %s31, %s169
          %s174 = smul.addr %s173, 64
          %s175 = scalar_lea.hbm %s1, %s174
          %s176 = sshll.u32 [#allocation6], 4
          %s177 = int_to_ptr.vmem [resolvable:$true] %s176
          %182 = dma.hbm_to_vmem [thread:$0]  %s175, 1024, %s177, [#allocation7], 64, 64, 4
        $region16: #{bottleneck_forward.10} parent=11 // pred_fallthru
          _
      $region12: #{bottleneck_forward.10} parent=5 // pred_fallthru
        _
      %p183 = scmp.lt.s32.totalorder %s20, 2
      // Predicated region
      $region17: #{bottleneck_forward.10} parent=5 // pred_check
        %p184 = pneg %p183
      $region18: #{bottleneck_forward.10} parent=5 // pred_check_branch
        %186 = sbr.rel (%p184) target = $region20
      $region19: #{bottleneck_forward.10} parent=5 // pred_region
        // Predicated region
        $region21: #{bottleneck_forward.10} parent=19 // pred_check
          %p187 = pneg %p61
        $region22: #{bottleneck_forward.10} parent=19 // pred_check_branch
          %189 = sbr.rel (%p187) target = $region24
        $region23: #{bottleneck_forward.10} parent=19 // pred_region
          %s190 = sand.u32 %s51, 1
          %s191 = scalar_lea.sflag [#allocation4], %s190
          %s192 = sand.u32 %s51, 1
          %s193 = smul.addr %s192, 128
          %s194 = scalar_lea.vmem [#allocation3], %s193
          %s195 = smul.u32 32, %s27
          %s197 = ssub.s32 2048, 2048
          %198 = vsyncadd %s191, %s197
          %s199 = sadd.s32 %s29, %s195
          %s200 = smul.addr %s199, 64
          %s201 = scalar_lea.hbm %s0, %s200
          %s202 = sshll.u32 %s194, 4
          %s203 = int_to_ptr.vmem [resolvable:$true] %s202
          %208 = dma.hbm_to_vmem [thread:$0]  %s201, 2048, %s203, %s191, 64, 64, 4
        $region24: #{bottleneck_forward.10} parent=19 // pred_fallthru
          _
      $region20: #{bottleneck_forward.10} parent=5 // pred_fallthru
        _
      %p209 = scmp.le.s32.totalorder 1, %s20
      %p210 = scmp.lt.s32.totalorder %s20, 3
      %p211 = pnand %p209, %p210
      %p212 = pneg %p211
      // Predicated region
      $region25: #{bottleneck_forward.10} parent=5 // pred_check
        _
      $region26: #{bottleneck_forward.10} parent=5 // pred_check_branch
        %214 = sbr.rel (%p211) target = $region28
      $region27: #{bottleneck_forward.10} parent=5 // pred_region
        %s215 = ssub.s32 %s20, 1
        %s216 = sand.u32 %s54, 1
        %s217 = scalar_lea.sflag [#allocation4], %s216
        %s218 = sand.u32 %s54, 1
        %s219 = smul.addr %s218, 128
        %s220 = scalar_lea.vmem [#allocation3], %s219
        // Predicated region
        $region29: #{bottleneck_forward.10} parent=27 // pred_check
          %p221 = pneg %p67
        $region30: #{bottleneck_forward.10} parent=27 // pred_check_branch
          %223 = sbr.rel (%p221) target = $region32
        $region31: #{bottleneck_forward.10} parent=27 // pred_region
          %224 = dma.done %s217, 2048
        $region32: #{bottleneck_forward.10} parent=27 // pred_fallthru
          _
        // Predicated region
        $region33: #{bottleneck_forward.10} parent=27 // pred_check
          %p225 = pneg %p95
        $region34: #{bottleneck_forward.10} parent=27 // pred_check_branch
          %227 = sbr.rel (%p225) target = $region36
        $region35: #{bottleneck_forward.10} parent=27 // pred_region
          %228 = dma.done [#allocation7], 1024
        $region36: #{bottleneck_forward.10} parent=27 // pred_fallthru
          _
        %s229 = sand.u32 %s54, 1
        %s230 = scalar_lea.sflag [#allocation4], %s229
        %s231 = sand.u32 %s54, 1
        %s232 = smul.addr %s231, 128
        %s233 = scalar_lea.vmem [#allocation3], %s232
        %p234 = pneg %p67
        %p235 = pneg %p64
        %p236 = pneg %p95
        %p237 = pneg %p92
        %p238 = pneg %p123
        %p239 = pneg %p120
        %s240 = sand.u32 %s110, 1
        %s241 = scalar_lea.sflag [#allocation5], %s240
        %s242 = sand.u32 %s110, 1
        %s243 = smul.addr %s242, 128
        %s244 = scalar_lea.vmem [#allocation8], %s243
        %p245 = pneg %p151
        %p246 = pneg %p148
        %s247 = sand.u32 %s138, 1
        %s248 = scalar_lea.sflag [#allocation10], %s247
        %s249 = sand.u32 %s138, 1
        %s250 = smul.addr %s249, 8
        %s251 = scalar_lea.vmem [#allocation9], %s250
        %s252 = smul.u32 32, %s30
        %s253 = smul.u32 16, %s32
        %s254 = smul.u32 32, %s30
        %p256 = scmp.eq.s32.totalorder %s32, 0
        // Predicated region
        $region37: #{bottleneck_forward.10} parent=27 // pred_check
          %p257 = pneg %p256
        $region38: #{bottleneck_forward.10} parent=27 // pred_check_branch
          %259 = sbr.rel (%p257) target = $region40
        $region39: #{bottleneck_forward.10} parent=27 // pred_region
          %260 = vst [vmem:[#allocation2] sm:$0xff] 0.0
          %261 = vst [vmem:[#allocation2 + $0x8] sm:$0xff] 0.0
          %262 = vst [vmem:[#allocation2 + $0x10] sm:$0xff] 0.0
          %263 = vst [vmem:[#allocation2 + $0x18] sm:$0xff] 0.0
          %264 = vst [vmem:[#allocation2 + $0x20] sm:$0xff] 0.0
          %265 = vst [vmem:[#allocation2 + $0x28] sm:$0xff] 0.0
          %266 = vst [vmem:[#allocation2 + $0x30] sm:$0xff] 0.0
          %267 = vst [vmem:[#allocation2 + $0x38] sm:$0xff] 0.0
          %268 = vst [vmem:[#allocation2 + $0x40] sm:$0xff] 0.0
          %269 = vst [vmem:[#allocation2 + $0x48] sm:$0xff] 0.0
          %270 = vst [vmem:[#allocation2 + $0x50] sm:$0xff] 0.0
          %271 = vst [vmem:[#allocation2 + $0x58] sm:$0xff] 0.0
          %272 = vst [vmem:[#allocation2 + $0x60] sm:$0xff] 0.0
          %273 = vst [vmem:[#allocation2 + $0x68] sm:$0xff] 0.0
          %274 = vst [vmem:[#allocation2 + $0x70] sm:$0xff] 0.0
          %275 = vst [vmem:[#allocation2 + $0x78] sm:$0xff] 0.0
          %276 = vst [vmem:[#allocation2 + $0x80] sm:$0xff] 0.0
          %277 = vst [vmem:[#allocation2 + $0x88] sm:$0xff] 0.0
          %278 = vst [vmem:[#allocation2 + $0x90] sm:$0xff] 0.0
          %279 = vst [vmem:[#allocation2 + $0x98] sm:$0xff] 0.0
          %280 = vst [vmem:[#allocation2 + $0xa0] sm:$0xff] 0.0
          %281 = vst [vmem:[#allocation2 + $0xa8] sm:$0xff] 0.0
          %282 = vst [vmem:[#allocation2 + $0xb0] sm:$0xff] 0.0
          %283 = vst [vmem:[#allocation2 + $0xb8] sm:$0xff] 0.0
          %284 = vst [vmem:[#allocation2 + $0xc0] sm:$0xff] 0.0
          %285 = vst [vmem:[#allocation2 + $0xc8] sm:$0xff] 0.0
          %286 = vst [vmem:[#allocation2 + $0xd0] sm:$0xff] 0.0
          %287 = vst [vmem:[#allocation2 + $0xd8] sm:$0xff] 0.0
          %288 = vst [vmem:[#allocation2 + $0xe0] sm:$0xff] 0.0
          %289 = vst [vmem:[#allocation2 + $0xe8] sm:$0xff] 0.0
          %290 = vst [vmem:[#allocation2 + $0xf0] sm:$0xff] 0.0
          %291 = vst [vmem:[#allocation2 + $0xf8] sm:$0xff] 0.0
        $region40: #{bottleneck_forward.10} parent=27 // pred_fallthru
          _
        %v292 = vld [vmem:[#allocation2] sm:$0xff]
        %v293 = vld [vmem:[#allocation2 + $0x8] sm:$0xff]
        %v294 = vld [vmem:[#allocation2 + $0x10] sm:$0xff]
        %v295 = vld [vmem:[#allocation2 + $0x18] sm:$0xff]
        %v296 = vld [vmem:[#allocation2 + $0x20] sm:$0xff]
        %v297 = vld [vmem:[#allocation2 + $0x28] sm:$0xff]
        %v298 = vld [vmem:[#allocation2 + $0x30] sm:$0xff]
        %v299 = vld [vmem:[#allocation2 + $0x38] sm:$0xff]
        %v300 = vld [vmem:[#allocation2 + $0x40] sm:$0xff]
        %v301 = vld [vmem:[#allocation2 + $0x48] sm:$0xff]
        %v302 = vld [vmem:[#allocation2 + $0x50] sm:$0xff]
        %v303 = vld [vmem:[#allocation2 + $0x58] sm:$0xff]
        %v304 = vld [vmem:[#allocation2 + $0x60] sm:$0xff]
        %v305 = vld [vmem:[#allocation2 + $0x68] sm:$0xff]
        %v306 = vld [vmem:[#allocation2 + $0x70] sm:$0xff]
        %v307 = vld [vmem:[#allocation2 + $0x78] sm:$0xff]
        %v308 = vld [vmem:[#allocation2 + $0x80] sm:$0xff]
        %v309 = vld [vmem:[#allocation2 + $0x88] sm:$0xff]
        %v310 = vld [vmem:[#allocation2 + $0x90] sm:$0xff]
        %v311 = vld [vmem:[#allocation2 + $0x98] sm:$0xff]
        %v312 = vld [vmem:[#allocation2 + $0xa0] sm:$0xff]
        %v313 = vld [vmem:[#allocation2 + $0xa8] sm:$0xff]
        %v314 = vld [vmem:[#allocation2 + $0xb0] sm:$0xff]
        %v315 = vld [vmem:[#allocation2 + $0xb8] sm:$0xff]
        %v316 = vld [vmem:[#allocation2 + $0xc0] sm:$0xff]
        %v317 = vld [vmem:[#allocation2 + $0xc8] sm:$0xff]
        %v318 = vld [vmem:[#allocation2 + $0xd0] sm:$0xff]
        %v319 = vld [vmem:[#allocation2 + $0xd8] sm:$0xff]
        %v320 = vld [vmem:[#allocation2 + $0xe0] sm:$0xff]
        %v321 = vld [vmem:[#allocation2 + $0xe8] sm:$0xff]
        %v322 = vld [vmem:[#allocation2 + $0xf0] sm:$0xff]
        %v323 = vld [vmem:[#allocation2 + $0xf8] sm:$0xff]
        %v324 = vld [vmem:[%s220] sm:$0xf]
        %v325 = vld [vmem:[%s220 + $0x4] sm:$0xf]
        %v326 = vld [vmem:[%s220 + $0x8] sm:$0xf]
        %v327 = vld [vmem:[%s220 + $0xc] sm:$0xf]
        %v328 = vld [vmem:[%s220 + $0x10] sm:$0xf]
        %v329 = vld [vmem:[%s220 + $0x14] sm:$0xf]
        %v330 = vld [vmem:[%s220 + $0x18] sm:$0xf]
        %v331 = vld [vmem:[%s220 + $0x1c] sm:$0xf]
        %v332 = vld [vmem:[%s220 + $0x20] sm:$0xf]
        %v333 = vld [vmem:[%s220 + $0x24] sm:$0xf]
        %v334 = vld [vmem:[%s220 + $0x28] sm:$0xf]
        %v335 = vld [vmem:[%s220 + $0x2c] sm:$0xf]
        %v336 = vld [vmem:[%s220 + $0x30] sm:$0xf]
        %v337 = vld [vmem:[%s220 + $0x34] sm:$0xf]
        %v338 = vld [vmem:[%s220 + $0x38] sm:$0xf]
        %v339 = vld [vmem:[%s220 + $0x3c] sm:$0xf]
        %v340 = vld [vmem:[%s220 + $0x40] sm:$0xf]
        %v341 = vld [vmem:[%s220 + $0x44] sm:$0xf]
        %v342 = vld [vmem:[%s220 + $0x48] sm:$0xf]
        %v343 = vld [vmem:[%s220 + $0x4c] sm:$0xf]
        %v344 = vld [vmem:[%s220 + $0x50] sm:$0xf]
        %v345 = vld [vmem:[%s220 + $0x54] sm:$0xf]
        %v346 = vld [vmem:[%s220 + $0x58] sm:$0xf]
        %v347 = vld [vmem:[%s220 + $0x5c] sm:$0xf]
        %v348 = vld [vmem:[%s220 + $0x60] sm:$0xf]
        %v349 = vld [vmem:[%s220 + $0x64] sm:$0xf]
        %v350 = vld [vmem:[%s220 + $0x68] sm:$0xf]
        %v351 = vld [vmem:[%s220 + $0x6c] sm:$0xf]
        %v352 = vld [vmem:[%s220 + $0x70] sm:$0xf]
        %v353 = vld [vmem:[%s220 + $0x74] sm:$0xf]
        %v354 = vld [vmem:[%s220 + $0x78] sm:$0xf]
        %v355 = vld [vmem:[%s220 + $0x7c] sm:$0xf]
        %v356 = vld [vmem:[#allocation6] sm:$0xf]
        %v357 = vld [vmem:[#allocation6 + $0x4] sm:$0xf]
        %v358 = vld [vmem:[#allocation6 + $0x8] sm:$0xf]
        %v359 = vld [vmem:[#allocation6 + $0xc] sm:$0xf]
        %v360 = vld [vmem:[#allocation6 + $0x10] sm:$0xf]
        %v361 = vld [vmem:[#allocation6 + $0x14] sm:$0xf]
        %v362 = vld [vmem:[#allocation6 + $0x18] sm:$0xf]
        %v363 = vld [vmem:[#allocation6 + $0x1c] sm:$0xf]
        %v364 = vld [vmem:[#allocation6 + $0x20] sm:$0xf]
        %v365 = vld [vmem:[#allocation6 + $0x24] sm:$0xf]
        %v366 = vld [vmem:[#allocation6 + $0x28] sm:$0xf]
        %v367 = vld [vmem:[#allocation6 + $0x2c] sm:$0xf]
        %v368 = vld [vmem:[#allocation6 + $0x30] sm:$0xf]
        %v369 = vld [vmem:[#allocation6 + $0x34] sm:$0xf]
        %v370 = vld [vmem:[#allocation6 + $0x38] sm:$0xf]
        %v371 = vld [vmem:[#allocation6 + $0x3c] sm:$0xf]
        %v404 = vunpack.c.l.b16 %v324
        %v405 = vunpack.c.l.b16 %v325
        %v406 = vunpack.c.l.b16 %v326
        %v407 = vunpack.c.l.b16 %v327
        %v408 = vunpack.c.l.b16 %v328
        %v409 = vunpack.c.l.b16 %v329
        %v410 = vunpack.c.l.b16 %v330
        %v411 = vunpack.c.l.b16 %v331
        %v412 = vunpack.c.l.b16 %v332
        %v413 = vunpack.c.l.b16 %v333
        %v414 = vunpack.c.l.b16 %v334
        %v415 = vunpack.c.l.b16 %v335
        %v416 = vunpack.c.l.b16 %v336
        %v417 = vunpack.c.l.b16 %v337
        %v418 = vunpack.c.l.b16 %v338
        %v419 = vunpack.c.l.b16 %v339
        %v420 = vunpack.c.l.b16 %v340
        %v421 = vunpack.c.l.b16 %v341
        %v422 = vunpack.c.l.b16 %v342
        %v423 = vunpack.c.l.b16 %v343
        %v424 = vunpack.c.l.b16 %v344
        %v425 = vunpack.c.l.b16 %v345
        %v426 = vunpack.c.l.b16 %v346
        %v427 = vunpack.c.l.b16 %v347
        %v428 = vunpack.c.l.b16 %v348
        %v429 = vunpack.c.l.b16 %v349
        %v430 = vunpack.c.l.b16 %v350
        %v431 = vunpack.c.l.b16 %v351
        %v432 = vunpack.c.l.b16 %v352
        %v433 = vunpack.c.l.b16 %v353
        %v434 = vunpack.c.l.b16 %v354
        %v435 = vunpack.c.l.b16 %v355
        %v436 = vpack.c.b16 %v405, %v404
        %v437 = vpack.c.b16 %v407, %v406
        %v438 = vpack.c.b16 %v409, %v408
        %v439 = vpack.c.b16 %v411, %v410
        %v440 = vpack.c.b16 %v413, %v412
        %v441 = vpack.c.b16 %v415, %v414
        %v442 = vpack.c.b16 %v417, %v416
        %v443 = vpack.c.b16 %v419, %v418
        %v444 = vpack.c.b16 %v421, %v420
        %v445 = vpack.c.b16 %v423, %v422
        %v446 = vpack.c.b16 %v425, %v424
        %v447 = vpack.c.b16 %v427, %v426
        %v448 = vpack.c.b16 %v429, %v428
        %v449 = vpack.c.b16 %v431, %v430
        %v450 = vpack.c.b16 %v433, %v432
        %v451 = vpack.c.b16 %v435, %v434
        %v484 = vunpack.c.l.b16 %v356
        %v485 = vunpack.c.l.b16 %v357
        %v486 = vunpack.c.l.b16 %v358
        %v487 = vunpack.c.l.b16 %v359
        %v488 = vunpack.c.l.b16 %v360
        %v489 = vunpack.c.l.b16 %v361
        %v490 = vunpack.c.l.b16 %v362
        %v491 = vunpack.c.l.b16 %v363
        %v492 = vunpack.c.l.b16 %v364
        %v493 = vunpack.c.l.b16 %v365
        %v494 = vunpack.c.l.b16 %v366
        %v495 = vunpack.c.l.b16 %v367
        %v496 = vunpack.c.l.b16 %v368
        %v497 = vunpack.c.l.b16 %v369
        %v498 = vunpack.c.l.b16 %v370
        %v499 = vunpack.c.l.b16 %v371
        %v500 = vpack.c.b16 %v485, %v484
        %v501 = vpack.c.b16 %v487, %v486
        %v502 = vpack.c.b16 %v489, %v488
        %v503 = vpack.c.b16 %v491, %v490
        %v504 = vpack.c.b16 %v493, %v492
        %v505 = vpack.c.b16 %v495, %v494
        %v506 = vpack.c.b16 %v497, %v496
        %v507 = vpack.c.b16 %v499, %v498
        %516 = vmatprep.subr.bf16.mxu0 0
        %517 = vmatpush1.bf16.msra.mxu0 %v500
        %518 = vmatprep.subr.bf16.mxu0 0
        %519 = vmatpush1.bf16.msra.mxu0 %v501
        %520 = vmatprep.subr.bf16.mxu0 0
        %521 = vmatpush1.bf16.msra.mxu0 %v502
        %522 = vmatprep.subr.bf16.mxu0 0
        %523 = vmatpush1.bf16.msra.mxu0 %v503
        %524 = vmatprep.subr.bf16.mxu0 0
        %525 = vmatpush1.bf16.msra.mxu0 %v504
        %526 = vmatprep.subr.bf16.mxu0 0
        %527 = vmatpush1.bf16.msra.mxu0 %v505
        %528 = vmatprep.subr.bf16.mxu0 0
        %529 = vmatpush1.bf16.msra.mxu0 %v506
        %530 = vmatprep.subr.bf16.mxu0 0
        %531 = vmatpush1.bf16.msra.mxu0 %v507
        %532 = vmatprep.subr.bf16.mxu0 0
        %533 = vmatpush1.bf16.msra.mxu0 0
        %534 = vmatprep.subr.bf16.mxu0 0
        %535 = vmatpush1.bf16.msra.mxu0 0
        %536 = vmatprep.subr.bf16.mxu0 0
        %537 = vmatpush1.bf16.msra.mxu0 0
        %538 = vmatprep.subr.bf16.mxu0 0
        %539 = vmatpush1.bf16.msra.mxu0 0
        %540 = vmatprep.subr.bf16.mxu0 0
        %541 = vmatpush1.bf16.msra.mxu0 0
        %542 = vmatprep.subr.bf16.mxu0 0
        %543 = vmatpush1.bf16.msra.mxu0 0
        %544 = vmatprep.subr.bf16.mxu0 0
        %545 = vmatpush1.bf16.msra.mxu0 0
        %546 = vmatprep.subr.bf16.mxu0 0
        %547 = vmatpush1.bf16.msra.mxu0 0
        %548 = vmatprep.mubr.bf16.mxu0 0
        %549 = vmatmul.mubr.bf16.gmra.mrb[0].mxu0 %v436
        %v550 = vpop.f32.mrb[0].mxu0
        %v551 = vadd.f32 0.0, %v550
        %v552 = vpop.f32.mrb[0].mxu0
        %v553 = vpop.f32.mrb[0].mxu0
        %v554 = vadd.f32 0.0, %v553
        %v555 = vpop.f32.mrb[0].mxu0
        %556 = vmatprep.mubr.bf16.mxu0 0
        %557 = vmatmul.mubr.bf16.gmra.mrb[0].mxu0 %v437
        %v558 = vpop.f32.mrb[0].mxu0
        %v559 = vadd.f32 0.0, %v558
        %v560 = vpop.f32.mrb[0].mxu0
        %v561 = vpop.f32.mrb[0].mxu0
        %v562 = vadd.f32 0.0, %v561
        %v563 = vpop.f32.mrb[0].mxu0
        %564 = vmatprep.mubr.bf16.mxu0 0
        %565 = vmatmul.mubr.bf16.gmra.mrb[0].mxu0 %v438
        %v566 = vpop.f32.mrb[0].mxu0
        %v567 = vadd.f32 0.0, %v566
        %v568 = vpop.f32.mrb[0].mxu0
        %v569 = vpop.f32.mrb[0].mxu0
        %v570 = vadd.f32 0.0, %v569
        %v571 = vpop.f32.mrb[0].mxu0
        %572 = vmatprep.mubr.bf16.mxu0 0
        %573 = vmatmul.mubr.bf16.gmra.mrb[0].mxu0 %v439
        %v574 = vpop.f32.mrb[0].mxu0
        %v575 = vadd.f32 0.0, %v574
        %v576 = vpop.f32.mrb[0].mxu0
        %v577 = vpop.f32.mrb[0].mxu0
        %v578 = vadd.f32 0.0, %v577
        %v579 = vpop.f32.mrb[0].mxu0
        %580 = vmatprep.mubr.bf16.mxu0 0
        %581 = vmatmul.mubr.bf16.gmra.mrb[0].mxu0 %v440
        %v582 = vpop.f32.mrb[0].mxu0
        %v583 = vadd.f32 0.0, %v582
        %v584 = vpop.f32.mrb[0].mxu0
        %v585 = vpop.f32.mrb[0].mxu0
        %v586 = vadd.f32 0.0, %v585
        %v587 = vpop.f32.mrb[0].mxu0
        %588 = vmatprep.mubr.bf16.mxu0 0
        %589 = vmatmul.mubr.bf16.gmra.mrb[0].mxu0 %v441
        %v590 = vpop.f32.mrb[0].mxu0
        %v591 = vadd.f32 0.0, %v590
        %v592 = vpop.f32.mrb[0].mxu0
        %v593 = vpop.f32.mrb[0].mxu0
        %v594 = vadd.f32 0.0, %v593
        %v595 = vpop.f32.mrb[0].mxu0
        %596 = vmatprep.mubr.bf16.mxu0 0
        %597 = vmatmul.mubr.bf16.gmra.mrb[0].mxu0 %v442
        %v598 = vpop.f32.mrb[0].mxu0
        %v599 = vadd.f32 0.0, %v598
        %v600 = vpop.f32.mrb[0].mxu0
        %v601 = vpop.f32.mrb[0].mxu0
        %v602 = vadd.f32 0.0, %v601
        %v603 = vpop.f32.mrb[0].mxu0
        %604 = vmatprep.mubr.bf16.mxu0 0
        %605 = vmatmul.mubr.bf16.gmra.mrb[0].mxu0 %v443
        %v606 = vpop.f32.mrb[0].mxu0
        %v607 = vadd.f32 0.0, %v606
        %v608 = vpop.f32.mrb[0].mxu0
        %v609 = vpop.f32.mrb[0].mxu0
        %v610 = vadd.f32 0.0, %v609
        %v611 = vpop.f32.mrb[0].mxu0
        %612 = vmatprep.mubr.bf16.mxu0 0
        %613 = vmatmul.mubr.bf16.gmra.mrb[0].mxu0 %v444
        %v614 = vpop.f32.mrb[0].mxu0
        %v615 = vadd.f32 0.0, %v614
        %v616 = vpop.f32.mrb[0].mxu0
        %v617 = vpop.f32.mrb[0].mxu0
        %v618 = vadd.f32 0.0, %v617
        %v619 = vpop.f32.mrb[0].mxu0
        %620 = vmatprep.mubr.bf16.mxu0 0
        %621 = vmatmul.mubr.bf16.gmra.mrb[0].mxu0 %v445
        %v622 = vpop.f32.mrb[0].mxu0
        %v623 = vadd.f32 0.0, %v622
        %v624 = vpop.f32.mrb[0].mxu0
        %v625 = vpop.f32.mrb[0].mxu0
        %v626 = vadd.f32 0.0, %v625
        %v627 = vpop.f32.mrb[0].mxu0
        %628 = vmatprep.mubr.bf16.mxu0 0
        %629 = vmatmul.mubr.bf16.gmra.mrb[0].mxu0 %v446
        %v630 = vpop.f32.mrb[0].mxu0
        %v631 = vadd.f32 0.0, %v630
        %v632 = vpop.f32.mrb[0].mxu0
        %v633 = vpop.f32.mrb[0].mxu0
        %v634 = vadd.f32 0.0, %v633
        %v635 = vpop.f32.mrb[0].mxu0
        %636 = vmatprep.mubr.bf16.mxu0 0
        %637 = vmatmul.mubr.bf16.gmra.mrb[0].mxu0 %v447
        %v638 = vpop.f32.mrb[0].mxu0
        %v639 = vadd.f32 0.0, %v638
        %v640 = vpop.f32.mrb[0].mxu0
        %v641 = vpop.f32.mrb[0].mxu0
        %v642 = vadd.f32 0.0, %v641
        %v643 = vpop.f32.mrb[0].mxu0
        %644 = vmatprep.mubr.bf16.mxu0 0
        %645 = vmatmul.mubr.bf16.gmra.mrb[0].mxu0 %v448
        %v646 = vpop.f32.mrb[0].mxu0
        %v647 = vadd.f32 0.0, %v646
        %v648 = vpop.f32.mrb[0].mxu0
        %v649 = vpop.f32.mrb[0].mxu0
        %v650 = vadd.f32 0.0, %v649
        %v651 = vpop.f32.mrb[0].mxu0
        %652 = vmatprep.mubr.bf16.mxu0 0
        %653 = vmatmul.mubr.bf16.gmra.mrb[0].mxu0 %v449
        %v654 = vpop.f32.mrb[0].mxu0
        %v655 = vadd.f32 0.0, %v654
        %v656 = vpop.f32.mrb[0].mxu0
        %v657 = vpop.f32.mrb[0].mxu0
        %v658 = vadd.f32 0.0, %v657
        %v659 = vpop.f32.mrb[0].mxu0
        %660 = vmatprep.mubr.bf16.mxu0 0
        %661 = vmatmul.mubr.bf16.gmra.mrb[0].mxu0 %v450
        %v662 = vpop.f32.mrb[0].mxu0
        %v663 = vadd.f32 0.0, %v662
        %v664 = vpop.f32.mrb[0].mxu0
        %v665 = vpop.f32.mrb[0].mxu0
        %v666 = vadd.f32 0.0, %v665
        %v667 = vpop.f32.mrb[0].mxu0
        %668 = vmatprep.mubr.bf16.mxu0 0
        %669 = vmatmul.mubr.bf16.gmra.mrb[0].mxu0 %v451
        %v670 = vpop.f32.mrb[0].mxu0
        %v671 = vadd.f32 0.0, %v670
        %v672 = vpop.f32.mrb[0].mxu0
        %v673 = vpop.f32.mrb[0].mxu0
        %v674 = vadd.f32 0.0, %v673
        %v675 = vpop.f32.mrb[0].mxu0
        %676 = vdwg.mxu0
        %v677 = vadd.f32 %v292, %v551
        %v678 = vadd.f32 %v293, %v554
        %v679 = vadd.f32 %v294, %v559
        %v680 = vadd.f32 %v295, %v562
        %v681 = vadd.f32 %v296, %v567
        %v682 = vadd.f32 %v297, %v570
        %v683 = vadd.f32 %v298, %v575
        %v684 = vadd.f32 %v299, %v578
        %v685 = vadd.f32 %v300, %v583
        %v686 = vadd.f32 %v301, %v586
        %v687 = vadd.f32 %v302, %v591
        %v688 = vadd.f32 %v303, %v594
        %v689 = vadd.f32 %v304, %v599
        %v690 = vadd.f32 %v305, %v602
        %v691 = vadd.f32 %v306, %v607
        %v692 = vadd.f32 %v307, %v610
        %v693 = vadd.f32 %v308, %v615
        %v694 = vadd.f32 %v309, %v618
        %v695 = vadd.f32 %v310, %v623
        %v696 = vadd.f32 %v311, %v626
        %v697 = vadd.f32 %v312, %v631
        %v698 = vadd.f32 %v313, %v634
        %v699 = vadd.f32 %v314, %v639
        %v700 = vadd.f32 %v315, %v642
        %v701 = vadd.f32 %v316, %v647
        %v702 = vadd.f32 %v317, %v650
        %v703 = vadd.f32 %v318, %v655
        %v704 = vadd.f32 %v319, %v658
        %v705 = vadd.f32 %v320, %v663
        %v706 = vadd.f32 %v321, %v666
        %v707 = vadd.f32 %v322, %v671
        %v708 = vadd.f32 %v323, %v674
        %709 = vst [vmem:[#allocation2] sm:$0xff] %v677
        %710 = vst [vmem:[#allocation2 + $0x8] sm:$0xff] %v678
        %711 = vst [vmem:[#allocation2 + $0x10] sm:$0xff] %v679
        %712 = vst [vmem:[#allocation2 + $0x18] sm:$0xff] %v680
        %713 = vst [vmem:[#allocation2 + $0x20] sm:$0xff] %v681
        %714 = vst [vmem:[#allocation2 + $0x28] sm:$0xff] %v682
        %715 = vst [vmem:[#allocation2 + $0x30] sm:$0xff] %v683
        %716 = vst [vmem:[#allocation2 + $0x38] sm:$0xff] %v684
        %717 = vst [vmem:[#allocation2 + $0x40] sm:$0xff] %v685
        %718 = vst [vmem:[#allocation2 + $0x48] sm:$0xff] %v686
        %719 = vst [vmem:[#allocation2 + $0x50] sm:$0xff] %v687
        %720 = vst [vmem:[#allocation2 + $0x58] sm:$0xff] %v688
        %721 = vst [vmem:[#allocation2 + $0x60] sm:$0xff] %v689
        %722 = vst [vmem:[#allocation2 + $0x68] sm:$0xff] %v690
        %723 = vst [vmem:[#allocation2 + $0x70] sm:$0xff] %v691
        %724 = vst [vmem:[#allocation2 + $0x78] sm:$0xff] %v692
        %725 = vst [vmem:[#allocation2 + $0x80] sm:$0xff] %v693
        %726 = vst [vmem:[#allocation2 + $0x88] sm:$0xff] %v694
        %727 = vst [vmem:[#allocation2 + $0x90] sm:$0xff] %v695
        %728 = vst [vmem:[#allocation2 + $0x98] sm:$0xff] %v696
        %729 = vst [vmem:[#allocation2 + $0xa0] sm:$0xff] %v697
        %730 = vst [vmem:[#allocation2 + $0xa8] sm:$0xff] %v698
        %731 = vst [vmem:[#allocation2 + $0xb0] sm:$0xff] %v699
        %732 = vst [vmem:[#allocation2 + $0xb8] sm:$0xff] %v700
        %733 = vst [vmem:[#allocation2 + $0xc0] sm:$0xff] %v701
        %734 = vst [vmem:[#allocation2 + $0xc8] sm:$0xff] %v702
        %735 = vst [vmem:[#allocation2 + $0xd0] sm:$0xff] %v703
        %736 = vst [vmem:[#allocation2 + $0xd8] sm:$0xff] %v704
        %737 = vst [vmem:[#allocation2 + $0xe0] sm:$0xff] %v705
        %738 = vst [vmem:[#allocation2 + $0xe8] sm:$0xff] %v706
        %739 = vst [vmem:[#allocation2 + $0xf0] sm:$0xff] %v707
        %740 = vst [vmem:[#allocation2 + $0xf8] sm:$0xff] %v708
        // Predicated region
        $region41: #{bottleneck_forward.10} parent=27 // pred_check
          %p741 = pneg %p256
        $region42: #{bottleneck_forward.10} parent=27 // pred_check_branch
          %743 = sbr.rel (%p741) target = $region44
        $region43: #{bottleneck_forward.10} parent=27 // pred_region
          %v744 = vld [vmem:[#allocation2] sm:$0xff]
          %v745 = vld [vmem:[#allocation2 + $0x8] sm:$0xff]
          %v746 = vld [vmem:[#allocation2 + $0x10] sm:$0xff]
          %v747 = vld [vmem:[#allocation2 + $0x18] sm:$0xff]
          %v748 = vld [vmem:[#allocation2 + $0x20] sm:$0xff]
          %v749 = vld [vmem:[#allocation2 + $0x28] sm:$0xff]
          %v750 = vld [vmem:[#allocation2 + $0x30] sm:$0xff]
          %v751 = vld [vmem:[#allocation2 + $0x38] sm:$0xff]
          %v752 = vld [vmem:[#allocation2 + $0x40] sm:$0xff]
          %v753 = vld [vmem:[#allocation2 + $0x48] sm:$0xff]
          %v754 = vld [vmem:[#allocation2 + $0x50] sm:$0xff]
          %v755 = vld [vmem:[#allocation2 + $0x58] sm:$0xff]
          %v756 = vld [vmem:[#allocation2 + $0x60] sm:$0xff]
          %v757 = vld [vmem:[#allocation2 + $0x68] sm:$0xff]
          %v758 = vld [vmem:[#allocation2 + $0x70] sm:$0xff]
          %v759 = vld [vmem:[#allocation2 + $0x78] sm:$0xff]
          %v760 = vld [vmem:[#allocation2 + $0x80] sm:$0xff]
          %v761 = vld [vmem:[#allocation2 + $0x88] sm:$0xff]
          %v762 = vld [vmem:[#allocation2 + $0x90] sm:$0xff]
          %v763 = vld [vmem:[#allocation2 + $0x98] sm:$0xff]
          %v764 = vld [vmem:[#allocation2 + $0xa0] sm:$0xff]
          %v765 = vld [vmem:[#allocation2 + $0xa8] sm:$0xff]
          %v766 = vld [vmem:[#allocation2 + $0xb0] sm:$0xff]
          %v767 = vld [vmem:[#allocation2 + $0xb8] sm:$0xff]
          %v768 = vld [vmem:[#allocation2 + $0xc0] sm:$0xff]
          %v769 = vld [vmem:[#allocation2 + $0xc8] sm:$0xff]
          %v770 = vld [vmem:[#allocation2 + $0xd0] sm:$0xff]
          %v771 = vld [vmem:[#allocation2 + $0xd8] sm:$0xff]
          %v772 = vld [vmem:[#allocation2 + $0xe0] sm:$0xff]
          %v773 = vld [vmem:[#allocation2 + $0xe8] sm:$0xff]
          %v774 = vld [vmem:[#allocation2 + $0xf0] sm:$0xff]
          %v775 = vld [vmem:[#allocation2 + $0xf8] sm:$0xff]
          %v776 = vpack.c.bf16 %v745, %v744
          %v777 = vpack.c.bf16 %v747, %v746
          %v778 = vpack.c.bf16 %v749, %v748
          %v779 = vpack.c.bf16 %v751, %v750
          %v780 = vpack.c.bf16 %v753, %v752
          %v781 = vpack.c.bf16 %v755, %v754
          %v782 = vpack.c.bf16 %v757, %v756
          %v783 = vpack.c.bf16 %v759, %v758
          %v784 = vpack.c.bf16 %v761, %v760
          %v785 = vpack.c.bf16 %v763, %v762
          %v786 = vpack.c.bf16 %v765, %v764
          %v787 = vpack.c.bf16 %v767, %v766
          %v788 = vpack.c.bf16 %v769, %v768
          %v789 = vpack.c.bf16 %v771, %v770
          %v790 = vpack.c.bf16 %v773, %v772
          %v791 = vpack.c.bf16 %v775, %v774
          %v808 = vunpack.c.l.b16 %v776
          %v809 = vunpack.c.h.b16 %v776
          %v810 = vunpack.c.l.b16 %v777
          %v811 = vunpack.c.h.b16 %v777
          %v812 = vunpack.c.l.b16 %v778
          %v813 = vunpack.c.h.b16 %v778
          %v814 = vunpack.c.l.b16 %v779
          %v815 = vunpack.c.h.b16 %v779
          %v816 = vunpack.c.l.b16 %v780
          %v817 = vunpack.c.h.b16 %v780
          %v818 = vunpack.c.l.b16 %v781
          %v819 = vunpack.c.h.b16 %v781
          %v820 = vunpack.c.l.b16 %v782
          %v821 = vunpack.c.h.b16 %v782
          %v822 = vunpack.c.l.b16 %v783
          %v823 = vunpack.c.h.b16 %v783
          %v824 = vunpack.c.l.b16 %v784
          %v825 = vunpack.c.h.b16 %v784
          %v826 = vunpack.c.l.b16 %v785
          %v827 = vunpack.c.h.b16 %v785
          %v828 = vunpack.c.l.b16 %v786
          %v829 = vunpack.c.h.b16 %v786
          %v830 = vunpack.c.l.b16 %v787
          %v831 = vunpack.c.h.b16 %v787
          %v832 = vunpack.c.l.b16 %v788
          %v833 = vunpack.c.h.b16 %v788
          %v834 = vunpack.c.l.b16 %v789
          %v835 = vunpack.c.h.b16 %v789
          %v836 = vunpack.c.l.b16 %v790
          %v837 = vunpack.c.h.b16 %v790
          %v838 = vunpack.c.l.b16 %v791
          %v839 = vunpack.c.h.b16 %v791
          %v840 = vpack.c.b16 %v808, %v808
          %v841 = vpack.c.b16 %v809, %v809
          %v842 = vpack.c.b16 %v810, %v810
          %v843 = vpack.c.b16 %v811, %v811
          %v844 = vpack.c.b16 %v812, %v812
          %v845 = vpack.c.b16 %v813, %v813
          %v846 = vpack.c.b16 %v814, %v814
          %v847 = vpack.c.b16 %v815, %v815
          %v848 = vpack.c.b16 %v816, %v816
          %v849 = vpack.c.b16 %v817, %v817
          %v850 = vpack.c.b16 %v818, %v818
          %v851 = vpack.c.b16 %v819, %v819
          %v852 = vpack.c.b16 %v820, %v820
          %v853 = vpack.c.b16 %v821, %v821
          %v854 = vpack.c.b16 %v822, %v822
          %v855 = vpack.c.b16 %v823, %v823
          %v856 = vpack.c.b16 %v824, %v824
          %v857 = vpack.c.b16 %v825, %v825
          %v858 = vpack.c.b16 %v826, %v826
          %v859 = vpack.c.b16 %v827, %v827
          %v860 = vpack.c.b16 %v828, %v828
          %v861 = vpack.c.b16 %v829, %v829
          %v862 = vpack.c.b16 %v830, %v830
          %v863 = vpack.c.b16 %v831, %v831
          %v864 = vpack.c.b16 %v832, %v832
          %v865 = vpack.c.b16 %v833, %v833
          %v866 = vpack.c.b16 %v834, %v834
          %v867 = vpack.c.b16 %v835, %v835
          %v868 = vpack.c.b16 %v836, %v836
          %v869 = vpack.c.b16 %v837, %v837
          %v870 = vpack.c.b16 %v838, %v838
          %v871 = vpack.c.b16 %v839, %v839
          %904 = vst [vmem:[%s244] sm:$0xf] %v840
          %905 = vst [vmem:[%s244 + $0x4] sm:$0xf] %v841
          %906 = vst [vmem:[%s244 + $0x8] sm:$0xf] %v842
          %907 = vst [vmem:[%s244 + $0xc] sm:$0xf] %v843
          %908 = vst [vmem:[%s244 + $0x10] sm:$0xf] %v844
          %909 = vst [vmem:[%s244 + $0x14] sm:$0xf] %v845
          %910 = vst [vmem:[%s244 + $0x18] sm:$0xf] %v846
          %911 = vst [vmem:[%s244 + $0x1c] sm:$0xf] %v847
          %912 = vst [vmem:[%s244 + $0x20] sm:$0xf] %v848
          %913 = vst [vmem:[%s244 + $0x24] sm:$0xf] %v849
          %914 = vst [vmem:[%s244 + $0x28] sm:$0xf] %v850
          %915 = vst [vmem:[%s244 + $0x2c] sm:$0xf] %v851
          %916 = vst [vmem:[%s244 + $0x30] sm:$0xf] %v852
          %917 = vst [vmem:[%s244 + $0x34] sm:$0xf] %v853
          %918 = vst [vmem:[%s244 + $0x38] sm:$0xf] %v854
          %919 = vst [vmem:[%s244 + $0x3c] sm:$0xf] %v855
          %920 = vst [vmem:[%s244 + $0x40] sm:$0xf] %v856
          %921 = vst [vmem:[%s244 + $0x44] sm:$0xf] %v857
          %922 = vst [vmem:[%s244 + $0x48] sm:$0xf] %v858
          %923 = vst [vmem:[%s244 + $0x4c] sm:$0xf] %v859
          %924 = vst [vmem:[%s244 + $0x50] sm:$0xf] %v860
          %925 = vst [vmem:[%s244 + $0x54] sm:$0xf] %v861
          %926 = vst [vmem:[%s244 + $0x58] sm:$0xf] %v862
          %927 = vst [vmem:[%s244 + $0x5c] sm:$0xf] %v863
          %928 = vst [vmem:[%s244 + $0x60] sm:$0xf] %v864
          %929 = vst [vmem:[%s244 + $0x64] sm:$0xf] %v865
          %930 = vst [vmem:[%s244 + $0x68] sm:$0xf] %v866
          %931 = vst [vmem:[%s244 + $0x6c] sm:$0xf] %v867
          %932 = vst [vmem:[%s244 + $0x70] sm:$0xf] %v868
          %933 = vst [vmem:[%s244 + $0x74] sm:$0xf] %v869
          %934 = vst [vmem:[%s244 + $0x78] sm:$0xf] %v870
          %935 = vst [vmem:[%s244 + $0x7c] sm:$0xf] %v871
          %v936 = vadd.f32 %v744, %v745
          %v937 = vadd.f32 %v936, %v746
          %v938 = vadd.f32 %v937, %v747
          %v939 = vadd.f32 %v938, %v748
          %v940 = vadd.f32 %v939, %v749
          %v941 = vadd.f32 %v940, %v750
          %v942 = vadd.f32 %v941, %v751
          %v943 = vadd.f32 %v942, %v752
          %v944 = vadd.f32 %v943, %v753
          %v945 = vadd.f32 %v944, %v754
          %v946 = vadd.f32 %v945, %v755
          %v947 = vadd.f32 %v946, %v756
          %v948 = vadd.f32 %v947, %v757
          %v949 = vadd.f32 %v948, %v758
          %v950 = vadd.f32 %v949, %v759
          %v951 = vadd.f32 %v950, %v760
          %v952 = vadd.f32 %v951, %v761
          %v953 = vadd.f32 %v952, %v762
          %v954 = vadd.f32 %v953, %v763
          %v955 = vadd.f32 %v954, %v764
          %v956 = vadd.f32 %v955, %v765
          %v957 = vadd.f32 %v956, %v766
          %v958 = vadd.f32 %v957, %v767
          %v959 = vadd.f32 %v958, %v768
          %v960 = vadd.f32 %v959, %v769
          %v961 = vadd.f32 %v960, %v770
          %v962 = vadd.f32 %v961, %v771
          %v963 = vadd.f32 %v962, %v772
          %v964 = vadd.f32 %v963, %v773
          %v965 = vadd.f32 %v964, %v774
          %v966 = vadd.f32 %v965, %v775
          %v967 = vrot.slane %v966, 4
          %v968 = vadd.f32 %v966, %v967
          %v969 = vrot.slane %v968, 2
          %v970 = vadd.f32 %v968, %v969
          %v971 = vrot.slane %v970, 1
          %v972 = vadd.f32 %v970, %v971
          %973 = vst [vmem:[%s251] sm:$0x1] %v972
          %v974 = vmul.f32 %v744, %v744
          %v975 = vmul.f32 %v745, %v745
          %v976 = vmul.f32 %v746, %v746
          %v977 = vmul.f32 %v747, %v747
          %v978 = vmul.f32 %v748, %v748
          %v979 = vmul.f32 %v749, %v749
          %v980 = vmul.f32 %v750, %v750
          %v981 = vmul.f32 %v751, %v751
          %v982 = vmul.f32 %v752, %v752
          %v983 = vmul.f32 %v753, %v753
          %v984 = vmul.f32 %v754, %v754
          %v985 = vmul.f32 %v755, %v755
          %v986 = vmul.f32 %v756, %v756
          %v987 = vmul.f32 %v757, %v757
          %v988 = vmul.f32 %v758, %v758
          %v989 = vmul.f32 %v759, %v759
          %v990 = vmul.f32 %v760, %v760
          %v991 = vmul.f32 %v761, %v761
          %v992 = vmul.f32 %v762, %v762
          %v993 = vmul.f32 %v763, %v763
          %v994 = vmul.f32 %v764, %v764
          %v995 = vmul.f32 %v765, %v765
          %v996 = vmul.f32 %v766, %v766
          %v997 = vmul.f32 %v767, %v767
          %v998 = vmul.f32 %v768, %v768
          %v999 = vmul.f32 %v769, %v769
          %v1000 = vmul.f32 %v770, %v770
          %v1001 = vmul.f32 %v771, %v771
          %v1002 = vmul.f32 %v772, %v772
          %v1003 = vmul.f32 %v773, %v773
          %v1004 = vmul.f32 %v774, %v774
          %v1005 = vmul.f32 %v775, %v775
          %v1006 = vadd.f32 %v974, %v975
          %v1007 = vadd.f32 %v1006, %v976
          %v1008 = vadd.f32 %v1007, %v977
          %v1009 = vadd.f32 %v1008, %v978
          %v1010 = vadd.f32 %v1009, %v979
          %v1011 = vadd.f32 %v1010, %v980
          %v1012 = vadd.f32 %v1011, %v981
          %v1013 = vadd.f32 %v1012, %v982
          %v1014 = vadd.f32 %v1013, %v983
          %v1015 = vadd.f32 %v1014, %v984
          %v1016 = vadd.f32 %v1015, %v985
          %v1017 = vadd.f32 %v1016, %v986
          %v1018 = vadd.f32 %v1017, %v987
          %v1019 = vadd.f32 %v1018, %v988
          %v1020 = vadd.f32 %v1019, %v989
          %v1021 = vadd.f32 %v1020, %v990
          %v1022 = vadd.f32 %v1021, %v991
          %v1023 = vadd.f32 %v1022, %v992
          %v1024 = vadd.f32 %v1023, %v993
          %v1025 = vadd.f32 %v1024, %v994
          %v1026 = vadd.f32 %v1025, %v995
          %v1027 = vadd.f32 %v1026, %v996
          %v1028 = vadd.f32 %v1027, %v997
          %v1029 = vadd.f32 %v1028, %v998
          %v1030 = vadd.f32 %v1029, %v999
          %v1031 = vadd.f32 %v1030, %v1000
          %v1032 = vadd.f32 %v1031, %v1001
          %v1033 = vadd.f32 %v1032, %v1002
          %v1034 = vadd.f32 %v1033, %v1003
          %v1035 = vadd.f32 %v1034, %v1004
          %v1036 = vadd.f32 %v1035, %v1005
          %v1037 = vrot.slane %v1036, 4
          %v1038 = vadd.f32 %v1036, %v1037
          %v1039 = vrot.slane %v1038, 2
          %v1040 = vadd.f32 %v1038, %v1039
          %v1041 = vrot.slane %v1040, 1
          %v1042 = vadd.f32 %v1040, %v1041
          %1043 = vst [vmem:[%s251 + $0x1] sm:$0x1] %v1042
        $region44: #{bottleneck_forward.10} parent=27 // pred_fallthru
          _
        %s1044 = sand.u32 %s110, 1
        %s1045 = scalar_lea.sflag [#allocation5], %s1044
        %s1046 = sand.u32 %s110, 1
        %s1047 = smul.addr %s1046, 128
        %s1048 = scalar_lea.vmem [#allocation8], %s1047
        %s1049 = sand.u32 %s138, 1
        %s1050 = scalar_lea.sflag [#allocation10], %s1049
        %s1051 = sand.u32 %s138, 1
        %s1052 = smul.addr %s1051, 8
        %s1053 = scalar_lea.vmem [#allocation9], %s1052
        // Predicated region
        $region45: #{bottleneck_forward.10} parent=27 // pred_check
          %p1054 = pneg %p120
        $region46: #{bottleneck_forward.10} parent=27 // pred_check_branch
          %1056 = sbr.rel (%p1054) target = $region48
        $region47: #{bottleneck_forward.10} parent=27 // pred_region
          %s1057 = smul.u32 32, %s30
          %s1059 = ssub.s32 2048, 2048
          %1060 = vsyncadd %s1045, %s1059
          %s1061 = sadd.s32 %s31, %s1057
          %s1062 = smul.addr %s1061, 64
          %s1063 = scalar_lea.hbm %s2, %s1062
          %s1064 = sshll.u32 %s1048, 4
          %s1065 = int_to_ptr.vmem [resolvable:$true] %s1064
          %1070 = dma.vmem_to_hbm [thread:$0]  %s1065, 2048, %s1063, %s1045, 64, 64, 4
        $region48: #{bottleneck_forward.10} parent=27 // pred_fallthru
          _
        // Predicated region
        $region49: #{bottleneck_forward.10} parent=27 // pred_check
          %p1071 = pneg %p148
        $region50: #{bottleneck_forward.10} parent=27 // pred_check_branch
          %1073 = sbr.rel (%p1071) target = $region52
        $region51: #{bottleneck_forward.10} parent=27 // pred_region
          %s1075 = ssub.s32 128, 128
          %1076 = vsyncadd %s1050, %s1075
          %s1077 = sadd.s32 %s31, %s30
          %s1078 = smul.addr %s1077, 128
          %s1079 = scalar_lea.hbm %s3, %s1078
          %s1081 = sshll.u32 %s1053, 4
          %s1082 = int_to_ptr.vmem [resolvable:$true] %s1081
          %1084 = dma.vmem_to_hbm [thread:$0]  %s1082, 128, %s1079, %s1050
        $region52: #{bottleneck_forward.10} parent=27 // pred_fallthru
          _
      $region28: #{bottleneck_forward.10} parent=5 // pred_fallthru
        _
      %p1085 = scmp.le.s32.totalorder 2, %s20
      // Predicated region
      $region53: #{bottleneck_forward.10} parent=5 // pred_check
        %p1086 = pneg %p1085
      $region54: #{bottleneck_forward.10} parent=5 // pred_check_branch
        %1088 = sbr.rel (%p1086) target = $region56
      $region55: #{bottleneck_forward.10} parent=5 // pred_region
        %s1089 = ssub.s32 %s20, 2
        // Predicated region
        $region57: #{bottleneck_forward.10} parent=55 // pred_check
          %p1090 = pneg %p126
        $region58: #{bottleneck_forward.10} parent=55 // pred_check_branch
          %1092 = sbr.rel (%p1090) target = $region60
        $region59: #{bottleneck_forward.10} parent=55 // pred_region
          %s1093 = sand.u32 %s111, 1
          %s1094 = scalar_lea.sflag [#allocation5], %s1093
          %s1095 = sand.u32 %s111, 1
          %s1096 = smul.addr %s1095, 128
          %s1097 = scalar_lea.vmem [#allocation8], %s1096
          %1098 = dma.done %s1094, 2048
        $region60: #{bottleneck_forward.10} parent=55 // pred_fallthru
          _
        // Predicated region
        $region61: #{bottleneck_forward.10} parent=55 // pred_check
          %p1099 = pneg %p154
        $region62: #{bottleneck_forward.10} parent=55 // pred_check_branch
          %1101 = sbr.rel (%p1099) target = $region64
        $region63: #{bottleneck_forward.10} parent=55 // pred_region
          %s1102 = sand.u32 %s139, 1
          %s1103 = scalar_lea.sflag [#allocation10], %s1102
          %s1104 = sand.u32 %s139, 1
          %s1105 = smul.addr %s1104, 8
          %s1106 = scalar_lea.vmem [#allocation9], %s1105
          %1107 = dma.done %s1103, 128
        $region64: #{bottleneck_forward.10} parent=55 // pred_fallthru
          _
      $region56: #{bottleneck_forward.10} parent=5 // pred_fallthru
        _
    $region6: #{bottleneck_forward.10} parent=1 // loop_footer
      %s24 = sadd.s32 1, %s20
    $region7: #{bottleneck_forward.10} parent=1 // loop_footer_branch
      %19 = sbr.rel target = $region3
    $region8: #{bottleneck_forward.10} parent=1 // loop_exit
      _
    %1108 = vsyncpa [#allocation4], 1
    %s1109 = scalar_lea.sflag [#allocation4], 1
    %1110 = vsyncpa %s1109, 1
    %1111 = vsyncpa [#allocation7], 1
    %1112 = vsyncpa [#allocation5], 1
    %s1113 = scalar_lea.sflag [#allocation5], 1
    %1114 = vsyncpa %s1113, 1
    %1115 = vsyncpa [#allocation10], 1
    %s1116 = scalar_lea.sflag [#allocation10], 1
    %1117 = vsyncpa %s1116, 1

// kernel: bottleneck_forward.11
$region0: #{bottleneck_forward.11}
  #allocation0 [shape = 'u32[]', space=smem, size = 0x4, offset = 0x4, fixed_abs, tag = 'smem constant byte address 0x4 - core index']
  #allocation1 [shape = 'u32[144,128]{1,0:T(1,128)}', space=vmem, size = 0x12000, scoped, tag = 'internal scratch']
  %s0 = inlined_call_operand.hbm [shape: bf16[512,128], index: 0, kind: input, shape index: {}]
  %s1 = inlined_call_operand.hbm [shape: f32[1,128], index: 1, kind: input, shape index: {}]
  %s2 = inlined_call_operand.hbm [shape: f32[1,128], index: 2, kind: input, shape index: {}]
  %s3 = inlined_call_operand.hbm [shape: bf16[512,128], index: 3, kind: output, shape index: {}]
  %s4 = sld [smem:[#allocation0]]
  $region34: #{bottleneck_forward.11} parent=0
    _
  %s6 = ssub.s32 1, %s4
  %s7 = scalar_select 0, %s6, %s4
  $region1: #{bottleneck_forward.11} parent=0
    #allocation2 [shape = 'u8[131072]{0}', space=vmem, size = 0x20000, scoped, tag = 'input window, operand 0, single buffered']
    #allocation3 [shape = 's32[1]{0}', space=sflag, size = 0x4, scoped, tag = 'scoped memory for bottleneck_forward.11']
    #allocation4 [shape = 's32[1]{0}', space=sflag, size = 0x4, scoped, tag = 'scoped memory for bottleneck_forward.11']
    #allocation5 [shape = 'u8[512]{0}', space=vmem, size = 0x400, scoped, tag = 'input window, operand 1, single buffered']
    #allocation6 [shape = 's32[1]{0}', space=sflag, size = 0x4, scoped, tag = 'scoped memory for bottleneck_forward.11']
    #allocation7 [shape = 'u8[512]{0}', space=vmem, size = 0x400, scoped, tag = 'input window, operand 2, single buffered']
    #allocation8 [shape = 'u8[131072]{0}', space=vmem, size = 0x20000, scoped, tag = 'output window, operand 0, single buffered']
    %8 = vsyncpa [#allocation3], 0
    %9 = vsyncpa [#allocation6], 0
    %10 = vsyncpa [#allocation4], 0
    // Predicated region
    $region2: #{bottleneck_forward.11} parent=1 // pred_check
      _
    $region3: #{bottleneck_forward.11} parent=1 // pred_check_branch
      %12 = sbr.rel (0) target = $region5
    $region4: #{bottleneck_forward.11} parent=1 // pred_region
      %s14 = ssub.s32 4096, 4096
      %15 = vsyncadd [#allocation3], %s14
      %s16 = sshll.u32 [#allocation2], 4
      %s17 = int_to_ptr.vmem [resolvable:$true] %s16
      %22 = dma.hbm_to_vmem [thread:$0]  %s0, 4096, %s17, [#allocation3], 64, 64, 4
    $region5: #{bottleneck_forward.11} parent=1 // pred_fallthru
      _
    // Predicated region
    $region6: #{bottleneck_forward.11} parent=1 // pred_check
      _
    $region7: #{bottleneck_forward.11} parent=1 // pred_check_branch
      %24 = sbr.rel (0) target = $region9
    $region8: #{bottleneck_forward.11} parent=1 // pred_region
      %s26 = ssub.s32 16, 16
      %27 = vsyncadd [#allocation6], %s26
      %s29 = sshll.u32 [#allocation5], 4
      %s30 = int_to_ptr.vmem [resolvable:$true] %s29
      %32 = dma.hbm_to_vmem [thread:$0]  %s1, 16, %s30, [#allocation6]
    $region9: #{bottleneck_forward.11} parent=1 // pred_fallthru
      _
    // Predicated region
    $region10: #{bottleneck_forward.11} parent=1 // pred_check
      _
    $region11: #{bottleneck_forward.11} parent=1 // pred_check_branch
      %34 = sbr.rel (0) target = $region13
    $region12: #{bottleneck_forward.11} parent=1 // pred_region
      %s36 = ssub.s32 16, 16
      %37 = vsyncadd [#allocation6], %s36
      %s39 = sshll.u32 [#allocation7], 4
      %s40 = int_to_ptr.vmem [resolvable:$true] %s39
      %42 = dma.hbm_to_vmem [thread:$0]  %s2, 16, %s40, [#allocation6]
    $region13: #{bottleneck_forward.11} parent=1 // pred_fallthru
      _
    // Predicated region
    $region14: #{bottleneck_forward.11} parent=1 // pred_check
      _
    $region15: #{bottleneck_forward.11} parent=1 // pred_check_branch
      %44 = sbr.rel (0) target = $region17
    $region16: #{bottleneck_forward.11} parent=1 // pred_region
      %45 = dma.done [#allocation3], 4096
    $region17: #{bottleneck_forward.11} parent=1 // pred_fallthru
      _
    // Predicated region
    $region18: #{bottleneck_forward.11} parent=1 // pred_check
      _
    $region19: #{bottleneck_forward.11} parent=1 // pred_check_branch
      %47 = sbr.rel (0) target = $region21
    $region20: #{bottleneck_forward.11} parent=1 // pred_region
      %48 = dma.done [#allocation6], 16
    $region21: #{bottleneck_forward.11} parent=1 // pred_fallthru
      _
    // Predicated region
    $region22: #{bottleneck_forward.11} parent=1 // pred_check
      _
    $region23: #{bottleneck_forward.11} parent=1 // pred_check_branch
      %50 = sbr.rel (0) target = $region25
    $region24: #{bottleneck_forward.11} parent=1 // pred_region
      %51 = dma.done [#allocation6], 16
    $region25: #{bottleneck_forward.11} parent=1 // pred_fallthru
      _
    %v52 = vld [vmem:[#allocation2] sm:$0xf]
    %v53 = vld [vmem:[#allocation2 + $0x4] sm:$0xf]
    %v54 = vld [vmem:[#allocation2 + $0x8] sm:$0xf]
    %v55 = vld [vmem:[#allocation2 + $0xc] sm:$0xf]
    %v56 = vld [vmem:[#allocation2 + $0x10] sm:$0xf]
    %v57 = vld [vmem:[#allocation2 + $0x14] sm:$0xf]
    %v58 = vld [vmem:[#allocation2 + $0x18] sm:$0xf]
    %v59 = vld [vmem:[#allocation2 + $0x1c] sm:$0xf]
    %v60 = vld [vmem:[#allocation2 + $0x20] sm:$0xf]
    %v61 = vld [vmem:[#allocation2 + $0x24] sm:$0xf]
    %v62 = vld [vmem:[#allocation2 + $0x28] sm:$0xf]
    %v63 = vld [vmem:[#allocation2 + $0x2c] sm:$0xf]
    %v64 = vld [vmem:[#allocation2 + $0x30] sm:$0xf]
    %v65 = vld [vmem:[#allocation2 + $0x34] sm:$0xf]
    %v66 = vld [vmem:[#allocation2 + $0x38] sm:$0xf]
    %v67 = vld [vmem:[#allocation2 + $0x3c] sm:$0xf]
    %v68 = vld [vmem:[#allocation2 + $0x40] sm:$0xf]
    %v69 = vld [vmem:[#allocation2 + $0x44] sm:$0xf]
    %v70 = vld [vmem:[#allocation2 + $0x48] sm:$0xf]
    %v71 = vld [vmem:[#allocation2 + $0x4c] sm:$0xf]
    %v72 = vld [vmem:[#allocation2 + $0x50] sm:$0xf]
    %v73 = vld [vmem:[#allocation2 + $0x54] sm:$0xf]
    %v74 = vld [vmem:[#allocation2 + $0x58] sm:$0xf]
    %v75 = vld [vmem:[#allocation2 + $0x5c] sm:$0xf]
    %v76 = vld [vmem:[#allocation2 + $0x60] sm:$0xf]
    %v77 = vld [vmem:[#allocation2 + $0x64] sm:$0xf]
    %v78 = vld [vmem:[#allocation2 + $0x68] sm:$0xf]
    %v79 = vld [vmem:[#allocation2 + $0x6c] sm:$0xf]
    %v80 = vld [vmem:[#allocation2 + $0x70] sm:$0xf]
    %v81 = vld [vmem:[#allocation2 + $0x74] sm:$0xf]
    %v82 = vld [vmem:[#allocation2 + $0x78] sm:$0xf]
    %v83 = vld [vmem:[#allocation2 + $0x7c] sm:$0xf]
    %v84 = vld [vmem:[#allocation2 + $0x80] sm:$0xf]
    %v85 = vld [vmem:[#allocation2 + $0x84] sm:$0xf]
    %v86 = vld [vmem:[#allocation2 + $0x88] sm:$0xf]
    %v87 = vld [vmem:[#allocation2 + $0x8c] sm:$0xf]
    %v88 = vld [vmem:[#allocation2 + $0x90] sm:$0xf]
    %v89 = vld [vmem:[#allocation2 + $0x94] sm:$0xf]
    %v90 = vld [vmem:[#allocation2 + $0x98] sm:$0xf]
    %v91 = vld [vmem:[#allocation2 + $0x9c] sm:$0xf]
    %v92 = vld [vmem:[#allocation2 + $0xa0] sm:$0xf]
    %v93 = vld [vmem:[#allocation2 + $0xa4] sm:$0xf]
    %v94 = vld [vmem:[#allocation2 + $0xa8] sm:$0xf]
    %v95 = vld [vmem:[#allocation2 + $0xac] sm:$0xf]
    %v96 = vld [vmem:[#allocation2 + $0xb0] sm:$0xf]
    %v97 = vld [vmem:[#allocation2 + $0xb4] sm:$0xf]
    %v98 = vld [vmem:[#allocation2 + $0xb8] sm:$0xf]
    %v99 = vld [vmem:[#allocation2 + $0xbc] sm:$0xf]
    %v100 = vld [vmem:[#allocation2 + $0xc0] sm:$0xf]
    %v101 = vld [vmem:[#allocation2 + $0xc4] sm:$0xf]
    %v102 = vld [vmem:[#allocation2 + $0xc8] sm:$0xf]
    %v103 = vld [vmem:[#allocation2 + $0xcc] sm:$0xf]
    %v104 = vld [vmem:[#allocation2 + $0xd0] sm:$0xf]
    %v105 = vld [vmem:[#allocation2 + $0xd4] sm:$0xf]
    %v106 = vld [vmem:[#allocation2 + $0xd8] sm:$0xf]
    %v107 = vld [vmem:[#allocation2 + $0xdc] sm:$0xf]
    %v108 = vld [vmem:[#allocation2 + $0xe0] sm:$0xf]
    %v109 = vld [vmem:[#allocation2 + $0xe4] sm:$0xf]
    %v110 = vld [vmem:[#allocation2 + $0xe8] sm:$0xf]
    %v111 = vld [vmem:[#allocation2 + $0xec] sm:$0xf]
    %v112 = vld [vmem:[#allocation2 + $0xf0] sm:$0xf]
    %v113 = vld [vmem:[#allocation2 + $0xf4] sm:$0xf]
    %v114 = vld [vmem:[#allocation2 + $0xf8] sm:$0xf]
    %v115 = vld [vmem:[#allocation2 + $0xfc] sm:$0xf]
    %v116 = vunpack.c.l.bf16 %v52
    %v117 = vunpack.c.l.bf16 %v53
    %v118 = vunpack.c.l.bf16 %v54
    %v119 = vunpack.c.l.bf16 %v55
    %v120 = vunpack.c.l.bf16 %v56
    %v121 = vunpack.c.l.bf16 %v57
    %v122 = vunpack.c.l.bf16 %v58
    %v123 = vunpack.c.l.bf16 %v59
    %v124 = vunpack.c.l.bf16 %v60
    %v125 = vunpack.c.l.bf16 %v61
    %v126 = vunpack.c.l.bf16 %v62
    %v127 = vunpack.c.l.bf16 %v63
    %v128 = vunpack.c.l.bf16 %v64
    %v129 = vunpack.c.l.bf16 %v65
    %v130 = vunpack.c.l.bf16 %v66
    %v131 = vunpack.c.l.bf16 %v67
    %v132 = vunpack.c.l.bf16 %v68
    %v133 = vunpack.c.l.bf16 %v69
    %v134 = vunpack.c.l.bf16 %v70
    %v135 = vunpack.c.l.bf16 %v71
    %v136 = vunpack.c.l.bf16 %v72
    %v137 = vunpack.c.l.bf16 %v73
    %v138 = vunpack.c.l.bf16 %v74
    %v139 = vunpack.c.l.bf16 %v75
    %v140 = vunpack.c.l.bf16 %v76
    %v141 = vunpack.c.l.bf16 %v77
    %v142 = vunpack.c.l.bf16 %v78
    %v143 = vunpack.c.l.bf16 %v79
    %v144 = vunpack.c.l.bf16 %v80
    %v145 = vunpack.c.l.bf16 %v81
    %v146 = vunpack.c.l.bf16 %v82
    %v147 = vunpack.c.l.bf16 %v83
    %v148 = vunpack.c.l.bf16 %v84
    %v149 = vunpack.c.l.bf16 %v85
    %v150 = vunpack.c.l.bf16 %v86
    %v151 = vunpack.c.l.bf16 %v87
    %v152 = vunpack.c.l.bf16 %v88
    %v153 = vunpack.c.l.bf16 %v89
    %v154 = vunpack.c.l.bf16 %v90
    %v155 = vunpack.c.l.bf16 %v91
    %v156 = vunpack.c.l.bf16 %v92
    %v157 = vunpack.c.l.bf16 %v93
    %v158 = vunpack.c.l.bf16 %v94
    %v159 = vunpack.c.l.bf16 %v95
    %v160 = vunpack.c.l.bf16 %v96
    %v161 = vunpack.c.l.bf16 %v97
    %v162 = vunpack.c.l.bf16 %v98
    %v163 = vunpack.c.l.bf16 %v99
    %v164 = vunpack.c.l.bf16 %v100
    %v165 = vunpack.c.l.bf16 %v101
    %v166 = vunpack.c.l.bf16 %v102
    %v167 = vunpack.c.l.bf16 %v103
    %v168 = vunpack.c.l.bf16 %v104
    %v169 = vunpack.c.l.bf16 %v105
    %v170 = vunpack.c.l.bf16 %v106
    %v171 = vunpack.c.l.bf16 %v107
    %v172 = vunpack.c.l.bf16 %v108
    %v173 = vunpack.c.l.bf16 %v109
    %v174 = vunpack.c.l.bf16 %v110
    %v175 = vunpack.c.l.bf16 %v111
    %v176 = vunpack.c.l.bf16 %v112
    %v177 = vunpack.c.l.bf16 %v113
    %v178 = vunpack.c.l.bf16 %v114
    %v179 = vunpack.c.l.bf16 %v115
    %v180 = vld [vmem:[#allocation5] sm:$0x1]
    %v182 = vlaneseq
    %v183 = vshrl.u32 %v182, 7
    %v184 = vsub.s32 0, %v183
    %v185 = vrot.slane %v180, %v184
    %v187 = vsub.f32 %v116, %v185
    %v188 = vsub.f32 %v117, %v185
    %v189 = vsub.f32 %v118, %v185
    %v190 = vsub.f32 %v119, %v185
    %v191 = vsub.f32 %v120, %v185
    %v192 = vsub.f32 %v121, %v185
    %v193 = vsub.f32 %v122, %v185
    %v194 = vsub.f32 %v123, %v185
    %v195 = vsub.f32 %v124, %v185
    %v196 = vsub.f32 %v125, %v185
    %v197 = vsub.f32 %v126, %v185
    %v198 = vsub.f32 %v127, %v185
    %v199 = vsub.f32 %v128, %v185
    %v200 = vsub.f32 %v129, %v185
    %v201 = vsub.f32 %v130, %v185
    %v202 = vsub.f32 %v131, %v185
    %v203 = vsub.f32 %v132, %v185
    %v204 = vsub.f32 %v133, %v185
    %v205 = vsub.f32 %v134, %v185
    %v206 = vsub.f32 %v135, %v185
    %v207 = vsub.f32 %v136, %v185
    %v208 = vsub.f32 %v137, %v185
    %v209 = vsub.f32 %v138, %v185
    %v210 = vsub.f32 %v139, %v185
    %v211 = vsub.f32 %v140, %v185
    %v212 = vsub.f32 %v141, %v185
    %v213 = vsub.f32 %v142, %v185
    %v214 = vsub.f32 %v143, %v185
    %v215 = vsub.f32 %v144, %v185
    %v216 = vsub.f32 %v145, %v185
    %v217 = vsub.f32 %v146, %v185
    %v218 = vsub.f32 %v147, %v185
    %v219 = vsub.f32 %v148, %v185
    %v220 = vsub.f32 %v149, %v185
    %v221 = vsub.f32 %v150, %v185
    %v222 = vsub.f32 %v151, %v185
    %v223 = vsub.f32 %v152, %v185
    %v224 = vsub.f32 %v153, %v185
    %v225 = vsub.f32 %v154, %v185
    %v226 = vsub.f32 %v155, %v185
    %v227 = vsub.f32 %v156, %v185
    %v228 = vsub.f32 %v157, %v185
    %v229 = vsub.f32 %v158, %v185
    %v230 = vsub.f32 %v159, %v185
    %v231 = vsub.f32 %v160, %v185
    %v232 = vsub.f32 %v161, %v185
    %v233 = vsub.f32 %v162, %v185
    %v234 = vsub.f32 %v163, %v185
    %v235 = vsub.f32 %v164, %v185
    %v236 = vsub.f32 %v165, %v185
    %v237 = vsub.f32 %v166, %v185
    %v238 = vsub.f32 %v167, %v185
    %v239 = vsub.f32 %v168, %v185
    %v240 = vsub.f32 %v169, %v185
    %v241 = vsub.f32 %v170, %v185
    %v242 = vsub.f32 %v171, %v185
    %v243 = vsub.f32 %v172, %v185
    %v244 = vsub.f32 %v173, %v185
    %v245 = vsub.f32 %v174, %v185
    %v246 = vsub.f32 %v175, %v185
    %v247 = vsub.f32 %v176, %v185
    %v248 = vsub.f32 %v177, %v185
    %v249 = vsub.f32 %v178, %v185
    %v250 = vsub.f32 %v179, %v185
    %v251 = vld [vmem:[#allocation7] sm:$0x1]
    %v253 = vlaneseq
    %v254 = vshrl.u32 %v253, 7
    %v255 = vsub.s32 0, %v254
    %v256 = vrot.slane %v251, %v255
    %v258 = vmul.f32 %v187, %v256
    %v259 = vmul.f32 %v188, %v256
    %v260 = vmul.f32 %v189, %v256
    %v261 = vmul.f32 %v190, %v256
    %v262 = vmul.f32 %v191, %v256
    %v263 = vmul.f32 %v192, %v256
    %v264 = vmul.f32 %v193, %v256
    %v265 = vmul.f32 %v194, %v256
    %v266 = vmul.f32 %v195, %v256
    %v267 = vmul.f32 %v196, %v256
    %v268 = vmul.f32 %v197, %v256
    %v269 = vmul.f32 %v198, %v256
    %v270 = vmul.f32 %v199, %v256
    %v271 = vmul.f32 %v200, %v256
    %v272 = vmul.f32 %v201, %v256
    %v273 = vmul.f32 %v202, %v256
    %v274 = vmul.f32 %v203, %v256
    %v275 = vmul.f32 %v204, %v256
    %v276 = vmul.f32 %v205, %v256
    %v277 = vmul.f32 %v206, %v256
    %v278 = vmul.f32 %v207, %v256
    %v279 = vmul.f32 %v208, %v256
    %v280 = vmul.f32 %v209, %v256
    %v281 = vmul.f32 %v210, %v256
    %v282 = vmul.f32 %v211, %v256
    %v283 = vmul.f32 %v212, %v256
    %v284 = vmul.f32 %v213, %v256
    %v285 = vmul.f32 %v214, %v256
    %v286 = vmul.f32 %v215, %v256
    %v287 = vmul.f32 %v216, %v256
    %v288 = vmul.f32 %v217, %v256
    %v289 = vmul.f32 %v218, %v256
    %v290 = vmul.f32 %v219, %v256
    %v291 = vmul.f32 %v220, %v256
    %v292 = vmul.f32 %v221, %v256
    %v293 = vmul.f32 %v222, %v256
    %v294 = vmul.f32 %v223, %v256
    %v295 = vmul.f32 %v224, %v256
    %v296 = vmul.f32 %v225, %v256
    %v297 = vmul.f32 %v226, %v256
    %v298 = vmul.f32 %v227, %v256
    %v299 = vmul.f32 %v228, %v256
    %v300 = vmul.f32 %v229, %v256
    %v301 = vmul.f32 %v230, %v256
    %v302 = vmul.f32 %v231, %v256
    %v303 = vmul.f32 %v232, %v256
    %v304 = vmul.f32 %v233, %v256
    %v305 = vmul.f32 %v234, %v256
    %v306 = vmul.f32 %v235, %v256
    %v307 = vmul.f32 %v236, %v256
    %v308 = vmul.f32 %v237, %v256
    %v309 = vmul.f32 %v238, %v256
    %v310 = vmul.f32 %v239, %v256
    %v311 = vmul.f32 %v240, %v256
    %v312 = vmul.f32 %v241, %v256
    %v313 = vmul.f32 %v242, %v256
    %v314 = vmul.f32 %v243, %v256
    %v315 = vmul.f32 %v244, %v256
    %v316 = vmul.f32 %v245, %v256
    %v317 = vmul.f32 %v246, %v256
    %v318 = vmul.f32 %v247, %v256
    %v319 = vmul.f32 %v248, %v256
    %v320 = vmul.f32 %v249, %v256
    %v321 = vmul.f32 %v250, %v256
    %v322 = vmax.f32 %v258, 0.0
    %v323 = vmax.f32 %v259, 0.0
    %v324 = vmax.f32 %v260, 0.0
    %v325 = vmax.f32 %v261, 0.0
    %v326 = vmax.f32 %v262, 0.0
    %v327 = vmax.f32 %v263, 0.0
    %v328 = vmax.f32 %v264, 0.0
    %v329 = vmax.f32 %v265, 0.0
    %v330 = vmax.f32 %v266, 0.0
    %v331 = vmax.f32 %v267, 0.0
    %v332 = vmax.f32 %v268, 0.0
    %v333 = vmax.f32 %v269, 0.0
    %v334 = vmax.f32 %v270, 0.0
    %v335 = vmax.f32 %v271, 0.0
    %v336 = vmax.f32 %v272, 0.0
    %v337 = vmax.f32 %v273, 0.0
    %v338 = vmax.f32 %v274, 0.0
    %v339 = vmax.f32 %v275, 0.0
    %v340 = vmax.f32 %v276, 0.0
    %v341 = vmax.f32 %v277, 0.0
    %v342 = vmax.f32 %v278, 0.0
    %v343 = vmax.f32 %v279, 0.0
    %v344 = vmax.f32 %v280, 0.0
    %v345 = vmax.f32 %v281, 0.0
    %v346 = vmax.f32 %v282, 0.0
    %v347 = vmax.f32 %v283, 0.0
    %v348 = vmax.f32 %v284, 0.0
    %v349 = vmax.f32 %v285, 0.0
    %v350 = vmax.f32 %v286, 0.0
    %v351 = vmax.f32 %v287, 0.0
    %v352 = vmax.f32 %v288, 0.0
    %v353 = vmax.f32 %v289, 0.0
    %v354 = vmax.f32 %v290, 0.0
    %v355 = vmax.f32 %v291, 0.0
    %v356 = vmax.f32 %v292, 0.0
    %v357 = vmax.f32 %v293, 0.0
    %v358 = vmax.f32 %v294, 0.0
    %v359 = vmax.f32 %v295, 0.0
    %v360 = vmax.f32 %v296, 0.0
    %v361 = vmax.f32 %v297, 0.0
    %v362 = vmax.f32 %v298, 0.0
    %v363 = vmax.f32 %v299, 0.0
    %v364 = vmax.f32 %v300, 0.0
    %v365 = vmax.f32 %v301, 0.0
    %v366 = vmax.f32 %v302, 0.0
    %v367 = vmax.f32 %v303, 0.0
    %v368 = vmax.f32 %v304, 0.0
    %v369 = vmax.f32 %v305, 0.0
    %v370 = vmax.f32 %v306, 0.0
    %v371 = vmax.f32 %v307, 0.0
    %v372 = vmax.f32 %v308, 0.0
    %v373 = vmax.f32 %v309, 0.0
    %v374 = vmax.f32 %v310, 0.0
    %v375 = vmax.f32 %v311, 0.0
    %v376 = vmax.f32 %v312, 0.0
    %v377 = vmax.f32 %v313, 0.0
    %v378 = vmax.f32 %v314, 0.0
    %v379 = vmax.f32 %v315, 0.0
    %v380 = vmax.f32 %v316, 0.0
    %v381 = vmax.f32 %v317, 0.0
    %v382 = vmax.f32 %v318, 0.0
    %v383 = vmax.f32 %v319, 0.0
    %v384 = vmax.f32 %v320, 0.0
    %v385 = vmax.f32 %v321, 0.0
    %v386 = vpack.c.bf16 %v323, %v322
    %v387 = vpack.c.bf16 %v325, %v324
    %v388 = vpack.c.bf16 %v327, %v326
    %v389 = vpack.c.bf16 %v329, %v328
    %v390 = vpack.c.bf16 %v331, %v330
    %v391 = vpack.c.bf16 %v333, %v332
    %v392 = vpack.c.bf16 %v335, %v334
    %v393 = vpack.c.bf16 %v337, %v336
    %v394 = vpack.c.bf16 %v339, %v338
    %v395 = vpack.c.bf16 %v341, %v340
    %v396 = vpack.c.bf16 %v343, %v342
    %v397 = vpack.c.bf16 %v345, %v344
    %v398 = vpack.c.bf16 %v347, %v346
    %v399 = vpack.c.bf16 %v349, %v348
    %v400 = vpack.c.bf16 %v351, %v350
    %v401 = vpack.c.bf16 %v353, %v352
    %v402 = vpack.c.bf16 %v355, %v354
    %v403 = vpack.c.bf16 %v357, %v356
    %v404 = vpack.c.bf16 %v359, %v358
    %v405 = vpack.c.bf16 %v361, %v360
    %v406 = vpack.c.bf16 %v363, %v362
    %v407 = vpack.c.bf16 %v365, %v364
    %v408 = vpack.c.bf16 %v367, %v366
    %v409 = vpack.c.bf16 %v369, %v368
    %v410 = vpack.c.bf16 %v371, %v370
    %v411 = vpack.c.bf16 %v373, %v372
    %v412 = vpack.c.bf16 %v375, %v374
    %v413 = vpack.c.bf16 %v377, %v376
    %v414 = vpack.c.bf16 %v379, %v378
    %v415 = vpack.c.bf16 %v381, %v380
    %v416 = vpack.c.bf16 %v383, %v382
    %v417 = vpack.c.bf16 %v385, %v384
    %v450 = vunpack.c.l.b16 %v386
    %v451 = vunpack.c.h.b16 %v386
    %v452 = vunpack.c.l.b16 %v387
    %v453 = vunpack.c.h.b16 %v387
    %v454 = vunpack.c.l.b16 %v388
    %v455 = vunpack.c.h.b16 %v388
    %v456 = vunpack.c.l.b16 %v389
    %v457 = vunpack.c.h.b16 %v389
    %v458 = vunpack.c.l.b16 %v390
    %v459 = vunpack.c.h.b16 %v390
    %v460 = vunpack.c.l.b16 %v391
    %v461 = vunpack.c.h.b16 %v391
    %v462 = vunpack.c.l.b16 %v392
    %v463 = vunpack.c.h.b16 %v392
    %v464 = vunpack.c.l.b16 %v393
    %v465 = vunpack.c.h.b16 %v393
    %v466 = vunpack.c.l.b16 %v394
    %v467 = vunpack.c.h.b16 %v394
    %v468 = vunpack.c.l.b16 %v395
    %v469 = vunpack.c.h.b16 %v395
    %v470 = vunpack.c.l.b16 %v396
    %v471 = vunpack.c.h.b16 %v396
    %v472 = vunpack.c.l.b16 %v397
    %v473 = vunpack.c.h.b16 %v397
    %v474 = vunpack.c.l.b16 %v398
    %v475 = vunpack.c.h.b16 %v398
    %v476 = vunpack.c.l.b16 %v399
    %v477 = vunpack.c.h.b16 %v399
    %v478 = vunpack.c.l.b16 %v400
    %v479 = vunpack.c.h.b16 %v400
    %v480 = vunpack.c.l.b16 %v401
    %v481 = vunpack.c.h.b16 %v401
    %v482 = vunpack.c.l.b16 %v402
    %v483 = vunpack.c.h.b16 %v402
    %v484 = vunpack.c.l.b16 %v403
    %v485 = vunpack.c.h.b16 %v403
    %v486 = vunpack.c.l.b16 %v404
    %v487 = vunpack.c.h.b16 %v404
    %v488 = vunpack.c.l.b16 %v405
    %v489 = vunpack.c.h.b16 %v405
    %v490 = vunpack.c.l.b16 %v406
    %v491 = vunpack.c.h.b16 %v406
    %v492 = vunpack.c.l.b16 %v407
    %v493 = vunpack.c.h.b16 %v407
    %v494 = vunpack.c.l.b16 %v408
    %v495 = vunpack.c.h.b16 %v408
    %v496 = vunpack.c.l.b16 %v409
    %v497 = vunpack.c.h.b16 %v409
    %v498 = vunpack.c.l.b16 %v410
    %v499 = vunpack.c.h.b16 %v410
    %v500 = vunpack.c.l.b16 %v411
    %v501 = vunpack.c.h.b16 %v411
    %v502 = vunpack.c.l.b16 %v412
    %v503 = vunpack.c.h.b16 %v412
    %v504 = vunpack.c.l.b16 %v413
    %v505 = vunpack.c.h.b16 %v413
    %v506 = vunpack.c.l.b16 %v414
    %v507 = vunpack.c.h.b16 %v414
    %v508 = vunpack.c.l.b16 %v415
    %v509 = vunpack.c.h.b16 %v415
    %v510 = vunpack.c.l.b16 %v416
    %v511 = vunpack.c.h.b16 %v416
    %v512 = vunpack.c.l.b16 %v417
    %v513 = vunpack.c.h.b16 %v417
    %v514 = vpack.c.b16 %v450, %v450
    %v515 = vpack.c.b16 %v451, %v451
    %v516 = vpack.c.b16 %v452, %v452
    %v517 = vpack.c.b16 %v453, %v453
    %v518 = vpack.c.b16 %v454, %v454
    %v519 = vpack.c.b16 %v455, %v455
    %v520 = vpack.c.b16 %v456, %v456
    %v521 = vpack.c.b16 %v457, %v457
    %v522 = vpack.c.b16 %v458, %v458
    %v523 = vpack.c.b16 %v459, %v459
    %v524 = vpack.c.b16 %v460, %v460
    %v525 = vpack.c.b16 %v461, %v461
    %v526 = vpack.c.b16 %v462, %v462
    %v527 = vpack.c.b16 %v463, %v463
    %v528 = vpack.c.b16 %v464, %v464
    %v529 = vpack.c.b16 %v465, %v465
    %v530 = vpack.c.b16 %v466, %v466
    %v531 = vpack.c.b16 %v467, %v467
    %v532 = vpack.c.b16 %v468, %v468
    %v533 = vpack.c.b16 %v469, %v469
    %v534 = vpack.c.b16 %v470, %v470
    %v535 = vpack.c.b16 %v471, %v471
    %v536 = vpack.c.b16 %v472, %v472
    %v537 = vpack.c.b16 %v473, %v473
    %v538 = vpack.c.b16 %v474, %v474
    %v539 = vpack.c.b16 %v475, %v475
    %v540 = vpack.c.b16 %v476, %v476
    %v541 = vpack.c.b16 %v477, %v477
    %v542 = vpack.c.b16 %v478, %v478
    %v543 = vpack.c.b16 %v479, %v479
    %v544 = vpack.c.b16 %v480, %v480
    %v545 = vpack.c.b16 %v481, %v481
    %v546 = vpack.c.b16 %v482, %v482
    %v547 = vpack.c.b16 %v483, %v483
    %v548 = vpack.c.b16 %v484, %v484
    %v549 = vpack.c.b16 %v485, %v485
    %v550 = vpack.c.b16 %v486, %v486
    %v551 = vpack.c.b16 %v487, %v487
    %v552 = vpack.c.b16 %v488, %v488
    %v553 = vpack.c.b16 %v489, %v489
    %v554 = vpack.c.b16 %v490, %v490
    %v555 = vpack.c.b16 %v491, %v491
    %v556 = vpack.c.b16 %v492, %v492
    %v557 = vpack.c.b16 %v493, %v493
    %v558 = vpack.c.b16 %v494, %v494
    %v559 = vpack.c.b16 %v495, %v495
    %v560 = vpack.c.b16 %v496, %v496
    %v561 = vpack.c.b16 %v497, %v497
    %v562 = vpack.c.b16 %v498, %v498
    %v563 = vpack.c.b16 %v499, %v499
    %v564 = vpack.c.b16 %v500, %v500
    %v565 = vpack.c.b16 %v501, %v501
    %v566 = vpack.c.b16 %v502, %v502
    %v567 = vpack.c.b16 %v503, %v503
    %v568 = vpack.c.b16 %v504, %v504
    %v569 = vpack.c.b16 %v505, %v505
    %v570 = vpack.c.b16 %v506, %v506
    %v571 = vpack.c.b16 %v507, %v507
    %v572 = vpack.c.b16 %v508, %v508
    %v573 = vpack.c.b16 %v509, %v509
    %v574 = vpack.c.b16 %v510, %v510
    %v575 = vpack.c.b16 %v511, %v511
    %v576 = vpack.c.b16 %v512, %v512
    %v577 = vpack.c.b16 %v513, %v513
    %642 = vst [vmem:[#allocation8] sm:$0xf] %v514
    %643 = vst [vmem:[#allocation8 + $0x4] sm:$0xf] %v515
    %644 = vst [vmem:[#allocation8 + $0x8] sm:$0xf] %v516
    %645 = vst [vmem:[#allocation8 + $0xc] sm:$0xf] %v517
    %646 = vst [vmem:[#allocation8 + $0x10] sm:$0xf] %v518
    %647 = vst [vmem:[#allocation8 + $0x14] sm:$0xf] %v519
    %648 = vst [vmem:[#allocation8 + $0x18] sm:$0xf] %v520
    %649 = vst [vmem:[#allocation8 + $0x1c] sm:$0xf] %v521
    %650 = vst [vmem:[#allocation8 + $0x20] sm:$0xf] %v522
    %651 = vst [vmem:[#allocation8 + $0x24] sm:$0xf] %v523
    %652 = vst [vmem:[#allocation8 + $0x28] sm:$0xf] %v524
    %653 = vst [vmem:[#allocation8 + $0x2c] sm:$0xf] %v525
    %654 = vst [vmem:[#allocation8 + $0x30] sm:$0xf] %v526
    %655 = vst [vmem:[#allocation8 + $0x34] sm:$0xf] %v527
    %656 = vst [vmem:[#allocation8 + $0x38] sm:$0xf] %v528
    %657 = vst [vmem:[#allocation8 + $0x3c] sm:$0xf] %v529
    %658 = vst [vmem:[#allocation8 + $0x40] sm:$0xf] %v530
    %659 = vst [vmem:[#allocation8 + $0x44] sm:$0xf] %v531
    %660 = vst [vmem:[#allocation8 + $0x48] sm:$0xf] %v532
    %661 = vst [vmem:[#allocation8 + $0x4c] sm:$0xf] %v533
    %662 = vst [vmem:[#allocation8 + $0x50] sm:$0xf] %v534
    %663 = vst [vmem:[#allocation8 + $0x54] sm:$0xf] %v535
    %664 = vst [vmem:[#allocation8 + $0x58] sm:$0xf] %v536
    %665 = vst [vmem:[#allocation8 + $0x5c] sm:$0xf] %v537
    %666 = vst [vmem:[#allocation8 + $0x60] sm:$0xf] %v538
    %667 = vst [vmem:[#allocation8 + $0x64] sm:$0xf] %v539
    %668 = vst [vmem:[#allocation8 + $0x68] sm:$0xf] %v540
    %669 = vst [vmem:[#allocation8 + $0x6c] sm:$0xf] %v541
    %670 = vst [vmem:[#allocation8 + $0x70] sm:$0xf] %v542
    %671 = vst [vmem:[#allocation8 + $0x74] sm:$0xf] %v543
    %672 = vst [vmem:[#allocation8 + $0x78] sm:$0xf] %v544
    %673 = vst [vmem:[#allocation8 + $0x7c] sm:$0xf] %v545
    %674 = vst [vmem:[#allocation8 + $0x80] sm:$0xf] %v546
    %675 = vst [vmem:[#allocation8 + $0x84] sm:$0xf] %v547
    %676 = vst [vmem:[#allocation8 + $0x88] sm:$0xf] %v548
    %677 = vst [vmem:[#allocation8 + $0x8c] sm:$0xf] %v549
    %678 = vst [vmem:[#allocation8 + $0x90] sm:$0xf] %v550
    %679 = vst [vmem:[#allocation8 + $0x94] sm:$0xf] %v551
    %680 = vst [vmem:[#allocation8 + $0x98] sm:$0xf] %v552
    %681 = vst [vmem:[#allocation8 + $0x9c] sm:$0xf] %v553
    %682 = vst [vmem:[#allocation8 + $0xa0] sm:$0xf] %v554
    %683 = vst [vmem:[#allocation8 + $0xa4] sm:$0xf] %v555
    %684 = vst [vmem:[#allocation8 + $0xa8] sm:$0xf] %v556
    %685 = vst [vmem:[#allocation8 + $0xac] sm:$0xf] %v557
    %686 = vst [vmem:[#allocation8 + $0xb0] sm:$0xf] %v558
    %687 = vst [vmem:[#allocation8 + $0xb4] sm:$0xf] %v559
    %688 = vst [vmem:[#allocation8 + $0xb8] sm:$0xf] %v560
    %689 = vst [vmem:[#allocation8 + $0xbc] sm:$0xf] %v561
    %690 = vst [vmem:[#allocation8 + $0xc0] sm:$0xf] %v562
    %691 = vst [vmem:[#allocation8 + $0xc4] sm:$0xf] %v563
    %692 = vst [vmem:[#allocation8 + $0xc8] sm:$0xf] %v564
    %693 = vst [vmem:[#allocation8 + $0xcc] sm:$0xf] %v565
    %694 = vst [vmem:[#allocation8 + $0xd0] sm:$0xf] %v566
    %695 = vst [vmem:[#allocation8 + $0xd4] sm:$0xf] %v567
    %696 = vst [vmem:[#allocation8 + $0xd8] sm:$0xf] %v568
    %697 = vst [vmem:[#allocation8 + $0xdc] sm:$0xf] %v569
    %698 = vst [vmem:[#allocation8 + $0xe0] sm:$0xf] %v570
    %699 = vst [vmem:[#allocation8 + $0xe4] sm:$0xf] %v571
    %700 = vst [vmem:[#allocation8 + $0xe8] sm:$0xf] %v572
    %701 = vst [vmem:[#allocation8 + $0xec] sm:$0xf] %v573
    %702 = vst [vmem:[#allocation8 + $0xf0] sm:$0xf] %v574
    %703 = vst [vmem:[#allocation8 + $0xf4] sm:$0xf] %v575
    %704 = vst [vmem:[#allocation8 + $0xf8] sm:$0xf] %v576
    %705 = vst [vmem:[#allocation8 + $0xfc] sm:$0xf] %v577
    // Predicated region
    $region26: #{bottleneck_forward.11} parent=1 // pred_check
      _
    $region27: #{bottleneck_forward.11} parent=1 // pred_check_branch
      %707 = sbr.rel (0) target = $region29
    $region28: #{bottleneck_forward.11} parent=1 // pred_region
      %s709 = ssub.s32 4096, 4096
      %710 = vsyncadd [#allocation4], %s709
      %s711 = sshll.u32 [#allocation8], 4
      %s712 = int_to_ptr.vmem [resolvable:$true] %s711
      %717 = dma.vmem_to_hbm [thread:$0]  %s712, 4096, %s3, [#allocation4], 64, 64, 4
    $region29: #{bottleneck_forward.11} parent=1 // pred_fallthru
      _
    // Predicated region
    $region30: #{bottleneck_forward.11} parent=1 // pred_check
      _
    $region31: #{bottleneck_forward.11} parent=1 // pred_check_branch
      %719 = sbr.rel (0) target = $region33
    $region32: #{bottleneck_forward.11} parent=1 // pred_region
      %720 = dma.done [#allocation4], 4096
    $region33: #{bottleneck_forward.11} parent=1 // pred_fallthru
      _
    %721 = vsyncpa [#allocation3], 1
    %722 = vsyncpa [#allocation6], 1
    %723 = vsyncpa [#allocation4], 1

// kernel: bottleneck_forward.14
$region0: #{bottleneck_forward.14}
  #allocation0 [shape = 'u32[]', space=smem, size = 0x4, offset = 0x4, fixed_abs, tag = 'smem constant byte address 0x4 - core index']
  #allocation1 [shape = 'u32[144,128]{1,0:T(1,128)}', space=vmem, size = 0x12000, scoped, tag = 'internal scratch']
  #allocation2 [shape = 'f32[256,256]{1,0:T(8,128)}', space=vmem, size = 0x40000, scoped, tag = 'scratch operand']
  %s0 = inlined_call_operand.hbm [shape: bf16[512,128], index: 0, kind: input, shape index: {}]
  %s1 = inlined_call_operand.hbm [shape: bf16[128,256], index: 1, kind: input, shape index: {}]
  %s2 = inlined_call_operand.hbm [shape: bf16[512,256], index: 2, kind: output, shape index: {0}]
  %s3 = inlined_call_operand.hbm [shape: f32[16,256], index: 3, kind: output, shape index: {1}]
  %4 = xla_tuple %s2, %s3
  %s5 = sld [smem:[#allocation0]]
  $region65: #{bottleneck_forward.14} parent=0
    _
  %s7 = ssub.s32 1, %s5
  %s8 = scalar_select 0, %s7, %s5
  $region1: #{bottleneck_forward.14} parent=0
    #allocation3 [shape = 'u8[131072]{0}', space=vmem, size = 0x20000, scoped, tag = 'input window, operand 0']
    #allocation4 [shape = 's32[2]{0}', space=sflag, size = 0x8, scoped, tag = 'scoped memory for bottleneck_forward.14']
    #allocation5 [shape = 's32[2]{0}', space=sflag, size = 0x8, scoped, tag = 'scoped memory for bottleneck_forward.14']
    #allocation6 [shape = 'u8[65536]{0}', space=vmem, size = 0x10000, scoped, tag = 'input window, operand 1, single buffered']
    #allocation7 [shape = 's32[1]{0}', space=sflag, size = 0x4, scoped, tag = 'scoped memory for bottleneck_forward.14']
    #allocation8 [shape = 'u8[262144]{0}', space=vmem, size = 0x40000, scoped, tag = 'output window, operand 0']
    #allocation9 [shape = 'u8[16384]{0}', space=vmem, size = 0x4000, scoped, tag = 'output window, operand 1']
    #allocation10 [shape = 's32[2]{0}', space=sflag, size = 0x8, scoped, tag = 'scoped memory for bottleneck_forward.14']
    %9 = vsyncpa [#allocation4], 0
    %s10 = scalar_lea.sflag [#allocation4], 1
    %11 = vsyncpa %s10, 0
    %12 = vsyncpa [#allocation7], 0
    %13 = vsyncpa [#allocation5], 0
    %s14 = scalar_lea.sflag [#allocation5], 1
    %15 = vsyncpa %s14, 0
    %16 = vsyncpa [#allocation10], 0
    %s17 = scalar_lea.sflag [#allocation10], 1
    %18 = vsyncpa %s17, 0
    loop: start=0, step=1, limit=4
    $region2: #{bottleneck_forward.14} parent=1 // loop_pre_header
      _
    $region3: #{bottleneck_forward.14} parent=1 // loop_header
      %s20 = sphi 0, %s24
      %p21 = scmp.ge.s32.totalorder %s20, 4
      %s27 = sphi 0, %s46
      %s28 = sphi 0, %s42
      %s29 = sphi 0, %s38
      %s30 = sphi 0, %s27
      %s31 = sphi 0, %s28
      %s32 = sphi 0, %s29
      %s33 = sphi 0, %s30
      %s34 = sphi 0, %s31
      %s35 = sphi 0, %s32
      %s51 = sphi 0, %s53
      %s54 = sphi 0, %s51
      %s55 = sphi 0, %s54
      %s71 = sphi 0, %s55
      %s79 = sphi 0, %s81
      %s82 = sphi 0, %s79
      %s83 = sphi 0, %s82
      %s99 = sphi 0, %s83
      %s107 = sphi 0, %s109
      %s110 = sphi 0, %s107
      %s111 = sphi 0, %s110
      %s127 = sphi 0, %s111
      %s135 = sphi 0, %s137
      %s138 = sphi 0, %s135
      %s139 = sphi 0, %s138
      %s155 = sphi 0, %s139
    $region4: #{bottleneck_forward.14} parent=1 // loop_header_branch
      %23 = sbr.rel (%p21) target = $region8
    $region5: #{bottleneck_forward.14} parent=1 // loop_body
      %s25 = ssub.s32 %s20, 1
      %s26 = ssub.s32 %s20, 2
      %s36 = sadd.s32 1, %s29
      %p37 = scmp.ge.s32.totalorder %s36, 1
      %s38 = scalar_select %p37, 0, %s36
      %s39 = sadd.s32 1, %s28
      %s40 = scalar_select %p37, %s39, %s28
      %p41 = scmp.ge.s32.totalorder %s40, 1
      %s42 = scalar_select %p41, 0, %s40
      %s43 = sadd.s32 1, %s27
      %s44 = scalar_select %p41, %s43, %s27
      %p45 = scmp.ge.s32.totalorder %s44, 2
      %s46 = scalar_select %p45, 0, %s44
      %s47 = ssub.s32 %s27, %s46
      %s48 = ssub.s32 %s29, %s38
      %s49 = sor.u32 %s47, %s48
      %p50 = scmp.eq.s32.totalorder %s49, 0
      %s52 = sadd.s32 %s51, 1
      %s53 = scalar_select %p50, %s51, %s52
      %p56 = pneg %p50
      %p57 = scmp.eq.s32.totalorder %s20, 1
      %p58 = por %p56, %p57
      %p59 = scmp.ne.s32.totalorder %s51, %s54
      %p60 = scmp.eq.s32.totalorder %s20, 0
      %p61 = por %p59, %p60
      %p62 = scmp.ne.s32.totalorder %s51, %s54
      %p63 = scmp.eq.s32.totalorder %s25, 1
      %p64 = por %p62, %p63
      %p65 = scmp.ne.s32.totalorder %s54, %s55
      %p66 = scmp.eq.s32.totalorder %s25, 0
      %p67 = por %p65, %p66
      %p68 = scmp.ne.s32.totalorder %s54, %s55
      %p69 = scmp.eq.s32.totalorder %s26, 1
      %p70 = por %p68, %p69
      %p72 = scmp.ne.s32.totalorder %s55, %s71
      %p73 = scmp.eq.s32.totalorder %s26, 0
      %p74 = por %p72, %p73
      %s75 = ssub.s32 %s29, %s38
      %s76 = ssub.s32 %s28, %s42
      %s77 = sor.u32 %s75, %s76
      %p78 = scmp.eq.s32.totalorder %s77, 0
      %s80 = sadd.s32 %s79, 1
      %s81 = scalar_select %p78, %s79, %s80
      %p84 = pneg %p78
      %p85 = scmp.eq.s32.totalorder %s20, 1
      %p86 = por %p84, %p85
      %p87 = scmp.ne.s32.totalorder %s79, %s82
      %p88 = scmp.eq.s32.totalorder %s20, 0
      %p89 = por %p87, %p88
      %p90 = scmp.ne.s32.totalorder %s79, %s82
      %p91 = scmp.eq.s32.totalorder %s25, 1
      %p92 = por %p90, %p91
      %p93 = scmp.ne.s32.totalorder %s82, %s83
      %p94 = scmp.eq.s32.totalorder %s25, 0
      %p95 = por %p93, %p94
      %p96 = scmp.ne.s32.totalorder %s82, %s83
      %p97 = scmp.eq.s32.totalorder %s26, 1
      %p98 = por %p96, %p97
      %p100 = scmp.ne.s32.totalorder %s83, %s99
      %p101 = scmp.eq.s32.totalorder %s26, 0
      %p102 = por %p100, %p101
      %s103 = ssub.s32 %s27, %s46
      %s104 = ssub.s32 %s28, %s42
      %s105 = sor.u32 %s103, %s104
      %p106 = scmp.eq.s32.totalorder %s105, 0
      %s108 = sadd.s32 %s107, 1
      %s109 = scalar_select %p106, %s107, %s108
      %p112 = pneg %p106
      %p113 = scmp.eq.s32.totalorder %s20, 1
      %p114 = por %p112, %p113
      %p115 = scmp.ne.s32.totalorder %s107, %s110
      %p116 = scmp.eq.s32.totalorder %s20, 0
      %p117 = por %p115, %p116
      %p118 = scmp.ne.s32.totalorder %s107, %s110
      %p119 = scmp.eq.s32.totalorder %s25, 1
      %p120 = por %p118, %p119
      %p121 = scmp.ne.s32.totalorder %s110, %s111
      %p122 = scmp.eq.s32.totalorder %s25, 0
      %p123 = por %p121, %p122
      %p124 = scmp.ne.s32.totalorder %s110, %s111
      %p125 = scmp.eq.s32.totalorder %s26, 1
      %p126 = por %p124, %p125
      %p128 = scmp.ne.s32.totalorder %s111, %s127
      %p129 = scmp.eq.s32.totalorder %s26, 0
      %p130 = por %p128, %p129
      %s131 = ssub.s32 %s27, %s46
      %s132 = ssub.s32 %s28, %s42
      %s133 = sor.u32 %s131, %s132
      %p134 = scmp.eq.s32.totalorder %s133, 0
      %s136 = sadd.s32 %s135, 1
      %s137 = scalar_select %p134, %s135, %s136
      %p140 = pneg %p134
      %p141 = scmp.eq.s32.totalorder %s20, 1
      %p142 = por %p140, %p141
      %p143 = scmp.ne.s32.totalorder %s135, %s138
      %p144 = scmp.eq.s32.totalorder %s20, 0
      %p145 = por %p143, %p144
      %p146 = scmp.ne.s32.totalorder %s135, %s138
      %p147 = scmp.eq.s32.totalorder %s25, 1
      %p148 = por %p146, %p147
      %p149 = scmp.ne.s32.totalorder %s138, %s139
      %p150 = scmp.eq.s32.totalorder %s25, 0
      %p151 = por %p149, %p150
      %p152 = scmp.ne.s32.totalorder %s138, %s139
      %p153 = scmp.eq.s32.totalorder %s26, 1
      %p154 = por %p152, %p153
      %p156 = scmp.ne.s32.totalorder %s139, %s155
      %p157 = scmp.eq.s32.totalorder %s26, 0
      %p158 = por %p156, %p157
      %p159 = scmp.le.s32.totalorder 1, %s20
      %p160 = scmp.lt.s32.totalorder %s20, 3
      %p161 = pnand %p159, %p160
      %p162 = pneg %p161
      // Predicated region
      $region9: #{bottleneck_forward.14} parent=5 // pred_check
        _
      $region10: #{bottleneck_forward.14} parent=5 // pred_check_branch
        %164 = sbr.rel (%p161) target = $region12
      $region11: #{bottleneck_forward.14} parent=5 // pred_region
        %s165 = ssub.s32 %s20, 1
        // Predicated region
        $region13: #{bottleneck_forward.14} parent=11 // pred_check
          %p166 = pneg %p95
        $region14: #{bottleneck_forward.14} parent=11 // pred_check_branch
          %168 = sbr.rel (%p166) target = $region16
        $region15: #{bottleneck_forward.14} parent=11 // pred_region
          %s169 = smul.u32 16, %s32
          %s170 = smul.u32 2, %s31
          %s172 = ssub.s32 2048, 2048
          %173 = vsyncadd [#allocation7], %s172
          %s174 = smul.addr %s169, 2
          %s175 = sadd.s32 %s170, %s174
          %s176 = smul.addr %s175, 64
          %s177 = scalar_lea.hbm %s1, %s176
          %s178 = sshll.u32 [#allocation6], 4
          %s179 = int_to_ptr.vmem [resolvable:$true] %s178
          %184 = dma.hbm_to_vmem [thread:$0]  %s177, 2048, %s179, [#allocation7], 128, 128, 8
        $region16: #{bottleneck_forward.14} parent=11 // pred_fallthru
          _
      $region12: #{bottleneck_forward.14} parent=5 // pred_fallthru
        _
      %p185 = scmp.lt.s32.totalorder %s20, 2
      // Predicated region
      $region17: #{bottleneck_forward.14} parent=5 // pred_check
        %p186 = pneg %p185
      $region18: #{bottleneck_forward.14} parent=5 // pred_check_branch
        %188 = sbr.rel (%p186) target = $region20
      $region19: #{bottleneck_forward.14} parent=5 // pred_region
        // Predicated region
        $region21: #{bottleneck_forward.14} parent=19 // pred_check
          %p189 = pneg %p61
        $region22: #{bottleneck_forward.14} parent=19 // pred_check_branch
          %191 = sbr.rel (%p189) target = $region24
        $region23: #{bottleneck_forward.14} parent=19 // pred_region
          %s192 = sand.u32 %s51, 1
          %s193 = scalar_lea.sflag [#allocation4], %s192
          %s194 = sand.u32 %s51, 1
          %s195 = smul.addr %s194, 128
          %s196 = scalar_lea.vmem [#allocation3], %s195
          %s197 = smul.u32 32, %s27
          %s199 = ssub.s32 2048, 2048
          %200 = vsyncadd %s193, %s199
          %s201 = sadd.s32 %s29, %s197
          %s202 = smul.addr %s201, 64
          %s203 = scalar_lea.hbm %s0, %s202
          %s204 = sshll.u32 %s196, 4
          %s205 = int_to_ptr.vmem [resolvable:$true] %s204
          %210 = dma.hbm_to_vmem [thread:$0]  %s203, 2048, %s205, %s193, 64, 64, 4
        $region24: #{bottleneck_forward.14} parent=19 // pred_fallthru
          _
      $region20: #{bottleneck_forward.14} parent=5 // pred_fallthru
        _
      %p211 = scmp.le.s32.totalorder 1, %s20
      %p212 = scmp.lt.s32.totalorder %s20, 3
      %p213 = pnand %p211, %p212
      %p214 = pneg %p213
      // Predicated region
      $region25: #{bottleneck_forward.14} parent=5 // pred_check
        _
      $region26: #{bottleneck_forward.14} parent=5 // pred_check_branch
        %216 = sbr.rel (%p213) target = $region28
      $region27: #{bottleneck_forward.14} parent=5 // pred_region
        %s217 = ssub.s32 %s20, 1
        %s218 = sand.u32 %s54, 1
        %s219 = scalar_lea.sflag [#allocation4], %s218
        %s220 = sand.u32 %s54, 1
        %s221 = smul.addr %s220, 128
        %s222 = scalar_lea.vmem [#allocation3], %s221
        // Predicated region
        $region29: #{bottleneck_forward.14} parent=27 // pred_check
          %p223 = pneg %p67
        $region30: #{bottleneck_forward.14} parent=27 // pred_check_branch
          %225 = sbr.rel (%p223) target = $region32
        $region31: #{bottleneck_forward.14} parent=27 // pred_region
          %226 = dma.done %s219, 2048
        $region32: #{bottleneck_forward.14} parent=27 // pred_fallthru
          _
        // Predicated region
        $region33: #{bottleneck_forward.14} parent=27 // pred_check
          %p227 = pneg %p95
        $region34: #{bottleneck_forward.14} parent=27 // pred_check_branch
          %229 = sbr.rel (%p227) target = $region36
        $region35: #{bottleneck_forward.14} parent=27 // pred_region
          %230 = dma.done [#allocation7], 2048
        $region36: #{bottleneck_forward.14} parent=27 // pred_fallthru
          _
        %s231 = sand.u32 %s54, 1
        %s232 = scalar_lea.sflag [#allocation4], %s231
        %s233 = sand.u32 %s54, 1
        %s234 = smul.addr %s233, 128
        %s235 = scalar_lea.vmem [#allocation3], %s234
        %p236 = pneg %p67
        %p237 = pneg %p64
        %p238 = pneg %p95
        %p239 = pneg %p92
        %p240 = pneg %p123
        %p241 = pneg %p120
        %s242 = sand.u32 %s110, 1
        %s243 = scalar_lea.sflag [#allocation5], %s242
        %s244 = sand.u32 %s110, 1
        %s245 = smul.addr %s244, 256
        %s246 = scalar_lea.vmem [#allocation8], %s245
        %p247 = pneg %p151
        %p248 = pneg %p148
        %s249 = sand.u32 %s138, 1
        %s250 = scalar_lea.sflag [#allocation10], %s249
        %s251 = sand.u32 %s138, 1
        %s252 = smul.addr %s251, 16
        %s253 = scalar_lea.vmem [#allocation9], %s252
        %s254 = smul.u32 32, %s30
        %s255 = smul.u32 16, %s32
        %s256 = smul.u32 2, %s31
        %s257 = smul.u32 32, %s30
        %s258 = smul.u32 2, %s31
        %s259 = smul.u32 2, %s31
        %p261 = scmp.eq.s32.totalorder %s32, 0
        // Predicated region
        $region37: #{bottleneck_forward.14} parent=27 // pred_check
          %p262 = pneg %p261
        $region38: #{bottleneck_forward.14} parent=27 // pred_check_branch
          %264 = sbr.rel (%p262) target = $region40
        $region39: #{bottleneck_forward.14} parent=27 // pred_region
          %265 = vst [vmem:[#allocation2] sm:$0xff] 0.0
          %266 = vst [vmem:[#allocation2 + $0x8] sm:$0xff] 0.0
          %267 = vst [vmem:[#allocation2 + $0x10] sm:$0xff] 0.0
          %268 = vst [vmem:[#allocation2 + $0x18] sm:$0xff] 0.0
          %269 = vst [vmem:[#allocation2 + $0x20] sm:$0xff] 0.0
          %270 = vst [vmem:[#allocation2 + $0x28] sm:$0xff] 0.0
          %271 = vst [vmem:[#allocation2 + $0x30] sm:$0xff] 0.0
          %272 = vst [vmem:[#allocation2 + $0x38] sm:$0xff] 0.0
          %273 = vst [vmem:[#allocation2 + $0x40] sm:$0xff] 0.0
          %274 = vst [vmem:[#allocation2 + $0x48] sm:$0xff] 0.0
          %275 = vst [vmem:[#allocation2 + $0x50] sm:$0xff] 0.0
          %276 = vst [vmem:[#allocation2 + $0x58] sm:$0xff] 0.0
          %277 = vst [vmem:[#allocation2 + $0x60] sm:$0xff] 0.0
          %278 = vst [vmem:[#allocation2 + $0x68] sm:$0xff] 0.0
          %279 = vst [vmem:[#allocation2 + $0x70] sm:$0xff] 0.0
          %280 = vst [vmem:[#allocation2 + $0x78] sm:$0xff] 0.0
          %281 = vst [vmem:[#allocation2 + $0x80] sm:$0xff] 0.0
          %282 = vst [vmem:[#allocation2 + $0x88] sm:$0xff] 0.0
          %283 = vst [vmem:[#allocation2 + $0x90] sm:$0xff] 0.0
          %284 = vst [vmem:[#allocation2 + $0x98] sm:$0xff] 0.0
          %285 = vst [vmem:[#allocation2 + $0xa0] sm:$0xff] 0.0
          %286 = vst [vmem:[#allocation2 + $0xa8] sm:$0xff] 0.0
          %287 = vst [vmem:[#allocation2 + $0xb0] sm:$0xff] 0.0
          %288 = vst [vmem:[#allocation2 + $0xb8] sm:$0xff] 0.0
          %289 = vst [vmem:[#allocation2 + $0xc0] sm:$0xff] 0.0
          %290 = vst [vmem:[#allocation2 + $0xc8] sm:$0xff] 0.0
          %291 = vst [vmem:[#allocation2 + $0xd0] sm:$0xff] 0.0
          %292 = vst [vmem:[#allocation2 + $0xd8] sm:$0xff] 0.0
          %293 = vst [vmem:[#allocation2 + $0xe0] sm:$0xff] 0.0
          %294 = vst [vmem:[#allocation2 + $0xe8] sm:$0xff] 0.0
          %295 = vst [vmem:[#allocation2 + $0xf0] sm:$0xff] 0.0
          %296 = vst [vmem:[#allocation2 + $0xf8] sm:$0xff] 0.0
          %297 = vst [vmem:[#allocation2 + $0x100] sm:$0xff] 0.0
          %298 = vst [vmem:[#allocation2 + $0x108] sm:$0xff] 0.0
          %299 = vst [vmem:[#allocation2 + $0x110] sm:$0xff] 0.0
          %300 = vst [vmem:[#allocation2 + $0x118] sm:$0xff] 0.0
          %301 = vst [vmem:[#allocation2 + $0x120] sm:$0xff] 0.0
          %302 = vst [vmem:[#allocation2 + $0x128] sm:$0xff] 0.0
          %303 = vst [vmem:[#allocation2 + $0x130] sm:$0xff] 0.0
          %304 = vst [vmem:[#allocation2 + $0x138] sm:$0xff] 0.0
          %305 = vst [vmem:[#allocation2 + $0x140] sm:$0xff] 0.0
          %306 = vst [vmem:[#allocation2 + $0x148] sm:$0xff] 0.0
          %307 = vst [vmem:[#allocation2 + $0x150] sm:$0xff] 0.0
          %308 = vst [vmem:[#allocation2 + $0x158] sm:$0xff] 0.0
          %309 = vst [vmem:[#allocation2 + $0x160] sm:$0xff] 0.0
          %310 = vst [vmem:[#allocation2 + $0x168] sm:$0xff] 0.0
          %311 = vst [vmem:[#allocation2 + $0x170] sm:$0xff] 0.0
          %312 = vst [vmem:[#allocation2 + $0x178] sm:$0xff] 0.0
          %313 = vst [vmem:[#allocation2 + $0x180] sm:$0xff] 0.0
          %314 = vst [vmem:[#allocation2 + $0x188] sm:$0xff] 0.0
          %315 = vst [vmem:[#allocation2 + $0x190] sm:$0xff] 0.0
          %316 = vst [vmem:[#allocation2 + $0x198] sm:$0xff] 0.0
          %317 = vst [vmem:[#allocation2 + $0x1a0] sm:$0xff] 0.0
          %318 = vst [vmem:[#allocation2 + $0x1a8] sm:$0xff] 0.0
          %319 = vst [vmem:[#allocation2 + $0x1b0] sm:$0xff] 0.0
          %320 = vst [vmem:[#allocation2 + $0x1b8] sm:$0xff] 0.0
          %321 = vst [vmem:[#allocation2 + $0x1c0] sm:$0xff] 0.0
          %322 = vst [vmem:[#allocation2 + $0x1c8] sm:$0xff] 0.0
          %323 = vst [vmem:[#allocation2 + $0x1d0] sm:$0xff] 0.0
          %324 = vst [vmem:[#allocation2 + $0x1d8] sm:$0xff] 0.0
          %325 = vst [vmem:[#allocation2 + $0x1e0] sm:$0xff] 0.0
          %326 = vst [vmem:[#allocation2 + $0x1e8] sm:$0xff] 0.0
          %327 = vst [vmem:[#allocation2 + $0x1f0] sm:$0xff] 0.0
          %328 = vst [vmem:[#allocation2 + $0x1f8] sm:$0xff] 0.0
        $region40: #{bottleneck_forward.14} parent=27 // pred_fallthru
          _
        %v329 = vld [vmem:[#allocation2] sm:$0xff]
        %v330 = vld [vmem:[#allocation2 + $0x8] sm:$0xff]
        %v331 = vld [vmem:[#allocation2 + $0x10] sm:$0xff]
        %v332 = vld [vmem:[#allocation2 + $0x18] sm:$0xff]
        %v333 = vld [vmem:[#allocation2 + $0x20] sm:$0xff]
        %v334 = vld [vmem:[#allocation2 + $0x28] sm:$0xff]
        %v335 = vld [vmem:[#allocation2 + $0x30] sm:$0xff]
        %v336 = vld [vmem:[#allocation2 + $0x38] sm:$0xff]
        %v337 = vld [vmem:[#allocation2 + $0x40] sm:$0xff]
        %v338 = vld [vmem:[#allocation2 + $0x48] sm:$0xff]
        %v339 = vld [vmem:[#allocation2 + $0x50] sm:$0xff]
        %v340 = vld [vmem:[#allocation2 + $0x58] sm:$0xff]
        %v341 = vld [vmem:[#allocation2 + $0x60] sm:$0xff]
        %v342 = vld [vmem:[#allocation2 + $0x68] sm:$0xff]
        %v343 = vld [vmem:[#allocation2 + $0x70] sm:$0xff]
        %v344 = vld [vmem:[#allocation2 + $0x78] sm:$0xff]
        %v345 = vld [vmem:[#allocation2 + $0x80] sm:$0xff]
        %v346 = vld [vmem:[#allocation2 + $0x88] sm:$0xff]
        %v347 = vld [vmem:[#allocation2 + $0x90] sm:$0xff]
        %v348 = vld [vmem:[#allocation2 + $0x98] sm:$0xff]
        %v349 = vld [vmem:[#allocation2 + $0xa0] sm:$0xff]
        %v350 = vld [vmem:[#allocation2 + $0xa8] sm:$0xff]
        %v351 = vld [vmem:[#allocation2 + $0xb0] sm:$0xff]
        %v352 = vld [vmem:[#allocation2 + $0xb8] sm:$0xff]
        %v353 = vld [vmem:[#allocation2 + $0xc0] sm:$0xff]
        %v354 = vld [vmem:[#allocation2 + $0xc8] sm:$0xff]
        %v355 = vld [vmem:[#allocation2 + $0xd0] sm:$0xff]
        %v356 = vld [vmem:[#allocation2 + $0xd8] sm:$0xff]
        %v357 = vld [vmem:[#allocation2 + $0xe0] sm:$0xff]
        %v358 = vld [vmem:[#allocation2 + $0xe8] sm:$0xff]
        %v359 = vld [vmem:[#allocation2 + $0xf0] sm:$0xff]
        %v360 = vld [vmem:[#allocation2 + $0xf8] sm:$0xff]
        %v361 = vld [vmem:[#allocation2 + $0x100] sm:$0xff]
        %v362 = vld [vmem:[#allocation2 + $0x108] sm:$0xff]
        %v363 = vld [vmem:[#allocation2 + $0x110] sm:$0xff]
        %v364 = vld [vmem:[#allocation2 + $0x118] sm:$0xff]
        %v365 = vld [vmem:[#allocation2 + $0x120] sm:$0xff]
        %v366 = vld [vmem:[#allocation2 + $0x128] sm:$0xff]
        %v367 = vld [vmem:[#allocation2 + $0x130] sm:$0xff]
        %v368 = vld [vmem:[#allocation2 + $0x138] sm:$0xff]
        %v369 = vld [vmem:[#allocation2 + $0x140] sm:$0xff]
        %v370 = vld [vmem:[#allocation2 + $0x148] sm:$0xff]
        %v371 = vld [vmem:[#allocation2 + $0x150] sm:$0xff]
        %v372 = vld [vmem:[#allocation2 + $0x158] sm:$0xff]
        %v373 = vld [vmem:[#allocation2 + $0x160] sm:$0xff]
        %v374 = vld [vmem:[#allocation2 + $0x168] sm:$0xff]
        %v375 = vld [vmem:[#allocation2 + $0x170] sm:$0xff]
        %v376 = vld [vmem:[#allocation2 + $0x178] sm:$0xff]
        %v377 = vld [vmem:[#allocation2 + $0x180] sm:$0xff]
        %v378 = vld [vmem:[#allocation2 + $0x188] sm:$0xff]
        %v379 = vld [vmem:[#allocation2 + $0x190] sm:$0xff]
        %v380 = vld [vmem:[#allocation2 + $0x198] sm:$0xff]
        %v381 = vld [vmem:[#allocation2 + $0x1a0] sm:$0xff]
        %v382 = vld [vmem:[#allocation2 + $0x1a8] sm:$0xff]
        %v383 = vld [vmem:[#allocation2 + $0x1b0] sm:$0xff]
        %v384 = vld [vmem:[#allocation2 + $0x1b8] sm:$0xff]
        %v385 = vld [vmem:[#allocation2 + $0x1c0] sm:$0xff]
        %v386 = vld [vmem:[#allocation2 + $0x1c8] sm:$0xff]
        %v387 = vld [vmem:[#allocation2 + $0x1d0] sm:$0xff]
        %v388 = vld [vmem:[#allocation2 + $0x1d8] sm:$0xff]
        %v389 = vld [vmem:[#allocation2 + $0x1e0] sm:$0xff]
        %v390 = vld [vmem:[#allocation2 + $0x1e8] sm:$0xff]
        %v391 = vld [vmem:[#allocation2 + $0x1f0] sm:$0xff]
        %v392 = vld [vmem:[#allocation2 + $0x1f8] sm:$0xff]
        %v393 = vld [vmem:[%s222] sm:$0xf]
        %v394 = vld [vmem:[%s222 + $0x4] sm:$0xf]
        %v395 = vld [vmem:[%s222 + $0x8] sm:$0xf]
        %v396 = vld [vmem:[%s222 + $0xc] sm:$0xf]
        %v397 = vld [vmem:[%s222 + $0x10] sm:$0xf]
        %v398 = vld [vmem:[%s222 + $0x14] sm:$0xf]
        %v399 = vld [vmem:[%s222 + $0x18] sm:$0xf]
        %v400 = vld [vmem:[%s222 + $0x1c] sm:$0xf]
        %v401 = vld [vmem:[%s222 + $0x20] sm:$0xf]
        %v402 = vld [vmem:[%s222 + $0x24] sm:$0xf]
        %v403 = vld [vmem:[%s222 + $0x28] sm:$0xf]
        %v404 = vld [vmem:[%s222 + $0x2c] sm:$0xf]
        %v405 = vld [vmem:[%s222 + $0x30] sm:$0xf]
        %v406 = vld [vmem:[%s222 + $0x34] sm:$0xf]
        %v407 = vld [vmem:[%s222 + $0x38] sm:$0xf]
        %v408 = vld [vmem:[%s222 + $0x3c] sm:$0xf]
        %v409 = vld [vmem:[%s222 + $0x40] sm:$0xf]
        %v410 = vld [vmem:[%s222 + $0x44] sm:$0xf]
        %v411 = vld [vmem:[%s222 + $0x48] sm:$0xf]
        %v412 = vld [vmem:[%s222 + $0x4c] sm:$0xf]
        %v413 = vld [vmem:[%s222 + $0x50] sm:$0xf]
        %v414 = vld [vmem:[%s222 + $0x54] sm:$0xf]
        %v415 = vld [vmem:[%s222 + $0x58] sm:$0xf]
        %v416 = vld [vmem:[%s222 + $0x5c] sm:$0xf]
        %v417 = vld [vmem:[%s222 + $0x60] sm:$0xf]
        %v418 = vld [vmem:[%s222 + $0x64] sm:$0xf]
        %v419 = vld [vmem:[%s222 + $0x68] sm:$0xf]
        %v420 = vld [vmem:[%s222 + $0x6c] sm:$0xf]
        %v421 = vld [vmem:[%s222 + $0x70] sm:$0xf]
        %v422 = vld [vmem:[%s222 + $0x74] sm:$0xf]
        %v423 = vld [vmem:[%s222 + $0x78] sm:$0xf]
        %v424 = vld [vmem:[%s222 + $0x7c] sm:$0xf]
        %v425 = vld [vmem:[#allocation6] sm:$0xff]
        %v426 = vld [vmem:[#allocation6 + $0x8] sm:$0xff]
        %v427 = vld [vmem:[#allocation6 + $0x10] sm:$0xff]
        %v428 = vld [vmem:[#allocation6 + $0x18] sm:$0xff]
        %v429 = vld [vmem:[#allocation6 + $0x20] sm:$0xff]
        %v430 = vld [vmem:[#allocation6 + $0x28] sm:$0xff]
        %v431 = vld [vmem:[#allocation6 + $0x30] sm:$0xff]
        %v432 = vld [vmem:[#allocation6 + $0x38] sm:$0xff]
        %v433 = vld [vmem:[#allocation6 + $0x40] sm:$0xff]
        %v434 = vld [vmem:[#allocation6 + $0x48] sm:$0xff]
        %v435 = vld [vmem:[#allocation6 + $0x50] sm:$0xff]
        %v436 = vld [vmem:[#allocation6 + $0x58] sm:$0xff]
        %v437 = vld [vmem:[#allocation6 + $0x60] sm:$0xff]
        %v438 = vld [vmem:[#allocation6 + $0x68] sm:$0xff]
        %v439 = vld [vmem:[#allocation6 + $0x70] sm:$0xff]
        %v440 = vld [vmem:[#allocation6 + $0x78] sm:$0xff]
        %v473 = vunpack.c.l.b16 %v393
        %v474 = vunpack.c.l.b16 %v394
        %v475 = vunpack.c.l.b16 %v395
        %v476 = vunpack.c.l.b16 %v396
        %v477 = vunpack.c.l.b16 %v397
        %v478 = vunpack.c.l.b16 %v398
        %v479 = vunpack.c.l.b16 %v399
        %v480 = vunpack.c.l.b16 %v400
        %v481 = vunpack.c.l.b16 %v401
        %v482 = vunpack.c.l.b16 %v402
        %v483 = vunpack.c.l.b16 %v403
        %v484 = vunpack.c.l.b16 %v404
        %v485 = vunpack.c.l.b16 %v405
        %v486 = vunpack.c.l.b16 %v406
        %v487 = vunpack.c.l.b16 %v407
        %v488 = vunpack.c.l.b16 %v408
        %v489 = vunpack.c.l.b16 %v409
        %v490 = vunpack.c.l.b16 %v410
        %v491 = vunpack.c.l.b16 %v411
        %v492 = vunpack.c.l.b16 %v412
        %v493 = vunpack.c.l.b16 %v413
        %v494 = vunpack.c.l.b16 %v414
        %v495 = vunpack.c.l.b16 %v415
        %v496 = vunpack.c.l.b16 %v416
        %v497 = vunpack.c.l.b16 %v417
        %v498 = vunpack.c.l.b16 %v418
        %v499 = vunpack.c.l.b16 %v419
        %v500 = vunpack.c.l.b16 %v420
        %v501 = vunpack.c.l.b16 %v421
        %v502 = vunpack.c.l.b16 %v422
        %v503 = vunpack.c.l.b16 %v423
        %v504 = vunpack.c.l.b16 %v424
        %v505 = vpack.c.b16 %v474, %v473
        %v506 = vpack.c.b16 %v476, %v475
        %v507 = vpack.c.b16 %v478, %v477
        %v508 = vpack.c.b16 %v480, %v479
        %v509 = vpack.c.b16 %v482, %v481
        %v510 = vpack.c.b16 %v484, %v483
        %v511 = vpack.c.b16 %v486, %v485
        %v512 = vpack.c.b16 %v488, %v487
        %v513 = vpack.c.b16 %v490, %v489
        %v514 = vpack.c.b16 %v492, %v491
        %v515 = vpack.c.b16 %v494, %v493
        %v516 = vpack.c.b16 %v496, %v495
        %v517 = vpack.c.b16 %v498, %v497
        %v518 = vpack.c.b16 %v500, %v499
        %v519 = vpack.c.b16 %v502, %v501
        %v520 = vpack.c.b16 %v504, %v503
        %v553 = vunpack.c.l.b16 %v425
        %v554 = vunpack.c.h.b16 %v425
        %v555 = vunpack.c.l.b16 %v426
        %v556 = vunpack.c.h.b16 %v426
        %v557 = vunpack.c.l.b16 %v427
        %v558 = vunpack.c.h.b16 %v427
        %v559 = vunpack.c.l.b16 %v428
        %v560 = vunpack.c.h.b16 %v428
        %v561 = vunpack.c.l.b16 %v429
        %v562 = vunpack.c.h.b16 %v429
        %v563 = vunpack.c.l.b16 %v430
        %v564 = vunpack.c.h.b16 %v430
        %v565 = vunpack.c.l.b16 %v431
        %v566 = vunpack.c.h.b16 %v431
        %v567 = vunpack.c.l.b16 %v432
        %v568 = vunpack.c.h.b16 %v432
        %v569 = vunpack.c.l.b16 %v433
        %v570 = vunpack.c.h.b16 %v433
        %v571 = vunpack.c.l.b16 %v434
        %v572 = vunpack.c.h.b16 %v434
        %v573 = vunpack.c.l.b16 %v435
        %v574 = vunpack.c.h.b16 %v435
        %v575 = vunpack.c.l.b16 %v436
        %v576 = vunpack.c.h.b16 %v436
        %v577 = vunpack.c.l.b16 %v437
        %v578 = vunpack.c.h.b16 %v437
        %v579 = vunpack.c.l.b16 %v438
        %v580 = vunpack.c.h.b16 %v438
        %v581 = vunpack.c.l.b16 %v439
        %v582 = vunpack.c.h.b16 %v439
        %v583 = vunpack.c.l.b16 %v440
        %v584 = vunpack.c.h.b16 %v440
        %v585 = vpack.c.b16 %v555, %v553
        %v586 = vpack.c.b16 %v556, %v554
        %v587 = vpack.c.b16 %v559, %v557
        %v588 = vpack.c.b16 %v560, %v558
        %v589 = vpack.c.b16 %v563, %v561
        %v590 = vpack.c.b16 %v564, %v562
        %v591 = vpack.c.b16 %v567, %v565
        %v592 = vpack.c.b16 %v568, %v566
        %v593 = vpack.c.b16 %v571, %v569
        %v594 = vpack.c.b16 %v572, %v570
        %v595 = vpack.c.b16 %v575, %v573
        %v596 = vpack.c.b16 %v576, %v574
        %v597 = vpack.c.b16 %v579, %v577
        %v598 = vpack.c.b16 %v580, %v578
        %v599 = vpack.c.b16 %v583, %v581
        %v600 = vpack.c.b16 %v584, %v582
        %617 = vmatprep.subr.bf16.mxu0 %v586
        %618 = vmatpush1.bf16.msra.mxu0 %v585
        %619 = vmatprep.subr.bf16.mxu0 %v588
        %620 = vmatpush1.bf16.msra.mxu0 %v587
        %621 = vmatprep.subr.bf16.mxu0 %v590
        %622 = vmatpush1.bf16.msra.mxu0 %v589
        %623 = vmatprep.subr.bf16.mxu0 %v592
        %624 = vmatpush1.bf16.msra.mxu0 %v591
        %625 = vmatprep.subr.bf16.mxu0 %v594
        %626 = vmatpush1.bf16.msra.mxu0 %v593
        %627 = vmatprep.subr.bf16.mxu0 %v596
        %628 = vmatpush1.bf16.msra.mxu0 %v595
        %629 = vmatprep.subr.bf16.mxu0 %v598
        %630 = vmatpush1.bf16.msra.mxu0 %v597
        %631 = vmatprep.subr.bf16.mxu0 %v600
        %632 = vmatpush1.bf16.msra.mxu0 %v599
        %633 = vmatprep.subr.bf16.mxu0 0
        %634 = vmatpush1.bf16.msra.mxu0 0
        %635 = vmatprep.subr.bf16.mxu0 0
        %636 = vmatpush1.bf16.msra.mxu0 0
        %637 = vmatprep.subr.bf16.mxu0 0
        %638 = vmatpush1.bf16.msra.mxu0 0
        %639 = vmatprep.subr.bf16.mxu0 0
        %640 = vmatpush1.bf16.msra.mxu0 0
        %641 = vmatprep.subr.bf16.mxu0 0
        %642 = vmatpush1.bf16.msra.mxu0 0
        %643 = vmatprep.subr.bf16.mxu0 0
        %644 = vmatpush1.bf16.msra.mxu0 0
        %645 = vmatprep.subr.bf16.mxu0 0
        %646 = vmatpush1.bf16.msra.mxu0 0
        %647 = vmatprep.subr.bf16.mxu0 0
        %648 = vmatpush1.bf16.msra.mxu0 0
        %649 = vmatprep.mubr.bf16.mxu0 0
        %650 = vmatmul.mubr.bf16.gmra.mrb[0].mxu0 %v505
        %v651 = vpop.f32.mrb[0].mxu0
        %v652 = vadd.f32 0.0, %v651
        %v653 = vpop.f32.mrb[0].mxu0
        %v654 = vadd.f32 0.0, %v653
        %v655 = vpop.f32.mrb[0].mxu0
        %v656 = vadd.f32 0.0, %v655
        %v657 = vpop.f32.mrb[0].mxu0
        %v658 = vadd.f32 0.0, %v657
        %659 = vmatprep.mubr.bf16.mxu0 0
        %660 = vmatmul.mubr.bf16.gmra.mrb[0].mxu0 %v506
        %v661 = vpop.f32.mrb[0].mxu0
        %v662 = vadd.f32 0.0, %v661
        %v663 = vpop.f32.mrb[0].mxu0
        %v664 = vadd.f32 0.0, %v663
        %v665 = vpop.f32.mrb[0].mxu0
        %v666 = vadd.f32 0.0, %v665
        %v667 = vpop.f32.mrb[0].mxu0
        %v668 = vadd.f32 0.0, %v667
        %669 = vmatprep.mubr.bf16.mxu0 0
        %670 = vmatmul.mubr.bf16.gmra.mrb[0].mxu0 %v507
        %v671 = vpop.f32.mrb[0].mxu0
        %v672 = vadd.f32 0.0, %v671
        %v673 = vpop.f32.mrb[0].mxu0
        %v674 = vadd.f32 0.0, %v673
        %v675 = vpop.f32.mrb[0].mxu0
        %v676 = vadd.f32 0.0, %v675
        %v677 = vpop.f32.mrb[0].mxu0
        %v678 = vadd.f32 0.0, %v677
        %679 = vmatprep.mubr.bf16.mxu0 0
        %680 = vmatmul.mubr.bf16.gmra.mrb[0].mxu0 %v508
        %v681 = vpop.f32.mrb[0].mxu0
        %v682 = vadd.f32 0.0, %v681
        %v683 = vpop.f32.mrb[0].mxu0
        %v684 = vadd.f32 0.0, %v683
        %v685 = vpop.f32.mrb[0].mxu0
        %v686 = vadd.f32 0.0, %v685
        %v687 = vpop.f32.mrb[0].mxu0
        %v688 = vadd.f32 0.0, %v687
        %689 = vmatprep.mubr.bf16.mxu0 0
        %690 = vmatmul.mubr.bf16.gmra.mrb[0].mxu0 %v509
        %v691 = vpop.f32.mrb[0].mxu0
        %v692 = vadd.f32 0.0, %v691
        %v693 = vpop.f32.mrb[0].mxu0
        %v694 = vadd.f32 0.0, %v693
        %v695 = vpop.f32.mrb[0].mxu0
        %v696 = vadd.f32 0.0, %v695
        %v697 = vpop.f32.mrb[0].mxu0
        %v698 = vadd.f32 0.0, %v697
        %699 = vmatprep.mubr.bf16.mxu0 0
        %700 = vmatmul.mubr.bf16.gmra.mrb[0].mxu0 %v510
        %v701 = vpop.f32.mrb[0].mxu0
        %v702 = vadd.f32 0.0, %v701
        %v703 = vpop.f32.mrb[0].mxu0
        %v704 = vadd.f32 0.0, %v703
        %v705 = vpop.f32.mrb[0].mxu0
        %v706 = vadd.f32 0.0, %v705
        %v707 = vpop.f32.mrb[0].mxu0
        %v708 = vadd.f32 0.0, %v707
        %709 = vmatprep.mubr.bf16.mxu0 0
        %710 = vmatmul.mubr.bf16.gmra.mrb[0].mxu0 %v511
        %v711 = vpop.f32.mrb[0].mxu0
        %v712 = vadd.f32 0.0, %v711
        %v713 = vpop.f32.mrb[0].mxu0
        %v714 = vadd.f32 0.0, %v713
        %v715 = vpop.f32.mrb[0].mxu0
        %v716 = vadd.f32 0.0, %v715
        %v717 = vpop.f32.mrb[0].mxu0
        %v718 = vadd.f32 0.0, %v717
        %719 = vmatprep.mubr.bf16.mxu0 0
        %720 = vmatmul.mubr.bf16.gmra.mrb[0].mxu0 %v512
        %v721 = vpop.f32.mrb[0].mxu0
        %v722 = vadd.f32 0.0, %v721
        %v723 = vpop.f32.mrb[0].mxu0
        %v724 = vadd.f32 0.0, %v723
        %v725 = vpop.f32.mrb[0].mxu0
        %v726 = vadd.f32 0.0, %v725
        %v727 = vpop.f32.mrb[0].mxu0
        %v728 = vadd.f32 0.0, %v727
        %729 = vmatprep.mubr.bf16.mxu0 0
        %730 = vmatmul.mubr.bf16.gmra.mrb[0].mxu0 %v513
        %v731 = vpop.f32.mrb[0].mxu0
        %v732 = vadd.f32 0.0, %v731
        %v733 = vpop.f32.mrb[0].mxu0
        %v734 = vadd.f32 0.0, %v733
        %v735 = vpop.f32.mrb[0].mxu0
        %v736 = vadd.f32 0.0, %v735
        %v737 = vpop.f32.mrb[0].mxu0
        %v738 = vadd.f32 0.0, %v737
        %739 = vmatprep.mubr.bf16.mxu0 0
        %740 = vmatmul.mubr.bf16.gmra.mrb[0].mxu0 %v514
        %v741 = vpop.f32.mrb[0].mxu0
        %v742 = vadd.f32 0.0, %v741
        %v743 = vpop.f32.mrb[0].mxu0
        %v744 = vadd.f32 0.0, %v743
        %v745 = vpop.f32.mrb[0].mxu0
        %v746 = vadd.f32 0.0, %v745
        %v747 = vpop.f32.mrb[0].mxu0
        %v748 = vadd.f32 0.0, %v747
        %749 = vmatprep.mubr.bf16.mxu0 0
        %750 = vmatmul.mubr.bf16.gmra.mrb[0].mxu0 %v515
        %v751 = vpop.f32.mrb[0].mxu0
        %v752 = vadd.f32 0.0, %v751
        %v753 = vpop.f32.mrb[0].mxu0
        %v754 = vadd.f32 0.0, %v753
        %v755 = vpop.f32.mrb[0].mxu0
        %v756 = vadd.f32 0.0, %v755
        %v757 = vpop.f32.mrb[0].mxu0
        %v758 = vadd.f32 0.0, %v757
        %759 = vmatprep.mubr.bf16.mxu0 0
        %760 = vmatmul.mubr.bf16.gmra.mrb[0].mxu0 %v516
        %v761 = vpop.f32.mrb[0].mxu0
        %v762 = vadd.f32 0.0, %v761
        %v763 = vpop.f32.mrb[0].mxu0
        %v764 = vadd.f32 0.0, %v763
        %v765 = vpop.f32.mrb[0].mxu0
        %v766 = vadd.f32 0.0, %v765
        %v767 = vpop.f32.mrb[0].mxu0
        %v768 = vadd.f32 0.0, %v767
        %769 = vmatprep.mubr.bf16.mxu0 0
        %770 = vmatmul.mubr.bf16.gmra.mrb[0].mxu0 %v517
        %v771 = vpop.f32.mrb[0].mxu0
        %v772 = vadd.f32 0.0, %v771
        %v773 = vpop.f32.mrb[0].mxu0
        %v774 = vadd.f32 0.0, %v773
        %v775 = vpop.f32.mrb[0].mxu0
        %v776 = vadd.f32 0.0, %v775
        %v777 = vpop.f32.mrb[0].mxu0
        %v778 = vadd.f32 0.0, %v777
        %779 = vmatprep.mubr.bf16.mxu0 0
        %780 = vmatmul.mubr.bf16.gmra.mrb[0].mxu0 %v518
        %v781 = vpop.f32.mrb[0].mxu0
        %v782 = vadd.f32 0.0, %v781
        %v783 = vpop.f32.mrb[0].mxu0
        %v784 = vadd.f32 0.0, %v783
        %v785 = vpop.f32.mrb[0].mxu0
        %v786 = vadd.f32 0.0, %v785
        %v787 = vpop.f32.mrb[0].mxu0
        %v788 = vadd.f32 0.0, %v787
        %789 = vmatprep.mubr.bf16.mxu0 0
        %790 = vmatmul.mubr.bf16.gmra.mrb[0].mxu0 %v519
        %v791 = vpop.f32.mrb[0].mxu0
        %v792 = vadd.f32 0.0, %v791
        %v793 = vpop.f32.mrb[0].mxu0
        %v794 = vadd.f32 0.0, %v793
        %v795 = vpop.f32.mrb[0].mxu0
        %v796 = vadd.f32 0.0, %v795
        %v797 = vpop.f32.mrb[0].mxu0
        %v798 = vadd.f32 0.0, %v797
        %799 = vmatprep.mubr.bf16.mxu0 0
        %800 = vmatmul.mubr.bf16.gmra.mrb[0].mxu0 %v520
        %v801 = vpop.f32.mrb[0].mxu0
        %v802 = vadd.f32 0.0, %v801
        %v803 = vpop.f32.mrb[0].mxu0
        %v804 = vadd.f32 0.0, %v803
        %v805 = vpop.f32.mrb[0].mxu0
        %v806 = vadd.f32 0.0, %v805
        %v807 = vpop.f32.mrb[0].mxu0
        %v808 = vadd.f32 0.0, %v807
        %809 = vdwg.mxu0
        %v810 = vadd.f32 %v329, %v652
        %v811 = vadd.f32 %v330, %v654
        %v812 = vadd.f32 %v331, %v656
        %v813 = vadd.f32 %v332, %v658
        %v814 = vadd.f32 %v333, %v662
        %v815 = vadd.f32 %v334, %v664
        %v816 = vadd.f32 %v335, %v666
        %v817 = vadd.f32 %v336, %v668
        %v818 = vadd.f32 %v337, %v672
        %v819 = vadd.f32 %v338, %v674
        %v820 = vadd.f32 %v339, %v676
        %v821 = vadd.f32 %v340, %v678
        %v822 = vadd.f32 %v341, %v682
        %v823 = vadd.f32 %v342, %v684
        %v824 = vadd.f32 %v343, %v686
        %v825 = vadd.f32 %v344, %v688
        %v826 = vadd.f32 %v345, %v692
        %v827 = vadd.f32 %v346, %v694
        %v828 = vadd.f32 %v347, %v696
        %v829 = vadd.f32 %v348, %v698
        %v830 = vadd.f32 %v349, %v702
        %v831 = vadd.f32 %v350, %v704
        %v832 = vadd.f32 %v351, %v706
        %v833 = vadd.f32 %v352, %v708
        %v834 = vadd.f32 %v353, %v712
        %v835 = vadd.f32 %v354, %v714
        %v836 = vadd.f32 %v355, %v716
        %v837 = vadd.f32 %v356, %v718
        %v838 = vadd.f32 %v357, %v722
        %v839 = vadd.f32 %v358, %v724
        %v840 = vadd.f32 %v359, %v726
        %v841 = vadd.f32 %v360, %v728
        %v842 = vadd.f32 %v361, %v732
        %v843 = vadd.f32 %v362, %v734
        %v844 = vadd.f32 %v363, %v736
        %v845 = vadd.f32 %v364, %v738
        %v846 = vadd.f32 %v365, %v742
        %v847 = vadd.f32 %v366, %v744
        %v848 = vadd.f32 %v367, %v746
        %v849 = vadd.f32 %v368, %v748
        %v850 = vadd.f32 %v369, %v752
        %v851 = vadd.f32 %v370, %v754
        %v852 = vadd.f32 %v371, %v756
        %v853 = vadd.f32 %v372, %v758
        %v854 = vadd.f32 %v373, %v762
        %v855 = vadd.f32 %v374, %v764
        %v856 = vadd.f32 %v375, %v766
        %v857 = vadd.f32 %v376, %v768
        %v858 = vadd.f32 %v377, %v772
        %v859 = vadd.f32 %v378, %v774
        %v860 = vadd.f32 %v379, %v776
        %v861 = vadd.f32 %v380, %v778
        %v862 = vadd.f32 %v381, %v782
        %v863 = vadd.f32 %v382, %v784
        %v864 = vadd.f32 %v383, %v786
        %v865 = vadd.f32 %v384, %v788
        %v866 = vadd.f32 %v385, %v792
        %v867 = vadd.f32 %v386, %v794
        %v868 = vadd.f32 %v387, %v796
        %v869 = vadd.f32 %v388, %v798
        %v870 = vadd.f32 %v389, %v802
        %v871 = vadd.f32 %v390, %v804
        %v872 = vadd.f32 %v391, %v806
        %v873 = vadd.f32 %v392, %v808
        %874 = vst [vmem:[#allocation2] sm:$0xff] %v810
        %875 = vst [vmem:[#allocation2 + $0x8] sm:$0xff] %v811
        %876 = vst [vmem:[#allocation2 + $0x10] sm:$0xff] %v812
        %877 = vst [vmem:[#allocation2 + $0x18] sm:$0xff] %v813
        %878 = vst [vmem:[#allocation2 + $0x20] sm:$0xff] %v814
        %879 = vst [vmem:[#allocation2 + $0x28] sm:$0xff] %v815
        %880 = vst [vmem:[#allocation2 + $0x30] sm:$0xff] %v816
        %881 = vst [vmem:[#allocation2 + $0x38] sm:$0xff] %v817
        %882 = vst [vmem:[#allocation2 + $0x40] sm:$0xff] %v818
        %883 = vst [vmem:[#allocation2 + $0x48] sm:$0xff] %v819
        %884 = vst [vmem:[#allocation2 + $0x50] sm:$0xff] %v820
        %885 = vst [vmem:[#allocation2 + $0x58] sm:$0xff] %v821
        %886 = vst [vmem:[#allocation2 + $0x60] sm:$0xff] %v822
        %887 = vst [vmem:[#allocation2 + $0x68] sm:$0xff] %v823
        %888 = vst [vmem:[#allocation2 + $0x70] sm:$0xff] %v824
        %889 = vst [vmem:[#allocation2 + $0x78] sm:$0xff] %v825
        %890 = vst [vmem:[#allocation2 + $0x80] sm:$0xff] %v826
        %891 = vst [vmem:[#allocation2 + $0x88] sm:$0xff] %v827
        %892 = vst [vmem:[#allocation2 + $0x90] sm:$0xff] %v828
        %893 = vst [vmem:[#allocation2 + $0x98] sm:$0xff] %v829
        %894 = vst [vmem:[#allocation2 + $0xa0] sm:$0xff] %v830
        %895 = vst [vmem:[#allocation2 + $0xa8] sm:$0xff] %v831
        %896 = vst [vmem:[#allocation2 + $0xb0] sm:$0xff] %v832
        %897 = vst [vmem:[#allocation2 + $0xb8] sm:$0xff] %v833
        %898 = vst [vmem:[#allocation2 + $0xc0] sm:$0xff] %v834
        %899 = vst [vmem:[#allocation2 + $0xc8] sm:$0xff] %v835
        %900 = vst [vmem:[#allocation2 + $0xd0] sm:$0xff] %v836
        %901 = vst [vmem:[#allocation2 + $0xd8] sm:$0xff] %v837
        %902 = vst [vmem:[#allocation2 + $0xe0] sm:$0xff] %v838
        %903 = vst [vmem:[#allocation2 + $0xe8] sm:$0xff] %v839
        %904 = vst [vmem:[#allocation2 + $0xf0] sm:$0xff] %v840
        %905 = vst [vmem:[#allocation2 + $0xf8] sm:$0xff] %v841
        %906 = vst [vmem:[#allocation2 + $0x100] sm:$0xff] %v842
        %907 = vst [vmem:[#allocation2 + $0x108] sm:$0xff] %v843
        %908 = vst [vmem:[#allocation2 + $0x110] sm:$0xff] %v844
        %909 = vst [vmem:[#allocation2 + $0x118] sm:$0xff] %v845
        %910 = vst [vmem:[#allocation2 + $0x120] sm:$0xff] %v846
        %911 = vst [vmem:[#allocation2 + $0x128] sm:$0xff] %v847
        %912 = vst [vmem:[#allocation2 + $0x130] sm:$0xff] %v848
        %913 = vst [vmem:[#allocation2 + $0x138] sm:$0xff] %v849
        %914 = vst [vmem:[#allocation2 + $0x140] sm:$0xff] %v850
        %915 = vst [vmem:[#allocation2 + $0x148] sm:$0xff] %v851
        %916 = vst [vmem:[#allocation2 + $0x150] sm:$0xff] %v852
        %917 = vst [vmem:[#allocation2 + $0x158] sm:$0xff] %v853
        %918 = vst [vmem:[#allocation2 + $0x160] sm:$0xff] %v854
        %919 = vst [vmem:[#allocation2 + $0x168] sm:$0xff] %v855
        %920 = vst [vmem:[#allocation2 + $0x170] sm:$0xff] %v856
        %921 = vst [vmem:[#allocation2 + $0x178] sm:$0xff] %v857
        %922 = vst [vmem:[#allocation2 + $0x180] sm:$0xff] %v858
        %923 = vst [vmem:[#allocation2 + $0x188] sm:$0xff] %v859
        %924 = vst [vmem:[#allocation2 + $0x190] sm:$0xff] %v860
        %925 = vst [vmem:[#allocation2 + $0x198] sm:$0xff] %v861
        %926 = vst [vmem:[#allocation2 + $0x1a0] sm:$0xff] %v862
        %927 = vst [vmem:[#allocation2 + $0x1a8] sm:$0xff] %v863
        %928 = vst [vmem:[#allocation2 + $0x1b0] sm:$0xff] %v864
        %929 = vst [vmem:[#allocation2 + $0x1b8] sm:$0xff] %v865
        %930 = vst [vmem:[#allocation2 + $0x1c0] sm:$0xff] %v866
        %931 = vst [vmem:[#allocation2 + $0x1c8] sm:$0xff] %v867
        %932 = vst [vmem:[#allocation2 + $0x1d0] sm:$0xff] %v868
        %933 = vst [vmem:[#allocation2 + $0x1d8] sm:$0xff] %v869
        %934 = vst [vmem:[#allocation2 + $0x1e0] sm:$0xff] %v870
        %935 = vst [vmem:[#allocation2 + $0x1e8] sm:$0xff] %v871
        %936 = vst [vmem:[#allocation2 + $0x1f0] sm:$0xff] %v872
        %937 = vst [vmem:[#allocation2 + $0x1f8] sm:$0xff] %v873
        // Predicated region
        $region41: #{bottleneck_forward.14} parent=27 // pred_check
          %p938 = pneg %p261
        $region42: #{bottleneck_forward.14} parent=27 // pred_check_branch
          %940 = sbr.rel (%p938) target = $region44
        $region43: #{bottleneck_forward.14} parent=27 // pred_region
          %v941 = vld [vmem:[#allocation2] sm:$0xff]
          %v942 = vld [vmem:[#allocation2 + $0x8] sm:$0xff]
          %v943 = vld [vmem:[#allocation2 + $0x10] sm:$0xff]
          %v944 = vld [vmem:[#allocation2 + $0x18] sm:$0xff]
          %v945 = vld [vmem:[#allocation2 + $0x20] sm:$0xff]
          %v946 = vld [vmem:[#allocation2 + $0x28] sm:$0xff]
          %v947 = vld [vmem:[#allocation2 + $0x30] sm:$0xff]
          %v948 = vld [vmem:[#allocation2 + $0x38] sm:$0xff]
          %v949 = vld [vmem:[#allocation2 + $0x40] sm:$0xff]
          %v950 = vld [vmem:[#allocation2 + $0x48] sm:$0xff]
          %v951 = vld [vmem:[#allocation2 + $0x50] sm:$0xff]
          %v952 = vld [vmem:[#allocation2 + $0x58] sm:$0xff]
          %v953 = vld [vmem:[#allocation2 + $0x60] sm:$0xff]
          %v954 = vld [vmem:[#allocation2 + $0x68] sm:$0xff]
          %v955 = vld [vmem:[#allocation2 + $0x70] sm:$0xff]
          %v956 = vld [vmem:[#allocation2 + $0x78] sm:$0xff]
          %v957 = vld [vmem:[#allocation2 + $0x80] sm:$0xff]
          %v958 = vld [vmem:[#allocation2 + $0x88] sm:$0xff]
          %v959 = vld [vmem:[#allocation2 + $0x90] sm:$0xff]
          %v960 = vld [vmem:[#allocation2 + $0x98] sm:$0xff]
          %v961 = vld [vmem:[#allocation2 + $0xa0] sm:$0xff]
          %v962 = vld [vmem:[#allocation2 + $0xa8] sm:$0xff]
          %v963 = vld [vmem:[#allocation2 + $0xb0] sm:$0xff]
          %v964 = vld [vmem:[#allocation2 + $0xb8] sm:$0xff]
          %v965 = vld [vmem:[#allocation2 + $0xc0] sm:$0xff]
          %v966 = vld [vmem:[#allocation2 + $0xc8] sm:$0xff]
          %v967 = vld [vmem:[#allocation2 + $0xd0] sm:$0xff]
          %v968 = vld [vmem:[#allocation2 + $0xd8] sm:$0xff]
          %v969 = vld [vmem:[#allocation2 + $0xe0] sm:$0xff]
          %v970 = vld [vmem:[#allocation2 + $0xe8] sm:$0xff]
          %v971 = vld [vmem:[#allocation2 + $0xf0] sm:$0xff]
          %v972 = vld [vmem:[#allocation2 + $0xf8] sm:$0xff]
          %v973 = vld [vmem:[#allocation2 + $0x100] sm:$0xff]
          %v974 = vld [vmem:[#allocation2 + $0x108] sm:$0xff]
          %v975 = vld [vmem:[#allocation2 + $0x110] sm:$0xff]
          %v976 = vld [vmem:[#allocation2 + $0x118] sm:$0xff]
          %v977 = vld [vmem:[#allocation2 + $0x120] sm:$0xff]
          %v978 = vld [vmem:[#allocation2 + $0x128] sm:$0xff]
          %v979 = vld [vmem:[#allocation2 + $0x130] sm:$0xff]
          %v980 = vld [vmem:[#allocation2 + $0x138] sm:$0xff]
          %v981 = vld [vmem:[#allocation2 + $0x140] sm:$0xff]
          %v982 = vld [vmem:[#allocation2 + $0x148] sm:$0xff]
          %v983 = vld [vmem:[#allocation2 + $0x150] sm:$0xff]
          %v984 = vld [vmem:[#allocation2 + $0x158] sm:$0xff]
          %v985 = vld [vmem:[#allocation2 + $0x160] sm:$0xff]
          %v986 = vld [vmem:[#allocation2 + $0x168] sm:$0xff]
          %v987 = vld [vmem:[#allocation2 + $0x170] sm:$0xff]
          %v988 = vld [vmem:[#allocation2 + $0x178] sm:$0xff]
          %v989 = vld [vmem:[#allocation2 + $0x180] sm:$0xff]
          %v990 = vld [vmem:[#allocation2 + $0x188] sm:$0xff]
          %v991 = vld [vmem:[#allocation2 + $0x190] sm:$0xff]
          %v992 = vld [vmem:[#allocation2 + $0x198] sm:$0xff]
          %v993 = vld [vmem:[#allocation2 + $0x1a0] sm:$0xff]
          %v994 = vld [vmem:[#allocation2 + $0x1a8] sm:$0xff]
          %v995 = vld [vmem:[#allocation2 + $0x1b0] sm:$0xff]
          %v996 = vld [vmem:[#allocation2 + $0x1b8] sm:$0xff]
          %v997 = vld [vmem:[#allocation2 + $0x1c0] sm:$0xff]
          %v998 = vld [vmem:[#allocation2 + $0x1c8] sm:$0xff]
          %v999 = vld [vmem:[#allocation2 + $0x1d0] sm:$0xff]
          %v1000 = vld [vmem:[#allocation2 + $0x1d8] sm:$0xff]
          %v1001 = vld [vmem:[#allocation2 + $0x1e0] sm:$0xff]
          %v1002 = vld [vmem:[#allocation2 + $0x1e8] sm:$0xff]
          %v1003 = vld [vmem:[#allocation2 + $0x1f0] sm:$0xff]
          %v1004 = vld [vmem:[#allocation2 + $0x1f8] sm:$0xff]
          %v1005 = vpack.c.bf16 %v943, %v941
          %v1006 = vpack.c.bf16 %v944, %v942
          %v1007 = vpack.c.bf16 %v947, %v945
          %v1008 = vpack.c.bf16 %v948, %v946
          %v1009 = vpack.c.bf16 %v951, %v949
          %v1010 = vpack.c.bf16 %v952, %v950
          %v1011 = vpack.c.bf16 %v955, %v953
          %v1012 = vpack.c.bf16 %v956, %v954
          %v1013 = vpack.c.bf16 %v959, %v957
          %v1014 = vpack.c.bf16 %v960, %v958
          %v1015 = vpack.c.bf16 %v963, %v961
          %v1016 = vpack.c.bf16 %v964, %v962
          %v1017 = vpack.c.bf16 %v967, %v965
          %v1018 = vpack.c.bf16 %v968, %v966
          %v1019 = vpack.c.bf16 %v971, %v969
          %v1020 = vpack.c.bf16 %v972, %v970
          %v1021 = vpack.c.bf16 %v975, %v973
          %v1022 = vpack.c.bf16 %v976, %v974
          %v1023 = vpack.c.bf16 %v979, %v977
          %v1024 = vpack.c.bf16 %v980, %v978
          %v1025 = vpack.c.bf16 %v983, %v981
          %v1026 = vpack.c.bf16 %v984, %v982
          %v1027 = vpack.c.bf16 %v987, %v985
          %v1028 = vpack.c.bf16 %v988, %v986
          %v1029 = vpack.c.bf16 %v991, %v989
          %v1030 = vpack.c.bf16 %v992, %v990
          %v1031 = vpack.c.bf16 %v995, %v993
          %v1032 = vpack.c.bf16 %v996, %v994
          %v1033 = vpack.c.bf16 %v999, %v997
          %v1034 = vpack.c.bf16 %v1000, %v998
          %v1035 = vpack.c.bf16 %v1003, %v1001
          %v1036 = vpack.c.bf16 %v1004, %v1002
          %v1069 = vunpack.c.l.b16 %v1005
          %v1070 = vunpack.c.l.b16 %v1006
          %v1071 = vunpack.c.h.b16 %v1005
          %v1072 = vunpack.c.h.b16 %v1006
          %v1073 = vunpack.c.l.b16 %v1007
          %v1074 = vunpack.c.l.b16 %v1008
          %v1075 = vunpack.c.h.b16 %v1007
          %v1076 = vunpack.c.h.b16 %v1008
          %v1077 = vunpack.c.l.b16 %v1009
          %v1078 = vunpack.c.l.b16 %v1010
          %v1079 = vunpack.c.h.b16 %v1009
          %v1080 = vunpack.c.h.b16 %v1010
          %v1081 = vunpack.c.l.b16 %v1011
          %v1082 = vunpack.c.l.b16 %v1012
          %v1083 = vunpack.c.h.b16 %v1011
          %v1084 = vunpack.c.h.b16 %v1012
          %v1085 = vunpack.c.l.b16 %v1013
          %v1086 = vunpack.c.l.b16 %v1014
          %v1087 = vunpack.c.h.b16 %v1013
          %v1088 = vunpack.c.h.b16 %v1014
          %v1089 = vunpack.c.l.b16 %v1015
          %v1090 = vunpack.c.l.b16 %v1016
          %v1091 = vunpack.c.h.b16 %v1015
          %v1092 = vunpack.c.h.b16 %v1016
          %v1093 = vunpack.c.l.b16 %v1017
          %v1094 = vunpack.c.l.b16 %v1018
          %v1095 = vunpack.c.h.b16 %v1017
          %v1096 = vunpack.c.h.b16 %v1018
          %v1097 = vunpack.c.l.b16 %v1019
          %v1098 = vunpack.c.l.b16 %v1020
          %v1099 = vunpack.c.h.b16 %v1019
          %v1100 = vunpack.c.h.b16 %v1020
          %v1101 = vunpack.c.l.b16 %v1021
          %v1102 = vunpack.c.l.b16 %v1022
          %v1103 = vunpack.c.h.b16 %v1021
          %v1104 = vunpack.c.h.b16 %v1022
          %v1105 = vunpack.c.l.b16 %v1023
          %v1106 = vunpack.c.l.b16 %v1024
          %v1107 = vunpack.c.h.b16 %v1023
          %v1108 = vunpack.c.h.b16 %v1024
          %v1109 = vunpack.c.l.b16 %v1025
          %v1110 = vunpack.c.l.b16 %v1026
          %v1111 = vunpack.c.h.b16 %v1025
          %v1112 = vunpack.c.h.b16 %v1026
          %v1113 = vunpack.c.l.b16 %v1027
          %v1114 = vunpack.c.l.b16 %v1028
          %v1115 = vunpack.c.h.b16 %v1027
          %v1116 = vunpack.c.h.b16 %v1028
          %v1117 = vunpack.c.l.b16 %v1029
          %v1118 = vunpack.c.l.b16 %v1030
          %v1119 = vunpack.c.h.b16 %v1029
          %v1120 = vunpack.c.h.b16 %v1030
          %v1121 = vunpack.c.l.b16 %v1031
          %v1122 = vunpack.c.l.b16 %v1032
          %v1123 = vunpack.c.h.b16 %v1031
          %v1124 = vunpack.c.h.b16 %v1032
          %v1125 = vunpack.c.l.b16 %v1033
          %v1126 = vunpack.c.l.b16 %v1034
          %v1127 = vunpack.c.h.b16 %v1033
          %v1128 = vunpack.c.h.b16 %v1034
          %v1129 = vunpack.c.l.b16 %v1035
          %v1130 = vunpack.c.l.b16 %v1036
          %v1131 = vunpack.c.h.b16 %v1035
          %v1132 = vunpack.c.h.b16 %v1036
          %v1133 = vpack.c.b16 %v1070, %v1069
          %v1134 = vpack.c.b16 %v1072, %v1071
          %v1135 = vpack.c.b16 %v1074, %v1073
          %v1136 = vpack.c.b16 %v1076, %v1075
          %v1137 = vpack.c.b16 %v1078, %v1077
          %v1138 = vpack.c.b16 %v1080, %v1079
          %v1139 = vpack.c.b16 %v1082, %v1081
          %v1140 = vpack.c.b16 %v1084, %v1083
          %v1141 = vpack.c.b16 %v1086, %v1085
          %v1142 = vpack.c.b16 %v1088, %v1087
          %v1143 = vpack.c.b16 %v1090, %v1089
          %v1144 = vpack.c.b16 %v1092, %v1091
          %v1145 = vpack.c.b16 %v1094, %v1093
          %v1146 = vpack.c.b16 %v1096, %v1095
          %v1147 = vpack.c.b16 %v1098, %v1097
          %v1148 = vpack.c.b16 %v1100, %v1099
          %v1149 = vpack.c.b16 %v1102, %v1101
          %v1150 = vpack.c.b16 %v1104, %v1103
          %v1151 = vpack.c.b16 %v1106, %v1105
          %v1152 = vpack.c.b16 %v1108, %v1107
          %v1153 = vpack.c.b16 %v1110, %v1109
          %v1154 = vpack.c.b16 %v1112, %v1111
          %v1155 = vpack.c.b16 %v1114, %v1113
          %v1156 = vpack.c.b16 %v1116, %v1115
          %v1157 = vpack.c.b16 %v1118, %v1117
          %v1158 = vpack.c.b16 %v1120, %v1119
          %v1159 = vpack.c.b16 %v1122, %v1121
          %v1160 = vpack.c.b16 %v1124, %v1123
          %v1161 = vpack.c.b16 %v1126, %v1125
          %v1162 = vpack.c.b16 %v1128, %v1127
          %v1163 = vpack.c.b16 %v1130, %v1129
          %v1164 = vpack.c.b16 %v1132, %v1131
          %1197 = vst [vmem:[%s246] sm:$0xff] %v1133
          %1198 = vst [vmem:[%s246 + $0x8] sm:$0xff] %v1134
          %1199 = vst [vmem:[%s246 + $0x10] sm:$0xff] %v1135
          %1200 = vst [vmem:[%s246 + $0x18] sm:$0xff] %v1136
          %1201 = vst [vmem:[%s246 + $0x20] sm:$0xff] %v1137
          %1202 = vst [vmem:[%s246 + $0x28] sm:$0xff] %v1138
          %1203 = vst [vmem:[%s246 + $0x30] sm:$0xff] %v1139
          %1204 = vst [vmem:[%s246 + $0x38] sm:$0xff] %v1140
          %1205 = vst [vmem:[%s246 + $0x40] sm:$0xff] %v1141
          %1206 = vst [vmem:[%s246 + $0x48] sm:$0xff] %v1142
          %1207 = vst [vmem:[%s246 + $0x50] sm:$0xff] %v1143
          %1208 = vst [vmem:[%s246 + $0x58] sm:$0xff] %v1144
          %1209 = vst [vmem:[%s246 + $0x60] sm:$0xff] %v1145
          %1210 = vst [vmem:[%s246 + $0x68] sm:$0xff] %v1146
          %1211 = vst [vmem:[%s246 + $0x70] sm:$0xff] %v1147
          %1212 = vst [vmem:[%s246 + $0x78] sm:$0xff] %v1148
          %1213 = vst [vmem:[%s246 + $0x80] sm:$0xff] %v1149
          %1214 = vst [vmem:[%s246 + $0x88] sm:$0xff] %v1150
          %1215 = vst [vmem:[%s246 + $0x90] sm:$0xff] %v1151
          %1216 = vst [vmem:[%s246 + $0x98] sm:$0xff] %v1152
          %1217 = vst [vmem:[%s246 + $0xa0] sm:$0xff] %v1153
          %1218 = vst [vmem:[%s246 + $0xa8] sm:$0xff] %v1154
          %1219 = vst [vmem:[%s246 + $0xb0] sm:$0xff] %v1155
          %1220 = vst [vmem:[%s246 + $0xb8] sm:$0xff] %v1156
          %1221 = vst [vmem:[%s246 + $0xc0] sm:$0xff] %v1157
          %1222 = vst [vmem:[%s246 + $0xc8] sm:$0xff] %v1158
          %1223 = vst [vmem:[%s246 + $0xd0] sm:$0xff] %v1159
          %1224 = vst [vmem:[%s246 + $0xd8] sm:$0xff] %v1160
          %1225 = vst [vmem:[%s246 + $0xe0] sm:$0xff] %v1161
          %1226 = vst [vmem:[%s246 + $0xe8] sm:$0xff] %v1162
          %1227 = vst [vmem:[%s246 + $0xf0] sm:$0xff] %v1163
          %1228 = vst [vmem:[%s246 + $0xf8] sm:$0xff] %v1164
          %v1229 = vadd.f32 %v941, %v943
          %v1230 = vadd.f32 %v1229, %v945
          %v1231 = vadd.f32 %v1230, %v947
          %v1232 = vadd.f32 %v1231, %v949
          %v1233 = vadd.f32 %v1232, %v951
          %v1234 = vadd.f32 %v1233, %v953
          %v1235 = vadd.f32 %v1234, %v955
          %v1236 = vadd.f32 %v1235, %v957
          %v1237 = vadd.f32 %v1236, %v959
          %v1238 = vadd.f32 %v1237, %v961
          %v1239 = vadd.f32 %v1238, %v963
          %v1240 = vadd.f32 %v1239, %v965
          %v1241 = vadd.f32 %v1240, %v967
          %v1242 = vadd.f32 %v1241, %v969
          %v1243 = vadd.f32 %v1242, %v971
          %v1244 = vadd.f32 %v1243, %v973
          %v1245 = vadd.f32 %v1244, %v975
          %v1246 = vadd.f32 %v1245, %v977
          %v1247 = vadd.f32 %v1246, %v979
          %v1248 = vadd.f32 %v1247, %v981
          %v1249 = vadd.f32 %v1248, %v983
          %v1250 = vadd.f32 %v1249, %v985
          %v1251 = vadd.f32 %v1250, %v987
          %v1252 = vadd.f32 %v1251, %v989
          %v1253 = vadd.f32 %v1252, %v991
          %v1254 = vadd.f32 %v1253, %v993
          %v1255 = vadd.f32 %v1254, %v995
          %v1256 = vadd.f32 %v1255, %v997
          %v1257 = vadd.f32 %v1256, %v999
          %v1258 = vadd.f32 %v1257, %v1001
          %v1259 = vadd.f32 %v1258, %v1003
          %v1260 = vrot.slane %v1259, 4
          %v1261 = vadd.f32 %v1259, %v1260
          %v1262 = vrot.slane %v1261, 2
          %v1263 = vadd.f32 %v1261, %v1262
          %v1264 = vrot.slane %v1263, 1
          %v1265 = vadd.f32 %v1263, %v1264
          %v1266 = vadd.f32 %v942, %v944
          %v1267 = vadd.f32 %v1266, %v946
          %v1268 = vadd.f32 %v1267, %v948
          %v1269 = vadd.f32 %v1268, %v950
          %v1270 = vadd.f32 %v1269, %v952
          %v1271 = vadd.f32 %v1270, %v954
          %v1272 = vadd.f32 %v1271, %v956
          %v1273 = vadd.f32 %v1272, %v958
          %v1274 = vadd.f32 %v1273, %v960
          %v1275 = vadd.f32 %v1274, %v962
          %v1276 = vadd.f32 %v1275, %v964
          %v1277 = vadd.f32 %v1276, %v966
          %v1278 = vadd.f32 %v1277, %v968
          %v1279 = vadd.f32 %v1278, %v970
          %v1280 = vadd.f32 %v1279, %v972
          %v1281 = vadd.f32 %v1280, %v974
          %v1282 = vadd.f32 %v1281, %v976
          %v1283 = vadd.f32 %v1282, %v978
          %v1284 = vadd.f32 %v1283, %v980
          %v1285 = vadd.f32 %v1284, %v982
          %v1286 = vadd.f32 %v1285, %v984
          %v1287 = vadd.f32 %v1286, %v986
          %v1288 = vadd.f32 %v1287, %v988
          %v1289 = vadd.f32 %v1288, %v990
          %v1290 = vadd.f32 %v1289, %v992
          %v1291 = vadd.f32 %v1290, %v994
          %v1292 = vadd.f32 %v1291, %v996
          %v1293 = vadd.f32 %v1292, %v998
          %v1294 = vadd.f32 %v1293, %v1000
          %v1295 = vadd.f32 %v1294, %v1002
          %v1296 = vadd.f32 %v1295, %v1004
          %v1297 = vrot.slane %v1296, 4
          %v1298 = vadd.f32 %v1296, %v1297
          %v1299 = vrot.slane %v1298, 2
          %v1300 = vadd.f32 %v1298, %v1299
          %v1301 = vrot.slane %v1300, 1
          %v1302 = vadd.f32 %v1300, %v1301
          %v1305 = vcombine.low %v1265, %v1302
          %v1307 = vunpack.c.l.s4 1966171168
          %v1308 = vunpack.c.0.s8 %v1307
          %v1309 = vlaneseq
          %v1310 = vshrl.u32 %v1309, 7
          %v1311 = vsub.s32 %v1308, %v1310
          %v1312 = vrot.slane %v1305, %v1311
          %v1314 = vunpack.c.l.s4 1966171168
          %v1315 = vunpack.c.0.s8 %v1314
          %v1316 = vlaneseq
          %v1317 = vshrl.u32 %v1316, 7
          %v1318 = vsub.s32 %v1315, %v1317
          %v1319 = vrot.slane %v1312, %v1318
          %v1321 = vlaneseq
          %vm1322 = vcmp.ge.s32.totalorder %v1321, 0
          %vm1323 = vcmp.lt.s32.totalorder %v1321, 256
          %vm1324 = vmand %vm1322, %vm1323
          %1325 = vst.msk [vmem:[%s253] ss:$8 sm:$0x3] %vm1324, %v1319
          %1326 = vst.msk [vmem:[%s253] ss:$8 sm:$0x0] %vm1324, %v1319
          %v1327 = vmul.f32 %v941, %v941
          %v1328 = vmul.f32 %v942, %v942
          %v1329 = vmul.f32 %v943, %v943
          %v1330 = vmul.f32 %v944, %v944
          %v1331 = vmul.f32 %v945, %v945
          %v1332 = vmul.f32 %v946, %v946
          %v1333 = vmul.f32 %v947, %v947
          %v1334 = vmul.f32 %v948, %v948
          %v1335 = vmul.f32 %v949, %v949
          %v1336 = vmul.f32 %v950, %v950
          %v1337 = vmul.f32 %v951, %v951
          %v1338 = vmul.f32 %v952, %v952
          %v1339 = vmul.f32 %v953, %v953
          %v1340 = vmul.f32 %v954, %v954
          %v1341 = vmul.f32 %v955, %v955
          %v1342 = vmul.f32 %v956, %v956
          %v1343 = vmul.f32 %v957, %v957
          %v1344 = vmul.f32 %v958, %v958
          %v1345 = vmul.f32 %v959, %v959
          %v1346 = vmul.f32 %v960, %v960
          %v1347 = vmul.f32 %v961, %v961
          %v1348 = vmul.f32 %v962, %v962
          %v1349 = vmul.f32 %v963, %v963
          %v1350 = vmul.f32 %v964, %v964
          %v1351 = vmul.f32 %v965, %v965
          %v1352 = vmul.f32 %v966, %v966
          %v1353 = vmul.f32 %v967, %v967
          %v1354 = vmul.f32 %v968, %v968
          %v1355 = vmul.f32 %v969, %v969
          %v1356 = vmul.f32 %v970, %v970
          %v1357 = vmul.f32 %v971, %v971
          %v1358 = vmul.f32 %v972, %v972
          %v1359 = vmul.f32 %v973, %v973
          %v1360 = vmul.f32 %v974, %v974
          %v1361 = vmul.f32 %v975, %v975
          %v1362 = vmul.f32 %v976, %v976
          %v1363 = vmul.f32 %v977, %v977
          %v1364 = vmul.f32 %v978, %v978
          %v1365 = vmul.f32 %v979, %v979
          %v1366 = vmul.f32 %v980, %v980
          %v1367 = vmul.f32 %v981, %v981
          %v1368 = vmul.f32 %v982, %v982
          %v1369 = vmul.f32 %v983, %v983
          %v1370 = vmul.f32 %v984, %v984
          %v1371 = vmul.f32 %v985, %v985
          %v1372 = vmul.f32 %v986, %v986
          %v1373 = vmul.f32 %v987, %v987
          %v1374 = vmul.f32 %v988, %v988
          %v1375 = vmul.f32 %v989, %v989
          %v1376 = vmul.f32 %v990, %v990
          %v1377 = vmul.f32 %v991, %v991
          %v1378 = vmul.f32 %v992, %v992
          %v1379 = vmul.f32 %v993, %v993
          %v1380 = vmul.f32 %v994, %v994
          %v1381 = vmul.f32 %v995, %v995
          %v1382 = vmul.f32 %v996, %v996
          %v1383 = vmul.f32 %v997, %v997
          %v1384 = vmul.f32 %v998, %v998
          %v1385 = vmul.f32 %v999, %v999
          %v1386 = vmul.f32 %v1000, %v1000
          %v1387 = vmul.f32 %v1001, %v1001
          %v1388 = vmul.f32 %v1002, %v1002
          %v1389 = vmul.f32 %v1003, %v1003
          %v1390 = vmul.f32 %v1004, %v1004
          %v1391 = vadd.f32 %v1327, %v1329
          %v1392 = vadd.f32 %v1391, %v1331
          %v1393 = vadd.f32 %v1392, %v1333
          %v1394 = vadd.f32 %v1393, %v1335
          %v1395 = vadd.f32 %v1394, %v1337
          %v1396 = vadd.f32 %v1395, %v1339
          %v1397 = vadd.f32 %v1396, %v1341
          %v1398 = vadd.f32 %v1397, %v1343
          %v1399 = vadd.f32 %v1398, %v1345
          %v1400 = vadd.f32 %v1399, %v1347
          %v1401 = vadd.f32 %v1400, %v1349
          %v1402 = vadd.f32 %v1401, %v1351
          %v1403 = vadd.f32 %v1402, %v1353
          %v1404 = vadd.f32 %v1403, %v1355
          %v1405 = vadd.f32 %v1404, %v1357
          %v1406 = vadd.f32 %v1405, %v1359
          %v1407 = vadd.f32 %v1406, %v1361
          %v1408 = vadd.f32 %v1407, %v1363
          %v1409 = vadd.f32 %v1408, %v1365
          %v1410 = vadd.f32 %v1409, %v1367
          %v1411 = vadd.f32 %v1410, %v1369
          %v1412 = vadd.f32 %v1411, %v1371
          %v1413 = vadd.f32 %v1412, %v1373
          %v1414 = vadd.f32 %v1413, %v1375
          %v1415 = vadd.f32 %v1414, %v1377
          %v1416 = vadd.f32 %v1415, %v1379
          %v1417 = vadd.f32 %v1416, %v1381
          %v1418 = vadd.f32 %v1417, %v1383
          %v1419 = vadd.f32 %v1418, %v1385
          %v1420 = vadd.f32 %v1419, %v1387
          %v1421 = vadd.f32 %v1420, %v1389
          %v1422 = vrot.slane %v1421, 4
          %v1423 = vadd.f32 %v1421, %v1422
          %v1424 = vrot.slane %v1423, 2
          %v1425 = vadd.f32 %v1423, %v1424
          %v1426 = vrot.slane %v1425, 1
          %v1427 = vadd.f32 %v1425, %v1426
          %v1428 = vadd.f32 %v1328, %v1330
          %v1429 = vadd.f32 %v1428, %v1332
          %v1430 = vadd.f32 %v1429, %v1334
          %v1431 = vadd.f32 %v1430, %v1336
          %v1432 = vadd.f32 %v1431, %v1338
          %v1433 = vadd.f32 %v1432, %v1340
          %v1434 = vadd.f32 %v1433, %v1342
          %v1435 = vadd.f32 %v1434, %v1344
          %v1436 = vadd.f32 %v1435, %v1346
          %v1437 = vadd.f32 %v1436, %v1348
          %v1438 = vadd.f32 %v1437, %v1350
          %v1439 = vadd.f32 %v1438, %v1352
          %v1440 = vadd.f32 %v1439, %v1354
          %v1441 = vadd.f32 %v1440, %v1356
          %v1442 = vadd.f32 %v1441, %v1358
          %v1443 = vadd.f32 %v1442, %v1360
          %v1444 = vadd.f32 %v1443, %v1362
          %v1445 = vadd.f32 %v1444, %v1364
          %v1446 = vadd.f32 %v1445, %v1366
          %v1447 = vadd.f32 %v1446, %v1368
          %v1448 = vadd.f32 %v1447, %v1370
          %v1449 = vadd.f32 %v1448, %v1372
          %v1450 = vadd.f32 %v1449, %v1374
          %v1451 = vadd.f32 %v1450, %v1376
          %v1452 = vadd.f32 %v1451, %v1378
          %v1453 = vadd.f32 %v1452, %v1380
          %v1454 = vadd.f32 %v1453, %v1382
          %v1455 = vadd.f32 %v1454, %v1384
          %v1456 = vadd.f32 %v1455, %v1386
          %v1457 = vadd.f32 %v1456, %v1388
          %v1458 = vadd.f32 %v1457, %v1390
          %v1459 = vrot.slane %v1458, 4
          %v1460 = vadd.f32 %v1458, %v1459
          %v1461 = vrot.slane %v1460, 2
          %v1462 = vadd.f32 %v1460, %v1461
          %v1463 = vrot.slane %v1462, 1
          %v1464 = vadd.f32 %v1462, %v1463
          %v1467 = vcombine.low %v1427, %v1464
          %v1469 = vunpack.c.l.s4 1966171168
          %v1470 = vunpack.c.0.s8 %v1469
          %v1471 = vlaneseq
          %v1472 = vshrl.u32 %v1471, 7
          %v1473 = vsub.s32 %v1470, %v1472
          %v1474 = vrot.slane %v1467, %v1473
          %v1476 = vunpack.c.l.s4 1966171168
          %v1477 = vunpack.c.0.s8 %v1476
          %v1478 = vlaneseq
          %v1479 = vshrl.u32 %v1478, 7
          %v1480 = vsub.s32 %v1477, %v1479
          %v1481 = vrot.slane %v1474, %v1480
          %s1483 = scalar_lea.vmem %s253, 1 [#allocation9]
          %1484 = vst.msk [vmem:[%s1483] ss:$8 sm:$0x3] %vm1324, %v1481
          %1485 = vst.msk [vmem:[%s1483] ss:$8 sm:$0x0] %vm1324, %v1481
        $region44: #{bottleneck_forward.14} parent=27 // pred_fallthru
          _
        %s1486 = sand.u32 %s110, 1
        %s1487 = scalar_lea.sflag [#allocation5], %s1486
        %s1488 = sand.u32 %s110, 1
        %s1489 = smul.addr %s1488, 256
        %s1490 = scalar_lea.vmem [#allocation8], %s1489
        %s1491 = sand.u32 %s138, 1
        %s1492 = scalar_lea.sflag [#allocation10], %s1491
        %s1493 = sand.u32 %s138, 1
        %s1494 = smul.addr %s1493, 16
        %s1495 = scalar_lea.vmem [#allocation9], %s1494
        // Predicated region
        $region45: #{bottleneck_forward.14} parent=27 // pred_check
          %p1496 = pneg %p120
        $region46: #{bottleneck_forward.14} parent=27 // pred_check_branch
          %1498 = sbr.rel (%p1496) target = $region48
        $region47: #{bottleneck_forward.14} parent=27 // pred_region
          %s1499 = smul.u32 32, %s30
          %s1500 = smul.u32 2, %s31
          %s1502 = ssub.s32 4096, 4096
          %1503 = vsyncadd %s1487, %s1502
          %s1504 = smul.addr %s1499, 2
          %s1505 = sadd.s32 %s1500, %s1504
          %s1506 = smul.addr %s1505, 64
          %s1507 = scalar_lea.hbm %s2, %s1506
          %s1508 = sshll.u32 %s1490, 4
          %s1509 = int_to_ptr.vmem [resolvable:$true] %s1508
          %1514 = dma.vmem_to_hbm [thread:$0]  %s1509, 4096, %s1507, %s1487, 128, 128, 8
        $region48: #{bottleneck_forward.14} parent=27 // pred_fallthru
          _
        // Predicated region
        $region49: #{bottleneck_forward.14} parent=27 // pred_check
          %p1515 = pneg %p148
        $region50: #{bottleneck_forward.14} parent=27 // pred_check_branch
          %1517 = sbr.rel (%p1515) target = $region52
        $region51: #{bottleneck_forward.14} parent=27 // pred_region
          %s1518 = smul.u32 2, %s31
          %s1520 = ssub.s32 256, 256
          %1521 = vsyncadd %s1492, %s1520
          %s1522 = smul.addr %s30, 2
          %s1523 = sadd.s32 %s1518, %s1522
          %s1524 = smul.addr %s1523, 128
          %s1525 = scalar_lea.hbm %s3, %s1524
          %s1527 = sshll.u32 %s1495, 4
          %s1528 = int_to_ptr.vmem [resolvable:$true] %s1527
          %1530 = dma.vmem_to_hbm [thread:$0]  %s1528, 256, %s1525, %s1492
        $region52: #{bottleneck_forward.14} parent=27 // pred_fallthru
          _
      $region28: #{bottleneck_forward.14} parent=5 // pred_fallthru
        _
      %p1531 = scmp.le.s32.totalorder 2, %s20
      // Predicated region
      $region53: #{bottleneck_forward.14} parent=5 // pred_check
        %p1532 = pneg %p1531
      $region54: #{bottleneck_forward.14} parent=5 // pred_check_branch
        %1534 = sbr.rel (%p1532) target = $region56
      $region55: #{bottleneck_forward.14} parent=5 // pred_region
        %s1535 = ssub.s32 %s20, 2
        // Predicated region
        $region57: #{bottleneck_forward.14} parent=55 // pred_check
          %p1536 = pneg %p126
        $region58: #{bottleneck_forward.14} parent=55 // pred_check_branch
          %1538 = sbr.rel (%p1536) target = $region60
        $region59: #{bottleneck_forward.14} parent=55 // pred_region
          %s1539 = sand.u32 %s111, 1
          %s1540 = scalar_lea.sflag [#allocation5], %s1539
          %s1541 = sand.u32 %s111, 1
          %s1542 = smul.addr %s1541, 256
          %s1543 = scalar_lea.vmem [#allocation8], %s1542
          %1544 = dma.done %s1540, 4096
        $region60: #{bottleneck_forward.14} parent=55 // pred_fallthru
          _
        // Predicated region
        $region61: #{bottleneck_forward.14} parent=55 // pred_check
          %p1545 = pneg %p154
        $region62: #{bottleneck_forward.14} parent=55 // pred_check_branch
          %1547 = sbr.rel (%p1545) target = $region64
        $region63: #{bottleneck_forward.14} parent=55 // pred_region
          %s1548 = sand.u32 %s139, 1
          %s1549 = scalar_lea.sflag [#allocation10], %s1548
          %s1550 = sand.u32 %s139, 1
          %s1551 = smul.addr %s1550, 16
          %s1552 = scalar_lea.vmem [#allocation9], %s1551
          %1553 = dma.done %s1549, 256
        $region64: #{bottleneck_forward.14} parent=55 // pred_fallthru
          _
      $region56: #{bottleneck_forward.14} parent=5 // pred_fallthru
        _
    $region6: #{bottleneck_forward.14} parent=1 // loop_footer
      %s24 = sadd.s32 1, %s20
    $region7: #{bottleneck_forward.14} parent=1 // loop_footer_branch
      %19 = sbr.rel target = $region3
    $region8: #{bottleneck_forward.14} parent=1 // loop_exit
      _
    %1554 = vsyncpa [#allocation4], 1
    %s1555 = scalar_lea.sflag [#allocation4], 1
    %1556 = vsyncpa %s1555, 1
    %1557 = vsyncpa [#allocation7], 1
    %1558 = vsyncpa [#allocation5], 1
    %s1559 = scalar_lea.sflag [#allocation5], 1
    %1560 = vsyncpa %s1559, 1
    %1561 = vsyncpa [#allocation10], 1
    %s1562 = scalar_lea.sflag [#allocation10], 1
    %1563 = vsyncpa %s1562, 1

// kernel: bottleneck_forward.12
$region0: #{bottleneck_forward.12}
  #allocation0 [shape = 'u32[]', space=smem, size = 0x4, offset = 0x4, fixed_abs, tag = 'smem constant byte address 0x4 - core index']
  #allocation1 [shape = 'u32[144,128]{1,0:T(1,128)}', space=vmem, size = 0x12000, scoped, tag = 'internal scratch']
  #allocation2 [shape = 'f32[256,128]{1,0:T(8,128)}', space=vmem, size = 0x20000, scoped, tag = 'scratch operand']
  %s0 = inlined_call_operand.hbm [shape: bf16[512,1152], index: 0, kind: input, shape index: {}]
  %s1 = inlined_call_operand.hbm [shape: bf16[1152,128], index: 1, kind: input, shape index: {}]
  %s2 = inlined_call_operand.hbm [shape: bf16[512,128], index: 2, kind: output, shape index: {0}]
  %s3 = inlined_call_operand.hbm [shape: f32[16,128], index: 3, kind: output, shape index: {1}]
  %4 = xla_tuple %s2, %s3
  %s5 = sld [smem:[#allocation0]]
  $region65: #{bottleneck_forward.12} parent=0
    _
  %s7 = ssub.s32 1, %s5
  %s8 = scalar_select 0, %s7, %s5
  $region1: #{bottleneck_forward.12} parent=0
    #allocation3 [shape = 'u8[1179648]{0}', space=vmem, size = 0x120000, scoped, tag = 'input window, operand 0']
    #allocation4 [shape = 's32[2]{0}', space=sflag, size = 0x8, scoped, tag = 'scoped memory for bottleneck_forward.12']
    #allocation5 [shape = 's32[2]{0}', space=sflag, size = 0x8, scoped, tag = 'scoped memory for bottleneck_forward.12']
    #allocation6 [shape = 'u8[294912]{0}', space=vmem, size = 0x48000, scoped, tag = 'input window, operand 1, single buffered']
    #allocation7 [shape = 's32[1]{0}', space=sflag, size = 0x4, scoped, tag = 'scoped memory for bottleneck_forward.12']
    #allocation8 [shape = 'u8[131072]{0}', space=vmem, size = 0x20000, scoped, tag = 'output window, operand 0']
    #allocation9 [shape = 'u8[8192]{0}', space=vmem, size = 0x2000, scoped, tag = 'output window, operand 1']
    #allocation10 [shape = 's32[2]{0}', space=sflag, size = 0x8, scoped, tag = 'scoped memory for bottleneck_forward.12']
    %9 = vsyncpa [#allocation4], 0
    %s10 = scalar_lea.sflag [#allocation4], 1
    %11 = vsyncpa %s10, 0
    %12 = vsyncpa [#allocation7], 0
    %13 = vsyncpa [#allocation5], 0
    %s14 = scalar_lea.sflag [#allocation5], 1
    %15 = vsyncpa %s14, 0
    %16 = vsyncpa [#allocation10], 0
    %s17 = scalar_lea.sflag [#allocation10], 1
    %18 = vsyncpa %s17, 0
    loop: start=0, step=1, limit=4
    $region2: #{bottleneck_forward.12} parent=1 // loop_pre_header
      _
    $region3: #{bottleneck_forward.12} parent=1 // loop_header
      %s20 = sphi 0, %s24
      %p21 = scmp.ge.s32.totalorder %s20, 4
      %s27 = sphi 0, %s46
      %s28 = sphi 0, %s42
      %s29 = sphi 0, %s38
      %s30 = sphi 0, %s27
      %s31 = sphi 0, %s28
      %s32 = sphi 0, %s29
      %s33 = sphi 0, %s30
      %s34 = sphi 0, %s31
      %s35 = sphi 0, %s32
      %s51 = sphi 0, %s53
      %s54 = sphi 0, %s51
      %s55 = sphi 0, %s54
      %s71 = sphi 0, %s55
      %s79 = sphi 0, %s81
      %s82 = sphi 0, %s79
      %s83 = sphi 0, %s82
      %s99 = sphi 0, %s83
      %s107 = sphi 0, %s109
      %s110 = sphi 0, %s107
      %s111 = sphi 0, %s110
      %s127 = sphi 0, %s111
      %s135 = sphi 0, %s137
      %s138 = sphi 0, %s135
      %s139 = sphi 0, %s138
      %s155 = sphi 0, %s139
    $region4: #{bottleneck_forward.12} parent=1 // loop_header_branch
      %23 = sbr.rel (%p21) target = $region8
    $region5: #{bottleneck_forward.12} parent=1 // loop_body
      %s25 = ssub.s32 %s20, 1
      %s26 = ssub.s32 %s20, 2
      %s36 = sadd.s32 1, %s29
      %p37 = scmp.ge.s32.totalorder %s36, 1
      %s38 = scalar_select %p37, 0, %s36
      %s39 = sadd.s32 1, %s28
      %s40 = scalar_select %p37, %s39, %s28
      %p41 = scmp.ge.s32.totalorder %s40, 1
      %s42 = scalar_select %p41, 0, %s40
      %s43 = sadd.s32 1, %s27
      %s44 = scalar_select %p41, %s43, %s27
      %p45 = scmp.ge.s32.totalorder %s44, 2
      %s46 = scalar_select %p45, 0, %s44
      %s47 = ssub.s32 %s27, %s46
      %s48 = ssub.s32 %s29, %s38
      %s49 = sor.u32 %s47, %s48
      %p50 = scmp.eq.s32.totalorder %s49, 0
      %s52 = sadd.s32 %s51, 1
      %s53 = scalar_select %p50, %s51, %s52
      %p56 = pneg %p50
      %p57 = scmp.eq.s32.totalorder %s20, 1
      %p58 = por %p56, %p57
      %p59 = scmp.ne.s32.totalorder %s51, %s54
      %p60 = scmp.eq.s32.totalorder %s20, 0
      %p61 = por %p59, %p60
      %p62 = scmp.ne.s32.totalorder %s51, %s54
      %p63 = scmp.eq.s32.totalorder %s25, 1
      %p64 = por %p62, %p63
      %p65 = scmp.ne.s32.totalorder %s54, %s55
      %p66 = scmp.eq.s32.totalorder %s25, 0
      %p67 = por %p65, %p66
      %p68 = scmp.ne.s32.totalorder %s54, %s55
      %p69 = scmp.eq.s32.totalorder %s26, 1
      %p70 = por %p68, %p69
      %p72 = scmp.ne.s32.totalorder %s55, %s71
      %p73 = scmp.eq.s32.totalorder %s26, 0
      %p74 = por %p72, %p73
      %s75 = ssub.s32 %s29, %s38
      %s76 = ssub.s32 %s28, %s42
      %s77 = sor.u32 %s75, %s76
      %p78 = scmp.eq.s32.totalorder %s77, 0
      %s80 = sadd.s32 %s79, 1
      %s81 = scalar_select %p78, %s79, %s80
      %p84 = pneg %p78
      %p85 = scmp.eq.s32.totalorder %s20, 1
      %p86 = por %p84, %p85
      %p87 = scmp.ne.s32.totalorder %s79, %s82
      %p88 = scmp.eq.s32.totalorder %s20, 0
      %p89 = por %p87, %p88
      %p90 = scmp.ne.s32.totalorder %s79, %s82
      %p91 = scmp.eq.s32.totalorder %s25, 1
      %p92 = por %p90, %p91
      %p93 = scmp.ne.s32.totalorder %s82, %s83
      %p94 = scmp.eq.s32.totalorder %s25, 0
      %p95 = por %p93, %p94
      %p96 = scmp.ne.s32.totalorder %s82, %s83
      %p97 = scmp.eq.s32.totalorder %s26, 1
      %p98 = por %p96, %p97
      %p100 = scmp.ne.s32.totalorder %s83, %s99
      %p101 = scmp.eq.s32.totalorder %s26, 0
      %p102 = por %p100, %p101
      %s103 = ssub.s32 %s27, %s46
      %s104 = ssub.s32 %s28, %s42
      %s105 = sor.u32 %s103, %s104
      %p106 = scmp.eq.s32.totalorder %s105, 0
      %s108 = sadd.s32 %s107, 1
      %s109 = scalar_select %p106, %s107, %s108
      %p112 = pneg %p106
      %p113 = scmp.eq.s32.totalorder %s20, 1
      %p114 = por %p112, %p113
      %p115 = scmp.ne.s32.totalorder %s107, %s110
      %p116 = scmp.eq.s32.totalorder %s20, 0
      %p117 = por %p115, %p116
      %p118 = scmp.ne.s32.totalorder %s107, %s110
      %p119 = scmp.eq.s32.totalorder %s25, 1
      %p120 = por %p118, %p119
      %p121 = scmp.ne.s32.totalorder %s110, %s111
      %p122 = scmp.eq.s32.totalorder %s25, 0
      %p123 = por %p121, %p122
      %p124 = scmp.ne.s32.totalorder %s110, %s111
      %p125 = scmp.eq.s32.totalorder %s26, 1
      %p126 = por %p124, %p125
      %p128 = scmp.ne.s32.totalorder %s111, %s127
      %p129 = scmp.eq.s32.totalorder %s26, 0
      %p130 = por %p128, %p129
      %s131 = ssub.s32 %s27, %s46
      %s132 = ssub.s32 %s28, %s42
      %s133 = sor.u32 %s131, %s132
      %p134 = scmp.eq.s32.totalorder %s133, 0
      %s136 = sadd.s32 %s135, 1
      %s137 = scalar_select %p134, %s135, %s136
      %p140 = pneg %p134
      %p141 = scmp.eq.s32.totalorder %s20, 1
      %p142 = por %p140, %p141
      %p143 = scmp.ne.s32.totalorder %s135, %s138
      %p144 = scmp.eq.s32.totalorder %s20, 0
      %p145 = por %p143, %p144
      %p146 = scmp.ne.s32.totalorder %s135, %s138
      %p147 = scmp.eq.s32.totalorder %s25, 1
      %p148 = por %p146, %p147
      %p149 = scmp.ne.s32.totalorder %s138, %s139
      %p150 = scmp.eq.s32.totalorder %s25, 0
      %p151 = por %p149, %p150
      %p152 = scmp.ne.s32.totalorder %s138, %s139
      %p153 = scmp.eq.s32.totalorder %s26, 1
      %p154 = por %p152, %p153
      %p156 = scmp.ne.s32.totalorder %s139, %s155
      %p157 = scmp.eq.s32.totalorder %s26, 0
      %p158 = por %p156, %p157
      %p159 = scmp.le.s32.totalorder 1, %s20
      %p160 = scmp.lt.s32.totalorder %s20, 3
      %p161 = pnand %p159, %p160
      %p162 = pneg %p161
      // Predicated region
      $region9: #{bottleneck_forward.12} parent=5 // pred_check
        _
      $region10: #{bottleneck_forward.12} parent=5 // pred_check_branch
        %164 = sbr.rel (%p161) target = $region12
      $region11: #{bottleneck_forward.12} parent=5 // pred_region
        %s165 = ssub.s32 %s20, 1
        // Predicated region
        $region13: #{bottleneck_forward.12} parent=11 // pred_check
          %p166 = pneg %p95
        $region14: #{bottleneck_forward.12} parent=11 // pred_check_branch
          %168 = sbr.rel (%p166) target = $region16
        $region15: #{bottleneck_forward.12} parent=11 // pred_region
          %s169 = smul.u32 144, %s32
          %s171 = ssub.s32 9216, 9216
          %172 = vsyncadd [#allocation7], %s171
          %s173 = sadd.s32 %s31, %s169
          %s174 = smul.addr %s173, 64
          %s175 = scalar_lea.hbm %s1, %s174
          %s176 = sshll.u32 [#allocation6], 4
          %s177 = int_to_ptr.vmem [resolvable:$true] %s176
          %182 = dma.hbm_to_vmem [thread:$0]  %s175, 9216, %s177, [#allocation7], 64, 64, 4
        $region16: #{bottleneck_forward.12} parent=11 // pred_fallthru
          _
      $region12: #{bottleneck_forward.12} parent=5 // pred_fallthru
        _
      %p183 = scmp.lt.s32.totalorder %s20, 2
      // Predicated region
      $region17: #{bottleneck_forward.12} parent=5 // pred_check
        %p184 = pneg %p183
      $region18: #{bottleneck_forward.12} parent=5 // pred_check_branch
        %186 = sbr.rel (%p184) target = $region20
      $region19: #{bottleneck_forward.12} parent=5 // pred_region
        // Predicated region
        $region21: #{bottleneck_forward.12} parent=19 // pred_check
          %p187 = pneg %p61
        $region22: #{bottleneck_forward.12} parent=19 // pred_check_branch
          %189 = sbr.rel (%p187) target = $region24
        $region23: #{bottleneck_forward.12} parent=19 // pred_region
          %s190 = sand.u32 %s51, 1
          %s191 = scalar_lea.sflag [#allocation4], %s190
          %s192 = sand.u32 %s51, 1
          %s193 = smul.addr %s192, 1152
          %s194 = scalar_lea.vmem [#allocation3], %s193
          %s195 = smul.u32 32, %s27
          %s196 = smul.u32 9, %s29
          %s198 = ssub.s32 18432, 18432
          %199 = vsyncadd %s191, %s198
          %s200 = smul.addr %s195, 9
          %s201 = sadd.s32 %s196, %s200
          %s202 = smul.addr %s201, 64
          %s203 = scalar_lea.hbm %s0, %s202
          %s204 = sshll.u32 %s194, 4
          %s205 = int_to_ptr.vmem [resolvable:$true] %s204
          %210 = dma.hbm_to_vmem [thread:$0]  %s203, 18432, %s205, %s191, 576, 576, 36
        $region24: #{bottleneck_forward.12} parent=19 // pred_fallthru
          _
      $region20: #{bottleneck_forward.12} parent=5 // pred_fallthru
        _
      %p211 = scmp.le.s32.totalorder 1, %s20
      %p212 = scmp.lt.s32.totalorder %s20, 3
      %p213 = pnand %p211, %p212
      %p214 = pneg %p213
      // Predicated region
      $region25: #{bottleneck_forward.12} parent=5 // pred_check
        _
      $region26: #{bottleneck_forward.12} parent=5 // pred_check_branch
        %216 = sbr.rel (%p213) target = $region28
      $region27: #{bottleneck_forward.12} parent=5 // pred_region
        %s217 = ssub.s32 %s20, 1
        %s218 = sand.u32 %s54, 1
        %s219 = scalar_lea.sflag [#allocation4], %s218
        %s220 = sand.u32 %s54, 1
        %s221 = smul.addr %s220, 1152
        %s222 = scalar_lea.vmem [#allocation3], %s221
        // Predicated region
        $region29: #{bottleneck_forward.12} parent=27 // pred_check
          %p223 = pneg %p67
        $region30: #{bottleneck_forward.12} parent=27 // pred_check_branch
          %225 = sbr.rel (%p223) target = $region32
        $region31: #{bottleneck_forward.12} parent=27 // pred_region
          %226 = dma.done %s219, 18432
        $region32: #{bottleneck_forward.12} parent=27 // pred_fallthru
          _
        // Predicated region
        $region33: #{bottleneck_forward.12} parent=27 // pred_check
          %p227 = pneg %p95
        $region34: #{bottleneck_forward.12} parent=27 // pred_check_branch
          %229 = sbr.rel (%p227) target = $region36
        $region35: #{bottleneck_forward.12} parent=27 // pred_region
          %230 = dma.done [#allocation7], 9216
        $region36: #{bottleneck_forward.12} parent=27 // pred_fallthru
          _
        %s231 = sand.u32 %s54, 1
        %s232 = scalar_lea.sflag [#allocation4], %s231
        %s233 = sand.u32 %s54, 1
        %s234 = smul.addr %s233, 1152
        %s235 = scalar_lea.vmem [#allocation3], %s234
        %p236 = pneg %p67
        %p237 = pneg %p64
        %p238 = pneg %p95
        %p239 = pneg %p92
        %p240 = pneg %p123
        %p241 = pneg %p120
        %s242 = sand.u32 %s110, 1
        %s243 = scalar_lea.sflag [#allocation5], %s242
        %s244 = sand.u32 %s110, 1
        %s245 = smul.addr %s244, 128
        %s246 = scalar_lea.vmem [#allocation8], %s245
        %p247 = pneg %p151
        %p248 = pneg %p148
        %s249 = sand.u32 %s138, 1
        %s250 = scalar_lea.sflag [#allocation10], %s249
        %s251 = sand.u32 %s138, 1
        %s252 = smul.addr %s251, 8
        %s253 = scalar_lea.vmem [#allocation9], %s252
        %s254 = smul.u32 32, %s30
        %s255 = smul.u32 9, %s32
        %s256 = smul.u32 144, %s32
        %s257 = smul.u32 32, %s30
        %p259 = scmp.eq.s32.totalorder %s32, 0
        // Predicated region
        $region37: #{bottleneck_forward.12} parent=27 // pred_check
          %p260 = pneg %p259
        $region38: #{bottleneck_forward.12} parent=27 // pred_check_branch
          %262 = sbr.rel (%p260) target = $region40
        $region39: #{bottleneck_forward.12} parent=27 // pred_region
          %263 = vst [vmem:[#allocation2] sm:$0xff] 0.0
          %264 = vst [vmem:[#allocation2 + $0x8] sm:$0xff] 0.0
          %265 = vst [vmem:[#allocation2 + $0x10] sm:$0xff] 0.0
          %266 = vst [vmem:[#allocation2 + $0x18] sm:$0xff] 0.0
          %267 = vst [vmem:[#allocation2 + $0x20] sm:$0xff] 0.0
          %268 = vst [vmem:[#allocation2 + $0x28] sm:$0xff] 0.0
          %269 = vst [vmem:[#allocation2 + $0x30] sm:$0xff] 0.0
          %270 = vst [vmem:[#allocation2 + $0x38] sm:$0xff] 0.0
          %271 = vst [vmem:[#allocation2 + $0x40] sm:$0xff] 0.0
          %272 = vst [vmem:[#allocation2 + $0x48] sm:$0xff] 0.0
          %273 = vst [vmem:[#allocation2 + $0x50] sm:$0xff] 0.0
          %274 = vst [vmem:[#allocation2 + $0x58] sm:$0xff] 0.0
          %275 = vst [vmem:[#allocation2 + $0x60] sm:$0xff] 0.0
          %276 = vst [vmem:[#allocation2 + $0x68] sm:$0xff] 0.0
          %277 = vst [vmem:[#allocation2 + $0x70] sm:$0xff] 0.0
          %278 = vst [vmem:[#allocation2 + $0x78] sm:$0xff] 0.0
          %279 = vst [vmem:[#allocation2 + $0x80] sm:$0xff] 0.0
          %280 = vst [vmem:[#allocation2 + $0x88] sm:$0xff] 0.0
          %281 = vst [vmem:[#allocation2 + $0x90] sm:$0xff] 0.0
          %282 = vst [vmem:[#allocation2 + $0x98] sm:$0xff] 0.0
          %283 = vst [vmem:[#allocation2 + $0xa0] sm:$0xff] 0.0
          %284 = vst [vmem:[#allocation2 + $0xa8] sm:$0xff] 0.0
          %285 = vst [vmem:[#allocation2 + $0xb0] sm:$0xff] 0.0
          %286 = vst [vmem:[#allocation2 + $0xb8] sm:$0xff] 0.0
          %287 = vst [vmem:[#allocation2 + $0xc0] sm:$0xff] 0.0
          %288 = vst [vmem:[#allocation2 + $0xc8] sm:$0xff] 0.0
          %289 = vst [vmem:[#allocation2 + $0xd0] sm:$0xff] 0.0
          %290 = vst [vmem:[#allocation2 + $0xd8] sm:$0xff] 0.0
          %291 = vst [vmem:[#allocation2 + $0xe0] sm:$0xff] 0.0
          %292 = vst [vmem:[#allocation2 + $0xe8] sm:$0xff] 0.0
          %293 = vst [vmem:[#allocation2 + $0xf0] sm:$0xff] 0.0
          %294 = vst [vmem:[#allocation2 + $0xf8] sm:$0xff] 0.0
        $region40: #{bottleneck_forward.12} parent=27 // pred_fallthru
          _
        %v295 = vld [vmem:[#allocation2] sm:$0xff]
        %v296 = vld [vmem:[#allocation2 + $0x8] sm:$0xff]
        %v297 = vld [vmem:[#allocation2 + $0x10] sm:$0xff]
        %v298 = vld [vmem:[#allocation2 + $0x18] sm:$0xff]
        %v299 = vld [vmem:[#allocation2 + $0x20] sm:$0xff]
        %v300 = vld [vmem:[#allocation2 + $0x28] sm:$0xff]
        %v301 = vld [vmem:[#allocation2 + $0x30] sm:$0xff]
        %v302 = vld [vmem:[#allocation2 + $0x38] sm:$0xff]
        %v303 = vld [vmem:[#allocation2 + $0x40] sm:$0xff]
        %v304 = vld [vmem:[#allocation2 + $0x48] sm:$0xff]
        %v305 = vld [vmem:[#allocation2 + $0x50] sm:$0xff]
        %v306 = vld [vmem:[#allocation2 + $0x58] sm:$0xff]
        %v307 = vld [vmem:[#allocation2 + $0x60] sm:$0xff]
        %v308 = vld [vmem:[#allocation2 + $0x68] sm:$0xff]
        %v309 = vld [vmem:[#allocation2 + $0x70] sm:$0xff]
        %v310 = vld [vmem:[#allocation2 + $0x78] sm:$0xff]
        %v311 = vld [vmem:[#allocation2 + $0x80] sm:$0xff]
        %v312 = vld [vmem:[#allocation2 + $0x88] sm:$0xff]
        %v313 = vld [vmem:[#allocation2 + $0x90] sm:$0xff]
        %v314 = vld [vmem:[#allocation2 + $0x98] sm:$0xff]
        %v315 = vld [vmem:[#allocation2 + $0xa0] sm:$0xff]
        %v316 = vld [vmem:[#allocation2 + $0xa8] sm:$0xff]
        %v317 = vld [vmem:[#allocation2 + $0xb0] sm:$0xff]
        %v318 = vld [vmem:[#allocation2 + $0xb8] sm:$0xff]
        %v319 = vld [vmem:[#allocation2 + $0xc0] sm:$0xff]
        %v320 = vld [vmem:[#allocation2 + $0xc8] sm:$0xff]
        %v321 = vld [vmem:[#allocation2 + $0xd0] sm:$0xff]
        %v322 = vld [vmem:[#allocation2 + $0xd8] sm:$0xff]
        %v323 = vld [vmem:[#allocation2 + $0xe0] sm:$0xff]
        %v324 = vld [vmem:[#allocation2 + $0xe8] sm:$0xff]
        %v325 = vld [vmem:[#allocation2 + $0xf0] sm:$0xff]
        %v326 = vld [vmem:[#allocation2 + $0xf8] sm:$0xff]
        %v327 = vld [vmem:[%s222] sm:$0xff]
        %v328 = vld [vmem:[%s222 + $0x8] sm:$0xff]
        %v329 = vld [vmem:[%s222 + $0x10] sm:$0xff]
        %v330 = vld [vmem:[%s222 + $0x18] sm:$0xff]
        %v331 = vld [vmem:[%s222 + $0x20] sm:$0xf]
        %v332 = vld [vmem:[%s222 + $0x24] sm:$0xff]
        %v333 = vld [vmem:[%s222 + $0x2c] sm:$0xff]
        %v334 = vld [vmem:[%s222 + $0x34] sm:$0xff]
        %v335 = vld [vmem:[%s222 + $0x3c] sm:$0xff]
        %v336 = vld [vmem:[%s222 + $0x44] sm:$0xf]
        %v337 = vld [vmem:[%s222 + $0x48] sm:$0xff]
        %v338 = vld [vmem:[%s222 + $0x50] sm:$0xff]
        %v339 = vld [vmem:[%s222 + $0x58] sm:$0xff]
        %v340 = vld [vmem:[%s222 + $0x60] sm:$0xff]
        %v341 = vld [vmem:[%s222 + $0x68] sm:$0xf]
        %v342 = vld [vmem:[%s222 + $0x6c] sm:$0xff]
        %v343 = vld [vmem:[%s222 + $0x74] sm:$0xff]
        %v344 = vld [vmem:[%s222 + $0x7c] sm:$0xff]
        %v345 = vld [vmem:[%s222 + $0x84] sm:$0xff]
        %v346 = vld [vmem:[%s222 + $0x8c] sm:$0xf]
        %v347 = vld [vmem:[%s222 + $0x90] sm:$0xff]
        %v348 = vld [vmem:[%s222 + $0x98] sm:$0xff]
        %v349 = vld [vmem:[%s222 + $0xa0] sm:$0xff]
        %v350 = vld [vmem:[%s222 + $0xa8] sm:$0xff]
        %v351 = vld [vmem:[%s222 + $0xb0] sm:$0xf]
        %v352 = vld [vmem:[%s222 + $0xb4] sm:$0xff]
        %v353 = vld [vmem:[%s222 + $0xbc] sm:$0xff]
        %v354 = vld [vmem:[%s222 + $0xc4] sm:$0xff]
        %v355 = vld [vmem:[%s222 + $0xcc] sm:$0xff]
        %v356 = vld [vmem:[%s222 + $0xd4] sm:$0xf]
        %v357 = vld [vmem:[%s222 + $0xd8] sm:$0xff]
        %v358 = vld [vmem:[%s222 + $0xe0] sm:$0xff]
        %v359 = vld [vmem:[%s222 + $0xe8] sm:$0xff]
        %v360 = vld [vmem:[%s222 + $0xf0] sm:$0xff]
        %v361 = vld [vmem:[%s222 + $0xf8] sm:$0xf]
        %v362 = vld [vmem:[%s222 + $0xfc] sm:$0xff]
        %v363 = vld [vmem:[%s222 + $0x104] sm:$0xff]
        %v364 = vld [vmem:[%s222 + $0x10c] sm:$0xff]
        %v365 = vld [vmem:[%s222 + $0x114] sm:$0xff]
        %v366 = vld [vmem:[%s222 + $0x11c] sm:$0xf]
        %v367 = vld [vmem:[%s222 + $0x120] sm:$0xff]
        %v368 = vld [vmem:[%s222 + $0x128] sm:$0xff]
        %v369 = vld [vmem:[%s222 + $0x130] sm:$0xff]
        %v370 = vld [vmem:[%s222 + $0x138] sm:$0xff]
        %v371 = vld [vmem:[%s222 + $0x140] sm:$0xf]
        %v372 = vld [vmem:[%s222 + $0x144] sm:$0xff]
        %v373 = vld [vmem:[%s222 + $0x14c] sm:$0xff]
        %v374 = vld [vmem:[%s222 + $0x154] sm:$0xff]
        %v375 = vld [vmem:[%s222 + $0x15c] sm:$0xff]
        %v376 = vld [vmem:[%s222 + $0x164] sm:$0xf]
        %v377 = vld [vmem:[%s222 + $0x168] sm:$0xff]
        %v378 = vld [vmem:[%s222 + $0x170] sm:$0xff]
        %v379 = vld [vmem:[%s222 + $0x178] sm:$0xff]
        %v380 = vld [vmem:[%s222 + $0x180] sm:$0xff]
        %v381 = vld [vmem:[%s222 + $0x188] sm:$0xf]
        %v382 = vld [vmem:[%s222 + $0x18c] sm:$0xff]
        %v383 = vld [vmem:[%s222 + $0x194] sm:$0xff]
        %v384 = vld [vmem:[%s222 + $0x19c] sm:$0xff]
        %v385 = vld [vmem:[%s222 + $0x1a4] sm:$0xff]
        %v386 = vld [vmem:[%s222 + $0x1ac] sm:$0xf]
        %v387 = vld [vmem:[%s222 + $0x1b0] sm:$0xff]
        %v388 = vld [vmem:[%s222 + $0x1b8] sm:$0xff]
        %v389 = vld [vmem:[%s222 + $0x1c0] sm:$0xff]
        %v390 = vld [vmem:[%s222 + $0x1c8] sm:$0xff]
        %v391 = vld [vmem:[%s222 + $0x1d0] sm:$0xf]
        %v392 = vld [vmem:[%s222 + $0x1d4] sm:$0xff]
        %v393 = vld [vmem:[%s222 + $0x1dc] sm:$0xff]
        %v394 = vld [vmem:[%s222 + $0x1e4] sm:$0xff]
        %v395 = vld [vmem:[%s222 + $0x1ec] sm:$0xff]
        %v396 = vld [vmem:[%s222 + $0x1f4] sm:$0xf]
        %v397 = vld [vmem:[%s222 + $0x1f8] sm:$0xff]
        %v398 = vld [vmem:[%s222 + $0x200] sm:$0xff]
        %v399 = vld [vmem:[%s222 + $0x208] sm:$0xff]
        %v400 = vld [vmem:[%s222 + $0x210] sm:$0xff]
        %v401 = vld [vmem:[%s222 + $0x218] sm:$0xf]
        %v402 = vld [vmem:[%s222 + $0x21c] sm:$0xff]
        %v403 = vld [vmem:[%s222 + $0x224] sm:$0xff]
        %v404 = vld [vmem:[%s222 + $0x22c] sm:$0xff]
        %v405 = vld [vmem:[%s222 + $0x234] sm:$0xff]
        %v406 = vld [vmem:[%s222 + $0x23c] sm:$0xf]
        %v407 = vld [vmem:[%s222 + $0x240] sm:$0xff]
        %v408 = vld [vmem:[%s222 + $0x248] sm:$0xff]
        %v409 = vld [vmem:[%s222 + $0x250] sm:$0xff]
        %v410 = vld [vmem:[%s222 + $0x258] sm:$0xff]
        %v411 = vld [vmem:[%s222 + $0x260] sm:$0xf]
        %v412 = vld [vmem:[%s222 + $0x264] sm:$0xff]
        %v413 = vld [vmem:[%s222 + $0x26c] sm:$0xff]
        %v414 = vld [vmem:[%s222 + $0x274] sm:$0xff]
        %v415 = vld [vmem:[%s222 + $0x27c] sm:$0xff]
        %v416 = vld [vmem:[%s222 + $0x284] sm:$0xf]
        %v417 = vld [vmem:[%s222 + $0x288] sm:$0xff]
        %v418 = vld [vmem:[%s222 + $0x290] sm:$0xff]
        %v419 = vld [vmem:[%s222 + $0x298] sm:$0xff]
        %v420 = vld [vmem:[%s222 + $0x2a0] sm:$0xff]
        %v421 = vld [vmem:[%s222 + $0x2a8] sm:$0xf]
        %v422 = vld [vmem:[%s222 + $0x2ac] sm:$0xff]
        %v423 = vld [vmem:[%s222 + $0x2b4] sm:$0xff]
        %v424 = vld [vmem:[%s222 + $0x2bc] sm:$0xff]
        %v425 = vld [vmem:[%s222 + $0x2c4] sm:$0xff]
        %v426 = vld [vmem:[%s222 + $0x2cc] sm:$0xf]
        %v427 = vld [vmem:[%s222 + $0x2d0] sm:$0xff]
        %v428 = vld [vmem:[%s222 + $0x2d8] sm:$0xff]
        %v429 = vld [vmem:[%s222 + $0x2e0] sm:$0xff]
        %v430 = vld [vmem:[%s222 + $0x2e8] sm:$0xff]
        %v431 = vld [vmem:[%s222 + $0x2f0] sm:$0xf]
        %v432 = vld [vmem:[%s222 + $0x2f4] sm:$0xff]
        %v433 = vld [vmem:[%s222 + $0x2fc] sm:$0xff]
        %v434 = vld [vmem:[%s222 + $0x304] sm:$0xff]
        %v435 = vld [vmem:[%s222 + $0x30c] sm:$0xff]
        %v436 = vld [vmem:[%s222 + $0x314] sm:$0xf]
        %v437 = vld [vmem:[%s222 + $0x318] sm:$0xff]
        %v438 = vld [vmem:[%s222 + $0x320] sm:$0xff]
        %v439 = vld [vmem:[%s222 + $0x328] sm:$0xff]
        %v440 = vld [vmem:[%s222 + $0x330] sm:$0xff]
        %v441 = vld [vmem:[%s222 + $0x338] sm:$0xf]
        %v442 = vld [vmem:[%s222 + $0x33c] sm:$0xff]
        %v443 = vld [vmem:[%s222 + $0x344] sm:$0xff]
        %v444 = vld [vmem:[%s222 + $0x34c] sm:$0xff]
        %v445 = vld [vmem:[%s222 + $0x354] sm:$0xff]
        %v446 = vld [vmem:[%s222 + $0x35c] sm:$0xf]
        %v447 = vld [vmem:[%s222 + $0x360] sm:$0xff]
        %v448 = vld [vmem:[%s222 + $0x368] sm:$0xff]
        %v449 = vld [vmem:[%s222 + $0x370] sm:$0xff]
        %v450 = vld [vmem:[%s222 + $0x378] sm:$0xff]
        %v451 = vld [vmem:[%s222 + $0x380] sm:$0xf]
        %v452 = vld [vmem:[%s222 + $0x384] sm:$0xff]
        %v453 = vld [vmem:[%s222 + $0x38c] sm:$0xff]
        %v454 = vld [vmem:[%s222 + $0x394] sm:$0xff]
        %v455 = vld [vmem:[%s222 + $0x39c] sm:$0xff]
        %v456 = vld [vmem:[%s222 + $0x3a4] sm:$0xf]
        %v457 = vld [vmem:[%s222 + $0x3a8] sm:$0xff]
        %v458 = vld [vmem:[%s222 + $0x3b0] sm:$0xff]
        %v459 = vld [vmem:[%s222 + $0x3b8] sm:$0xff]
        %v460 = vld [vmem:[%s222 + $0x3c0] sm:$0xff]
        %v461 = vld [vmem:[%s222 + $0x3c8] sm:$0xf]
        %v462 = vld [vmem:[%s222 + $0x3cc] sm:$0xff]
        %v463 = vld [vmem:[%s222 + $0x3d4] sm:$0xff]
        %v464 = vld [vmem:[%s222 + $0x3dc] sm:$0xff]
        %v465 = vld [vmem:[%s222 + $0x3e4] sm:$0xff]
        %v466 = vld [vmem:[%s222 + $0x3ec] sm:$0xf]
        %v467 = vld [vmem:[%s222 + $0x3f0] sm:$0xff]
        %v468 = vld [vmem:[%s222 + $0x3f8] sm:$0xff]
        %v469 = vld [vmem:[%s222 + $0x400] sm:$0xff]
        %v470 = vld [vmem:[%s222 + $0x408] sm:$0xff]
        %v471 = vld [vmem:[%s222 + $0x410] sm:$0xf]
        %v472 = vld [vmem:[%s222 + $0x414] sm:$0xff]
        %v473 = vld [vmem:[%s222 + $0x41c] sm:$0xff]
        %v474 = vld [vmem:[%s222 + $0x424] sm:$0xff]
        %v475 = vld [vmem:[%s222 + $0x42c] sm:$0xff]
        %v476 = vld [vmem:[%s222 + $0x434] sm:$0xf]
        %v477 = vld [vmem:[%s222 + $0x438] sm:$0xff]
        %v478 = vld [vmem:[%s222 + $0x440] sm:$0xff]
        %v479 = vld [vmem:[%s222 + $0x448] sm:$0xff]
        %v480 = vld [vmem:[%s222 + $0x450] sm:$0xff]
        %v481 = vld [vmem:[%s222 + $0x458] sm:$0xf]
        %v482 = vld [vmem:[%s222 + $0x45c] sm:$0xff]
        %v483 = vld [vmem:[%s222 + $0x464] sm:$0xff]
        %v484 = vld [vmem:[%s222 + $0x46c] sm:$0xff]
        %v485 = vld [vmem:[%s222 + $0x474] sm:$0xff]
        %v486 = vld [vmem:[%s222 + $0x47c] sm:$0xf]
        %v487 = vld [vmem:[#allocation6] sm:$0xf]
        %v488 = vld [vmem:[#allocation6 + $0x4] sm:$0xf]
        %v489 = vld [vmem:[#allocation6 + $0x8] sm:$0xf]
        %v490 = vld [vmem:[#allocation6 + $0xc] sm:$0xf]
        %v491 = vld [vmem:[#allocation6 + $0x10] sm:$0xf]
        %v492 = vld [vmem:[#allocation6 + $0x14] sm:$0xf]
        %v493 = vld [vmem:[#allocation6 + $0x18] sm:$0xf]
        %v494 = vld [vmem:[#allocation6 + $0x1c] sm:$0xf]
        %v495 = vld [vmem:[#allocation6 + $0x20] sm:$0xf]
        %v496 = vld [vmem:[#allocation6 + $0x24] sm:$0xf]
        %v497 = vld [vmem:[#allocation6 + $0x28] sm:$0xf]
        %v498 = vld [vmem:[#allocation6 + $0x2c] sm:$0xf]
        %v499 = vld [vmem:[#allocation6 + $0x30] sm:$0xf]
        %v500 = vld [vmem:[#allocation6 + $0x34] sm:$0xf]
        %v501 = vld [vmem:[#allocation6 + $0x38] sm:$0xf]
        %v502 = vld [vmem:[#allocation6 + $0x3c] sm:$0xf]
        %v503 = vld [vmem:[#allocation6 + $0x40] sm:$0xf]
        %v504 = vld [vmem:[#allocation6 + $0x44] sm:$0xf]
        %v505 = vld [vmem:[#allocation6 + $0x48] sm:$0xf]
        %v506 = vld [vmem:[#allocation6 + $0x4c] sm:$0xf]
        %v507 = vld [vmem:[#allocation6 + $0x50] sm:$0xf]
        %v508 = vld [vmem:[#allocation6 + $0x54] sm:$0xf]
        %v509 = vld [vmem:[#allocation6 + $0x58] sm:$0xf]
        %v510 = vld [vmem:[#allocation6 + $0x5c] sm:$0xf]
        %v511 = vld [vmem:[#allocation6 + $0x60] sm:$0xf]
        %v512 = vld [vmem:[#allocation6 + $0x64] sm:$0xf]
        %v513 = vld [vmem:[#allocation6 + $0x68] sm:$0xf]
        %v514 = vld [vmem:[#allocation6 + $0x6c] sm:$0xf]
        %v515 = vld [vmem:[#allocation6 + $0x70] sm:$0xf]
        %v516 = vld [vmem:[#allocation6 + $0x74] sm:$0xf]
        %v517 = vld [vmem:[#allocation6 + $0x78] sm:$0xf]
        %v518 = vld [vmem:[#allocation6 + $0x7c] sm:$0xf]
        %v519 = vld [vmem:[#allocation6 + $0x80] sm:$0xf]
        %v520 = vld [vmem:[#allocation6 + $0x84] sm:$0xf]
        %v521 = vld [vmem:[#allocation6 + $0x88] sm:$0xf]
        %v522 = vld [vmem:[#allocation6 + $0x8c] sm:$0xf]
        %v523 = vld [vmem:[#allocation6 + $0x90] sm:$0xf]
        %v524 = vld [vmem:[#allocation6 + $0x94] sm:$0xf]
        %v525 = vld [vmem:[#allocation6 + $0x98] sm:$0xf]
        %v526 = vld [vmem:[#allocation6 + $0x9c] sm:$0xf]
        %v527 = vld [vmem:[#allocation6 + $0xa0] sm:$0xf]
        %v528 = vld [vmem:[#allocation6 + $0xa4] sm:$0xf]
        %v529 = vld [vmem:[#allocation6 + $0xa8] sm:$0xf]
        %v530 = vld [vmem:[#allocation6 + $0xac] sm:$0xf]
        %v531 = vld [vmem:[#allocation6 + $0xb0] sm:$0xf]
        %v532 = vld [vmem:[#allocation6 + $0xb4] sm:$0xf]
        %v533 = vld [vmem:[#allocation6 + $0xb8] sm:$0xf]
        %v534 = vld [vmem:[#allocation6 + $0xbc] sm:$0xf]
        %v535 = vld [vmem:[#allocation6 + $0xc0] sm:$0xf]
        %v536 = vld [vmem:[#allocation6 + $0xc4] sm:$0xf]
        %v537 = vld [vmem:[#allocation6 + $0xc8] sm:$0xf]
        %v538 = vld [vmem:[#allocation6 + $0xcc] sm:$0xf]
        %v539 = vld [vmem:[#allocation6 + $0xd0] sm:$0xf]
        %v540 = vld [vmem:[#allocation6 + $0xd4] sm:$0xf]
        %v541 = vld [vmem:[#allocation6 + $0xd8] sm:$0xf]
        %v542 = vld [vmem:[#allocation6 + $0xdc] sm:$0xf]
        %v543 = vld [vmem:[#allocation6 + $0xe0] sm:$0xf]
        %v544 = vld [vmem:[#allocation6 + $0xe4] sm:$0xf]
        %v545 = vld [vmem:[#allocation6 + $0xe8] sm:$0xf]
        %v546 = vld [vmem:[#allocation6 + $0xec] sm:$0xf]
        %v547 = vld [vmem:[#allocation6 + $0xf0] sm:$0xf]
        %v548 = vld [vmem:[#allocation6 + $0xf4] sm:$0xf]
        %v549 = vld [vmem:[#allocation6 + $0xf8] sm:$0xf]
        %v550 = vld [vmem:[#allocation6 + $0xfc] sm:$0xf]
        %v551 = vld [vmem:[#allocation6 + $0x100] sm:$0xf]
        %v552 = vld [vmem:[#allocation6 + $0x104] sm:$0xf]
        %v553 = vld [vmem:[#allocation6 + $0x108] sm:$0xf]
        %v554 = vld [vmem:[#allocation6 + $0x10c] sm:$0xf]
        %v555 = vld [vmem:[#allocation6 + $0x110] sm:$0xf]
        %v556 = vld [vmem:[#allocation6 + $0x114] sm:$0xf]
        %v557 = vld [vmem:[#allocation6 + $0x118] sm:$0xf]
        %v558 = vld [vmem:[#allocation6 + $0x11c] sm:$0xf]
        %v559 = vld [vmem:[#allocation6 + $0x120] sm:$0xf]
        %v560 = vld [vmem:[#allocation6 + $0x124] sm:$0xf]
        %v561 = vld [vmem:[#allocation6 + $0x128] sm:$0xf]
        %v562 = vld [vmem:[#allocation6 + $0x12c] sm:$0xf]
        %v563 = vld [vmem:[#allocation6 + $0x130] sm:$0xf]
        %v564 = vld [vmem:[#allocation6 + $0x134] sm:$0xf]
        %v565 = vld [vmem:[#allocation6 + $0x138] sm:$0xf]
        %v566 = vld [vmem:[#allocation6 + $0x13c] sm:$0xf]
        %v567 = vld [vmem:[#allocation6 + $0x140] sm:$0xf]
        %v568 = vld [vmem:[#allocation6 + $0x144] sm:$0xf]
        %v569 = vld [vmem:[#allocation6 + $0x148] sm:$0xf]
        %v570 = vld [vmem:[#allocation6 + $0x14c] sm:$0xf]
        %v571 = vld [vmem:[#allocation6 + $0x150] sm:$0xf]
        %v572 = vld [vmem:[#allocation6 + $0x154] sm:$0xf]
        %v573 = vld [vmem:[#allocation6 + $0x158] sm:$0xf]
        %v574 = vld [vmem:[#allocation6 + $0x15c] sm:$0xf]
        %v575 = vld [vmem:[#allocation6 + $0x160] sm:$0xf]
        %v576 = vld [vmem:[#allocation6 + $0x164] sm:$0xf]
        %v577 = vld [vmem:[#allocation6 + $0x168] sm:$0xf]
        %v578 = vld [vmem:[#allocation6 + $0x16c] sm:$0xf]
        %v579 = vld [vmem:[#allocation6 + $0x170] sm:$0xf]
        %v580 = vld [vmem:[#allocation6 + $0x174] sm:$0xf]
        %v581 = vld [vmem:[#allocation6 + $0x178] sm:$0xf]
        %v582 = vld [vmem:[#allocation6 + $0x17c] sm:$0xf]
        %v583 = vld [vmem:[#allocation6 + $0x180] sm:$0xf]
        %v584 = vld [vmem:[#allocation6 + $0x184] sm:$0xf]
        %v585 = vld [vmem:[#allocation6 + $0x188] sm:$0xf]
        %v586 = vld [vmem:[#allocation6 + $0x18c] sm:$0xf]
        %v587 = vld [vmem:[#allocation6 + $0x190] sm:$0xf]
        %v588 = vld [vmem:[#allocation6 + $0x194] sm:$0xf]
        %v589 = vld [vmem:[#allocation6 + $0x198] sm:$0xf]
        %v590 = vld [vmem:[#allocation6 + $0x19c] sm:$0xf]
        %v591 = vld [vmem:[#allocation6 + $0x1a0] sm:$0xf]
        %v592 = vld [vmem:[#allocation6 + $0x1a4] sm:$0xf]
        %v593 = vld [vmem:[#allocation6 + $0x1a8] sm:$0xf]
        %v594 = vld [vmem:[#allocation6 + $0x1ac] sm:$0xf]
        %v595 = vld [vmem:[#allocation6 + $0x1b0] sm:$0xf]
        %v596 = vld [vmem:[#allocation6 + $0x1b4] sm:$0xf]
        %v597 = vld [vmem:[#allocation6 + $0x1b8] sm:$0xf]
        %v598 = vld [vmem:[#allocation6 + $0x1bc] sm:$0xf]
        %v599 = vld [vmem:[#allocation6 + $0x1c0] sm:$0xf]
        %v600 = vld [vmem:[#allocation6 + $0x1c4] sm:$0xf]
        %v601 = vld [vmem:[#allocation6 + $0x1c8] sm:$0xf]
        %v602 = vld [vmem:[#allocation6 + $0x1cc] sm:$0xf]
        %v603 = vld [vmem:[#allocation6 + $0x1d0] sm:$0xf]
        %v604 = vld [vmem:[#allocation6 + $0x1d4] sm:$0xf]
        %v605 = vld [vmem:[#allocation6 + $0x1d8] sm:$0xf]
        %v606 = vld [vmem:[#allocation6 + $0x1dc] sm:$0xf]
        %v607 = vld [vmem:[#allocation6 + $0x1e0] sm:$0xf]
        %v608 = vld [vmem:[#allocation6 + $0x1e4] sm:$0xf]
        %v609 = vld [vmem:[#allocation6 + $0x1e8] sm:$0xf]
        %v610 = vld [vmem:[#allocation6 + $0x1ec] sm:$0xf]
        %v611 = vld [vmem:[#allocation6 + $0x1f0] sm:$0xf]
        %v612 = vld [vmem:[#allocation6 + $0x1f4] sm:$0xf]
        %v613 = vld [vmem:[#allocation6 + $0x1f8] sm:$0xf]
        %v614 = vld [vmem:[#allocation6 + $0x1fc] sm:$0xf]
        %v615 = vld [vmem:[#allocation6 + $0x200] sm:$0xf]
        %v616 = vld [vmem:[#allocation6 + $0x204] sm:$0xf]
        %v617 = vld [vmem:[#allocation6 + $0x208] sm:$0xf]
        %v618 = vld [vmem:[#allocation6 + $0x20c] sm:$0xf]
        %v619 = vld [vmem:[#allocation6 + $0x210] sm:$0xf]
        %v620 = vld [vmem:[#allocation6 + $0x214] sm:$0xf]
        %v621 = vld [vmem:[#allocation6 + $0x218] sm:$0xf]
        %v622 = vld [vmem:[#allocation6 + $0x21c] sm:$0xf]
        %v623 = vld [vmem:[#allocation6 + $0x220] sm:$0xf]
        %v624 = vld [vmem:[#allocation6 + $0x224] sm:$0xf]
        %v625 = vld [vmem:[#allocation6 + $0x228] sm:$0xf]
        %v626 = vld [vmem:[#allocation6 + $0x22c] sm:$0xf]
        %v627 = vld [vmem:[#allocation6 + $0x230] sm:$0xf]
        %v628 = vld [vmem:[#allocation6 + $0x234] sm:$0xf]
        %v629 = vld [vmem:[#allocation6 + $0x238] sm:$0xf]
        %v630 = vld [vmem:[#allocation6 + $0x23c] sm:$0xf]
        %v791 = vunpack.c.l.b16 %v327
        %v792 = vunpack.c.h.b16 %v327
        %v793 = vunpack.c.l.b16 %v328
        %v794 = vunpack.c.h.b16 %v328
        %v795 = vunpack.c.l.b16 %v329
        %v796 = vunpack.c.h.b16 %v329
        %v797 = vunpack.c.l.b16 %v330
        %v798 = vunpack.c.h.b16 %v330
        %v799 = vunpack.c.l.b16 %v331
        %v800 = vunpack.c.l.b16 %v332
        %v801 = vunpack.c.h.b16 %v332
        %v802 = vunpack.c.l.b16 %v333
        %v803 = vunpack.c.h.b16 %v333
        %v804 = vunpack.c.l.b16 %v334
        %v805 = vunpack.c.h.b16 %v334
        %v806 = vunpack.c.l.b16 %v335
        %v807 = vunpack.c.h.b16 %v335
        %v808 = vunpack.c.l.b16 %v336
        %v809 = vunpack.c.l.b16 %v337
        %v810 = vunpack.c.h.b16 %v337
        %v811 = vunpack.c.l.b16 %v338
        %v812 = vunpack.c.h.b16 %v338
        %v813 = vunpack.c.l.b16 %v339
        %v814 = vunpack.c.h.b16 %v339
        %v815 = vunpack.c.l.b16 %v340
        %v816 = vunpack.c.h.b16 %v340
        %v817 = vunpack.c.l.b16 %v341
        %v818 = vunpack.c.l.b16 %v342
        %v819 = vunpack.c.h.b16 %v342
        %v820 = vunpack.c.l.b16 %v343
        %v821 = vunpack.c.h.b16 %v343
        %v822 = vunpack.c.l.b16 %v344
        %v823 = vunpack.c.h.b16 %v344
        %v824 = vunpack.c.l.b16 %v345
        %v825 = vunpack.c.h.b16 %v345
        %v826 = vunpack.c.l.b16 %v346
        %v827 = vunpack.c.l.b16 %v347
        %v828 = vunpack.c.h.b16 %v347
        %v829 = vunpack.c.l.b16 %v348
        %v830 = vunpack.c.h.b16 %v348
        %v831 = vunpack.c.l.b16 %v349
        %v832 = vunpack.c.h.b16 %v349
        %v833 = vunpack.c.l.b16 %v350
        %v834 = vunpack.c.h.b16 %v350
        %v835 = vunpack.c.l.b16 %v351
        %v836 = vunpack.c.l.b16 %v352
        %v837 = vunpack.c.h.b16 %v352
        %v838 = vunpack.c.l.b16 %v353
        %v839 = vunpack.c.h.b16 %v353
        %v840 = vunpack.c.l.b16 %v354
        %v841 = vunpack.c.h.b16 %v354
        %v842 = vunpack.c.l.b16 %v355
        %v843 = vunpack.c.h.b16 %v355
        %v844 = vunpack.c.l.b16 %v356
        %v845 = vunpack.c.l.b16 %v357
        %v846 = vunpack.c.h.b16 %v357
        %v847 = vunpack.c.l.b16 %v358
        %v848 = vunpack.c.h.b16 %v358
        %v849 = vunpack.c.l.b16 %v359
        %v850 = vunpack.c.h.b16 %v359
        %v851 = vunpack.c.l.b16 %v360
        %v852 = vunpack.c.h.b16 %v360
        %v853 = vunpack.c.l.b16 %v361
        %v854 = vunpack.c.l.b16 %v362
        %v855 = vunpack.c.h.b16 %v362
        %v856 = vunpack.c.l.b16 %v363
        %v857 = vunpack.c.h.b16 %v363
        %v858 = vunpack.c.l.b16 %v364
        %v859 = vunpack.c.h.b16 %v364
        %v860 = vunpack.c.l.b16 %v365
        %v861 = vunpack.c.h.b16 %v365
        %v862 = vunpack.c.l.b16 %v366
        %v863 = vunpack.c.l.b16 %v367
        %v864 = vunpack.c.h.b16 %v367
        %v865 = vunpack.c.l.b16 %v368
        %v866 = vunpack.c.h.b16 %v368
        %v867 = vunpack.c.l.b16 %v369
        %v868 = vunpack.c.h.b16 %v369
        %v869 = vunpack.c.l.b16 %v370
        %v870 = vunpack.c.h.b16 %v370
        %v871 = vunpack.c.l.b16 %v371
        %v872 = vunpack.c.l.b16 %v372
        %v873 = vunpack.c.h.b16 %v372
        %v874 = vunpack.c.l.b16 %v373
        %v875 = vunpack.c.h.b16 %v373
        %v876 = vunpack.c.l.b16 %v374
        %v877 = vunpack.c.h.b16 %v374
        %v878 = vunpack.c.l.b16 %v375
        %v879 = vunpack.c.h.b16 %v375
        %v880 = vunpack.c.l.b16 %v376
        %v881 = vunpack.c.l.b16 %v377
        %v882 = vunpack.c.h.b16 %v377
        %v883 = vunpack.c.l.b16 %v378
        %v884 = vunpack.c.h.b16 %v378
        %v885 = vunpack.c.l.b16 %v379
        %v886 = vunpack.c.h.b16 %v379
        %v887 = vunpack.c.l.b16 %v380
        %v888 = vunpack.c.h.b16 %v380
        %v889 = vunpack.c.l.b16 %v381
        %v890 = vunpack.c.l.b16 %v382
        %v891 = vunpack.c.h.b16 %v382
        %v892 = vunpack.c.l.b16 %v383
        %v893 = vunpack.c.h.b16 %v383
        %v894 = vunpack.c.l.b16 %v384
        %v895 = vunpack.c.h.b16 %v384
        %v896 = vunpack.c.l.b16 %v385
        %v897 = vunpack.c.h.b16 %v385
        %v898 = vunpack.c.l.b16 %v386
        %v899 = vunpack.c.l.b16 %v387
        %v900 = vunpack.c.h.b16 %v387
        %v901 = vunpack.c.l.b16 %v388
        %v902 = vunpack.c.h.b16 %v388
        %v903 = vunpack.c.l.b16 %v389
        %v904 = vunpack.c.h.b16 %v389
        %v905 = vunpack.c.l.b16 %v390
        %v906 = vunpack.c.h.b16 %v390
        %v907 = vunpack.c.l.b16 %v391
        %v908 = vunpack.c.l.b16 %v392
        %v909 = vunpack.c.h.b16 %v392
        %v910 = vunpack.c.l.b16 %v393
        %v911 = vunpack.c.h.b16 %v393
        %v912 = vunpack.c.l.b16 %v394
        %v913 = vunpack.c.h.b16 %v394
        %v914 = vunpack.c.l.b16 %v395
        %v915 = vunpack.c.h.b16 %v395
        %v916 = vunpack.c.l.b16 %v396
        %v917 = vunpack.c.l.b16 %v397
        %v918 = vunpack.c.h.b16 %v397
        %v919 = vunpack.c.l.b16 %v398
        %v920 = vunpack.c.h.b16 %v398
        %v921 = vunpack.c.l.b16 %v399
        %v922 = vunpack.c.h.b16 %v399
        %v923 = vunpack.c.l.b16 %v400
        %v924 = vunpack.c.h.b16 %v400
        %v925 = vunpack.c.l.b16 %v401
        %v926 = vunpack.c.l.b16 %v402
        %v927 = vunpack.c.h.b16 %v402
        %v928 = vunpack.c.l.b16 %v403
        %v929 = vunpack.c.h.b16 %v403
        %v930 = vunpack.c.l.b16 %v404
        %v931 = vunpack.c.h.b16 %v404
        %v932 = vunpack.c.l.b16 %v405
        %v933 = vunpack.c.h.b16 %v405
        %v934 = vunpack.c.l.b16 %v406
        %v935 = vunpack.c.l.b16 %v407
        %v936 = vunpack.c.h.b16 %v407
        %v937 = vunpack.c.l.b16 %v408
        %v938 = vunpack.c.h.b16 %v408
        %v939 = vunpack.c.l.b16 %v409
        %v940 = vunpack.c.h.b16 %v409
        %v941 = vunpack.c.l.b16 %v410
        %v942 = vunpack.c.h.b16 %v410
        %v943 = vunpack.c.l.b16 %v411
        %v944 = vunpack.c.l.b16 %v412
        %v945 = vunpack.c.h.b16 %v412
        %v946 = vunpack.c.l.b16 %v413
        %v947 = vunpack.c.h.b16 %v413
        %v948 = vunpack.c.l.b16 %v414
        %v949 = vunpack.c.h.b16 %v414
        %v950 = vunpack.c.l.b16 %v415
        %v951 = vunpack.c.h.b16 %v415
        %v952 = vunpack.c.l.b16 %v416
        %v953 = vunpack.c.l.b16 %v417
        %v954 = vunpack.c.h.b16 %v417
        %v955 = vunpack.c.l.b16 %v418
        %v956 = vunpack.c.h.b16 %v418
        %v957 = vunpack.c.l.b16 %v419
        %v958 = vunpack.c.h.b16 %v419
        %v959 = vunpack.c.l.b16 %v420
        %v960 = vunpack.c.h.b16 %v420
        %v961 = vunpack.c.l.b16 %v421
        %v962 = vunpack.c.l.b16 %v422
        %v963 = vunpack.c.h.b16 %v422
        %v964 = vunpack.c.l.b16 %v423
        %v965 = vunpack.c.h.b16 %v423
        %v966 = vunpack.c.l.b16 %v424
        %v967 = vunpack.c.h.b16 %v424
        %v968 = vunpack.c.l.b16 %v425
        %v969 = vunpack.c.h.b16 %v425
        %v970 = vunpack.c.l.b16 %v426
        %v971 = vunpack.c.l.b16 %v427
        %v972 = vunpack.c.h.b16 %v427
        %v973 = vunpack.c.l.b16 %v428
        %v974 = vunpack.c.h.b16 %v428
        %v975 = vunpack.c.l.b16 %v429
        %v976 = vunpack.c.h.b16 %v429
        %v977 = vunpack.c.l.b16 %v430
        %v978 = vunpack.c.h.b16 %v430
        %v979 = vunpack.c.l.b16 %v431
        %v980 = vunpack.c.l.b16 %v432
        %v981 = vunpack.c.h.b16 %v432
        %v982 = vunpack.c.l.b16 %v433
        %v983 = vunpack.c.h.b16 %v433
        %v984 = vunpack.c.l.b16 %v434
        %v985 = vunpack.c.h.b16 %v434
        %v986 = vunpack.c.l.b16 %v435
        %v987 = vunpack.c.h.b16 %v435
        %v988 = vunpack.c.l.b16 %v436
        %v989 = vunpack.c.l.b16 %v437
        %v990 = vunpack.c.h.b16 %v437
        %v991 = vunpack.c.l.b16 %v438
        %v992 = vunpack.c.h.b16 %v438
        %v993 = vunpack.c.l.b16 %v439
        %v994 = vunpack.c.h.b16 %v439
        %v995 = vunpack.c.l.b16 %v440
        %v996 = vunpack.c.h.b16 %v440
        %v997 = vunpack.c.l.b16 %v441
        %v998 = vunpack.c.l.b16 %v442
        %v999 = vunpack.c.h.b16 %v442
        %v1000 = vunpack.c.l.b16 %v443
        %v1001 = vunpack.c.h.b16 %v443
        %v1002 = vunpack.c.l.b16 %v444
        %v1003 = vunpack.c.h.b16 %v444
        %v1004 = vunpack.c.l.b16 %v445
        %v1005 = vunpack.c.h.b16 %v445
        %v1006 = vunpack.c.l.b16 %v446
        %v1007 = vunpack.c.l.b16 %v447
        %v1008 = vunpack.c.h.b16 %v447
        %v1009 = vunpack.c.l.b16 %v448
        %v1010 = vunpack.c.h.b16 %v448
        %v1011 = vunpack.c.l.b16 %v449
        %v1012 = vunpack.c.h.b16 %v449
        %v1013 = vunpack.c.l.b16 %v450
        %v1014 = vunpack.c.h.b16 %v450
        %v1015 = vunpack.c.l.b16 %v451
        %v1016 = vunpack.c.l.b16 %v452
        %v1017 = vunpack.c.h.b16 %v452
        %v1018 = vunpack.c.l.b16 %v453
        %v1019 = vunpack.c.h.b16 %v453
        %v1020 = vunpack.c.l.b16 %v454
        %v1021 = vunpack.c.h.b16 %v454
        %v1022 = vunpack.c.l.b16 %v455
        %v1023 = vunpack.c.h.b16 %v455
        %v1024 = vunpack.c.l.b16 %v456
        %v1025 = vunpack.c.l.b16 %v457
        %v1026 = vunpack.c.h.b16 %v457
        %v1027 = vunpack.c.l.b16 %v458
        %v1028 = vunpack.c.h.b16 %v458
        %v1029 = vunpack.c.l.b16 %v459
        %v1030 = vunpack.c.h.b16 %v459
        %v1031 = vunpack.c.l.b16 %v460
        %v1032 = vunpack.c.h.b16 %v460
        %v1033 = vunpack.c.l.b16 %v461
        %v1034 = vunpack.c.l.b16 %v462
        %v1035 = vunpack.c.h.b16 %v462
        %v1036 = vunpack.c.l.b16 %v463
        %v1037 = vunpack.c.h.b16 %v463
        %v1038 = vunpack.c.l.b16 %v464
        %v1039 = vunpack.c.h.b16 %v464
        %v1040 = vunpack.c.l.b16 %v465
        %v1041 = vunpack.c.h.b16 %v465
        %v1042 = vunpack.c.l.b16 %v466
        %v1043 = vunpack.c.l.b16 %v467
        %v1044 = vunpack.c.h.b16 %v467
        %v1045 = vunpack.c.l.b16 %v468
        %v1046 = vunpack.c.h.b16 %v468
        %v1047 = vunpack.c.l.b16 %v469
        %v1048 = vunpack.c.h.b16 %v469
        %v1049 = vunpack.c.l.b16 %v470
        %v1050 = vunpack.c.h.b16 %v470
        %v1051 = vunpack.c.l.b16 %v471
        %v1052 = vunpack.c.l.b16 %v472
        %v1053 = vunpack.c.h.b16 %v472
        %v1054 = vunpack.c.l.b16 %v473
        %v1055 = vunpack.c.h.b16 %v473
        %v1056 = vunpack.c.l.b16 %v474
        %v1057 = vunpack.c.h.b16 %v474
        %v1058 = vunpack.c.l.b16 %v475
        %v1059 = vunpack.c.h.b16 %v475
        %v1060 = vunpack.c.l.b16 %v476
        %v1061 = vunpack.c.l.b16 %v477
        %v1062 = vunpack.c.h.b16 %v477
        %v1063 = vunpack.c.l.b16 %v478
        %v1064 = vunpack.c.h.b16 %v478
        %v1065 = vunpack.c.l.b16 %v479
        %v1066 = vunpack.c.h.b16 %v479
        %v1067 = vunpack.c.l.b16 %v480
        %v1068 = vunpack.c.h.b16 %v480
        %v1069 = vunpack.c.l.b16 %v481
        %v1070 = vunpack.c.l.b16 %v482
        %v1071 = vunpack.c.h.b16 %v482
        %v1072 = vunpack.c.l.b16 %v483
        %v1073 = vunpack.c.h.b16 %v483
        %v1074 = vunpack.c.l.b16 %v484
        %v1075 = vunpack.c.h.b16 %v484
        %v1076 = vunpack.c.l.b16 %v485
        %v1077 = vunpack.c.h.b16 %v485
        %v1078 = vunpack.c.l.b16 %v486
        %v1079 = vpack.c.b16 %v800, %v791
        %v1080 = vpack.c.b16 %v801, %v792
        %v1081 = vpack.c.b16 %v802, %v793
        %v1082 = vpack.c.b16 %v803, %v794
        %v1083 = vpack.c.b16 %v804, %v795
        %v1084 = vpack.c.b16 %v805, %v796
        %v1085 = vpack.c.b16 %v806, %v797
        %v1086 = vpack.c.b16 %v807, %v798
        %v1087 = vpack.c.b16 %v808, %v799
        %v1088 = vpack.c.b16 %v818, %v809
        %v1089 = vpack.c.b16 %v819, %v810
        %v1090 = vpack.c.b16 %v820, %v811
        %v1091 = vpack.c.b16 %v821, %v812
        %v1092 = vpack.c.b16 %v822, %v813
        %v1093 = vpack.c.b16 %v823, %v814
        %v1094 = vpack.c.b16 %v824, %v815
        %v1095 = vpack.c.b16 %v825, %v816
        %v1096 = vpack.c.b16 %v826, %v817
        %v1097 = vpack.c.b16 %v836, %v827
        %v1098 = vpack.c.b16 %v837, %v828
        %v1099 = vpack.c.b16 %v838, %v829
        %v1100 = vpack.c.b16 %v839, %v830
        %v1101 = vpack.c.b16 %v840, %v831
        %v1102 = vpack.c.b16 %v841, %v832
        %v1103 = vpack.c.b16 %v842, %v833
        %v1104 = vpack.c.b16 %v843, %v834
        %v1105 = vpack.c.b16 %v844, %v835
        %v1106 = vpack.c.b16 %v854, %v845
        %v1107 = vpack.c.b16 %v855, %v846
        %v1108 = vpack.c.b16 %v856, %v847
        %v1109 = vpack.c.b16 %v857, %v848
        %v1110 = vpack.c.b16 %v858, %v849
        %v1111 = vpack.c.b16 %v859, %v850
        %v1112 = vpack.c.b16 %v860, %v851
        %v1113 = vpack.c.b16 %v861, %v852
        %v1114 = vpack.c.b16 %v862, %v853
        %v1115 = vpack.c.b16 %v872, %v863
        %v1116 = vpack.c.b16 %v873, %v864
        %v1117 = vpack.c.b16 %v874, %v865
        %v1118 = vpack.c.b16 %v875, %v866
        %v1119 = vpack.c.b16 %v876, %v867
        %v1120 = vpack.c.b16 %v877, %v868
        %v1121 = vpack.c.b16 %v878, %v869
        %v1122 = vpack.c.b16 %v879, %v870
        %v1123 = vpack.c.b16 %v880, %v871
        %v1124 = vpack.c.b16 %v890, %v881
        %v1125 = vpack.c.b16 %v891, %v882
        %v1126 = vpack.c.b16 %v892, %v883
        %v1127 = vpack.c.b16 %v893, %v884
        %v1128 = vpack.c.b16 %v894, %v885
        %v1129 = vpack.c.b16 %v895, %v886
        %v1130 = vpack.c.b16 %v896, %v887
        %v1131 = vpack.c.b16 %v897, %v888
        %v1132 = vpack.c.b16 %v898, %v889
        %v1133 = vpack.c.b16 %v908, %v899
        %v1134 = vpack.c.b16 %v909, %v900
        %v1135 = vpack.c.b16 %v910, %v901
        %v1136 = vpack.c.b16 %v911, %v902
        %v1137 = vpack.c.b16 %v912, %v903
        %v1138 = vpack.c.b16 %v913, %v904
        %v1139 = vpack.c.b16 %v914, %v905
        %v1140 = vpack.c.b16 %v915, %v906
        %v1141 = vpack.c.b16 %v916, %v907
        %v1142 = vpack.c.b16 %v926, %v917
        %v1143 = vpack.c.b16 %v927, %v918
        %v1144 = vpack.c.b16 %v928, %v919
        %v1145 = vpack.c.b16 %v929, %v920
        %v1146 = vpack.c.b16 %v930, %v921
        %v1147 = vpack.c.b16 %v931, %v922
        %v1148 = vpack.c.b16 %v932, %v923
        %v1149 = vpack.c.b16 %v933, %v924
        %v1150 = vpack.c.b16 %v934, %v925
        %v1151 = vpack.c.b16 %v944, %v935
        %v1152 = vpack.c.b16 %v945, %v936
        %v1153 = vpack.c.b16 %v946, %v937
        %v1154 = vpack.c.b16 %v947, %v938
        %v1155 = vpack.c.b16 %v948, %v939
        %v1156 = vpack.c.b16 %v949, %v940
        %v1157 = vpack.c.b16 %v950, %v941
        %v1158 = vpack.c.b16 %v951, %v942
        %v1159 = vpack.c.b16 %v952, %v943
        %v1160 = vpack.c.b16 %v962, %v953
        %v1161 = vpack.c.b16 %v963, %v954
        %v1162 = vpack.c.b16 %v964, %v955
        %v1163 = vpack.c.b16 %v965, %v956
        %v1164 = vpack.c.b16 %v966, %v957
        %v1165 = vpack.c.b16 %v967, %v958
        %v1166 = vpack.c.b16 %v968, %v959
        %v1167 = vpack.c.b16 %v969, %v960
        %v1168 = vpack.c.b16 %v970, %v961
        %v1169 = vpack.c.b16 %v980, %v971
        %v1170 = vpack.c.b16 %v981, %v972
        %v1171 = vpack.c.b16 %v982, %v973
        %v1172 = vpack.c.b16 %v983, %v974
        %v1173 = vpack.c.b16 %v984, %v975
        %v1174 = vpack.c.b16 %v985, %v976
        %v1175 = vpack.c.b16 %v986, %v977
        %v1176 = vpack.c.b16 %v987, %v978
        %v1177 = vpack.c.b16 %v988, %v979
        %v1178 = vpack.c.b16 %v998, %v989
        %v1179 = vpack.c.b16 %v999, %v990
        %v1180 = vpack.c.b16 %v1000, %v991
        %v1181 = vpack.c.b16 %v1001, %v992
        %v1182 = vpack.c.b16 %v1002, %v993
        %v1183 = vpack.c.b16 %v1003, %v994
        %v1184 = vpack.c.b16 %v1004, %v995
        %v1185 = vpack.c.b16 %v1005, %v996
        %v1186 = vpack.c.b16 %v1006, %v997
        %v1187 = vpack.c.b16 %v1016, %v1007
        %v1188 = vpack.c.b16 %v1017, %v1008
        %v1189 = vpack.c.b16 %v1018, %v1009
        %v1190 = vpack.c.b16 %v1019, %v1010
        %v1191 = vpack.c.b16 %v1020, %v1011
        %v1192 = vpack.c.b16 %v1021, %v1012
        %v1193 = vpack.c.b16 %v1022, %v1013
        %v1194 = vpack.c.b16 %v1023, %v1014
        %v1195 = vpack.c.b16 %v1024, %v1015
        %v1196 = vpack.c.b16 %v1034, %v1025
        %v1197 = vpack.c.b16 %v1035, %v1026
        %v1198 = vpack.c.b16 %v1036, %v1027
        %v1199 = vpack.c.b16 %v1037, %v1028
        %v1200 = vpack.c.b16 %v1038, %v1029
        %v1201 = vpack.c.b16 %v1039, %v1030
        %v1202 = vpack.c.b16 %v1040, %v1031
        %v1203 = vpack.c.b16 %v1041, %v1032
        %v1204 = vpack.c.b16 %v1042, %v1033
        %v1205 = vpack.c.b16 %v1052, %v1043
        %v1206 = vpack.c.b16 %v1053, %v1044
        %v1207 = vpack.c.b16 %v1054, %v1045
        %v1208 = vpack.c.b16 %v1055, %v1046
        %v1209 = vpack.c.b16 %v1056, %v1047
        %v1210 = vpack.c.b16 %v1057, %v1048
        %v1211 = vpack.c.b16 %v1058, %v1049
        %v1212 = vpack.c.b16 %v1059, %v1050
        %v1213 = vpack.c.b16 %v1060, %v1051
        %v1214 = vpack.c.b16 %v1070, %v1061
        %v1215 = vpack.c.b16 %v1071, %v1062
        %v1216 = vpack.c.b16 %v1072, %v1063
        %v1217 = vpack.c.b16 %v1073, %v1064
        %v1218 = vpack.c.b16 %v1074, %v1065
        %v1219 = vpack.c.b16 %v1075, %v1066
        %v1220 = vpack.c.b16 %v1076, %v1067
        %v1221 = vpack.c.b16 %v1077, %v1068
        %v1222 = vpack.c.b16 %v1078, %v1069
        %v1511 = vunpack.c.l.b16 %v487
        %v1512 = vunpack.c.l.b16 %v488
        %v1513 = vunpack.c.l.b16 %v489
        %v1514 = vunpack.c.l.b16 %v490
        %v1515 = vunpack.c.l.b16 %v491
        %v1516 = vunpack.c.l.b16 %v492
        %v1517 = vunpack.c.l.b16 %v493
        %v1518 = vunpack.c.l.b16 %v494
        %v1519 = vunpack.c.l.b16 %v495
        %v1520 = vunpack.c.l.b16 %v496
        %v1521 = vunpack.c.l.b16 %v497
        %v1522 = vunpack.c.l.b16 %v498
        %v1523 = vunpack.c.l.b16 %v499
        %v1524 = vunpack.c.l.b16 %v500
        %v1525 = vunpack.c.l.b16 %v501
        %v1526 = vunpack.c.l.b16 %v502
        %v1527 = vunpack.c.l.b16 %v503
        %v1528 = vunpack.c.l.b16 %v504
        %v1529 = vunpack.c.l.b16 %v505
        %v1530 = vunpack.c.l.b16 %v506
        %v1531 = vunpack.c.l.b16 %v507
        %v1532 = vunpack.c.l.b16 %v508
        %v1533 = vunpack.c.l.b16 %v509
        %v1534 = vunpack.c.l.b16 %v510
        %v1535 = vunpack.c.l.b16 %v511
        %v1536 = vunpack.c.l.b16 %v512
        %v1537 = vunpack.c.l.b16 %v513
        %v1538 = vunpack.c.l.b16 %v514
        %v1539 = vunpack.c.l.b16 %v515
        %v1540 = vunpack.c.l.b16 %v516
        %v1541 = vunpack.c.l.b16 %v517
        %v1542 = vunpack.c.l.b16 %v518
        %v1543 = vunpack.c.l.b16 %v519
        %v1544 = vunpack.c.l.b16 %v520
        %v1545 = vunpack.c.l.b16 %v521
        %v1546 = vunpack.c.l.b16 %v522
        %v1547 = vunpack.c.l.b16 %v523
        %v1548 = vunpack.c.l.b16 %v524
        %v1549 = vunpack.c.l.b16 %v525
        %v1550 = vunpack.c.l.b16 %v526
        %v1551 = vunpack.c.l.b16 %v527
        %v1552 = vunpack.c.l.b16 %v528
        %v1553 = vunpack.c.l.b16 %v529
        %v1554 = vunpack.c.l.b16 %v530
        %v1555 = vunpack.c.l.b16 %v531
        %v1556 = vunpack.c.l.b16 %v532
        %v1557 = vunpack.c.l.b16 %v533
        %v1558 = vunpack.c.l.b16 %v534
        %v1559 = vunpack.c.l.b16 %v535
        %v1560 = vunpack.c.l.b16 %v536
        %v1561 = vunpack.c.l.b16 %v537
        %v1562 = vunpack.c.l.b16 %v538
        %v1563 = vunpack.c.l.b16 %v539
        %v1564 = vunpack.c.l.b16 %v540
        %v1565 = vunpack.c.l.b16 %v541
        %v1566 = vunpack.c.l.b16 %v542
        %v1567 = vunpack.c.l.b16 %v543
        %v1568 = vunpack.c.l.b16 %v544
        %v1569 = vunpack.c.l.b16 %v545
        %v1570 = vunpack.c.l.b16 %v546
        %v1571 = vunpack.c.l.b16 %v547
        %v1572 = vunpack.c.l.b16 %v548
        %v1573 = vunpack.c.l.b16 %v549
        %v1574 = vunpack.c.l.b16 %v550
        %v1575 = vunpack.c.l.b16 %v551
        %v1576 = vunpack.c.l.b16 %v552
        %v1577 = vunpack.c.l.b16 %v553
        %v1578 = vunpack.c.l.b16 %v554
        %v1579 = vunpack.c.l.b16 %v555
        %v1580 = vunpack.c.l.b16 %v556
        %v1581 = vunpack.c.l.b16 %v557
        %v1582 = vunpack.c.l.b16 %v558
        %v1583 = vunpack.c.l.b16 %v559
        %v1584 = vunpack.c.l.b16 %v560
        %v1585 = vunpack.c.l.b16 %v561
        %v1586 = vunpack.c.l.b16 %v562
        %v1587 = vunpack.c.l.b16 %v563
        %v1588 = vunpack.c.l.b16 %v564
        %v1589 = vunpack.c.l.b16 %v565
        %v1590 = vunpack.c.l.b16 %v566
        %v1591 = vunpack.c.l.b16 %v567
        %v1592 = vunpack.c.l.b16 %v568
        %v1593 = vunpack.c.l.b16 %v569
        %v1594 = vunpack.c.l.b16 %v570
        %v1595 = vunpack.c.l.b16 %v571
        %v1596 = vunpack.c.l.b16 %v572
        %v1597 = vunpack.c.l.b16 %v573
        %v1598 = vunpack.c.l.b16 %v574
        %v1599 = vunpack.c.l.b16 %v575
        %v1600 = vunpack.c.l.b16 %v576
        %v1601 = vunpack.c.l.b16 %v577
        %v1602 = vunpack.c.l.b16 %v578
        %v1603 = vunpack.c.l.b16 %v579
        %v1604 = vunpack.c.l.b16 %v580
        %v1605 = vunpack.c.l.b16 %v581
        %v1606 = vunpack.c.l.b16 %v582
        %v1607 = vunpack.c.l.b16 %v583
        %v1608 = vunpack.c.l.b16 %v584
        %v1609 = vunpack.c.l.b16 %v585
        %v1610 = vunpack.c.l.b16 %v586
        %v1611 = vunpack.c.l.b16 %v587
        %v1612 = vunpack.c.l.b16 %v588
        %v1613 = vunpack.c.l.b16 %v589
        %v1614 = vunpack.c.l.b16 %v590
        %v1615 = vunpack.c.l.b16 %v591
        %v1616 = vunpack.c.l.b16 %v592
        %v1617 = vunpack.c.l.b16 %v593
        %v1618 = vunpack.c.l.b16 %v594
        %v1619 = vunpack.c.l.b16 %v595
        %v1620 = vunpack.c.l.b16 %v596
        %v1621 = vunpack.c.l.b16 %v597
        %v1622 = vunpack.c.l.b16 %v598
        %v1623 = vunpack.c.l.b16 %v599
        %v1624 = vunpack.c.l.b16 %v600
        %v1625 = vunpack.c.l.b16 %v601
        %v1626 = vunpack.c.l.b16 %v602
        %v1627 = vunpack.c.l.b16 %v603
        %v1628 = vunpack.c.l.b16 %v604
        %v1629 = vunpack.c.l.b16 %v605
        %v1630 = vunpack.c.l.b16 %v606
        %v1631 = vunpack.c.l.b16 %v607
        %v1632 = vunpack.c.l.b16 %v608
        %v1633 = vunpack.c.l.b16 %v609
        %v1634 = vunpack.c.l.b16 %v610
        %v1635 = vunpack.c.l.b16 %v611
        %v1636 = vunpack.c.l.b16 %v612
        %v1637 = vunpack.c.l.b16 %v613
        %v1638 = vunpack.c.l.b16 %v614
        %v1639 = vunpack.c.l.b16 %v615
        %v1640 = vunpack.c.l.b16 %v616
        %v1641 = vunpack.c.l.b16 %v617
        %v1642 = vunpack.c.l.b16 %v618
        %v1643 = vunpack.c.l.b16 %v619
        %v1644 = vunpack.c.l.b16 %v620
        %v1645 = vunpack.c.l.b16 %v621
        %v1646 = vunpack.c.l.b16 %v622
        %v1647 = vunpack.c.l.b16 %v623
        %v1648 = vunpack.c.l.b16 %v624
        %v1649 = vunpack.c.l.b16 %v625
        %v1650 = vunpack.c.l.b16 %v626
        %v1651 = vunpack.c.l.b16 %v627
        %v1652 = vunpack.c.l.b16 %v628
        %v1653 = vunpack.c.l.b16 %v629
        %v1654 = vunpack.c.l.b16 %v630
        %v1655 = vpack.c.b16 %v1512, %v1511
        %v1656 = vpack.c.b16 %v1514, %v1513
        %v1657 = vpack.c.b16 %v1516, %v1515
        %v1658 = vpack.c.b16 %v1518, %v1517
        %v1659 = vpack.c.b16 %v1520, %v1519
        %v1660 = vpack.c.b16 %v1522, %v1521
        %v1661 = vpack.c.b16 %v1524, %v1523
        %v1662 = vpack.c.b16 %v1526, %v1525
        %v1663 = vpack.c.b16 %v1528, %v1527
        %v1664 = vpack.c.b16 %v1530, %v1529
        %v1665 = vpack.c.b16 %v1532, %v1531
        %v1666 = vpack.c.b16 %v1534, %v1533
        %v1667 = vpack.c.b16 %v1536, %v1535
        %v1668 = vpack.c.b16 %v1538, %v1537
        %v1669 = vpack.c.b16 %v1540, %v1539
        %v1670 = vpack.c.b16 %v1542, %v1541
        %v1671 = vpack.c.b16 %v1544, %v1543
        %v1672 = vpack.c.b16 %v1546, %v1545
        %v1673 = vpack.c.b16 %v1548, %v1547
        %v1674 = vpack.c.b16 %v1550, %v1549
        %v1675 = vpack.c.b16 %v1552, %v1551
        %v1676 = vpack.c.b16 %v1554, %v1553
        %v1677 = vpack.c.b16 %v1556, %v1555
        %v1678 = vpack.c.b16 %v1558, %v1557
        %v1679 = vpack.c.b16 %v1560, %v1559
        %v1680 = vpack.c.b16 %v1562, %v1561
        %v1681 = vpack.c.b16 %v1564, %v1563
        %v1682 = vpack.c.b16 %v1566, %v1565
        %v1683 = vpack.c.b16 %v1568, %v1567
        %v1684 = vpack.c.b16 %v1570, %v1569
        %v1685 = vpack.c.b16 %v1572, %v1571
        %v1686 = vpack.c.b16 %v1574, %v1573
        %v1687 = vpack.c.b16 %v1576, %v1575
        %v1688 = vpack.c.b16 %v1578, %v1577
        %v1689 = vpack.c.b16 %v1580, %v1579
        %v1690 = vpack.c.b16 %v1582, %v1581
        %v1691 = vpack.c.b16 %v1584, %v1583
        %v1692 = vpack.c.b16 %v1586, %v1585
        %v1693 = vpack.c.b16 %v1588, %v1587
        %v1694 = vpack.c.b16 %v1590, %v1589
        %v1695 = vpack.c.b16 %v1592, %v1591
        %v1696 = vpack.c.b16 %v1594, %v1593
        %v1697 = vpack.c.b16 %v1596, %v1595
        %v1698 = vpack.c.b16 %v1598, %v1597
        %v1699 = vpack.c.b16 %v1600, %v1599
        %v1700 = vpack.c.b16 %v1602, %v1601
        %v1701 = vpack.c.b16 %v1604, %v1603
        %v1702 = vpack.c.b16 %v1606, %v1605
        %v1703 = vpack.c.b16 %v1608, %v1607
        %v1704 = vpack.c.b16 %v1610, %v1609
        %v1705 = vpack.c.b16 %v1612, %v1611
        %v1706 = vpack.c.b16 %v1614, %v1613
        %v1707 = vpack.c.b16 %v1616, %v1615
        %v1708 = vpack.c.b16 %v1618, %v1617
        %v1709 = vpack.c.b16 %v1620, %v1619
        %v1710 = vpack.c.b16 %v1622, %v1621
        %v1711 = vpack.c.b16 %v1624, %v1623
        %v1712 = vpack.c.b16 %v1626, %v1625
        %v1713 = vpack.c.b16 %v1628, %v1627
        %v1714 = vpack.c.b16 %v1630, %v1629
        %v1715 = vpack.c.b16 %v1632, %v1631
        %v1716 = vpack.c.b16 %v1634, %v1633
        %v1717 = vpack.c.b16 %v1636, %v1635
        %v1718 = vpack.c.b16 %v1638, %v1637
        %v1719 = vpack.c.b16 %v1640, %v1639
        %v1720 = vpack.c.b16 %v1642, %v1641
        %v1721 = vpack.c.b16 %v1644, %v1643
        %v1722 = vpack.c.b16 %v1646, %v1645
        %v1723 = vpack.c.b16 %v1648, %v1647
        %v1724 = vpack.c.b16 %v1650, %v1649
        %v1725 = vpack.c.b16 %v1652, %v1651
        %v1726 = vpack.c.b16 %v1654, %v1653
        %1799 = vmatprep.subr.bf16.mxu0 0
        %1800 = vmatpush1.bf16.msra.mxu0 %v1655
        %1801 = vmatprep.subr.bf16.mxu0 0
        %1802 = vmatpush1.bf16.msra.mxu0 %v1656
        %1803 = vmatprep.subr.bf16.mxu0 0
        %1804 = vmatpush1.bf16.msra.mxu0 %v1657
        %1805 = vmatprep.subr.bf16.mxu0 0
        %1806 = vmatpush1.bf16.msra.mxu0 %v1658
        %1807 = vmatprep.subr.bf16.mxu0 0
        %1808 = vmatpush1.bf16.msra.mxu0 %v1659
        %1809 = vmatprep.subr.bf16.mxu0 0
        %1810 = vmatpush1.bf16.msra.mxu0 %v1660
        %1811 = vmatprep.subr.bf16.mxu0 0
        %1812 = vmatpush1.bf16.msra.mxu0 %v1661
        %1813 = vmatprep.subr.bf16.mxu0 0
        %1814 = vmatpush1.bf16.msra.mxu0 %v1662
        %1815 = vmatprep.subr.bf16.mxu0 0
        %1816 = vmatpush1.bf16.msra.mxu0 %v1663
        %1817 = vmatprep.subr.bf16.mxu0 0
        %1818 = vmatpush1.bf16.msra.mxu0 %v1664
        %1819 = vmatprep.subr.bf16.mxu0 0
        %1820 = vmatpush1.bf16.msra.mxu0 %v1665
        %1821 = vmatprep.subr.bf16.mxu0 0
        %1822 = vmatpush1.bf16.msra.mxu0 %v1666
        %1823 = vmatprep.subr.bf16.mxu0 0
        %1824 = vmatpush1.bf16.msra.mxu0 %v1667
        %1825 = vmatprep.subr.bf16.mxu0 0
        %1826 = vmatpush1.bf16.msra.mxu0 %v1668
        %1827 = vmatprep.subr.bf16.mxu0 0
        %1828 = vmatpush1.bf16.msra.mxu0 %v1669
        %1829 = vmatprep.subr.bf16.mxu0 0
        %1830 = vmatpush1.bf16.msra.mxu0 %v1670
        %1831 = vmatprep.mubr.bf16.mxu0 %v1080
        %1832 = vmatmul.mubr.bf16.gmra.mrb[0].mxu0 %v1079
        %v1833 = vpop.f32.mrb[0].mxu0
        %v1834 = vadd.f32 0.0, %v1833
        %v1835 = vpop.f32.mrb[0].mxu0
        %v1836 = vpop.f32.mrb[0].mxu0
        %v1837 = vadd.f32 0.0, %v1836
        %v1838 = vpop.f32.mrb[0].mxu0
        %1839 = vmatprep.mubr.bf16.mxu0 %v1089
        %1840 = vmatmul.mubr.bf16.gmra.mrb[0].mxu0 %v1088
        %v1841 = vpop.f32.mrb[0].mxu0
        %v1842 = vadd.f32 0.0, %v1841
        %v1843 = vpop.f32.mrb[0].mxu0
        %v1844 = vpop.f32.mrb[0].mxu0
        %v1845 = vadd.f32 0.0, %v1844
        %v1846 = vpop.f32.mrb[0].mxu0
        %1847 = vmatprep.mubr.bf16.mxu0 %v1098
        %1848 = vmatmul.mubr.bf16.gmra.mrb[0].mxu0 %v1097
        %v1849 = vpop.f32.mrb[0].mxu0
        %v1850 = vadd.f32 0.0, %v1849
        %v1851 = vpop.f32.mrb[0].mxu0
        %v1852 = vpop.f32.mrb[0].mxu0
        %v1853 = vadd.f32 0.0, %v1852
        %v1854 = vpop.f32.mrb[0].mxu0
        %1855 = vmatprep.mubr.bf16.mxu0 %v1107
        %1856 = vmatmul.mubr.bf16.gmra.mrb[0].mxu0 %v1106
        %v1857 = vpop.f32.mrb[0].mxu0
        %v1858 = vadd.f32 0.0, %v1857
        %v1859 = vpop.f32.mrb[0].mxu0
        %v1860 = vpop.f32.mrb[0].mxu0
        %v1861 = vadd.f32 0.0, %v1860
        %v1862 = vpop.f32.mrb[0].mxu0
        %1863 = vmatprep.mubr.bf16.mxu0 %v1116
        %1864 = vmatmul.mubr.bf16.gmra.mrb[0].mxu0 %v1115
        %v1865 = vpop.f32.mrb[0].mxu0
        %v1866 = vadd.f32 0.0, %v1865
        %v1867 = vpop.f32.mrb[0].mxu0
        %v1868 = vpop.f32.mrb[0].mxu0
        %v1869 = vadd.f32 0.0, %v1868
        %v1870 = vpop.f32.mrb[0].mxu0
        %1871 = vmatprep.mubr.bf16.mxu0 %v1125
        %1872 = vmatmul.mubr.bf16.gmra.mrb[0].mxu0 %v1124
        %v1873 = vpop.f32.mrb[0].mxu0
        %v1874 = vadd.f32 0.0, %v1873
        %v1875 = vpop.f32.mrb[0].mxu0
        %v1876 = vpop.f32.mrb[0].mxu0
        %v1877 = vadd.f32 0.0, %v1876
        %v1878 = vpop.f32.mrb[0].mxu0
        %1879 = vmatprep.mubr.bf16.mxu0 %v1134
        %1880 = vmatmul.mubr.bf16.gmra.mrb[0].mxu0 %v1133
        %v1881 = vpop.f32.mrb[0].mxu0
        %v1882 = vadd.f32 0.0, %v1881
        %v1883 = vpop.f32.mrb[0].mxu0
        %v1884 = vpop.f32.mrb[0].mxu0
        %v1885 = vadd.f32 0.0, %v1884
        %v1886 = vpop.f32.mrb[0].mxu0
        %1887 = vmatprep.mubr.bf16.mxu0 %v1143
        %1888 = vmatmul.mubr.bf16.gmra.mrb[0].mxu0 %v1142
        %v1889 = vpop.f32.mrb[0].mxu0
        %v1890 = vadd.f32 0.0, %v1889
        %v1891 = vpop.f32.mrb[0].mxu0
        %v1892 = vpop.f32.mrb[0].mxu0
        %v1893 = vadd.f32 0.0, %v1892
        %v1894 = vpop.f32.mrb[0].mxu0
        %1895 = vmatprep.mubr.bf16.mxu0 %v1152
        %1896 = vmatmul.mubr.bf16.gmra.mrb[0].mxu0 %v1151
        %v1897 = vpop.f32.mrb[0].mxu0
        %v1898 = vadd.f32 0.0, %v1897
        %v1899 = vpop.f32.mrb[0].mxu0
        %v1900 = vpop.f32.mrb[0].mxu0
        %v1901 = vadd.f32 0.0, %v1900
        %v1902 = vpop.f32.mrb[0].mxu0
        %1903 = vmatprep.mubr.bf16.mxu0 %v1161
        %1904 = vmatmul.mubr.bf16.gmra.mrb[0].mxu0 %v1160
        %v1905 = vpop.f32.mrb[0].mxu0
        %v1906 = vadd.f32 0.0, %v1905
        %v1907 = vpop.f32.mrb[0].mxu0
        %v1908 = vpop.f32.mrb[0].mxu0
        %v1909 = vadd.f32 0.0, %v1908
        %v1910 = vpop.f32.mrb[0].mxu0
        %1911 = vmatprep.mubr.bf16.mxu0 %v1170
        %1912 = vmatmul.mubr.bf16.gmra.mrb[0].mxu0 %v1169
        %v1913 = vpop.f32.mrb[0].mxu0
        %v1914 = vadd.f32 0.0, %v1913
        %v1915 = vpop.f32.mrb[0].mxu0
        %v1916 = vpop.f32.mrb[0].mxu0
        %v1917 = vadd.f32 0.0, %v1916
        %v1918 = vpop.f32.mrb[0].mxu0
        %1919 = vmatprep.mubr.bf16.mxu0 %v1179
        %1920 = vmatmul.mubr.bf16.gmra.mrb[0].mxu0 %v1178
        %v1921 = vpop.f32.mrb[0].mxu0
        %v1922 = vadd.f32 0.0, %v1921
        %v1923 = vpop.f32.mrb[0].mxu0
        %v1924 = vpop.f32.mrb[0].mxu0
        %v1925 = vadd.f32 0.0, %v1924
        %v1926 = vpop.f32.mrb[0].mxu0
        %1927 = vmatprep.mubr.bf16.mxu0 %v1188
        %1928 = vmatmul.mubr.bf16.gmra.mrb[0].mxu0 %v1187
        %v1929 = vpop.f32.mrb[0].mxu0
        %v1930 = vadd.f32 0.0, %v1929
        %v1931 = vpop.f32.mrb[0].mxu0
        %v1932 = vpop.f32.mrb[0].mxu0
        %v1933 = vadd.f32 0.0, %v1932
        %v1934 = vpop.f32.mrb[0].mxu0
        %1935 = vmatprep.mubr.bf16.mxu0 %v1197
        %1936 = vmatmul.mubr.bf16.gmra.mrb[0].mxu0 %v1196
        %v1937 = vpop.f32.mrb[0].mxu0
        %v1938 = vadd.f32 0.0, %v1937
        %v1939 = vpop.f32.mrb[0].mxu0
        %v1940 = vpop.f32.mrb[0].mxu0
        %v1941 = vadd.f32 0.0, %v1940
        %v1942 = vpop.f32.mrb[0].mxu0
        %1943 = vmatprep.mubr.bf16.mxu0 %v1206
        %1944 = vmatmul.mubr.bf16.gmra.mrb[0].mxu0 %v1205
        %v1945 = vpop.f32.mrb[0].mxu0
        %v1946 = vadd.f32 0.0, %v1945
        %v1947 = vpop.f32.mrb[0].mxu0
        %v1948 = vpop.f32.mrb[0].mxu0
        %v1949 = vadd.f32 0.0, %v1948
        %v1950 = vpop.f32.mrb[0].mxu0
        %1951 = vmatprep.mubr.bf16.mxu0 %v1215
        %1952 = vmatmul.mubr.bf16.gmra.mrb[0].mxu0 %v1214
        %v1953 = vpop.f32.mrb[0].mxu0
        %v1954 = vadd.f32 0.0, %v1953
        %v1955 = vpop.f32.mrb[0].mxu0
        %v1956 = vpop.f32.mrb[0].mxu0
        %v1957 = vadd.f32 0.0, %v1956
        %v1958 = vpop.f32.mrb[0].mxu0
        %1959 = vdwg.mxu0
        %1960 = vmatprep.subr.bf16.mxu0 0
        %1961 = vmatpush1.bf16.msra.mxu0 %v1671
        %1962 = vmatprep.subr.bf16.mxu0 0
        %1963 = vmatpush1.bf16.msra.mxu0 %v1672
        %1964 = vmatprep.subr.bf16.mxu0 0
        %1965 = vmatpush1.bf16.msra.mxu0 %v1673
        %1966 = vmatprep.subr.bf16.mxu0 0
        %1967 = vmatpush1.bf16.msra.mxu0 %v1674
        %1968 = vmatprep.subr.bf16.mxu0 0
        %1969 = vmatpush1.bf16.msra.mxu0 %v1675
        %1970 = vmatprep.subr.bf16.mxu0 0
        %1971 = vmatpush1.bf16.msra.mxu0 %v1676
        %1972 = vmatprep.subr.bf16.mxu0 0
        %1973 = vmatpush1.bf16.msra.mxu0 %v1677
        %1974 = vmatprep.subr.bf16.mxu0 0
        %1975 = vmatpush1.bf16.msra.mxu0 %v1678
        %1976 = vmatprep.subr.bf16.mxu0 0
        %1977 = vmatpush1.bf16.msra.mxu0 %v1679
        %1978 = vmatprep.subr.bf16.mxu0 0
        %1979 = vmatpush1.bf16.msra.mxu0 %v1680
        %1980 = vmatprep.subr.bf16.mxu0 0
        %1981 = vmatpush1.bf16.msra.mxu0 %v1681
        %1982 = vmatprep.subr.bf16.mxu0 0
        %1983 = vmatpush1.bf16.msra.mxu0 %v1682
        %1984 = vmatprep.subr.bf16.mxu0 0
        %1985 = vmatpush1.bf16.msra.mxu0 %v1683
        %1986 = vmatprep.subr.bf16.mxu0 0
        %1987 = vmatpush1.bf16.msra.mxu0 %v1684
        %1988 = vmatprep.subr.bf16.mxu0 0
        %1989 = vmatpush1.bf16.msra.mxu0 %v1685
        %1990 = vmatprep.subr.bf16.mxu0 0
        %1991 = vmatpush1.bf16.msra.mxu0 %v1686
        %1992 = vmatprep.mubr.bf16.mxu0 %v1082
        %1993 = vmatmul.mubr.bf16.gmra.mrb[0].mxu0 %v1081
        %v1994 = vpop.f32.mrb[0].mxu0
        %v1995 = vadd.f32 %v1834, %v1994
        %v1996 = vpop.f32.mrb[0].mxu0
        %v1997 = vpop.f32.mrb[0].mxu0
        %v1998 = vadd.f32 %v1837, %v1997
        %v1999 = vpop.f32.mrb[0].mxu0
        %2000 = vmatprep.mubr.bf16.mxu0 %v1091
        %2001 = vmatmul.mubr.bf16.gmra.mrb[0].mxu0 %v1090
        %v2002 = vpop.f32.mrb[0].mxu0
        %v2003 = vadd.f32 %v1842, %v2002
        %v2004 = vpop.f32.mrb[0].mxu0
        %v2005 = vpop.f32.mrb[0].mxu0
        %v2006 = vadd.f32 %v1845, %v2005
        %v2007 = vpop.f32.mrb[0].mxu0
        %2008 = vmatprep.mubr.bf16.mxu0 %v1100
        %2009 = vmatmul.mubr.bf16.gmra.mrb[0].mxu0 %v1099
        %v2010 = vpop.f32.mrb[0].mxu0
        %v2011 = vadd.f32 %v1850, %v2010
        %v2012 = vpop.f32.mrb[0].mxu0
        %v2013 = vpop.f32.mrb[0].mxu0
        %v2014 = vadd.f32 %v1853, %v2013
        %v2015 = vpop.f32.mrb[0].mxu0
        %2016 = vmatprep.mubr.bf16.mxu0 %v1109
        %2017 = vmatmul.mubr.bf16.gmra.mrb[0].mxu0 %v1108
        %v2018 = vpop.f32.mrb[0].mxu0
        %v2019 = vadd.f32 %v1858, %v2018
        %v2020 = vpop.f32.mrb[0].mxu0
        %v2021 = vpop.f32.mrb[0].mxu0
        %v2022 = vadd.f32 %v1861, %v2021
        %v2023 = vpop.f32.mrb[0].mxu0
        %2024 = vmatprep.mubr.bf16.mxu0 %v1118
        %2025 = vmatmul.mubr.bf16.gmra.mrb[0].mxu0 %v1117
        %v2026 = vpop.f32.mrb[0].mxu0
        %v2027 = vadd.f32 %v1866, %v2026
        %v2028 = vpop.f32.mrb[0].mxu0
        %v2029 = vpop.f32.mrb[0].mxu0
        %v2030 = vadd.f32 %v1869, %v2029
        %v2031 = vpop.f32.mrb[0].mxu0
        %2032 = vmatprep.mubr.bf16.mxu0 %v1127
        %2033 = vmatmul.mubr.bf16.gmra.mrb[0].mxu0 %v1126
        %v2034 = vpop.f32.mrb[0].mxu0
        %v2035 = vadd.f32 %v1874, %v2034
        %v2036 = vpop.f32.mrb[0].mxu0
        %v2037 = vpop.f32.mrb[0].mxu0
        %v2038 = vadd.f32 %v1877, %v2037
        %v2039 = vpop.f32.mrb[0].mxu0
        %2040 = vmatprep.mubr.bf16.mxu0 %v1136
        %2041 = vmatmul.mubr.bf16.gmra.mrb[0].mxu0 %v1135
        %v2042 = vpop.f32.mrb[0].mxu0
        %v2043 = vadd.f32 %v1882, %v2042
        %v2044 = vpop.f32.mrb[0].mxu0
        %v2045 = vpop.f32.mrb[0].mxu0
        %v2046 = vadd.f32 %v1885, %v2045
        %v2047 = vpop.f32.mrb[0].mxu0
        %2048 = vmatprep.mubr.bf16.mxu0 %v1145
        %2049 = vmatmul.mubr.bf16.gmra.mrb[0].mxu0 %v1144
        %v2050 = vpop.f32.mrb[0].mxu0
        %v2051 = vadd.f32 %v1890, %v2050
        %v2052 = vpop.f32.mrb[0].mxu0
        %v2053 = vpop.f32.mrb[0].mxu0
        %v2054 = vadd.f32 %v1893, %v2053
        %v2055 = vpop.f32.mrb[0].mxu0
        %2056 = vmatprep.mubr.bf16.mxu0 %v1154
        %2057 = vmatmul.mubr.bf16.gmra.mrb[0].mxu0 %v1153
        %v2058 = vpop.f32.mrb[0].mxu0
        %v2059 = vadd.f32 %v1898, %v2058
        %v2060 = vpop.f32.mrb[0].mxu0
        %v2061 = vpop.f32.mrb[0].mxu0
        %v2062 = vadd.f32 %v1901, %v2061
        %v2063 = vpop.f32.mrb[0].mxu0
        %2064 = vmatprep.mubr.bf16.mxu0 %v1163
        %2065 = vmatmul.mubr.bf16.gmra.mrb[0].mxu0 %v1162
        %v2066 = vpop.f32.mrb[0].mxu0
        %v2067 = vadd.f32 %v1906, %v2066
        %v2068 = vpop.f32.mrb[0].mxu0
        %v2069 = vpop.f32.mrb[0].mxu0
        %v2070 = vadd.f32 %v1909, %v2069
        %v2071 = vpop.f32.mrb[0].mxu0
        %2072 = vmatprep.mubr.bf16.mxu0 %v1172
        %2073 = vmatmul.mubr.bf16.gmra.mrb[0].mxu0 %v1171
        %v2074 = vpop.f32.mrb[0].mxu0
        %v2075 = vadd.f32 %v1914, %v2074
        %v2076 = vpop.f32.mrb[0].mxu0
        %v2077 = vpop.f32.mrb[0].mxu0
        %v2078 = vadd.f32 %v1917, %v2077
        %v2079 = vpop.f32.mrb[0].mxu0
        %2080 = vmatprep.mubr.bf16.mxu0 %v1181
        %2081 = vmatmul.mubr.bf16.gmra.mrb[0].mxu0 %v1180
        %v2082 = vpop.f32.mrb[0].mxu0
        %v2083 = vadd.f32 %v1922, %v2082
        %v2084 = vpop.f32.mrb[0].mxu0
        %v2085 = vpop.f32.mrb[0].mxu0
        %v2086 = vadd.f32 %v1925, %v2085
        %v2087 = vpop.f32.mrb[0].mxu0
        %2088 = vmatprep.mubr.bf16.mxu0 %v1190
        %2089 = vmatmul.mubr.bf16.gmra.mrb[0].mxu0 %v1189
        %v2090 = vpop.f32.mrb[0].mxu0
        %v2091 = vadd.f32 %v1930, %v2090
        %v2092 = vpop.f32.mrb[0].mxu0
        %v2093 = vpop.f32.mrb[0].mxu0
        %v2094 = vadd.f32 %v1933, %v2093
        %v2095 = vpop.f32.mrb[0].mxu0
        %2096 = vmatprep.mubr.bf16.mxu0 %v1199
        %2097 = vmatmul.mubr.bf16.gmra.mrb[0].mxu0 %v1198
        %v2098 = vpop.f32.mrb[0].mxu0
        %v2099 = vadd.f32 %v1938, %v2098
        %v2100 = vpop.f32.mrb[0].mxu0
        %v2101 = vpop.f32.mrb[0].mxu0
        %v2102 = vadd.f32 %v1941, %v2101
        %v2103 = vpop.f32.mrb[0].mxu0
        %2104 = vmatprep.mubr.bf16.mxu0 %v1208
        %2105 = vmatmul.mubr.bf16.gmra.mrb[0].mxu0 %v1207
        %v2106 = vpop.f32.mrb[0].mxu0
        %v2107 = vadd.f32 %v1946, %v2106
        %v2108 = vpop.f32.mrb[0].mxu0
        %v2109 = vpop.f32.mrb[0].mxu0
        %v2110 = vadd.f32 %v1949, %v2109
        %v2111 = vpop.f32.mrb[0].mxu0
        %2112 = vmatprep.mubr.bf16.mxu0 %v1217
        %2113 = vmatmul.mubr.bf16.gmra.mrb[0].mxu0 %v1216
        %v2114 = vpop.f32.mrb[0].mxu0
        %v2115 = vadd.f32 %v1954, %v2114
        %v2116 = vpop.f32.mrb[0].mxu0
        %v2117 = vpop.f32.mrb[0].mxu0
        %v2118 = vadd.f32 %v1957, %v2117
        %v2119 = vpop.f32.mrb[0].mxu0
        %2120 = vdwg.mxu0
        %2121 = vmatprep.subr.bf16.mxu0 0
        %2122 = vmatpush1.bf16.msra.mxu0 %v1687
        %2123 = vmatprep.subr.bf16.mxu0 0
        %2124 = vmatpush1.bf16.msra.mxu0 %v1688
        %2125 = vmatprep.subr.bf16.mxu0 0
        %2126 = vmatpush1.bf16.msra.mxu0 %v1689
        %2127 = vmatprep.subr.bf16.mxu0 0
        %2128 = vmatpush1.bf16.msra.mxu0 %v1690
        %2129 = vmatprep.subr.bf16.mxu0 0
        %2130 = vmatpush1.bf16.msra.mxu0 %v1691
        %2131 = vmatprep.subr.bf16.mxu0 0
        %2132 = vmatpush1.bf16.msra.mxu0 %v1692
        %2133 = vmatprep.subr.bf16.mxu0 0
        %2134 = vmatpush1.bf16.msra.mxu0 %v1693
        %2135 = vmatprep.subr.bf16.mxu0 0
        %2136 = vmatpush1.bf16.msra.mxu0 %v1694
        %2137 = vmatprep.subr.bf16.mxu0 0
        %2138 = vmatpush1.bf16.msra.mxu0 %v1695
        %2139 = vmatprep.subr.bf16.mxu0 0
        %2140 = vmatpush1.bf16.msra.mxu0 %v1696
        %2141 = vmatprep.subr.bf16.mxu0 0
        %2142 = vmatpush1.bf16.msra.mxu0 %v1697
        %2143 = vmatprep.subr.bf16.mxu0 0
        %2144 = vmatpush1.bf16.msra.mxu0 %v1698
        %2145 = vmatprep.subr.bf16.mxu0 0
        %2146 = vmatpush1.bf16.msra.mxu0 %v1699
        %2147 = vmatprep.subr.bf16.mxu0 0
        %2148 = vmatpush1.bf16.msra.mxu0 %v1700
        %2149 = vmatprep.subr.bf16.mxu0 0
        %2150 = vmatpush1.bf16.msra.mxu0 %v1701
        %2151 = vmatprep.subr.bf16.mxu0 0
        %2152 = vmatpush1.bf16.msra.mxu0 %v1702
        %2153 = vmatprep.mubr.bf16.mxu0 %v1084
        %2154 = vmatmul.mubr.bf16.gmra.mrb[0].mxu0 %v1083
        %v2155 = vpop.f32.mrb[0].mxu0
        %v2156 = vadd.f32 %v1995, %v2155
        %v2157 = vpop.f32.mrb[0].mxu0
        %v2158 = vpop.f32.mrb[0].mxu0
        %v2159 = vadd.f32 %v1998, %v2158
        %v2160 = vpop.f32.mrb[0].mxu0
        %2161 = vmatprep.mubr.bf16.mxu0 %v1093
        %2162 = vmatmul.mubr.bf16.gmra.mrb[0].mxu0 %v1092
        %v2163 = vpop.f32.mrb[0].mxu0
        %v2164 = vadd.f32 %v2003, %v2163
        %v2165 = vpop.f32.mrb[0].mxu0
        %v2166 = vpop.f32.mrb[0].mxu0
        %v2167 = vadd.f32 %v2006, %v2166
        %v2168 = vpop.f32.mrb[0].mxu0
        %2169 = vmatprep.mubr.bf16.mxu0 %v1102
        %2170 = vmatmul.mubr.bf16.gmra.mrb[0].mxu0 %v1101
        %v2171 = vpop.f32.mrb[0].mxu0
        %v2172 = vadd.f32 %v2011, %v2171
        %v2173 = vpop.f32.mrb[0].mxu0
        %v2174 = vpop.f32.mrb[0].mxu0
        %v2175 = vadd.f32 %v2014, %v2174
        %v2176 = vpop.f32.mrb[0].mxu0
        %2177 = vmatprep.mubr.bf16.mxu0 %v1111
        %2178 = vmatmul.mubr.bf16.gmra.mrb[0].mxu0 %v1110
        %v2179 = vpop.f32.mrb[0].mxu0
        %v2180 = vadd.f32 %v2019, %v2179
        %v2181 = vpop.f32.mrb[0].mxu0
        %v2182 = vpop.f32.mrb[0].mxu0
        %v2183 = vadd.f32 %v2022, %v2182
        %v2184 = vpop.f32.mrb[0].mxu0
        %2185 = vmatprep.mubr.bf16.mxu0 %v1120
        %2186 = vmatmul.mubr.bf16.gmra.mrb[0].mxu0 %v1119
        %v2187 = vpop.f32.mrb[0].mxu0
        %v2188 = vadd.f32 %v2027, %v2187
        %v2189 = vpop.f32.mrb[0].mxu0
        %v2190 = vpop.f32.mrb[0].mxu0
        %v2191 = vadd.f32 %v2030, %v2190
        %v2192 = vpop.f32.mrb[0].mxu0
        %2193 = vmatprep.mubr.bf16.mxu0 %v1129
        %2194 = vmatmul.mubr.bf16.gmra.mrb[0].mxu0 %v1128
        %v2195 = vpop.f32.mrb[0].mxu0
        %v2196 = vadd.f32 %v2035, %v2195
        %v2197 = vpop.f32.mrb[0].mxu0
        %v2198 = vpop.f32.mrb[0].mxu0
        %v2199 = vadd.f32 %v2038, %v2198
        %v2200 = vpop.f32.mrb[0].mxu0
        %2201 = vmatprep.mubr.bf16.mxu0 %v1138
        %2202 = vmatmul.mubr.bf16.gmra.mrb[0].mxu0 %v1137
        %v2203 = vpop.f32.mrb[0].mxu0
        %v2204 = vadd.f32 %v2043, %v2203
        %v2205 = vpop.f32.mrb[0].mxu0
        %v2206 = vpop.f32.mrb[0].mxu0
        %v2207 = vadd.f32 %v2046, %v2206
        %v2208 = vpop.f32.mrb[0].mxu0
        %2209 = vmatprep.mubr.bf16.mxu0 %v1147
        %2210 = vmatmul.mubr.bf16.gmra.mrb[0].mxu0 %v1146
        %v2211 = vpop.f32.mrb[0].mxu0
        %v2212 = vadd.f32 %v2051, %v2211
        %v2213 = vpop.f32.mrb[0].mxu0
        %v2214 = vpop.f32.mrb[0].mxu0
        %v2215 = vadd.f32 %v2054, %v2214
        %v2216 = vpop.f32.mrb[0].mxu0
        %2217 = vmatprep.mubr.bf16.mxu0 %v1156
        %2218 = vmatmul.mubr.bf16.gmra.mrb[0].mxu0 %v1155
        %v2219 = vpop.f32.mrb[0].mxu0
        %v2220 = vadd.f32 %v2059, %v2219
        %v2221 = vpop.f32.mrb[0].mxu0
        %v2222 = vpop.f32.mrb[0].mxu0
        %v2223 = vadd.f32 %v2062, %v2222
        %v2224 = vpop.f32.mrb[0].mxu0
        %2225 = vmatprep.mubr.bf16.mxu0 %v1165
        %2226 = vmatmul.mubr.bf16.gmra.mrb[0].mxu0 %v1164
        %v2227 = vpop.f32.mrb[0].mxu0
        %v2228 = vadd.f32 %v2067, %v2227
        %v2229 = vpop.f32.mrb[0].mxu0
        %v2230 = vpop.f32.mrb[0].mxu0
        %v2231 = vadd.f32 %v2070, %v2230
        %v2232 = vpop.f32.mrb[0].mxu0
        %2233 = vmatprep.mubr.bf16.mxu0 %v1174
        %2234 = vmatmul.mubr.bf16.gmra.mrb[0].mxu0 %v1173
        %v2235 = vpop.f32.mrb[0].mxu0
        %v2236 = vadd.f32 %v2075, %v2235
        %v2237 = vpop.f32.mrb[0].mxu0
        %v2238 = vpop.f32.mrb[0].mxu0
        %v2239 = vadd.f32 %v2078, %v2238
        %v2240 = vpop.f32.mrb[0].mxu0
        %2241 = vmatprep.mubr.bf16.mxu0 %v1183
        %2242 = vmatmul.mubr.bf16.gmra.mrb[0].mxu0 %v1182
        %v2243 = vpop.f32.mrb[0].mxu0
        %v2244 = vadd.f32 %v2083, %v2243
        %v2245 = vpop.f32.mrb[0].mxu0
        %v2246 = vpop.f32.mrb[0].mxu0
        %v2247 = vadd.f32 %v2086, %v2246
        %v2248 = vpop.f32.mrb[0].mxu0
        %2249 = vmatprep.mubr.bf16.mxu0 %v1192
        %2250 = vmatmul.mubr.bf16.gmra.mrb[0].mxu0 %v1191
        %v2251 = vpop.f32.mrb[0].mxu0
        %v2252 = vadd.f32 %v2091, %v2251
        %v2253 = vpop.f32.mrb[0].mxu0
        %v2254 = vpop.f32.mrb[0].mxu0
        %v2255 = vadd.f32 %v2094, %v2254
        %v2256 = vpop.f32.mrb[0].mxu0
        %2257 = vmatprep.mubr.bf16.mxu0 %v1201
        %2258 = vmatmul.mubr.bf16.gmra.mrb[0].mxu0 %v1200
        %v2259 = vpop.f32.mrb[0].mxu0
        %v2260 = vadd.f32 %v2099, %v2259
        %v2261 = vpop.f32.mrb[0].mxu0
        %v2262 = vpop.f32.mrb[0].mxu0
        %v2263 = vadd.f32 %v2102, %v2262
        %v2264 = vpop.f32.mrb[0].mxu0
        %2265 = vmatprep.mubr.bf16.mxu0 %v1210
        %2266 = vmatmul.mubr.bf16.gmra.mrb[0].mxu0 %v1209
        %v2267 = vpop.f32.mrb[0].mxu0
        %v2268 = vadd.f32 %v2107, %v2267
        %v2269 = vpop.f32.mrb[0].mxu0
        %v2270 = vpop.f32.mrb[0].mxu0
        %v2271 = vadd.f32 %v2110, %v2270
        %v2272 = vpop.f32.mrb[0].mxu0
        %2273 = vmatprep.mubr.bf16.mxu0 %v1219
        %2274 = vmatmul.mubr.bf16.gmra.mrb[0].mxu0 %v1218
        %v2275 = vpop.f32.mrb[0].mxu0
        %v2276 = vadd.f32 %v2115, %v2275
        %v2277 = vpop.f32.mrb[0].mxu0
        %v2278 = vpop.f32.mrb[0].mxu0
        %v2279 = vadd.f32 %v2118, %v2278
        %v2280 = vpop.f32.mrb[0].mxu0
        %2281 = vdwg.mxu0
        %2282 = vmatprep.subr.bf16.mxu0 0
        %2283 = vmatpush1.bf16.msra.mxu0 %v1703
        %2284 = vmatprep.subr.bf16.mxu0 0
        %2285 = vmatpush1.bf16.msra.mxu0 %v1704
        %2286 = vmatprep.subr.bf16.mxu0 0
        %2287 = vmatpush1.bf16.msra.mxu0 %v1705
        %2288 = vmatprep.subr.bf16.mxu0 0
        %2289 = vmatpush1.bf16.msra.mxu0 %v1706
        %2290 = vmatprep.subr.bf16.mxu0 0
        %2291 = vmatpush1.bf16.msra.mxu0 %v1707
        %2292 = vmatprep.subr.bf16.mxu0 0
        %2293 = vmatpush1.bf16.msra.mxu0 %v1708
        %2294 = vmatprep.subr.bf16.mxu0 0
        %2295 = vmatpush1.bf16.msra.mxu0 %v1709
        %2296 = vmatprep.subr.bf16.mxu0 0
        %2297 = vmatpush1.bf16.msra.mxu0 %v1710
        %2298 = vmatprep.subr.bf16.mxu0 0
        %2299 = vmatpush1.bf16.msra.mxu0 %v1711
        %2300 = vmatprep.subr.bf16.mxu0 0
        %2301 = vmatpush1.bf16.msra.mxu0 %v1712
        %2302 = vmatprep.subr.bf16.mxu0 0
        %2303 = vmatpush1.bf16.msra.mxu0 %v1713
        %2304 = vmatprep.subr.bf16.mxu0 0
        %2305 = vmatpush1.bf16.msra.mxu0 %v1714
        %2306 = vmatprep.subr.bf16.mxu0 0
        %2307 = vmatpush1.bf16.msra.mxu0 %v1715
        %2308 = vmatprep.subr.bf16.mxu0 0
        %2309 = vmatpush1.bf16.msra.mxu0 %v1716
        %2310 = vmatprep.subr.bf16.mxu0 0
        %2311 = vmatpush1.bf16.msra.mxu0 %v1717
        %2312 = vmatprep.subr.bf16.mxu0 0
        %2313 = vmatpush1.bf16.msra.mxu0 %v1718
        %2314 = vmatprep.mubr.bf16.mxu0 %v1086
        %2315 = vmatmul.mubr.bf16.gmra.mrb[0].mxu0 %v1085
        %v2316 = vpop.f32.mrb[0].mxu0
        %v2317 = vadd.f32 %v2156, %v2316
        %v2318 = vpop.f32.mrb[0].mxu0
        %v2319 = vpop.f32.mrb[0].mxu0
        %v2320 = vadd.f32 %v2159, %v2319
        %v2321 = vpop.f32.mrb[0].mxu0
        %2322 = vmatprep.mubr.bf16.mxu0 %v1095
        %2323 = vmatmul.mubr.bf16.gmra.mrb[0].mxu0 %v1094
        %v2324 = vpop.f32.mrb[0].mxu0
        %v2325 = vadd.f32 %v2164, %v2324
        %v2326 = vpop.f32.mrb[0].mxu0
        %v2327 = vpop.f32.mrb[0].mxu0
        %v2328 = vadd.f32 %v2167, %v2327
        %v2329 = vpop.f32.mrb[0].mxu0
        %2330 = vmatprep.mubr.bf16.mxu0 %v1104
        %2331 = vmatmul.mubr.bf16.gmra.mrb[0].mxu0 %v1103
        %v2332 = vpop.f32.mrb[0].mxu0
        %v2333 = vadd.f32 %v2172, %v2332
        %v2334 = vpop.f32.mrb[0].mxu0
        %v2335 = vpop.f32.mrb[0].mxu0
        %v2336 = vadd.f32 %v2175, %v2335
        %v2337 = vpop.f32.mrb[0].mxu0
        %2338 = vmatprep.mubr.bf16.mxu0 %v1113
        %2339 = vmatmul.mubr.bf16.gmra.mrb[0].mxu0 %v1112
        %v2340 = vpop.f32.mrb[0].mxu0
        %v2341 = vadd.f32 %v2180, %v2340
        %v2342 = vpop.f32.mrb[0].mxu0
        %v2343 = vpop.f32.mrb[0].mxu0
        %v2344 = vadd.f32 %v2183, %v2343
        %v2345 = vpop.f32.mrb[0].mxu0
        %2346 = vmatprep.mubr.bf16.mxu0 %v1122
        %2347 = vmatmul.mubr.bf16.gmra.mrb[0].mxu0 %v1121
        %v2348 = vpop.f32.mrb[0].mxu0
        %v2349 = vadd.f32 %v2188, %v2348
        %v2350 = vpop.f32.mrb[0].mxu0
        %v2351 = vpop.f32.mrb[0].mxu0
        %v2352 = vadd.f32 %v2191, %v2351
        %v2353 = vpop.f32.mrb[0].mxu0
        %2354 = vmatprep.mubr.bf16.mxu0 %v1131
        %2355 = vmatmul.mubr.bf16.gmra.mrb[0].mxu0 %v1130
        %v2356 = vpop.f32.mrb[0].mxu0
        %v2357 = vadd.f32 %v2196, %v2356
        %v2358 = vpop.f32.mrb[0].mxu0
        %v2359 = vpop.f32.mrb[0].mxu0
        %v2360 = vadd.f32 %v2199, %v2359
        %v2361 = vpop.f32.mrb[0].mxu0
        %2362 = vmatprep.mubr.bf16.mxu0 %v1140
        %2363 = vmatmul.mubr.bf16.gmra.mrb[0].mxu0 %v1139
        %v2364 = vpop.f32.mrb[0].mxu0
        %v2365 = vadd.f32 %v2204, %v2364
        %v2366 = vpop.f32.mrb[0].mxu0
        %v2367 = vpop.f32.mrb[0].mxu0
        %v2368 = vadd.f32 %v2207, %v2367
        %v2369 = vpop.f32.mrb[0].mxu0
        %2370 = vmatprep.mubr.bf16.mxu0 %v1149
        %2371 = vmatmul.mubr.bf16.gmra.mrb[0].mxu0 %v1148
        %v2372 = vpop.f32.mrb[0].mxu0
        %v2373 = vadd.f32 %v2212, %v2372
        %v2374 = vpop.f32.mrb[0].mxu0
        %v2375 = vpop.f32.mrb[0].mxu0
        %v2376 = vadd.f32 %v2215, %v2375
        %v2377 = vpop.f32.mrb[0].mxu0
        %2378 = vmatprep.mubr.bf16.mxu0 %v1158
        %2379 = vmatmul.mubr.bf16.gmra.mrb[0].mxu0 %v1157
        %v2380 = vpop.f32.mrb[0].mxu0
        %v2381 = vadd.f32 %v2220, %v2380
        %v2382 = vpop.f32.mrb[0].mxu0
        %v2383 = vpop.f32.mrb[0].mxu0
        %v2384 = vadd.f32 %v2223, %v2383
        %v2385 = vpop.f32.mrb[0].mxu0
        %2386 = vmatprep.mubr.bf16.mxu0 %v1167
        %2387 = vmatmul.mubr.bf16.gmra.mrb[0].mxu0 %v1166
        %v2388 = vpop.f32.mrb[0].mxu0
        %v2389 = vadd.f32 %v2228, %v2388
        %v2390 = vpop.f32.mrb[0].mxu0
        %v2391 = vpop.f32.mrb[0].mxu0
        %v2392 = vadd.f32 %v2231, %v2391
        %v2393 = vpop.f32.mrb[0].mxu0
        %2394 = vmatprep.mubr.bf16.mxu0 %v1176
        %2395 = vmatmul.mubr.bf16.gmra.mrb[0].mxu0 %v1175
        %v2396 = vpop.f32.mrb[0].mxu0
        %v2397 = vadd.f32 %v2236, %v2396
        %v2398 = vpop.f32.mrb[0].mxu0
        %v2399 = vpop.f32.mrb[0].mxu0
        %v2400 = vadd.f32 %v2239, %v2399
        %v2401 = vpop.f32.mrb[0].mxu0
        %2402 = vmatprep.mubr.bf16.mxu0 %v1185
        %2403 = vmatmul.mubr.bf16.gmra.mrb[0].mxu0 %v1184
        %v2404 = vpop.f32.mrb[0].mxu0
        %v2405 = vadd.f32 %v2244, %v2404
        %v2406 = vpop.f32.mrb[0].mxu0
        %v2407 = vpop.f32.mrb[0].mxu0
        %v2408 = vadd.f32 %v2247, %v2407
        %v2409 = vpop.f32.mrb[0].mxu0
        %2410 = vmatprep.mubr.bf16.mxu0 %v1194
        %2411 = vmatmul.mubr.bf16.gmra.mrb[0].mxu0 %v1193
        %v2412 = vpop.f32.mrb[0].mxu0
        %v2413 = vadd.f32 %v2252, %v2412
        %v2414 = vpop.f32.mrb[0].mxu0
        %v2415 = vpop.f32.mrb[0].mxu0
        %v2416 = vadd.f32 %v2255, %v2415
        %v2417 = vpop.f32.mrb[0].mxu0
        %2418 = vmatprep.mubr.bf16.mxu0 %v1203
        %2419 = vmatmul.mubr.bf16.gmra.mrb[0].mxu0 %v1202
        %v2420 = vpop.f32.mrb[0].mxu0
        %v2421 = vadd.f32 %v2260, %v2420
        %v2422 = vpop.f32.mrb[0].mxu0
        %v2423 = vpop.f32.mrb[0].mxu0
        %v2424 = vadd.f32 %v2263, %v2423
        %v2425 = vpop.f32.mrb[0].mxu0
        %2426 = vmatprep.mubr.bf16.mxu0 %v1212
        %2427 = vmatmul.mubr.bf16.gmra.mrb[0].mxu0 %v1211
        %v2428 = vpop.f32.mrb[0].mxu0
        %v2429 = vadd.f32 %v2268, %v2428
        %v2430 = vpop.f32.mrb[0].mxu0
        %v2431 = vpop.f32.mrb[0].mxu0
        %v2432 = vadd.f32 %v2271, %v2431
        %v2433 = vpop.f32.mrb[0].mxu0
        %2434 = vmatprep.mubr.bf16.mxu0 %v1221
        %2435 = vmatmul.mubr.bf16.gmra.mrb[0].mxu0 %v1220
        %v2436 = vpop.f32.mrb[0].mxu0
        %v2437 = vadd.f32 %v2276, %v2436
        %v2438 = vpop.f32.mrb[0].mxu0
        %v2439 = vpop.f32.mrb[0].mxu0
        %v2440 = vadd.f32 %v2279, %v2439
        %v2441 = vpop.f32.mrb[0].mxu0
        %2442 = vdwg.mxu0
        %2443 = vmatprep.subr.bf16.mxu0 0
        %2444 = vmatpush1.bf16.msra.mxu0 %v1719
        %2445 = vmatprep.subr.bf16.mxu0 0
        %2446 = vmatpush1.bf16.msra.mxu0 %v1720
        %2447 = vmatprep.subr.bf16.mxu0 0
        %2448 = vmatpush1.bf16.msra.mxu0 %v1721
        %2449 = vmatprep.subr.bf16.mxu0 0
        %2450 = vmatpush1.bf16.msra.mxu0 %v1722
        %2451 = vmatprep.subr.bf16.mxu0 0
        %2452 = vmatpush1.bf16.msra.mxu0 %v1723
        %2453 = vmatprep.subr.bf16.mxu0 0
        %2454 = vmatpush1.bf16.msra.mxu0 %v1724
        %2455 = vmatprep.subr.bf16.mxu0 0
        %2456 = vmatpush1.bf16.msra.mxu0 %v1725
        %2457 = vmatprep.subr.bf16.mxu0 0
        %2458 = vmatpush1.bf16.msra.mxu0 %v1726
        %2459 = vmatprep.subr.bf16.mxu0 0
        %2460 = vmatpush1.bf16.msra.mxu0 0
        %2461 = vmatprep.subr.bf16.mxu0 0
        %2462 = vmatpush1.bf16.msra.mxu0 0
        %2463 = vmatprep.subr.bf16.mxu0 0
        %2464 = vmatpush1.bf16.msra.mxu0 0
        %2465 = vmatprep.subr.bf16.mxu0 0
        %2466 = vmatpush1.bf16.msra.mxu0 0
        %2467 = vmatprep.subr.bf16.mxu0 0
        %2468 = vmatpush1.bf16.msra.mxu0 0
        %2469 = vmatprep.subr.bf16.mxu0 0
        %2470 = vmatpush1.bf16.msra.mxu0 0
        %2471 = vmatprep.subr.bf16.mxu0 0
        %2472 = vmatpush1.bf16.msra.mxu0 0
        %2473 = vmatprep.subr.bf16.mxu0 0
        %2474 = vmatpush1.bf16.msra.mxu0 0
        %2475 = vmatprep.mubr.bf16.mxu0 0
        %2476 = vmatmul.mubr.bf16.gmra.mrb[0].mxu0 %v1087
        %v2477 = vpop.f32.mrb[0].mxu0
        %v2478 = vadd.f32 %v2317, %v2477
        %v2479 = vpop.f32.mrb[0].mxu0
        %v2480 = vpop.f32.mrb[0].mxu0
        %v2481 = vadd.f32 %v2320, %v2480
        %v2482 = vpop.f32.mrb[0].mxu0
        %2483 = vmatprep.mubr.bf16.mxu0 0
        %2484 = vmatmul.mubr.bf16.gmra.mrb[0].mxu0 %v1096
        %v2485 = vpop.f32.mrb[0].mxu0
        %v2486 = vadd.f32 %v2325, %v2485
        %v2487 = vpop.f32.mrb[0].mxu0
        %v2488 = vpop.f32.mrb[0].mxu0
        %v2489 = vadd.f32 %v2328, %v2488
        %v2490 = vpop.f32.mrb[0].mxu0
        %2491 = vmatprep.mubr.bf16.mxu0 0
        %2492 = vmatmul.mubr.bf16.gmra.mrb[0].mxu0 %v1105
        %v2493 = vpop.f32.mrb[0].mxu0
        %v2494 = vadd.f32 %v2333, %v2493
        %v2495 = vpop.f32.mrb[0].mxu0
        %v2496 = vpop.f32.mrb[0].mxu0
        %v2497 = vadd.f32 %v2336, %v2496
        %v2498 = vpop.f32.mrb[0].mxu0
        %2499 = vmatprep.mubr.bf16.mxu0 0
        %2500 = vmatmul.mubr.bf16.gmra.mrb[0].mxu0 %v1114
        %v2501 = vpop.f32.mrb[0].mxu0
        %v2502 = vadd.f32 %v2341, %v2501
        %v2503 = vpop.f32.mrb[0].mxu0
        %v2504 = vpop.f32.mrb[0].mxu0
        %v2505 = vadd.f32 %v2344, %v2504
        %v2506 = vpop.f32.mrb[0].mxu0
        %2507 = vmatprep.mubr.bf16.mxu0 0
        %2508 = vmatmul.mubr.bf16.gmra.mrb[0].mxu0 %v1123
        %v2509 = vpop.f32.mrb[0].mxu0
        %v2510 = vadd.f32 %v2349, %v2509
        %v2511 = vpop.f32.mrb[0].mxu0
        %v2512 = vpop.f32.mrb[0].mxu0
        %v2513 = vadd.f32 %v2352, %v2512
        %v2514 = vpop.f32.mrb[0].mxu0
        %2515 = vmatprep.mubr.bf16.mxu0 0
        %2516 = vmatmul.mubr.bf16.gmra.mrb[0].mxu0 %v1132
        %v2517 = vpop.f32.mrb[0].mxu0
        %v2518 = vadd.f32 %v2357, %v2517
        %v2519 = vpop.f32.mrb[0].mxu0
        %v2520 = vpop.f32.mrb[0].mxu0
        %v2521 = vadd.f32 %v2360, %v2520
        %v2522 = vpop.f32.mrb[0].mxu0
        %2523 = vmatprep.mubr.bf16.mxu0 0
        %2524 = vmatmul.mubr.bf16.gmra.mrb[0].mxu0 %v1141
        %v2525 = vpop.f32.mrb[0].mxu0
        %v2526 = vadd.f32 %v2365, %v2525
        %v2527 = vpop.f32.mrb[0].mxu0
        %v2528 = vpop.f32.mrb[0].mxu0
        %v2529 = vadd.f32 %v2368, %v2528
        %v2530 = vpop.f32.mrb[0].mxu0
        %2531 = vmatprep.mubr.bf16.mxu0 0
        %2532 = vmatmul.mubr.bf16.gmra.mrb[0].mxu0 %v1150
        %v2533 = vpop.f32.mrb[0].mxu0
        %v2534 = vadd.f32 %v2373, %v2533
        %v2535 = vpop.f32.mrb[0].mxu0
        %v2536 = vpop.f32.mrb[0].mxu0
        %v2537 = vadd.f32 %v2376, %v2536
        %v2538 = vpop.f32.mrb[0].mxu0
        %2539 = vmatprep.mubr.bf16.mxu0 0
        %2540 = vmatmul.mubr.bf16.gmra.mrb[0].mxu0 %v1159
        %v2541 = vpop.f32.mrb[0].mxu0
        %v2542 = vadd.f32 %v2381, %v2541
        %v2543 = vpop.f32.mrb[0].mxu0
        %v2544 = vpop.f32.mrb[0].mxu0
        %v2545 = vadd.f32 %v2384, %v2544
        %v2546 = vpop.f32.mrb[0].mxu0
        %2547 = vmatprep.mubr.bf16.mxu0 0
        %2548 = vmatmul.mubr.bf16.gmra.mrb[0].mxu0 %v1168
        %v2549 = vpop.f32.mrb[0].mxu0
        %v2550 = vadd.f32 %v2389, %v2549
        %v2551 = vpop.f32.mrb[0].mxu0
        %v2552 = vpop.f32.mrb[0].mxu0
        %v2553 = vadd.f32 %v2392, %v2552
        %v2554 = vpop.f32.mrb[0].mxu0
        %2555 = vmatprep.mubr.bf16.mxu0 0
        %2556 = vmatmul.mubr.bf16.gmra.mrb[0].mxu0 %v1177
        %v2557 = vpop.f32.mrb[0].mxu0
        %v2558 = vadd.f32 %v2397, %v2557
        %v2559 = vpop.f32.mrb[0].mxu0
        %v2560 = vpop.f32.mrb[0].mxu0
        %v2561 = vadd.f32 %v2400, %v2560
        %v2562 = vpop.f32.mrb[0].mxu0
        %2563 = vmatprep.mubr.bf16.mxu0 0
        %2564 = vmatmul.mubr.bf16.gmra.mrb[0].mxu0 %v1186
        %v2565 = vpop.f32.mrb[0].mxu0
        %v2566 = vadd.f32 %v2405, %v2565
        %v2567 = vpop.f32.mrb[0].mxu0
        %v2568 = vpop.f32.mrb[0].mxu0
        %v2569 = vadd.f32 %v2408, %v2568
        %v2570 = vpop.f32.mrb[0].mxu0
        %2571 = vmatprep.mubr.bf16.mxu0 0
        %2572 = vmatmul.mubr.bf16.gmra.mrb[0].mxu0 %v1195
        %v2573 = vpop.f32.mrb[0].mxu0
        %v2574 = vadd.f32 %v2413, %v2573
        %v2575 = vpop.f32.mrb[0].mxu0
        %v2576 = vpop.f32.mrb[0].mxu0
        %v2577 = vadd.f32 %v2416, %v2576
        %v2578 = vpop.f32.mrb[0].mxu0
        %2579 = vmatprep.mubr.bf16.mxu0 0
        %2580 = vmatmul.mubr.bf16.gmra.mrb[0].mxu0 %v1204
        %v2581 = vpop.f32.mrb[0].mxu0
        %v2582 = vadd.f32 %v2421, %v2581
        %v2583 = vpop.f32.mrb[0].mxu0
        %v2584 = vpop.f32.mrb[0].mxu0
        %v2585 = vadd.f32 %v2424, %v2584
        %v2586 = vpop.f32.mrb[0].mxu0
        %2587 = vmatprep.mubr.bf16.mxu0 0
        %2588 = vmatmul.mubr.bf16.gmra.mrb[0].mxu0 %v1213
        %v2589 = vpop.f32.mrb[0].mxu0
        %v2590 = vadd.f32 %v2429, %v2589
        %v2591 = vpop.f32.mrb[0].mxu0
        %v2592 = vpop.f32.mrb[0].mxu0
        %v2593 = vadd.f32 %v2432, %v2592
        %v2594 = vpop.f32.mrb[0].mxu0
        %2595 = vmatprep.mubr.bf16.mxu0 0
        %2596 = vmatmul.mubr.bf16.gmra.mrb[0].mxu0 %v1222
        %v2597 = vpop.f32.mrb[0].mxu0
        %v2598 = vadd.f32 %v2437, %v2597
        %v2599 = vpop.f32.mrb[0].mxu0
        %v2600 = vpop.f32.mrb[0].mxu0
        %v2601 = vadd.f32 %v2440, %v2600
        %v2602 = vpop.f32.mrb[0].mxu0
        %2603 = vdwg.mxu0
        %v2604 = vadd.f32 %v295, %v2478
        %v2605 = vadd.f32 %v296, %v2481
        %v2606 = vadd.f32 %v297, %v2486
        %v2607 = vadd.f32 %v298, %v2489
        %v2608 = vadd.f32 %v299, %v2494
        %v2609 = vadd.f32 %v300, %v2497
        %v2610 = vadd.f32 %v301, %v2502
        %v2611 = vadd.f32 %v302, %v2505
        %v2612 = vadd.f32 %v303, %v2510
        %v2613 = vadd.f32 %v304, %v2513
        %v2614 = vadd.f32 %v305, %v2518
        %v2615 = vadd.f32 %v306, %v2521
        %v2616 = vadd.f32 %v307, %v2526
        %v2617 = vadd.f32 %v308, %v2529
        %v2618 = vadd.f32 %v309, %v2534
        %v2619 = vadd.f32 %v310, %v2537
        %v2620 = vadd.f32 %v311, %v2542
        %v2621 = vadd.f32 %v312, %v2545
        %v2622 = vadd.f32 %v313, %v2550
        %v2623 = vadd.f32 %v314, %v2553
        %v2624 = vadd.f32 %v315, %v2558
        %v2625 = vadd.f32 %v316, %v2561
        %v2626 = vadd.f32 %v317, %v2566
        %v2627 = vadd.f32 %v318, %v2569
        %v2628 = vadd.f32 %v319, %v2574
        %v2629 = vadd.f32 %v320, %v2577
        %v2630 = vadd.f32 %v321, %v2582
        %v2631 = vadd.f32 %v322, %v2585
        %v2632 = vadd.f32 %v323, %v2590
        %v2633 = vadd.f32 %v324, %v2593
        %v2634 = vadd.f32 %v325, %v2598
        %v2635 = vadd.f32 %v326, %v2601
        %2636 = vst [vmem:[#allocation2] sm:$0xff] %v2604
        %2637 = vst [vmem:[#allocation2 + $0x8] sm:$0xff] %v2605
        %2638 = vst [vmem:[#allocation2 + $0x10] sm:$0xff] %v2606
        %2639 = vst [vmem:[#allocation2 + $0x18] sm:$0xff] %v2607
        %2640 = vst [vmem:[#allocation2 + $0x20] sm:$0xff] %v2608
        %2641 = vst [vmem:[#allocation2 + $0x28] sm:$0xff] %v2609
        %2642 = vst [vmem:[#allocation2 + $0x30] sm:$0xff] %v2610
        %2643 = vst [vmem:[#allocation2 + $0x38] sm:$0xff] %v2611
        %2644 = vst [vmem:[#allocation2 + $0x40] sm:$0xff] %v2612
        %2645 = vst [vmem:[#allocation2 + $0x48] sm:$0xff] %v2613
        %2646 = vst [vmem:[#allocation2 + $0x50] sm:$0xff] %v2614
        %2647 = vst [vmem:[#allocation2 + $0x58] sm:$0xff] %v2615
        %2648 = vst [vmem:[#allocation2 + $0x60] sm:$0xff] %v2616
        %2649 = vst [vmem:[#allocation2 + $0x68] sm:$0xff] %v2617
        %2650 = vst [vmem:[#allocation2 + $0x70] sm:$0xff] %v2618
        %2651 = vst [vmem:[#allocation2 + $0x78] sm:$0xff] %v2619
        %2652 = vst [vmem:[#allocation2 + $0x80] sm:$0xff] %v2620
        %2653 = vst [vmem:[#allocation2 + $0x88] sm:$0xff] %v2621
        %2654 = vst [vmem:[#allocation2 + $0x90] sm:$0xff] %v2622
        %2655 = vst [vmem:[#allocation2 + $0x98] sm:$0xff] %v2623
        %2656 = vst [vmem:[#allocation2 + $0xa0] sm:$0xff] %v2624
        %2657 = vst [vmem:[#allocation2 + $0xa8] sm:$0xff] %v2625
        %2658 = vst [vmem:[#allocation2 + $0xb0] sm:$0xff] %v2626
        %2659 = vst [vmem:[#allocation2 + $0xb8] sm:$0xff] %v2627
        %2660 = vst [vmem:[#allocation2 + $0xc0] sm:$0xff] %v2628
        %2661 = vst [vmem:[#allocation2 + $0xc8] sm:$0xff] %v2629
        %2662 = vst [vmem:[#allocation2 + $0xd0] sm:$0xff] %v2630
        %2663 = vst [vmem:[#allocation2 + $0xd8] sm:$0xff] %v2631
        %2664 = vst [vmem:[#allocation2 + $0xe0] sm:$0xff] %v2632
        %2665 = vst [vmem:[#allocation2 + $0xe8] sm:$0xff] %v2633
        %2666 = vst [vmem:[#allocation2 + $0xf0] sm:$0xff] %v2634
        %2667 = vst [vmem:[#allocation2 + $0xf8] sm:$0xff] %v2635
        // Predicated region
        $region41: #{bottleneck_forward.12} parent=27 // pred_check
          %p2668 = pneg %p259
        $region42: #{bottleneck_forward.12} parent=27 // pred_check_branch
          %2670 = sbr.rel (%p2668) target = $region44
        $region43: #{bottleneck_forward.12} parent=27 // pred_region
          %v2671 = vld [vmem:[#allocation2] sm:$0xff]
          %v2672 = vld [vmem:[#allocation2 + $0x8] sm:$0xff]
          %v2673 = vld [vmem:[#allocation2 + $0x10] sm:$0xff]
          %v2674 = vld [vmem:[#allocation2 + $0x18] sm:$0xff]
          %v2675 = vld [vmem:[#allocation2 + $0x20] sm:$0xff]
          %v2676 = vld [vmem:[#allocation2 + $0x28] sm:$0xff]
          %v2677 = vld [vmem:[#allocation2 + $0x30] sm:$0xff]
          %v2678 = vld [vmem:[#allocation2 + $0x38] sm:$0xff]
          %v2679 = vld [vmem:[#allocation2 + $0x40] sm:$0xff]
          %v2680 = vld [vmem:[#allocation2 + $0x48] sm:$0xff]
          %v2681 = vld [vmem:[#allocation2 + $0x50] sm:$0xff]
          %v2682 = vld [vmem:[#allocation2 + $0x58] sm:$0xff]
          %v2683 = vld [vmem:[#allocation2 + $0x60] sm:$0xff]
          %v2684 = vld [vmem:[#allocation2 + $0x68] sm:$0xff]
          %v2685 = vld [vmem:[#allocation2 + $0x70] sm:$0xff]
          %v2686 = vld [vmem:[#allocation2 + $0x78] sm:$0xff]
          %v2687 = vld [vmem:[#allocation2 + $0x80] sm:$0xff]
          %v2688 = vld [vmem:[#allocation2 + $0x88] sm:$0xff]
          %v2689 = vld [vmem:[#allocation2 + $0x90] sm:$0xff]
          %v2690 = vld [vmem:[#allocation2 + $0x98] sm:$0xff]
          %v2691 = vld [vmem:[#allocation2 + $0xa0] sm:$0xff]
          %v2692 = vld [vmem:[#allocation2 + $0xa8] sm:$0xff]
          %v2693 = vld [vmem:[#allocation2 + $0xb0] sm:$0xff]
          %v2694 = vld [vmem:[#allocation2 + $0xb8] sm:$0xff]
          %v2695 = vld [vmem:[#allocation2 + $0xc0] sm:$0xff]
          %v2696 = vld [vmem:[#allocation2 + $0xc8] sm:$0xff]
          %v2697 = vld [vmem:[#allocation2 + $0xd0] sm:$0xff]
          %v2698 = vld [vmem:[#allocation2 + $0xd8] sm:$0xff]
          %v2699 = vld [vmem:[#allocation2 + $0xe0] sm:$0xff]
          %v2700 = vld [vmem:[#allocation2 + $0xe8] sm:$0xff]
          %v2701 = vld [vmem:[#allocation2 + $0xf0] sm:$0xff]
          %v2702 = vld [vmem:[#allocation2 + $0xf8] sm:$0xff]
          %v2703 = vpack.c.bf16 %v2672, %v2671
          %v2704 = vpack.c.bf16 %v2674, %v2673
          %v2705 = vpack.c.bf16 %v2676, %v2675
          %v2706 = vpack.c.bf16 %v2678, %v2677
          %v2707 = vpack.c.bf16 %v2680, %v2679
          %v2708 = vpack.c.bf16 %v2682, %v2681
          %v2709 = vpack.c.bf16 %v2684, %v2683
          %v2710 = vpack.c.bf16 %v2686, %v2685
          %v2711 = vpack.c.bf16 %v2688, %v2687
          %v2712 = vpack.c.bf16 %v2690, %v2689
          %v2713 = vpack.c.bf16 %v2692, %v2691
          %v2714 = vpack.c.bf16 %v2694, %v2693
          %v2715 = vpack.c.bf16 %v2696, %v2695
          %v2716 = vpack.c.bf16 %v2698, %v2697
          %v2717 = vpack.c.bf16 %v2700, %v2699
          %v2718 = vpack.c.bf16 %v2702, %v2701
          %v2735 = vunpack.c.l.b16 %v2703
          %v2736 = vunpack.c.h.b16 %v2703
          %v2737 = vunpack.c.l.b16 %v2704
          %v2738 = vunpack.c.h.b16 %v2704
          %v2739 = vunpack.c.l.b16 %v2705
          %v2740 = vunpack.c.h.b16 %v2705
          %v2741 = vunpack.c.l.b16 %v2706
          %v2742 = vunpack.c.h.b16 %v2706
          %v2743 = vunpack.c.l.b16 %v2707
          %v2744 = vunpack.c.h.b16 %v2707
          %v2745 = vunpack.c.l.b16 %v2708
          %v2746 = vunpack.c.h.b16 %v2708
          %v2747 = vunpack.c.l.b16 %v2709
          %v2748 = vunpack.c.h.b16 %v2709
          %v2749 = vunpack.c.l.b16 %v2710
          %v2750 = vunpack.c.h.b16 %v2710
          %v2751 = vunpack.c.l.b16 %v2711
          %v2752 = vunpack.c.h.b16 %v2711
          %v2753 = vunpack.c.l.b16 %v2712
          %v2754 = vunpack.c.h.b16 %v2712
          %v2755 = vunpack.c.l.b16 %v2713
          %v2756 = vunpack.c.h.b16 %v2713
          %v2757 = vunpack.c.l.b16 %v2714
          %v2758 = vunpack.c.h.b16 %v2714
          %v2759 = vunpack.c.l.b16 %v2715
          %v2760 = vunpack.c.h.b16 %v2715
          %v2761 = vunpack.c.l.b16 %v2716
          %v2762 = vunpack.c.h.b16 %v2716
          %v2763 = vunpack.c.l.b16 %v2717
          %v2764 = vunpack.c.h.b16 %v2717
          %v2765 = vunpack.c.l.b16 %v2718
          %v2766 = vunpack.c.h.b16 %v2718
          %v2767 = vpack.c.b16 %v2735, %v2735
          %v2768 = vpack.c.b16 %v2736, %v2736
          %v2769 = vpack.c.b16 %v2737, %v2737
          %v2770 = vpack.c.b16 %v2738, %v2738
          %v2771 = vpack.c.b16 %v2739, %v2739
          %v2772 = vpack.c.b16 %v2740, %v2740
          %v2773 = vpack.c.b16 %v2741, %v2741
          %v2774 = vpack.c.b16 %v2742, %v2742
          %v2775 = vpack.c.b16 %v2743, %v2743
          %v2776 = vpack.c.b16 %v2744, %v2744
          %v2777 = vpack.c.b16 %v2745, %v2745
          %v2778 = vpack.c.b16 %v2746, %v2746
          %v2779 = vpack.c.b16 %v2747, %v2747
          %v2780 = vpack.c.b16 %v2748, %v2748
          %v2781 = vpack.c.b16 %v2749, %v2749
          %v2782 = vpack.c.b16 %v2750, %v2750
          %v2783 = vpack.c.b16 %v2751, %v2751
          %v2784 = vpack.c.b16 %v2752, %v2752
          %v2785 = vpack.c.b16 %v2753, %v2753
          %v2786 = vpack.c.b16 %v2754, %v2754
          %v2787 = vpack.c.b16 %v2755, %v2755
          %v2788 = vpack.c.b16 %v2756, %v2756
          %v2789 = vpack.c.b16 %v2757, %v2757
          %v2790 = vpack.c.b16 %v2758, %v2758
          %v2791 = vpack.c.b16 %v2759, %v2759
          %v2792 = vpack.c.b16 %v2760, %v2760
          %v2793 = vpack.c.b16 %v2761, %v2761
          %v2794 = vpack.c.b16 %v2762, %v2762
          %v2795 = vpack.c.b16 %v2763, %v2763
          %v2796 = vpack.c.b16 %v2764, %v2764
          %v2797 = vpack.c.b16 %v2765, %v2765
          %v2798 = vpack.c.b16 %v2766, %v2766
          %2831 = vst [vmem:[%s246] sm:$0xf] %v2767
          %2832 = vst [vmem:[%s246 + $0x4] sm:$0xf] %v2768
          %2833 = vst [vmem:[%s246 + $0x8] sm:$0xf] %v2769
          %2834 = vst [vmem:[%s246 + $0xc] sm:$0xf] %v2770
          %2835 = vst [vmem:[%s246 + $0x10] sm:$0xf] %v2771
          %2836 = vst [vmem:[%s246 + $0x14] sm:$0xf] %v2772
          %2837 = vst [vmem:[%s246 + $0x18] sm:$0xf] %v2773
          %2838 = vst [vmem:[%s246 + $0x1c] sm:$0xf] %v2774
          %2839 = vst [vmem:[%s246 + $0x20] sm:$0xf] %v2775
          %2840 = vst [vmem:[%s246 + $0x24] sm:$0xf] %v2776
          %2841 = vst [vmem:[%s246 + $0x28] sm:$0xf] %v2777
          %2842 = vst [vmem:[%s246 + $0x2c] sm:$0xf] %v2778
          %2843 = vst [vmem:[%s246 + $0x30] sm:$0xf] %v2779
          %2844 = vst [vmem:[%s246 + $0x34] sm:$0xf] %v2780
          %2845 = vst [vmem:[%s246 + $0x38] sm:$0xf] %v2781
          %2846 = vst [vmem:[%s246 + $0x3c] sm:$0xf] %v2782
          %2847 = vst [vmem:[%s246 + $0x40] sm:$0xf] %v2783
          %2848 = vst [vmem:[%s246 + $0x44] sm:$0xf] %v2784
          %2849 = vst [vmem:[%s246 + $0x48] sm:$0xf] %v2785
          %2850 = vst [vmem:[%s246 + $0x4c] sm:$0xf] %v2786
          %2851 = vst [vmem:[%s246 + $0x50] sm:$0xf] %v2787
          %2852 = vst [vmem:[%s246 + $0x54] sm:$0xf] %v2788
          %2853 = vst [vmem:[%s246 + $0x58] sm:$0xf] %v2789
          %2854 = vst [vmem:[%s246 + $0x5c] sm:$0xf] %v2790
          %2855 = vst [vmem:[%s246 + $0x60] sm:$0xf] %v2791
          %2856 = vst [vmem:[%s246 + $0x64] sm:$0xf] %v2792
          %2857 = vst [vmem:[%s246 + $0x68] sm:$0xf] %v2793
          %2858 = vst [vmem:[%s246 + $0x6c] sm:$0xf] %v2794
          %2859 = vst [vmem:[%s246 + $0x70] sm:$0xf] %v2795
          %2860 = vst [vmem:[%s246 + $0x74] sm:$0xf] %v2796
          %2861 = vst [vmem:[%s246 + $0x78] sm:$0xf] %v2797
          %2862 = vst [vmem:[%s246 + $0x7c] sm:$0xf] %v2798
          %v2863 = vadd.f32 %v2671, %v2672
          %v2864 = vadd.f32 %v2863, %v2673
          %v2865 = vadd.f32 %v2864, %v2674
          %v2866 = vadd.f32 %v2865, %v2675
          %v2867 = vadd.f32 %v2866, %v2676
          %v2868 = vadd.f32 %v2867, %v2677
          %v2869 = vadd.f32 %v2868, %v2678
          %v2870 = vadd.f32 %v2869, %v2679
          %v2871 = vadd.f32 %v2870, %v2680
          %v2872 = vadd.f32 %v2871, %v2681
          %v2873 = vadd.f32 %v2872, %v2682
          %v2874 = vadd.f32 %v2873, %v2683
          %v2875 = vadd.f32 %v2874, %v2684
          %v2876 = vadd.f32 %v2875, %v2685
          %v2877 = vadd.f32 %v2876, %v2686
          %v2878 = vadd.f32 %v2877, %v2687
          %v2879 = vadd.f32 %v2878, %v2688
          %v2880 = vadd.f32 %v2879, %v2689
          %v2881 = vadd.f32 %v2880, %v2690
          %v2882 = vadd.f32 %v2881, %v2691
          %v2883 = vadd.f32 %v2882, %v2692
          %v2884 = vadd.f32 %v2883, %v2693
          %v2885 = vadd.f32 %v2884, %v2694
          %v2886 = vadd.f32 %v2885, %v2695
          %v2887 = vadd.f32 %v2886, %v2696
          %v2888 = vadd.f32 %v2887, %v2697
          %v2889 = vadd.f32 %v2888, %v2698
          %v2890 = vadd.f32 %v2889, %v2699
          %v2891 = vadd.f32 %v2890, %v2700
          %v2892 = vadd.f32 %v2891, %v2701
          %v2893 = vadd.f32 %v2892, %v2702
          %v2894 = vrot.slane %v2893, 4
          %v2895 = vadd.f32 %v2893, %v2894
          %v2896 = vrot.slane %v2895, 2
          %v2897 = vadd.f32 %v2895, %v2896
          %v2898 = vrot.slane %v2897, 1
          %v2899 = vadd.f32 %v2897, %v2898
          %2900 = vst [vmem:[%s253] sm:$0x1] %v2899
          %v2901 = vmul.f32 %v2671, %v2671
          %v2902 = vmul.f32 %v2672, %v2672
          %v2903 = vmul.f32 %v2673, %v2673
          %v2904 = vmul.f32 %v2674, %v2674
          %v2905 = vmul.f32 %v2675, %v2675
          %v2906 = vmul.f32 %v2676, %v2676
          %v2907 = vmul.f32 %v2677, %v2677
          %v2908 = vmul.f32 %v2678, %v2678
          %v2909 = vmul.f32 %v2679, %v2679
          %v2910 = vmul.f32 %v2680, %v2680
          %v2911 = vmul.f32 %v2681, %v2681
          %v2912 = vmul.f32 %v2682, %v2682
          %v2913 = vmul.f32 %v2683, %v2683
          %v2914 = vmul.f32 %v2684, %v2684
          %v2915 = vmul.f32 %v2685, %v2685
          %v2916 = vmul.f32 %v2686, %v2686
          %v2917 = vmul.f32 %v2687, %v2687
          %v2918 = vmul.f32 %v2688, %v2688
          %v2919 = vmul.f32 %v2689, %v2689
          %v2920 = vmul.f32 %v2690, %v2690
          %v2921 = vmul.f32 %v2691, %v2691
          %v2922 = vmul.f32 %v2692, %v2692
          %v2923 = vmul.f32 %v2693, %v2693
          %v2924 = vmul.f32 %v2694, %v2694
          %v2925 = vmul.f32 %v2695, %v2695
          %v2926 = vmul.f32 %v2696, %v2696
          %v2927 = vmul.f32 %v2697, %v2697
          %v2928 = vmul.f32 %v2698, %v2698
          %v2929 = vmul.f32 %v2699, %v2699
          %v2930 = vmul.f32 %v2700, %v2700
          %v2931 = vmul.f32 %v2701, %v2701
          %v2932 = vmul.f32 %v2702, %v2702
          %v2933 = vadd.f32 %v2901, %v2902
          %v2934 = vadd.f32 %v2933, %v2903
          %v2935 = vadd.f32 %v2934, %v2904
          %v2936 = vadd.f32 %v2935, %v2905
          %v2937 = vadd.f32 %v2936, %v2906
          %v2938 = vadd.f32 %v2937, %v2907
          %v2939 = vadd.f32 %v2938, %v2908
          %v2940 = vadd.f32 %v2939, %v2909
          %v2941 = vadd.f32 %v2940, %v2910
          %v2942 = vadd.f32 %v2941, %v2911
          %v2943 = vadd.f32 %v2942, %v2912
          %v2944 = vadd.f32 %v2943, %v2913
          %v2945 = vadd.f32 %v2944, %v2914
          %v2946 = vadd.f32 %v2945, %v2915
          %v2947 = vadd.f32 %v2946, %v2916
          %v2948 = vadd.f32 %v2947, %v2917
          %v2949 = vadd.f32 %v2948, %v2918
          %v2950 = vadd.f32 %v2949, %v2919
          %v2951 = vadd.f32 %v2950, %v2920
          %v2952 = vadd.f32 %v2951, %v2921
          %v2953 = vadd.f32 %v2952, %v2922
          %v2954 = vadd.f32 %v2953, %v2923
          %v2955 = vadd.f32 %v2954, %v2924
          %v2956 = vadd.f32 %v2955, %v2925
          %v2957 = vadd.f32 %v2956, %v2926
          %v2958 = vadd.f32 %v2957, %v2927
          %v2959 = vadd.f32 %v2958, %v2928
          %v2960 = vadd.f32 %v2959, %v2929
          %v2961 = vadd.f32 %v2960, %v2930
          %v2962 = vadd.f32 %v2961, %v2931
          %v2963 = vadd.f32 %v2962, %v2932
          %v2964 = vrot.slane %v2963, 4
          %v2965 = vadd.f32 %v2963, %v2964
          %v2966 = vrot.slane %v2965, 2
          %v2967 = vadd.f32 %v2965, %v2966
          %v2968 = vrot.slane %v2967, 1
          %v2969 = vadd.f32 %v2967, %v2968
          %2970 = vst [vmem:[%s253 + $0x1] sm:$0x1] %v2969
        $region44: #{bottleneck_forward.12} parent=27 // pred_fallthru
          _
        %s2971 = sand.u32 %s110, 1
        %s2972 = scalar_lea.sflag [#allocation5], %s2971
        %s2973 = sand.u32 %s110, 1
        %s2974 = smul.addr %s2973, 128
        %s2975 = scalar_lea.vmem [#allocation8], %s2974
        %s2976 = sand.u32 %s138, 1
        %s2977 = scalar_lea.sflag [#allocation10], %s2976
        %s2978 = sand.u32 %s138, 1
        %s2979 = smul.addr %s2978, 8
        %s2980 = scalar_lea.vmem [#allocation9], %s2979
        // Predicated region
        $region45: #{bottleneck_forward.12} parent=27 // pred_check
          %p2981 = pneg %p120
        $region46: #{bottleneck_forward.12} parent=27 // pred_check_branch
          %2983 = sbr.rel (%p2981) target = $region48
        $region47: #{bottleneck_forward.12} parent=27 // pred_region
          %s2984 = smul.u32 32, %s30
          %s2986 = ssub.s32 2048, 2048
          %2987 = vsyncadd %s2972, %s2986
          %s2988 = sadd.s32 %s31, %s2984
          %s2989 = smul.addr %s2988, 64
          %s2990 = scalar_lea.hbm %s2, %s2989
          %s2991 = sshll.u32 %s2975, 4
          %s2992 = int_to_ptr.vmem [resolvable:$true] %s2991
          %2997 = dma.vmem_to_hbm [thread:$0]  %s2992, 2048, %s2990, %s2972, 64, 64, 4
        $region48: #{bottleneck_forward.12} parent=27 // pred_fallthru
          _
        // Predicated region
        $region49: #{bottleneck_forward.12} parent=27 // pred_check
          %p2998 = pneg %p148
        $region50: #{bottleneck_forward.12} parent=27 // pred_check_branch
          %3000 = sbr.rel (%p2998) target = $region52
        $region51: #{bottleneck_forward.12} parent=27 // pred_region
          %s3002 = ssub.s32 128, 128
          %3003 = vsyncadd %s2977, %s3002
          %s3004 = sadd.s32 %s31, %s30
          %s3005 = smul.addr %s3004, 128
          %s3006 = scalar_lea.hbm %s3, %s3005
          %s3008 = sshll.u32 %s2980, 4
          %s3009 = int_to_ptr.vmem [resolvable:$true] %s3008
          %3011 = dma.vmem_to_hbm [thread:$0]  %s3009, 128, %s3006, %s2977
        $region52: #{bottleneck_forward.12} parent=27 // pred_fallthru
          _
      $region28: #{bottleneck_forward.12} parent=5 // pred_fallthru
        _
      %p3012 = scmp.le.s32.totalorder 2, %s20
      // Predicated region
      $region53: #{bottleneck_forward.12} parent=5 // pred_check
        %p3013 = pneg %p3012
      $region54: #{bottleneck_forward.12} parent=5 // pred_check_branch
        %3015 = sbr.rel (%p3013) target = $region56
      $region55: #{bottleneck_forward.12} parent=5 // pred_region
        %s3016 = ssub.s32 %s20, 2
        // Predicated region
        $region57: #{bottleneck_forward.12} parent=55 // pred_check
          %p3017 = pneg %p126
        $region58: #{bottleneck_forward.12} parent=55 // pred_check_branch
          %3019 = sbr.rel (%p3017) target = $region60
        $region59: #{bottleneck_forward.12} parent=55 // pred_region
          %s3020 = sand.u32 %s111, 1
          %s3021 = scalar_lea.sflag [#allocation5], %s3020
          %s3022 = sand.u32 %s111, 1
          %s3023 = smul.addr %s3022, 128
          %s3024 = scalar_lea.vmem [#allocation8], %s3023
          %3025 = dma.done %s3021, 2048
        $region60: #{bottleneck_forward.12} parent=55 // pred_fallthru
          _
        // Predicated region
        $region61: #{bottleneck_forward.12} parent=55 // pred_check
          %p3026 = pneg %p154
        $region62: #{bottleneck_forward.12} parent=55 // pred_check_branch
          %3028 = sbr.rel (%p3026) target = $region64
        $region63: #{bottleneck_forward.12} parent=55 // pred_region
          %s3029 = sand.u32 %s139, 1
          %s3030 = scalar_lea.sflag [#allocation10], %s3029
          %s3031 = sand.u32 %s139, 1
          %s3032 = smul.addr %s3031, 8
          %s3033 = scalar_lea.vmem [#allocation9], %s3032
          %3034 = dma.done %s3030, 128
        $region64: #{bottleneck_forward.12} parent=55 // pred_fallthru
          _
      $region56: #{bottleneck_forward.12} parent=5 // pred_fallthru
        _
    $region6: #{bottleneck_forward.12} parent=1 // loop_footer
      %s24 = sadd.s32 1, %s20
    $region7: #{bottleneck_forward.12} parent=1 // loop_footer_branch
      %19 = sbr.rel target = $region3
    $region8: #{bottleneck_forward.12} parent=1 // loop_exit
      _
    %3035 = vsyncpa [#allocation4], 1
    %s3036 = scalar_lea.sflag [#allocation4], 1
    %3037 = vsyncpa %s3036, 1
    %3038 = vsyncpa [#allocation7], 1
    %3039 = vsyncpa [#allocation5], 1
    %s3040 = scalar_lea.sflag [#allocation5], 1
    %3041 = vsyncpa %s3040, 1
    %3042 = vsyncpa [#allocation10], 1
    %s3043 = scalar_lea.sflag [#allocation10], 1
    %3044 = vsyncpa %s3043, 1

// kernel: bottleneck_forward.9
$region0: #{bottleneck_forward.9}
  #allocation0 [shape = 'u32[]', space=smem, size = 0x4, offset = 0x4, fixed_abs, tag = 'smem constant byte address 0x4 - core index']
  #allocation1 [shape = 'u32[144,128]{1,0:T(1,128)}', space=vmem, size = 0x12000, scoped, tag = 'internal scratch']
  %s0 = inlined_call_operand.hbm [shape: bf16[512,256], index: 0, kind: input, shape index: {}]
  %s1 = inlined_call_operand.hbm [shape: f32[1,256], index: 1, kind: input, shape index: {}]
  %s2 = inlined_call_operand.hbm [shape: f32[1,256], index: 2, kind: input, shape index: {}]
  %s3 = inlined_call_operand.hbm [shape: bf16[512,256], index: 3, kind: output, shape index: {}]
  %s4 = sld [smem:[#allocation0]]
  $region34: #{bottleneck_forward.9} parent=0
    _
  %s6 = ssub.s32 1, %s4
  %s7 = scalar_select 0, %s6, %s4
  $region1: #{bottleneck_forward.9} parent=0
    #allocation2 [shape = 'u8[262144]{0}', space=vmem, size = 0x40000, scoped, tag = 'input window, operand 0, single buffered']
    #allocation3 [shape = 's32[1]{0}', space=sflag, size = 0x4, scoped, tag = 'scoped memory for bottleneck_forward.9']
    #allocation4 [shape = 's32[1]{0}', space=sflag, size = 0x4, scoped, tag = 'scoped memory for bottleneck_forward.9']
    #allocation5 [shape = 'u8[1024]{0}', space=vmem, size = 0x400, scoped, tag = 'input window, operand 1, single buffered']
    #allocation6 [shape = 's32[1]{0}', space=sflag, size = 0x4, scoped, tag = 'scoped memory for bottleneck_forward.9']
    #allocation7 [shape = 'u8[1024]{0}', space=vmem, size = 0x400, scoped, tag = 'input window, operand 2, single buffered']
    #allocation8 [shape = 'u8[262144]{0}', space=vmem, size = 0x40000, scoped, tag = 'output window, operand 0, single buffered']
    %8 = vsyncpa [#allocation3], 0
    %9 = vsyncpa [#allocation6], 0
    %10 = vsyncpa [#allocation4], 0
    // Predicated region
    $region2: #{bottleneck_forward.9} parent=1 // pred_check
      _
    $region3: #{bottleneck_forward.9} parent=1 // pred_check_branch
      %12 = sbr.rel (0) target = $region5
    $region4: #{bottleneck_forward.9} parent=1 // pred_region
      %s14 = ssub.s32 8192, 8192
      %15 = vsyncadd [#allocation3], %s14
      %s16 = sshll.u32 [#allocation2], 4
      %s17 = int_to_ptr.vmem [resolvable:$true] %s16
      %22 = dma.hbm_to_vmem [thread:$0]  %s0, 8192, %s17, [#allocation3], 128, 128, 8
    $region5: #{bottleneck_forward.9} parent=1 // pred_fallthru
      _
    // Predicated region
    $region6: #{bottleneck_forward.9} parent=1 // pred_check
      _
    $region7: #{bottleneck_forward.9} parent=1 // pred_check_branch
      %24 = sbr.rel (0) target = $region9
    $region8: #{bottleneck_forward.9} parent=1 // pred_region
      %s26 = ssub.s32 32, 32
      %27 = vsyncadd [#allocation6], %s26
      %s29 = sshll.u32 [#allocation5], 4
      %s30 = int_to_ptr.vmem [resolvable:$true] %s29
      %32 = dma.hbm_to_vmem [thread:$0]  %s1, 32, %s30, [#allocation6]
    $region9: #{bottleneck_forward.9} parent=1 // pred_fallthru
      _
    // Predicated region
    $region10: #{bottleneck_forward.9} parent=1 // pred_check
      _
    $region11: #{bottleneck_forward.9} parent=1 // pred_check_branch
      %34 = sbr.rel (0) target = $region13
    $region12: #{bottleneck_forward.9} parent=1 // pred_region
      %s36 = ssub.s32 32, 32
      %37 = vsyncadd [#allocation6], %s36
      %s39 = sshll.u32 [#allocation7], 4
      %s40 = int_to_ptr.vmem [resolvable:$true] %s39
      %42 = dma.hbm_to_vmem [thread:$0]  %s2, 32, %s40, [#allocation6]
    $region13: #{bottleneck_forward.9} parent=1 // pred_fallthru
      _
    // Predicated region
    $region14: #{bottleneck_forward.9} parent=1 // pred_check
      _
    $region15: #{bottleneck_forward.9} parent=1 // pred_check_branch
      %44 = sbr.rel (0) target = $region17
    $region16: #{bottleneck_forward.9} parent=1 // pred_region
      %45 = dma.done [#allocation3], 8192
    $region17: #{bottleneck_forward.9} parent=1 // pred_fallthru
      _
    // Predicated region
    $region18: #{bottleneck_forward.9} parent=1 // pred_check
      _
    $region19: #{bottleneck_forward.9} parent=1 // pred_check_branch
      %47 = sbr.rel (0) target = $region21
    $region20: #{bottleneck_forward.9} parent=1 // pred_region
      %48 = dma.done [#allocation6], 32
    $region21: #{bottleneck_forward.9} parent=1 // pred_fallthru
      _
    // Predicated region
    $region22: #{bottleneck_forward.9} parent=1 // pred_check
      _
    $region23: #{bottleneck_forward.9} parent=1 // pred_check_branch
      %50 = sbr.rel (0) target = $region25
    $region24: #{bottleneck_forward.9} parent=1 // pred_region
      %51 = dma.done [#allocation6], 32
    $region25: #{bottleneck_forward.9} parent=1 // pred_fallthru
      _
    %v52 = vld [vmem:[#allocation2] sm:$0xff]
    %v53 = vld [vmem:[#allocation2 + $0x8] sm:$0xff]
    %v54 = vld [vmem:[#allocation2 + $0x10] sm:$0xff]
    %v55 = vld [vmem:[#allocation2 + $0x18] sm:$0xff]
    %v56 = vld [vmem:[#allocation2 + $0x20] sm:$0xff]
    %v57 = vld [vmem:[#allocation2 + $0x28] sm:$0xff]
    %v58 = vld [vmem:[#allocation2 + $0x30] sm:$0xff]
    %v59 = vld [vmem:[#allocation2 + $0x38] sm:$0xff]
    %v60 = vld [vmem:[#allocation2 + $0x40] sm:$0xff]
    %v61 = vld [vmem:[#allocation2 + $0x48] sm:$0xff]
    %v62 = vld [vmem:[#allocation2 + $0x50] sm:$0xff]
    %v63 = vld [vmem:[#allocation2 + $0x58] sm:$0xff]
    %v64 = vld [vmem:[#allocation2 + $0x60] sm:$0xff]
    %v65 = vld [vmem:[#allocation2 + $0x68] sm:$0xff]
    %v66 = vld [vmem:[#allocation2 + $0x70] sm:$0xff]
    %v67 = vld [vmem:[#allocation2 + $0x78] sm:$0xff]
    %v68 = vld [vmem:[#allocation2 + $0x80] sm:$0xff]
    %v69 = vld [vmem:[#allocation2 + $0x88] sm:$0xff]
    %v70 = vld [vmem:[#allocation2 + $0x90] sm:$0xff]
    %v71 = vld [vmem:[#allocation2 + $0x98] sm:$0xff]
    %v72 = vld [vmem:[#allocation2 + $0xa0] sm:$0xff]
    %v73 = vld [vmem:[#allocation2 + $0xa8] sm:$0xff]
    %v74 = vld [vmem:[#allocation2 + $0xb0] sm:$0xff]
    %v75 = vld [vmem:[#allocation2 + $0xb8] sm:$0xff]
    %v76 = vld [vmem:[#allocation2 + $0xc0] sm:$0xff]
    %v77 = vld [vmem:[#allocation2 + $0xc8] sm:$0xff]
    %v78 = vld [vmem:[#allocation2 + $0xd0] sm:$0xff]
    %v79 = vld [vmem:[#allocation2 + $0xd8] sm:$0xff]
    %v80 = vld [vmem:[#allocation2 + $0xe0] sm:$0xff]
    %v81 = vld [vmem:[#allocation2 + $0xe8] sm:$0xff]
    %v82 = vld [vmem:[#allocation2 + $0xf0] sm:$0xff]
    %v83 = vld [vmem:[#allocation2 + $0xf8] sm:$0xff]
    %v84 = vld [vmem:[#allocation2 + $0x100] sm:$0xff]
    %v85 = vld [vmem:[#allocation2 + $0x108] sm:$0xff]
    %v86 = vld [vmem:[#allocation2 + $0x110] sm:$0xff]
    %v87 = vld [vmem:[#allocation2 + $0x118] sm:$0xff]
    %v88 = vld [vmem:[#allocation2 + $0x120] sm:$0xff]
    %v89 = vld [vmem:[#allocation2 + $0x128] sm:$0xff]
    %v90 = vld [vmem:[#allocation2 + $0x130] sm:$0xff]
    %v91 = vld [vmem:[#allocation2 + $0x138] sm:$0xff]
    %v92 = vld [vmem:[#allocation2 + $0x140] sm:$0xff]
    %v93 = vld [vmem:[#allocation2 + $0x148] sm:$0xff]
    %v94 = vld [vmem:[#allocation2 + $0x150] sm:$0xff]
    %v95 = vld [vmem:[#allocation2 + $0x158] sm:$0xff]
    %v96 = vld [vmem:[#allocation2 + $0x160] sm:$0xff]
    %v97 = vld [vmem:[#allocation2 + $0x168] sm:$0xff]
    %v98 = vld [vmem:[#allocation2 + $0x170] sm:$0xff]
    %v99 = vld [vmem:[#allocation2 + $0x178] sm:$0xff]
    %v100 = vld [vmem:[#allocation2 + $0x180] sm:$0xff]
    %v101 = vld [vmem:[#allocation2 + $0x188] sm:$0xff]
    %v102 = vld [vmem:[#allocation2 + $0x190] sm:$0xff]
    %v103 = vld [vmem:[#allocation2 + $0x198] sm:$0xff]
    %v104 = vld [vmem:[#allocation2 + $0x1a0] sm:$0xff]
    %v105 = vld [vmem:[#allocation2 + $0x1a8] sm:$0xff]
    %v106 = vld [vmem:[#allocation2 + $0x1b0] sm:$0xff]
    %v107 = vld [vmem:[#allocation2 + $0x1b8] sm:$0xff]
    %v108 = vld [vmem:[#allocation2 + $0x1c0] sm:$0xff]
    %v109 = vld [vmem:[#allocation2 + $0x1c8] sm:$0xff]
    %v110 = vld [vmem:[#allocation2 + $0x1d0] sm:$0xff]
    %v111 = vld [vmem:[#allocation2 + $0x1d8] sm:$0xff]
    %v112 = vld [vmem:[#allocation2 + $0x1e0] sm:$0xff]
    %v113 = vld [vmem:[#allocation2 + $0x1e8] sm:$0xff]
    %v114 = vld [vmem:[#allocation2 + $0x1f0] sm:$0xff]
    %v115 = vld [vmem:[#allocation2 + $0x1f8] sm:$0xff]
    %v116 = vunpack.c.l.bf16 %v52
    %v117 = vunpack.c.h.bf16 %v52
    %v118 = vunpack.c.l.bf16 %v53
    %v119 = vunpack.c.h.bf16 %v53
    %v120 = vunpack.c.l.bf16 %v54
    %v121 = vunpack.c.h.bf16 %v54
    %v122 = vunpack.c.l.bf16 %v55
    %v123 = vunpack.c.h.bf16 %v55
    %v124 = vunpack.c.l.bf16 %v56
    %v125 = vunpack.c.h.bf16 %v56
    %v126 = vunpack.c.l.bf16 %v57
    %v127 = vunpack.c.h.bf16 %v57
    %v128 = vunpack.c.l.bf16 %v58
    %v129 = vunpack.c.h.bf16 %v58
    %v130 = vunpack.c.l.bf16 %v59
    %v131 = vunpack.c.h.bf16 %v59
    %v132 = vunpack.c.l.bf16 %v60
    %v133 = vunpack.c.h.bf16 %v60
    %v134 = vunpack.c.l.bf16 %v61
    %v135 = vunpack.c.h.bf16 %v61
    %v136 = vunpack.c.l.bf16 %v62
    %v137 = vunpack.c.h.bf16 %v62
    %v138 = vunpack.c.l.bf16 %v63
    %v139 = vunpack.c.h.bf16 %v63
    %v140 = vunpack.c.l.bf16 %v64
    %v141 = vunpack.c.h.bf16 %v64
    %v142 = vunpack.c.l.bf16 %v65
    %v143 = vunpack.c.h.bf16 %v65
    %v144 = vunpack.c.l.bf16 %v66
    %v145 = vunpack.c.h.bf16 %v66
    %v146 = vunpack.c.l.bf16 %v67
    %v147 = vunpack.c.h.bf16 %v67
    %v148 = vunpack.c.l.bf16 %v68
    %v149 = vunpack.c.h.bf16 %v68
    %v150 = vunpack.c.l.bf16 %v69
    %v151 = vunpack.c.h.bf16 %v69
    %v152 = vunpack.c.l.bf16 %v70
    %v153 = vunpack.c.h.bf16 %v70
    %v154 = vunpack.c.l.bf16 %v71
    %v155 = vunpack.c.h.bf16 %v71
    %v156 = vunpack.c.l.bf16 %v72
    %v157 = vunpack.c.h.bf16 %v72
    %v158 = vunpack.c.l.bf16 %v73
    %v159 = vunpack.c.h.bf16 %v73
    %v160 = vunpack.c.l.bf16 %v74
    %v161 = vunpack.c.h.bf16 %v74
    %v162 = vunpack.c.l.bf16 %v75
    %v163 = vunpack.c.h.bf16 %v75
    %v164 = vunpack.c.l.bf16 %v76
    %v165 = vunpack.c.h.bf16 %v76
    %v166 = vunpack.c.l.bf16 %v77
    %v167 = vunpack.c.h.bf16 %v77
    %v168 = vunpack.c.l.bf16 %v78
    %v169 = vunpack.c.h.bf16 %v78
    %v170 = vunpack.c.l.bf16 %v79
    %v171 = vunpack.c.h.bf16 %v79
    %v172 = vunpack.c.l.bf16 %v80
    %v173 = vunpack.c.h.bf16 %v80
    %v174 = vunpack.c.l.bf16 %v81
    %v175 = vunpack.c.h.bf16 %v81
    %v176 = vunpack.c.l.bf16 %v82
    %v177 = vunpack.c.h.bf16 %v82
    %v178 = vunpack.c.l.bf16 %v83
    %v179 = vunpack.c.h.bf16 %v83
    %v180 = vunpack.c.l.bf16 %v84
    %v181 = vunpack.c.h.bf16 %v84
    %v182 = vunpack.c.l.bf16 %v85
    %v183 = vunpack.c.h.bf16 %v85
    %v184 = vunpack.c.l.bf16 %v86
    %v185 = vunpack.c.h.bf16 %v86
    %v186 = vunpack.c.l.bf16 %v87
    %v187 = vunpack.c.h.bf16 %v87
    %v188 = vunpack.c.l.bf16 %v88
    %v189 = vunpack.c.h.bf16 %v88
    %v190 = vunpack.c.l.bf16 %v89
    %v191 = vunpack.c.h.bf16 %v89
    %v192 = vunpack.c.l.bf16 %v90
    %v193 = vunpack.c.h.bf16 %v90
    %v194 = vunpack.c.l.bf16 %v91
    %v195 = vunpack.c.h.bf16 %v91
    %v196 = vunpack.c.l.bf16 %v92
    %v197 = vunpack.c.h.bf16 %v92
    %v198 = vunpack.c.l.bf16 %v93
    %v199 = vunpack.c.h.bf16 %v93
    %v200 = vunpack.c.l.bf16 %v94
    %v201 = vunpack.c.h.bf16 %v94
    %v202 = vunpack.c.l.bf16 %v95
    %v203 = vunpack.c.h.bf16 %v95
    %v204 = vunpack.c.l.bf16 %v96
    %v205 = vunpack.c.h.bf16 %v96
    %v206 = vunpack.c.l.bf16 %v97
    %v207 = vunpack.c.h.bf16 %v97
    %v208 = vunpack.c.l.bf16 %v98
    %v209 = vunpack.c.h.bf16 %v98
    %v210 = vunpack.c.l.bf16 %v99
    %v211 = vunpack.c.h.bf16 %v99
    %v212 = vunpack.c.l.bf16 %v100
    %v213 = vunpack.c.h.bf16 %v100
    %v214 = vunpack.c.l.bf16 %v101
    %v215 = vunpack.c.h.bf16 %v101
    %v216 = vunpack.c.l.bf16 %v102
    %v217 = vunpack.c.h.bf16 %v102
    %v218 = vunpack.c.l.bf16 %v103
    %v219 = vunpack.c.h.bf16 %v103
    %v220 = vunpack.c.l.bf16 %v104
    %v221 = vunpack.c.h.bf16 %v104
    %v222 = vunpack.c.l.bf16 %v105
    %v223 = vunpack.c.h.bf16 %v105
    %v224 = vunpack.c.l.bf16 %v106
    %v225 = vunpack.c.h.bf16 %v106
    %v226 = vunpack.c.l.bf16 %v107
    %v227 = vunpack.c.h.bf16 %v107
    %v228 = vunpack.c.l.bf16 %v108
    %v229 = vunpack.c.h.bf16 %v108
    %v230 = vunpack.c.l.bf16 %v109
    %v231 = vunpack.c.h.bf16 %v109
    %v232 = vunpack.c.l.bf16 %v110
    %v233 = vunpack.c.h.bf16 %v110
    %v234 = vunpack.c.l.bf16 %v111
    %v235 = vunpack.c.h.bf16 %v111
    %v236 = vunpack.c.l.bf16 %v112
    %v237 = vunpack.c.h.bf16 %v112
    %v238 = vunpack.c.l.bf16 %v113
    %v239 = vunpack.c.h.bf16 %v113
    %v240 = vunpack.c.l.bf16 %v114
    %v241 = vunpack.c.h.bf16 %v114
    %v242 = vunpack.c.l.bf16 %v115
    %v243 = vunpack.c.h.bf16 %v115
    %v244 = vld [vmem:[#allocation5] sm:$0x3]
    %v246 = vlaneseq
    %v247 = vshrl.u32 %v246, 7
    %v248 = vsub.s32 0, %v247
    %v249 = vrot.slane %v244, %v248
    %v250 = vlaneseq
    %v251 = vshrl.u32 %v250, 7
    %v252 = vsub.s32 1, %v251
    %v253 = vrot.slane %v244, %v252
    %v256 = vsub.f32 %v116, %v249
    %v257 = vsub.f32 %v117, %v253
    %v258 = vsub.f32 %v118, %v249
    %v259 = vsub.f32 %v119, %v253
    %v260 = vsub.f32 %v120, %v249
    %v261 = vsub.f32 %v121, %v253
    %v262 = vsub.f32 %v122, %v249
    %v263 = vsub.f32 %v123, %v253
    %v264 = vsub.f32 %v124, %v249
    %v265 = vsub.f32 %v125, %v253
    %v266 = vsub.f32 %v126, %v249
    %v267 = vsub.f32 %v127, %v253
    %v268 = vsub.f32 %v128, %v249
    %v269 = vsub.f32 %v129, %v253
    %v270 = vsub.f32 %v130, %v249
    %v271 = vsub.f32 %v131, %v253
    %v272 = vsub.f32 %v132, %v249
    %v273 = vsub.f32 %v133, %v253
    %v274 = vsub.f32 %v134, %v249
    %v275 = vsub.f32 %v135, %v253
    %v276 = vsub.f32 %v136, %v249
    %v277 = vsub.f32 %v137, %v253
    %v278 = vsub.f32 %v138, %v249
    %v279 = vsub.f32 %v139, %v253
    %v280 = vsub.f32 %v140, %v249
    %v281 = vsub.f32 %v141, %v253
    %v282 = vsub.f32 %v142, %v249
    %v283 = vsub.f32 %v143, %v253
    %v284 = vsub.f32 %v144, %v249
    %v285 = vsub.f32 %v145, %v253
    %v286 = vsub.f32 %v146, %v249
    %v287 = vsub.f32 %v147, %v253
    %v288 = vsub.f32 %v148, %v249
    %v289 = vsub.f32 %v149, %v253
    %v290 = vsub.f32 %v150, %v249
    %v291 = vsub.f32 %v151, %v253
    %v292 = vsub.f32 %v152, %v249
    %v293 = vsub.f32 %v153, %v253
    %v294 = vsub.f32 %v154, %v249
    %v295 = vsub.f32 %v155, %v253
    %v296 = vsub.f32 %v156, %v249
    %v297 = vsub.f32 %v157, %v253
    %v298 = vsub.f32 %v158, %v249
    %v299 = vsub.f32 %v159, %v253
    %v300 = vsub.f32 %v160, %v249
    %v301 = vsub.f32 %v161, %v253
    %v302 = vsub.f32 %v162, %v249
    %v303 = vsub.f32 %v163, %v253
    %v304 = vsub.f32 %v164, %v249
    %v305 = vsub.f32 %v165, %v253
    %v306 = vsub.f32 %v166, %v249
    %v307 = vsub.f32 %v167, %v253
    %v308 = vsub.f32 %v168, %v249
    %v309 = vsub.f32 %v169, %v253
    %v310 = vsub.f32 %v170, %v249
    %v311 = vsub.f32 %v171, %v253
    %v312 = vsub.f32 %v172, %v249
    %v313 = vsub.f32 %v173, %v253
    %v314 = vsub.f32 %v174, %v249
    %v315 = vsub.f32 %v175, %v253
    %v316 = vsub.f32 %v176, %v249
    %v317 = vsub.f32 %v177, %v253
    %v318 = vsub.f32 %v178, %v249
    %v319 = vsub.f32 %v179, %v253
    %v320 = vsub.f32 %v180, %v249
    %v321 = vsub.f32 %v181, %v253
    %v322 = vsub.f32 %v182, %v249
    %v323 = vsub.f32 %v183, %v253
    %v324 = vsub.f32 %v184, %v249
    %v325 = vsub.f32 %v185, %v253
    %v326 = vsub.f32 %v186, %v249
    %v327 = vsub.f32 %v187, %v253
    %v328 = vsub.f32 %v188, %v249
    %v329 = vsub.f32 %v189, %v253
    %v330 = vsub.f32 %v190, %v249
    %v331 = vsub.f32 %v191, %v253
    %v332 = vsub.f32 %v192, %v249
    %v333 = vsub.f32 %v193, %v253
    %v334 = vsub.f32 %v194, %v249
    %v335 = vsub.f32 %v195, %v253
    %v336 = vsub.f32 %v196, %v249
    %v337 = vsub.f32 %v197, %v253
    %v338 = vsub.f32 %v198, %v249
    %v339 = vsub.f32 %v199, %v253
    %v340 = vsub.f32 %v200, %v249
    %v341 = vsub.f32 %v201, %v253
    %v342 = vsub.f32 %v202, %v249
    %v343 = vsub.f32 %v203, %v253
    %v344 = vsub.f32 %v204, %v249
    %v345 = vsub.f32 %v205, %v253
    %v346 = vsub.f32 %v206, %v249
    %v347 = vsub.f32 %v207, %v253
    %v348 = vsub.f32 %v208, %v249
    %v349 = vsub.f32 %v209, %v253
    %v350 = vsub.f32 %v210, %v249
    %v351 = vsub.f32 %v211, %v253
    %v352 = vsub.f32 %v212, %v249
    %v353 = vsub.f32 %v213, %v253
    %v354 = vsub.f32 %v214, %v249
    %v355 = vsub.f32 %v215, %v253
    %v356 = vsub.f32 %v216, %v249
    %v357 = vsub.f32 %v217, %v253
    %v358 = vsub.f32 %v218, %v249
    %v359 = vsub.f32 %v219, %v253
    %v360 = vsub.f32 %v220, %v249
    %v361 = vsub.f32 %v221, %v253
    %v362 = vsub.f32 %v222, %v249
    %v363 = vsub.f32 %v223, %v253
    %v364 = vsub.f32 %v224, %v249
    %v365 = vsub.f32 %v225, %v253
    %v366 = vsub.f32 %v226, %v249
    %v367 = vsub.f32 %v227, %v253
    %v368 = vsub.f32 %v228, %v249
    %v369 = vsub.f32 %v229, %v253
    %v370 = vsub.f32 %v230, %v249
    %v371 = vsub.f32 %v231, %v253
    %v372 = vsub.f32 %v232, %v249
    %v373 = vsub.f32 %v233, %v253
    %v374 = vsub.f32 %v234, %v249
    %v375 = vsub.f32 %v235, %v253
    %v376 = vsub.f32 %v236, %v249
    %v377 = vsub.f32 %v237, %v253
    %v378 = vsub.f32 %v238, %v249
    %v379 = vsub.f32 %v239, %v253
    %v380 = vsub.f32 %v240, %v249
    %v381 = vsub.f32 %v241, %v253
    %v382 = vsub.f32 %v242, %v249
    %v383 = vsub.f32 %v243, %v253
    %v384 = vld [vmem:[#allocation7] sm:$0x3]
    %v386 = vlaneseq
    %v387 = vshrl.u32 %v386, 7
    %v388 = vsub.s32 0, %v387
    %v389 = vrot.slane %v384, %v388
    %v390 = vlaneseq
    %v391 = vshrl.u32 %v390, 7
    %v392 = vsub.s32 1, %v391
    %v393 = vrot.slane %v384, %v392
    %v396 = vmul.f32 %v256, %v389
    %v397 = vmul.f32 %v257, %v393
    %v398 = vmul.f32 %v258, %v389
    %v399 = vmul.f32 %v259, %v393
    %v400 = vmul.f32 %v260, %v389
    %v401 = vmul.f32 %v261, %v393
    %v402 = vmul.f32 %v262, %v389
    %v403 = vmul.f32 %v263, %v393
    %v404 = vmul.f32 %v264, %v389
    %v405 = vmul.f32 %v265, %v393
    %v406 = vmul.f32 %v266, %v389
    %v407 = vmul.f32 %v267, %v393
    %v408 = vmul.f32 %v268, %v389
    %v409 = vmul.f32 %v269, %v393
    %v410 = vmul.f32 %v270, %v389
    %v411 = vmul.f32 %v271, %v393
    %v412 = vmul.f32 %v272, %v389
    %v413 = vmul.f32 %v273, %v393
    %v414 = vmul.f32 %v274, %v389
    %v415 = vmul.f32 %v275, %v393
    %v416 = vmul.f32 %v276, %v389
    %v417 = vmul.f32 %v277, %v393
    %v418 = vmul.f32 %v278, %v389
    %v419 = vmul.f32 %v279, %v393
    %v420 = vmul.f32 %v280, %v389
    %v421 = vmul.f32 %v281, %v393
    %v422 = vmul.f32 %v282, %v389
    %v423 = vmul.f32 %v283, %v393
    %v424 = vmul.f32 %v284, %v389
    %v425 = vmul.f32 %v285, %v393
    %v426 = vmul.f32 %v286, %v389
    %v427 = vmul.f32 %v287, %v393
    %v428 = vmul.f32 %v288, %v389
    %v429 = vmul.f32 %v289, %v393
    %v430 = vmul.f32 %v290, %v389
    %v431 = vmul.f32 %v291, %v393
    %v432 = vmul.f32 %v292, %v389
    %v433 = vmul.f32 %v293, %v393
    %v434 = vmul.f32 %v294, %v389
    %v435 = vmul.f32 %v295, %v393
    %v436 = vmul.f32 %v296, %v389
    %v437 = vmul.f32 %v297, %v393
    %v438 = vmul.f32 %v298, %v389
    %v439 = vmul.f32 %v299, %v393
    %v440 = vmul.f32 %v300, %v389
    %v441 = vmul.f32 %v301, %v393
    %v442 = vmul.f32 %v302, %v389
    %v443 = vmul.f32 %v303, %v393
    %v444 = vmul.f32 %v304, %v389
    %v445 = vmul.f32 %v305, %v393
    %v446 = vmul.f32 %v306, %v389
    %v447 = vmul.f32 %v307, %v393
    %v448 = vmul.f32 %v308, %v389
    %v449 = vmul.f32 %v309, %v393
    %v450 = vmul.f32 %v310, %v389
    %v451 = vmul.f32 %v311, %v393
    %v452 = vmul.f32 %v312, %v389
    %v453 = vmul.f32 %v313, %v393
    %v454 = vmul.f32 %v314, %v389
    %v455 = vmul.f32 %v315, %v393
    %v456 = vmul.f32 %v316, %v389
    %v457 = vmul.f32 %v317, %v393
    %v458 = vmul.f32 %v318, %v389
    %v459 = vmul.f32 %v319, %v393
    %v460 = vmul.f32 %v320, %v389
    %v461 = vmul.f32 %v321, %v393
    %v462 = vmul.f32 %v322, %v389
    %v463 = vmul.f32 %v323, %v393
    %v464 = vmul.f32 %v324, %v389
    %v465 = vmul.f32 %v325, %v393
    %v466 = vmul.f32 %v326, %v389
    %v467 = vmul.f32 %v327, %v393
    %v468 = vmul.f32 %v328, %v389
    %v469 = vmul.f32 %v329, %v393
    %v470 = vmul.f32 %v330, %v389
    %v471 = vmul.f32 %v331, %v393
    %v472 = vmul.f32 %v332, %v389
    %v473 = vmul.f32 %v333, %v393
    %v474 = vmul.f32 %v334, %v389
    %v475 = vmul.f32 %v335, %v393
    %v476 = vmul.f32 %v336, %v389
    %v477 = vmul.f32 %v337, %v393
    %v478 = vmul.f32 %v338, %v389
    %v479 = vmul.f32 %v339, %v393
    %v480 = vmul.f32 %v340, %v389
    %v481 = vmul.f32 %v341, %v393
    %v482 = vmul.f32 %v342, %v389
    %v483 = vmul.f32 %v343, %v393
    %v484 = vmul.f32 %v344, %v389
    %v485 = vmul.f32 %v345, %v393
    %v486 = vmul.f32 %v346, %v389
    %v487 = vmul.f32 %v347, %v393
    %v488 = vmul.f32 %v348, %v389
    %v489 = vmul.f32 %v349, %v393
    %v490 = vmul.f32 %v350, %v389
    %v491 = vmul.f32 %v351, %v393
    %v492 = vmul.f32 %v352, %v389
    %v493 = vmul.f32 %v353, %v393
    %v494 = vmul.f32 %v354, %v389
    %v495 = vmul.f32 %v355, %v393
    %v496 = vmul.f32 %v356, %v389
    %v497 = vmul.f32 %v357, %v393
    %v498 = vmul.f32 %v358, %v389
    %v499 = vmul.f32 %v359, %v393
    %v500 = vmul.f32 %v360, %v389
    %v501 = vmul.f32 %v361, %v393
    %v502 = vmul.f32 %v362, %v389
    %v503 = vmul.f32 %v363, %v393
    %v504 = vmul.f32 %v364, %v389
    %v505 = vmul.f32 %v365, %v393
    %v506 = vmul.f32 %v366, %v389
    %v507 = vmul.f32 %v367, %v393
    %v508 = vmul.f32 %v368, %v389
    %v509 = vmul.f32 %v369, %v393
    %v510 = vmul.f32 %v370, %v389
    %v511 = vmul.f32 %v371, %v393
    %v512 = vmul.f32 %v372, %v389
    %v513 = vmul.f32 %v373, %v393
    %v514 = vmul.f32 %v374, %v389
    %v515 = vmul.f32 %v375, %v393
    %v516 = vmul.f32 %v376, %v389
    %v517 = vmul.f32 %v377, %v393
    %v518 = vmul.f32 %v378, %v389
    %v519 = vmul.f32 %v379, %v393
    %v520 = vmul.f32 %v380, %v389
    %v521 = vmul.f32 %v381, %v393
    %v522 = vmul.f32 %v382, %v389
    %v523 = vmul.f32 %v383, %v393
    %v524 = vpack.c.bf16 %v398, %v396
    %v525 = vpack.c.bf16 %v399, %v397
    %v526 = vpack.c.bf16 %v402, %v400
    %v527 = vpack.c.bf16 %v403, %v401
    %v528 = vpack.c.bf16 %v406, %v404
    %v529 = vpack.c.bf16 %v407, %v405
    %v530 = vpack.c.bf16 %v410, %v408
    %v531 = vpack.c.bf16 %v411, %v409
    %v532 = vpack.c.bf16 %v414, %v412
    %v533 = vpack.c.bf16 %v415, %v413
    %v534 = vpack.c.bf16 %v418, %v416
    %v535 = vpack.c.bf16 %v419, %v417
    %v536 = vpack.c.bf16 %v422, %v420
    %v537 = vpack.c.bf16 %v423, %v421
    %v538 = vpack.c.bf16 %v426, %v424
    %v539 = vpack.c.bf16 %v427, %v425
    %v540 = vpack.c.bf16 %v430, %v428
    %v541 = vpack.c.bf16 %v431, %v429
    %v542 = vpack.c.bf16 %v434, %v432
    %v543 = vpack.c.bf16 %v435, %v433
    %v544 = vpack.c.bf16 %v438, %v436
    %v545 = vpack.c.bf16 %v439, %v437
    %v546 = vpack.c.bf16 %v442, %v440
    %v547 = vpack.c.bf16 %v443, %v441
    %v548 = vpack.c.bf16 %v446, %v444
    %v549 = vpack.c.bf16 %v447, %v445
    %v550 = vpack.c.bf16 %v450, %v448
    %v551 = vpack.c.bf16 %v451, %v449
    %v552 = vpack.c.bf16 %v454, %v452
    %v553 = vpack.c.bf16 %v455, %v453
    %v554 = vpack.c.bf16 %v458, %v456
    %v555 = vpack.c.bf16 %v459, %v457
    %v556 = vpack.c.bf16 %v462, %v460
    %v557 = vpack.c.bf16 %v463, %v461
    %v558 = vpack.c.bf16 %v466, %v464
    %v559 = vpack.c.bf16 %v467, %v465
    %v560 = vpack.c.bf16 %v470, %v468
    %v561 = vpack.c.bf16 %v471, %v469
    %v562 = vpack.c.bf16 %v474, %v472
    %v563 = vpack.c.bf16 %v475, %v473
    %v564 = vpack.c.bf16 %v478, %v476
    %v565 = vpack.c.bf16 %v479, %v477
    %v566 = vpack.c.bf16 %v482, %v480
    %v567 = vpack.c.bf16 %v483, %v481
    %v568 = vpack.c.bf16 %v486, %v484
    %v569 = vpack.c.bf16 %v487, %v485
    %v570 = vpack.c.bf16 %v490, %v488
    %v571 = vpack.c.bf16 %v491, %v489
    %v572 = vpack.c.bf16 %v494, %v492
    %v573 = vpack.c.bf16 %v495, %v493
    %v574 = vpack.c.bf16 %v498, %v496
    %v575 = vpack.c.bf16 %v499, %v497
    %v576 = vpack.c.bf16 %v502, %v500
    %v577 = vpack.c.bf16 %v503, %v501
    %v578 = vpack.c.bf16 %v506, %v504
    %v579 = vpack.c.bf16 %v507, %v505
    %v580 = vpack.c.bf16 %v510, %v508
    %v581 = vpack.c.bf16 %v511, %v509
    %v582 = vpack.c.bf16 %v514, %v512
    %v583 = vpack.c.bf16 %v515, %v513
    %v584 = vpack.c.bf16 %v518, %v516
    %v585 = vpack.c.bf16 %v519, %v517
    %v586 = vpack.c.bf16 %v522, %v520
    %v587 = vpack.c.bf16 %v523, %v521
    %v652 = vunpack.c.l.b16 %v524
    %v653 = vunpack.c.l.b16 %v525
    %v654 = vunpack.c.h.b16 %v524
    %v655 = vunpack.c.h.b16 %v525
    %v656 = vunpack.c.l.b16 %v526
    %v657 = vunpack.c.l.b16 %v527
    %v658 = vunpack.c.h.b16 %v526
    %v659 = vunpack.c.h.b16 %v527
    %v660 = vunpack.c.l.b16 %v528
    %v661 = vunpack.c.l.b16 %v529
    %v662 = vunpack.c.h.b16 %v528
    %v663 = vunpack.c.h.b16 %v529
    %v664 = vunpack.c.l.b16 %v530
    %v665 = vunpack.c.l.b16 %v531
    %v666 = vunpack.c.h.b16 %v530
    %v667 = vunpack.c.h.b16 %v531
    %v668 = vunpack.c.l.b16 %v532
    %v669 = vunpack.c.l.b16 %v533
    %v670 = vunpack.c.h.b16 %v532
    %v671 = vunpack.c.h.b16 %v533
    %v672 = vunpack.c.l.b16 %v534
    %v673 = vunpack.c.l.b16 %v535
    %v674 = vunpack.c.h.b16 %v534
    %v675 = vunpack.c.h.b16 %v535
    %v676 = vunpack.c.l.b16 %v536
    %v677 = vunpack.c.l.b16 %v537
    %v678 = vunpack.c.h.b16 %v536
    %v679 = vunpack.c.h.b16 %v537
    %v680 = vunpack.c.l.b16 %v538
    %v681 = vunpack.c.l.b16 %v539
    %v682 = vunpack.c.h.b16 %v538
    %v683 = vunpack.c.h.b16 %v539
    %v684 = vunpack.c.l.b16 %v540
    %v685 = vunpack.c.l.b16 %v541
    %v686 = vunpack.c.h.b16 %v540
    %v687 = vunpack.c.h.b16 %v541
    %v688 = vunpack.c.l.b16 %v542
    %v689 = vunpack.c.l.b16 %v543
    %v690 = vunpack.c.h.b16 %v542
    %v691 = vunpack.c.h.b16 %v543
    %v692 = vunpack.c.l.b16 %v544
    %v693 = vunpack.c.l.b16 %v545
    %v694 = vunpack.c.h.b16 %v544
    %v695 = vunpack.c.h.b16 %v545
    %v696 = vunpack.c.l.b16 %v546
    %v697 = vunpack.c.l.b16 %v547
    %v698 = vunpack.c.h.b16 %v546
    %v699 = vunpack.c.h.b16 %v547
    %v700 = vunpack.c.l.b16 %v548
    %v701 = vunpack.c.l.b16 %v549
    %v702 = vunpack.c.h.b16 %v548
    %v703 = vunpack.c.h.b16 %v549
    %v704 = vunpack.c.l.b16 %v550
    %v705 = vunpack.c.l.b16 %v551
    %v706 = vunpack.c.h.b16 %v550
    %v707 = vunpack.c.h.b16 %v551
    %v708 = vunpack.c.l.b16 %v552
    %v709 = vunpack.c.l.b16 %v553
    %v710 = vunpack.c.h.b16 %v552
    %v711 = vunpack.c.h.b16 %v553
    %v712 = vunpack.c.l.b16 %v554
    %v713 = vunpack.c.l.b16 %v555
    %v714 = vunpack.c.h.b16 %v554
    %v715 = vunpack.c.h.b16 %v555
    %v716 = vunpack.c.l.b16 %v556
    %v717 = vunpack.c.l.b16 %v557
    %v718 = vunpack.c.h.b16 %v556
    %v719 = vunpack.c.h.b16 %v557
    %v720 = vunpack.c.l.b16 %v558
    %v721 = vunpack.c.l.b16 %v559
    %v722 = vunpack.c.h.b16 %v558
    %v723 = vunpack.c.h.b16 %v559
    %v724 = vunpack.c.l.b16 %v560
    %v725 = vunpack.c.l.b16 %v561
    %v726 = vunpack.c.h.b16 %v560
    %v727 = vunpack.c.h.b16 %v561
    %v728 = vunpack.c.l.b16 %v562
    %v729 = vunpack.c.l.b16 %v563
    %v730 = vunpack.c.h.b16 %v562
    %v731 = vunpack.c.h.b16 %v563
    %v732 = vunpack.c.l.b16 %v564
    %v733 = vunpack.c.l.b16 %v565
    %v734 = vunpack.c.h.b16 %v564
    %v735 = vunpack.c.h.b16 %v565
    %v736 = vunpack.c.l.b16 %v566
    %v737 = vunpack.c.l.b16 %v567
    %v738 = vunpack.c.h.b16 %v566
    %v739 = vunpack.c.h.b16 %v567
    %v740 = vunpack.c.l.b16 %v568
    %v741 = vunpack.c.l.b16 %v569
    %v742 = vunpack.c.h.b16 %v568
    %v743 = vunpack.c.h.b16 %v569
    %v744 = vunpack.c.l.b16 %v570
    %v745 = vunpack.c.l.b16 %v571
    %v746 = vunpack.c.h.b16 %v570
    %v747 = vunpack.c.h.b16 %v571
    %v748 = vunpack.c.l.b16 %v572
    %v749 = vunpack.c.l.b16 %v573
    %v750 = vunpack.c.h.b16 %v572
    %v751 = vunpack.c.h.b16 %v573
    %v752 = vunpack.c.l.b16 %v574
    %v753 = vunpack.c.l.b16 %v575
    %v754 = vunpack.c.h.b16 %v574
    %v755 = vunpack.c.h.b16 %v575
    %v756 = vunpack.c.l.b16 %v576
    %v757 = vunpack.c.l.b16 %v577
    %v758 = vunpack.c.h.b16 %v576
    %v759 = vunpack.c.h.b16 %v577
    %v760 = vunpack.c.l.b16 %v578
    %v761 = vunpack.c.l.b16 %v579
    %v762 = vunpack.c.h.b16 %v578
    %v763 = vunpack.c.h.b16 %v579
    %v764 = vunpack.c.l.b16 %v580
    %v765 = vunpack.c.l.b16 %v581
    %v766 = vunpack.c.h.b16 %v580
    %v767 = vunpack.c.h.b16 %v581
    %v768 = vunpack.c.l.b16 %v582
    %v769 = vunpack.c.l.b16 %v583
    %v770 = vunpack.c.h.b16 %v582
    %v771 = vunpack.c.h.b16 %v583
    %v772 = vunpack.c.l.b16 %v584
    %v773 = vunpack.c.l.b16 %v585
    %v774 = vunpack.c.h.b16 %v584
    %v775 = vunpack.c.h.b16 %v585
    %v776 = vunpack.c.l.b16 %v586
    %v777 = vunpack.c.l.b16 %v587
    %v778 = vunpack.c.h.b16 %v586
    %v779 = vunpack.c.h.b16 %v587
    %v780 = vpack.c.b16 %v653, %v652
    %v781 = vpack.c.b16 %v655, %v654
    %v782 = vpack.c.b16 %v657, %v656
    %v783 = vpack.c.b16 %v659, %v658
    %v784 = vpack.c.b16 %v661, %v660
    %v785 = vpack.c.b16 %v663, %v662
    %v786 = vpack.c.b16 %v665, %v664
    %v787 = vpack.c.b16 %v667, %v666
    %v788 = vpack.c.b16 %v669, %v668
    %v789 = vpack.c.b16 %v671, %v670
    %v790 = vpack.c.b16 %v673, %v672
    %v791 = vpack.c.b16 %v675, %v674
    %v792 = vpack.c.b16 %v677, %v676
    %v793 = vpack.c.b16 %v679, %v678
    %v794 = vpack.c.b16 %v681, %v680
    %v795 = vpack.c.b16 %v683, %v682
    %v796 = vpack.c.b16 %v685, %v684
    %v797 = vpack.c.b16 %v687, %v686
    %v798 = vpack.c.b16 %v689, %v688
    %v799 = vpack.c.b16 %v691, %v690
    %v800 = vpack.c.b16 %v693, %v692
    %v801 = vpack.c.b16 %v695, %v694
    %v802 = vpack.c.b16 %v697, %v696
    %v803 = vpack.c.b16 %v699, %v698
    %v804 = vpack.c.b16 %v701, %v700
    %v805 = vpack.c.b16 %v703, %v702
    %v806 = vpack.c.b16 %v705, %v704
    %v807 = vpack.c.b16 %v707, %v706
    %v808 = vpack.c.b16 %v709, %v708
    %v809 = vpack.c.b16 %v711, %v710
    %v810 = vpack.c.b16 %v713, %v712
    %v811 = vpack.c.b16 %v715, %v714
    %v812 = vpack.c.b16 %v717, %v716
    %v813 = vpack.c.b16 %v719, %v718
    %v814 = vpack.c.b16 %v721, %v720
    %v815 = vpack.c.b16 %v723, %v722
    %v816 = vpack.c.b16 %v725, %v724
    %v817 = vpack.c.b16 %v727, %v726
    %v818 = vpack.c.b16 %v729, %v728
    %v819 = vpack.c.b16 %v731, %v730
    %v820 = vpack.c.b16 %v733, %v732
    %v821 = vpack.c.b16 %v735, %v734
    %v822 = vpack.c.b16 %v737, %v736
    %v823 = vpack.c.b16 %v739, %v738
    %v824 = vpack.c.b16 %v741, %v740
    %v825 = vpack.c.b16 %v743, %v742
    %v826 = vpack.c.b16 %v745, %v744
    %v827 = vpack.c.b16 %v747, %v746
    %v828 = vpack.c.b16 %v749, %v748
    %v829 = vpack.c.b16 %v751, %v750
    %v830 = vpack.c.b16 %v753, %v752
    %v831 = vpack.c.b16 %v755, %v754
    %v832 = vpack.c.b16 %v757, %v756
    %v833 = vpack.c.b16 %v759, %v758
    %v834 = vpack.c.b16 %v761, %v760
    %v835 = vpack.c.b16 %v763, %v762
    %v836 = vpack.c.b16 %v765, %v764
    %v837 = vpack.c.b16 %v767, %v766
    %v838 = vpack.c.b16 %v769, %v768
    %v839 = vpack.c.b16 %v771, %v770
    %v840 = vpack.c.b16 %v773, %v772
    %v841 = vpack.c.b16 %v775, %v774
    %v842 = vpack.c.b16 %v777, %v776
    %v843 = vpack.c.b16 %v779, %v778
    %908 = vst [vmem:[#allocation8] sm:$0xff] %v780
    %909 = vst [vmem:[#allocation8 + $0x8] sm:$0xff] %v781
    %910 = vst [vmem:[#allocation8 + $0x10] sm:$0xff] %v782
    %911 = vst [vmem:[#allocation8 + $0x18] sm:$0xff] %v783
    %912 = vst [vmem:[#allocation8 + $0x20] sm:$0xff] %v784
    %913 = vst [vmem:[#allocation8 + $0x28] sm:$0xff] %v785
    %914 = vst [vmem:[#allocation8 + $0x30] sm:$0xff] %v786
    %915 = vst [vmem:[#allocation8 + $0x38] sm:$0xff] %v787
    %916 = vst [vmem:[#allocation8 + $0x40] sm:$0xff] %v788
    %917 = vst [vmem:[#allocation8 + $0x48] sm:$0xff] %v789
    %918 = vst [vmem:[#allocation8 + $0x50] sm:$0xff] %v790
    %919 = vst [vmem:[#allocation8 + $0x58] sm:$0xff] %v791
    %920 = vst [vmem:[#allocation8 + $0x60] sm:$0xff] %v792
    %921 = vst [vmem:[#allocation8 + $0x68] sm:$0xff] %v793
    %922 = vst [vmem:[#allocation8 + $0x70] sm:$0xff] %v794
    %923 = vst [vmem:[#allocation8 + $0x78] sm:$0xff] %v795
    %924 = vst [vmem:[#allocation8 + $0x80] sm:$0xff] %v796
    %925 = vst [vmem:[#allocation8 + $0x88] sm:$0xff] %v797
    %926 = vst [vmem:[#allocation8 + $0x90] sm:$0xff] %v798
    %927 = vst [vmem:[#allocation8 + $0x98] sm:$0xff] %v799
    %928 = vst [vmem:[#allocation8 + $0xa0] sm:$0xff] %v800
    %929 = vst [vmem:[#allocation8 + $0xa8] sm:$0xff] %v801
    %930 = vst [vmem:[#allocation8 + $0xb0] sm:$0xff] %v802
    %931 = vst [vmem:[#allocation8 + $0xb8] sm:$0xff] %v803
    %932 = vst [vmem:[#allocation8 + $0xc0] sm:$0xff] %v804
    %933 = vst [vmem:[#allocation8 + $0xc8] sm:$0xff] %v805
    %934 = vst [vmem:[#allocation8 + $0xd0] sm:$0xff] %v806
    %935 = vst [vmem:[#allocation8 + $0xd8] sm:$0xff] %v807
    %936 = vst [vmem:[#allocation8 + $0xe0] sm:$0xff] %v808
    %937 = vst [vmem:[#allocation8 + $0xe8] sm:$0xff] %v809
    %938 = vst [vmem:[#allocation8 + $0xf0] sm:$0xff] %v810
    %939 = vst [vmem:[#allocation8 + $0xf8] sm:$0xff] %v811
    %940 = vst [vmem:[#allocation8 + $0x100] sm:$0xff] %v812
    %941 = vst [vmem:[#allocation8 + $0x108] sm:$0xff] %v813
    %942 = vst [vmem:[#allocation8 + $0x110] sm:$0xff] %v814
    %943 = vst [vmem:[#allocation8 + $0x118] sm:$0xff] %v815
    %944 = vst [vmem:[#allocation8 + $0x120] sm:$0xff] %v816
    %945 = vst [vmem:[#allocation8 + $0x128] sm:$0xff] %v817
    %946 = vst [vmem:[#allocation8 + $0x130] sm:$0xff] %v818
    %947 = vst [vmem:[#allocation8 + $0x138] sm:$0xff] %v819
    %948 = vst [vmem:[#allocation8 + $0x140] sm:$0xff] %v820
    %949 = vst [vmem:[#allocation8 + $0x148] sm:$0xff] %v821
    %950 = vst [vmem:[#allocation8 + $0x150] sm:$0xff] %v822
    %951 = vst [vmem:[#allocation8 + $0x158] sm:$0xff] %v823
    %952 = vst [vmem:[#allocation8 + $0x160] sm:$0xff] %v824
    %953 = vst [vmem:[#allocation8 + $0x168] sm:$0xff] %v825
    %954 = vst [vmem:[#allocation8 + $0x170] sm:$0xff] %v826
    %955 = vst [vmem:[#allocation8 + $0x178] sm:$0xff] %v827
    %956 = vst [vmem:[#allocation8 + $0x180] sm:$0xff] %v828
    %957 = vst [vmem:[#allocation8 + $0x188] sm:$0xff] %v829
    %958 = vst [vmem:[#allocation8 + $0x190] sm:$0xff] %v830
    %959 = vst [vmem:[#allocation8 + $0x198] sm:$0xff] %v831
    %960 = vst [vmem:[#allocation8 + $0x1a0] sm:$0xff] %v832
    %961 = vst [vmem:[#allocation8 + $0x1a8] sm:$0xff] %v833
    %962 = vst [vmem:[#allocation8 + $0x1b0] sm:$0xff] %v834
    %963 = vst [vmem:[#allocation8 + $0x1b8] sm:$0xff] %v835
    %964 = vst [vmem:[#allocation8 + $0x1c0] sm:$0xff] %v836
    %965 = vst [vmem:[#allocation8 + $0x1c8] sm:$0xff] %v837
    %966 = vst [vmem:[#allocation8 + $0x1d0] sm:$0xff] %v838
    %967 = vst [vmem:[#allocation8 + $0x1d8] sm:$0xff] %v839
    %968 = vst [vmem:[#allocation8 + $0x1e0] sm:$0xff] %v840
    %969 = vst [vmem:[#allocation8 + $0x1e8] sm:$0xff] %v841
    %970 = vst [vmem:[#allocation8 + $0x1f0] sm:$0xff] %v842
    %971 = vst [vmem:[#allocation8 + $0x1f8] sm:$0xff] %v843
    // Predicated region
    $region26: #{bottleneck_forward.9} parent=1 // pred_check
      _
    $region27: #{bottleneck_forward.9} parent=1 // pred_check_branch
      %973 = sbr.rel (0) target = $region29
    $region28: #{bottleneck_forward.9} parent=1 // pred_region
      %s975 = ssub.s32 8192, 8192
      %976 = vsyncadd [#allocation4], %s975
      %s977 = sshll.u32 [#allocation8], 4
      %s978 = int_to_ptr.vmem [resolvable:$true] %s977
      %983 = dma.vmem_to_hbm [thread:$0]  %s978, 8192, %s3, [#allocation4], 128, 128, 8
    $region29: #{bottleneck_forward.9} parent=1 // pred_fallthru
      _
    // Predicated region
    $region30: #{bottleneck_forward.9} parent=1 // pred_check
      _
    $region31: #{bottleneck_forward.9} parent=1 // pred_check_branch
      %985 = sbr.rel (0) target = $region33
    $region32: #{bottleneck_forward.9} parent=1 // pred_region
      %986 = dma.done [#allocation4], 8192
    $region33: #{bottleneck_forward.9} parent=1 // pred_fallthru
      _
    %987 = vsyncpa [#allocation3], 1
    %988 = vsyncpa [#allocation6], 1
    %989 = vsyncpa [#allocation4], 1

// kernel: bottleneck_forward.15
$region0: #{bottleneck_forward.15}
  #allocation0 [shape = 'u32[]', space=smem, size = 0x4, offset = 0x4, fixed_abs, tag = 'smem constant byte address 0x4 - core index']
  #allocation1 [shape = 'u32[144,128]{1,0:T(1,128)}', space=vmem, size = 0x12000, scoped, tag = 'internal scratch']
  %s0 = inlined_call_operand.hbm [shape: bf16[512,256], index: 0, kind: input, shape index: {}]
  %s1 = inlined_call_operand.hbm [shape: f32[1,256], index: 1, kind: input, shape index: {}]
  %s2 = inlined_call_operand.hbm [shape: f32[1,256], index: 2, kind: input, shape index: {}]
  %s3 = inlined_call_operand.hbm [shape: bf16[512,256], index: 3, kind: input, shape index: {}]
  %s4 = inlined_call_operand.hbm [shape: f32[512,256], index: 4, kind: output, shape index: {}]
  %s5 = sld [smem:[#allocation0]]
  $region42: #{bottleneck_forward.15} parent=0
    _
  %s7 = ssub.s32 1, %s5
  %s8 = scalar_select 0, %s7, %s5
  $region1: #{bottleneck_forward.15} parent=0
    #allocation2 [shape = 'u8[262144]{0}', space=vmem, size = 0x40000, scoped, tag = 'input window, operand 0, single buffered']
    #allocation3 [shape = 's32[1]{0}', space=sflag, size = 0x4, scoped, tag = 'scoped memory for bottleneck_forward.15']
    #allocation4 [shape = 's32[1]{0}', space=sflag, size = 0x4, scoped, tag = 'scoped memory for bottleneck_forward.15']
    #allocation5 [shape = 'u8[1024]{0}', space=vmem, size = 0x400, scoped, tag = 'input window, operand 1, single buffered']
    #allocation6 [shape = 's32[1]{0}', space=sflag, size = 0x4, scoped, tag = 'scoped memory for bottleneck_forward.15']
    #allocation7 [shape = 'u8[1024]{0}', space=vmem, size = 0x400, scoped, tag = 'input window, operand 2, single buffered']
    #allocation8 [shape = 'u8[262144]{0}', space=vmem, size = 0x40000, scoped, tag = 'input window, operand 3, single buffered']
    #allocation9 [shape = 's32[1]{0}', space=sflag, size = 0x4, scoped, tag = 'scoped memory for bottleneck_forward.15']
    #allocation10 [shape = 'u8[524288]{0}', space=vmem, size = 0x80000, scoped, tag = 'output window, operand 0, single buffered']
    %9 = vsyncpa [#allocation3], 0
    %10 = vsyncpa [#allocation6], 0
    %11 = vsyncpa [#allocation9], 0
    %12 = vsyncpa [#allocation4], 0
    // Predicated region
    $region2: #{bottleneck_forward.15} parent=1 // pred_check
      _
    $region3: #{bottleneck_forward.15} parent=1 // pred_check_branch
      %14 = sbr.rel (0) target = $region5
    $region4: #{bottleneck_forward.15} parent=1 // pred_region
      %s16 = ssub.s32 8192, 8192
      %17 = vsyncadd [#allocation3], %s16
      %s18 = sshll.u32 [#allocation2], 4
      %s19 = int_to_ptr.vmem [resolvable:$true] %s18
      %24 = dma.hbm_to_vmem [thread:$0]  %s0, 8192, %s19, [#allocation3], 128, 128, 8
    $region5: #{bottleneck_forward.15} parent=1 // pred_fallthru
      _
    // Predicated region
    $region6: #{bottleneck_forward.15} parent=1 // pred_check
      _
    $region7: #{bottleneck_forward.15} parent=1 // pred_check_branch
      %26 = sbr.rel (0) target = $region9
    $region8: #{bottleneck_forward.15} parent=1 // pred_region
      %s28 = ssub.s32 32, 32
      %29 = vsyncadd [#allocation6], %s28
      %s31 = sshll.u32 [#allocation5], 4
      %s32 = int_to_ptr.vmem [resolvable:$true] %s31
      %34 = dma.hbm_to_vmem [thread:$0]  %s1, 32, %s32, [#allocation6]
    $region9: #{bottleneck_forward.15} parent=1 // pred_fallthru
      _
    // Predicated region
    $region10: #{bottleneck_forward.15} parent=1 // pred_check
      _
    $region11: #{bottleneck_forward.15} parent=1 // pred_check_branch
      %36 = sbr.rel (0) target = $region13
    $region12: #{bottleneck_forward.15} parent=1 // pred_region
      %s38 = ssub.s32 32, 32
      %39 = vsyncadd [#allocation6], %s38
      %s41 = sshll.u32 [#allocation7], 4
      %s42 = int_to_ptr.vmem [resolvable:$true] %s41
      %44 = dma.hbm_to_vmem [thread:$0]  %s2, 32, %s42, [#allocation6]
    $region13: #{bottleneck_forward.15} parent=1 // pred_fallthru
      _
    // Predicated region
    $region14: #{bottleneck_forward.15} parent=1 // pred_check
      _
    $region15: #{bottleneck_forward.15} parent=1 // pred_check_branch
      %46 = sbr.rel (0) target = $region17
    $region16: #{bottleneck_forward.15} parent=1 // pred_region
      %s48 = ssub.s32 8192, 8192
      %49 = vsyncadd [#allocation9], %s48
      %s50 = sshll.u32 [#allocation8], 4
      %s51 = int_to_ptr.vmem [resolvable:$true] %s50
      %56 = dma.hbm_to_vmem [thread:$0]  %s3, 8192, %s51, [#allocation9], 128, 128, 8
    $region17: #{bottleneck_forward.15} parent=1 // pred_fallthru
      _
    // Predicated region
    $region18: #{bottleneck_forward.15} parent=1 // pred_check
      _
    $region19: #{bottleneck_forward.15} parent=1 // pred_check_branch
      %58 = sbr.rel (0) target = $region21
    $region20: #{bottleneck_forward.15} parent=1 // pred_region
      %59 = dma.done [#allocation3], 8192
    $region21: #{bottleneck_forward.15} parent=1 // pred_fallthru
      _
    // Predicated region
    $region22: #{bottleneck_forward.15} parent=1 // pred_check
      _
    $region23: #{bottleneck_forward.15} parent=1 // pred_check_branch
      %61 = sbr.rel (0) target = $region25
    $region24: #{bottleneck_forward.15} parent=1 // pred_region
      %62 = dma.done [#allocation6], 32
    $region25: #{bottleneck_forward.15} parent=1 // pred_fallthru
      _
    // Predicated region
    $region26: #{bottleneck_forward.15} parent=1 // pred_check
      _
    $region27: #{bottleneck_forward.15} parent=1 // pred_check_branch
      %64 = sbr.rel (0) target = $region29
    $region28: #{bottleneck_forward.15} parent=1 // pred_region
      %65 = dma.done [#allocation6], 32
    $region29: #{bottleneck_forward.15} parent=1 // pred_fallthru
      _
    // Predicated region
    $region30: #{bottleneck_forward.15} parent=1 // pred_check
      _
    $region31: #{bottleneck_forward.15} parent=1 // pred_check_branch
      %67 = sbr.rel (0) target = $region33
    $region32: #{bottleneck_forward.15} parent=1 // pred_region
      %68 = dma.done [#allocation9], 8192
    $region33: #{bottleneck_forward.15} parent=1 // pred_fallthru
      _
    %v69 = vld [vmem:[#allocation2] sm:$0xff]
    %v70 = vld [vmem:[#allocation2 + $0x8] sm:$0xff]
    %v71 = vld [vmem:[#allocation2 + $0x10] sm:$0xff]
    %v72 = vld [vmem:[#allocation2 + $0x18] sm:$0xff]
    %v73 = vld [vmem:[#allocation2 + $0x20] sm:$0xff]
    %v74 = vld [vmem:[#allocation2 + $0x28] sm:$0xff]
    %v75 = vld [vmem:[#allocation2 + $0x30] sm:$0xff]
    %v76 = vld [vmem:[#allocation2 + $0x38] sm:$0xff]
    %v77 = vld [vmem:[#allocation2 + $0x40] sm:$0xff]
    %v78 = vld [vmem:[#allocation2 + $0x48] sm:$0xff]
    %v79 = vld [vmem:[#allocation2 + $0x50] sm:$0xff]
    %v80 = vld [vmem:[#allocation2 + $0x58] sm:$0xff]
    %v81 = vld [vmem:[#allocation2 + $0x60] sm:$0xff]
    %v82 = vld [vmem:[#allocation2 + $0x68] sm:$0xff]
    %v83 = vld [vmem:[#allocation2 + $0x70] sm:$0xff]
    %v84 = vld [vmem:[#allocation2 + $0x78] sm:$0xff]
    %v85 = vld [vmem:[#allocation2 + $0x80] sm:$0xff]
    %v86 = vld [vmem:[#allocation2 + $0x88] sm:$0xff]
    %v87 = vld [vmem:[#allocation2 + $0x90] sm:$0xff]
    %v88 = vld [vmem:[#allocation2 + $0x98] sm:$0xff]
    %v89 = vld [vmem:[#allocation2 + $0xa0] sm:$0xff]
    %v90 = vld [vmem:[#allocation2 + $0xa8] sm:$0xff]
    %v91 = vld [vmem:[#allocation2 + $0xb0] sm:$0xff]
    %v92 = vld [vmem:[#allocation2 + $0xb8] sm:$0xff]
    %v93 = vld [vmem:[#allocation2 + $0xc0] sm:$0xff]
    %v94 = vld [vmem:[#allocation2 + $0xc8] sm:$0xff]
    %v95 = vld [vmem:[#allocation2 + $0xd0] sm:$0xff]
    %v96 = vld [vmem:[#allocation2 + $0xd8] sm:$0xff]
    %v97 = vld [vmem:[#allocation2 + $0xe0] sm:$0xff]
    %v98 = vld [vmem:[#allocation2 + $0xe8] sm:$0xff]
    %v99 = vld [vmem:[#allocation2 + $0xf0] sm:$0xff]
    %v100 = vld [vmem:[#allocation2 + $0xf8] sm:$0xff]
    %v101 = vld [vmem:[#allocation2 + $0x100] sm:$0xff]
    %v102 = vld [vmem:[#allocation2 + $0x108] sm:$0xff]
    %v103 = vld [vmem:[#allocation2 + $0x110] sm:$0xff]
    %v104 = vld [vmem:[#allocation2 + $0x118] sm:$0xff]
    %v105 = vld [vmem:[#allocation2 + $0x120] sm:$0xff]
    %v106 = vld [vmem:[#allocation2 + $0x128] sm:$0xff]
    %v107 = vld [vmem:[#allocation2 + $0x130] sm:$0xff]
    %v108 = vld [vmem:[#allocation2 + $0x138] sm:$0xff]
    %v109 = vld [vmem:[#allocation2 + $0x140] sm:$0xff]
    %v110 = vld [vmem:[#allocation2 + $0x148] sm:$0xff]
    %v111 = vld [vmem:[#allocation2 + $0x150] sm:$0xff]
    %v112 = vld [vmem:[#allocation2 + $0x158] sm:$0xff]
    %v113 = vld [vmem:[#allocation2 + $0x160] sm:$0xff]
    %v114 = vld [vmem:[#allocation2 + $0x168] sm:$0xff]
    %v115 = vld [vmem:[#allocation2 + $0x170] sm:$0xff]
    %v116 = vld [vmem:[#allocation2 + $0x178] sm:$0xff]
    %v117 = vld [vmem:[#allocation2 + $0x180] sm:$0xff]
    %v118 = vld [vmem:[#allocation2 + $0x188] sm:$0xff]
    %v119 = vld [vmem:[#allocation2 + $0x190] sm:$0xff]
    %v120 = vld [vmem:[#allocation2 + $0x198] sm:$0xff]
    %v121 = vld [vmem:[#allocation2 + $0x1a0] sm:$0xff]
    %v122 = vld [vmem:[#allocation2 + $0x1a8] sm:$0xff]
    %v123 = vld [vmem:[#allocation2 + $0x1b0] sm:$0xff]
    %v124 = vld [vmem:[#allocation2 + $0x1b8] sm:$0xff]
    %v125 = vld [vmem:[#allocation2 + $0x1c0] sm:$0xff]
    %v126 = vld [vmem:[#allocation2 + $0x1c8] sm:$0xff]
    %v127 = vld [vmem:[#allocation2 + $0x1d0] sm:$0xff]
    %v128 = vld [vmem:[#allocation2 + $0x1d8] sm:$0xff]
    %v129 = vld [vmem:[#allocation2 + $0x1e0] sm:$0xff]
    %v130 = vld [vmem:[#allocation2 + $0x1e8] sm:$0xff]
    %v131 = vld [vmem:[#allocation2 + $0x1f0] sm:$0xff]
    %v132 = vld [vmem:[#allocation2 + $0x1f8] sm:$0xff]
    %v133 = vunpack.c.l.bf16 %v69
    %v134 = vunpack.c.h.bf16 %v69
    %v135 = vunpack.c.l.bf16 %v70
    %v136 = vunpack.c.h.bf16 %v70
    %v137 = vunpack.c.l.bf16 %v71
    %v138 = vunpack.c.h.bf16 %v71
    %v139 = vunpack.c.l.bf16 %v72
    %v140 = vunpack.c.h.bf16 %v72
    %v141 = vunpack.c.l.bf16 %v73
    %v142 = vunpack.c.h.bf16 %v73
    %v143 = vunpack.c.l.bf16 %v74
    %v144 = vunpack.c.h.bf16 %v74
    %v145 = vunpack.c.l.bf16 %v75
    %v146 = vunpack.c.h.bf16 %v75
    %v147 = vunpack.c.l.bf16 %v76
    %v148 = vunpack.c.h.bf16 %v76
    %v149 = vunpack.c.l.bf16 %v77
    %v150 = vunpack.c.h.bf16 %v77
    %v151 = vunpack.c.l.bf16 %v78
    %v152 = vunpack.c.h.bf16 %v78
    %v153 = vunpack.c.l.bf16 %v79
    %v154 = vunpack.c.h.bf16 %v79
    %v155 = vunpack.c.l.bf16 %v80
    %v156 = vunpack.c.h.bf16 %v80
    %v157 = vunpack.c.l.bf16 %v81
    %v158 = vunpack.c.h.bf16 %v81
    %v159 = vunpack.c.l.bf16 %v82
    %v160 = vunpack.c.h.bf16 %v82
    %v161 = vunpack.c.l.bf16 %v83
    %v162 = vunpack.c.h.bf16 %v83
    %v163 = vunpack.c.l.bf16 %v84
    %v164 = vunpack.c.h.bf16 %v84
    %v165 = vunpack.c.l.bf16 %v85
    %v166 = vunpack.c.h.bf16 %v85
    %v167 = vunpack.c.l.bf16 %v86
    %v168 = vunpack.c.h.bf16 %v86
    %v169 = vunpack.c.l.bf16 %v87
    %v170 = vunpack.c.h.bf16 %v87
    %v171 = vunpack.c.l.bf16 %v88
    %v172 = vunpack.c.h.bf16 %v88
    %v173 = vunpack.c.l.bf16 %v89
    %v174 = vunpack.c.h.bf16 %v89
    %v175 = vunpack.c.l.bf16 %v90
    %v176 = vunpack.c.h.bf16 %v90
    %v177 = vunpack.c.l.bf16 %v91
    %v178 = vunpack.c.h.bf16 %v91
    %v179 = vunpack.c.l.bf16 %v92
    %v180 = vunpack.c.h.bf16 %v92
    %v181 = vunpack.c.l.bf16 %v93
    %v182 = vunpack.c.h.bf16 %v93
    %v183 = vunpack.c.l.bf16 %v94
    %v184 = vunpack.c.h.bf16 %v94
    %v185 = vunpack.c.l.bf16 %v95
    %v186 = vunpack.c.h.bf16 %v95
    %v187 = vunpack.c.l.bf16 %v96
    %v188 = vunpack.c.h.bf16 %v96
    %v189 = vunpack.c.l.bf16 %v97
    %v190 = vunpack.c.h.bf16 %v97
    %v191 = vunpack.c.l.bf16 %v98
    %v192 = vunpack.c.h.bf16 %v98
    %v193 = vunpack.c.l.bf16 %v99
    %v194 = vunpack.c.h.bf16 %v99
    %v195 = vunpack.c.l.bf16 %v100
    %v196 = vunpack.c.h.bf16 %v100
    %v197 = vunpack.c.l.bf16 %v101
    %v198 = vunpack.c.h.bf16 %v101
    %v199 = vunpack.c.l.bf16 %v102
    %v200 = vunpack.c.h.bf16 %v102
    %v201 = vunpack.c.l.bf16 %v103
    %v202 = vunpack.c.h.bf16 %v103
    %v203 = vunpack.c.l.bf16 %v104
    %v204 = vunpack.c.h.bf16 %v104
    %v205 = vunpack.c.l.bf16 %v105
    %v206 = vunpack.c.h.bf16 %v105
    %v207 = vunpack.c.l.bf16 %v106
    %v208 = vunpack.c.h.bf16 %v106
    %v209 = vunpack.c.l.bf16 %v107
    %v210 = vunpack.c.h.bf16 %v107
    %v211 = vunpack.c.l.bf16 %v108
    %v212 = vunpack.c.h.bf16 %v108
    %v213 = vunpack.c.l.bf16 %v109
    %v214 = vunpack.c.h.bf16 %v109
    %v215 = vunpack.c.l.bf16 %v110
    %v216 = vunpack.c.h.bf16 %v110
    %v217 = vunpack.c.l.bf16 %v111
    %v218 = vunpack.c.h.bf16 %v111
    %v219 = vunpack.c.l.bf16 %v112
    %v220 = vunpack.c.h.bf16 %v112
    %v221 = vunpack.c.l.bf16 %v113
    %v222 = vunpack.c.h.bf16 %v113
    %v223 = vunpack.c.l.bf16 %v114
    %v224 = vunpack.c.h.bf16 %v114
    %v225 = vunpack.c.l.bf16 %v115
    %v226 = vunpack.c.h.bf16 %v115
    %v227 = vunpack.c.l.bf16 %v116
    %v228 = vunpack.c.h.bf16 %v116
    %v229 = vunpack.c.l.bf16 %v117
    %v230 = vunpack.c.h.bf16 %v117
    %v231 = vunpack.c.l.bf16 %v118
    %v232 = vunpack.c.h.bf16 %v118
    %v233 = vunpack.c.l.bf16 %v119
    %v234 = vunpack.c.h.bf16 %v119
    %v235 = vunpack.c.l.bf16 %v120
    %v236 = vunpack.c.h.bf16 %v120
    %v237 = vunpack.c.l.bf16 %v121
    %v238 = vunpack.c.h.bf16 %v121
    %v239 = vunpack.c.l.bf16 %v122
    %v240 = vunpack.c.h.bf16 %v122
    %v241 = vunpack.c.l.bf16 %v123
    %v242 = vunpack.c.h.bf16 %v123
    %v243 = vunpack.c.l.bf16 %v124
    %v244 = vunpack.c.h.bf16 %v124
    %v245 = vunpack.c.l.bf16 %v125
    %v246 = vunpack.c.h.bf16 %v125
    %v247 = vunpack.c.l.bf16 %v126
    %v248 = vunpack.c.h.bf16 %v126
    %v249 = vunpack.c.l.bf16 %v127
    %v250 = vunpack.c.h.bf16 %v127
    %v251 = vunpack.c.l.bf16 %v128
    %v252 = vunpack.c.h.bf16 %v128
    %v253 = vunpack.c.l.bf16 %v129
    %v254 = vunpack.c.h.bf16 %v129
    %v255 = vunpack.c.l.bf16 %v130
    %v256 = vunpack.c.h.bf16 %v130
    %v257 = vunpack.c.l.bf16 %v131
    %v258 = vunpack.c.h.bf16 %v131
    %v259 = vunpack.c.l.bf16 %v132
    %v260 = vunpack.c.h.bf16 %v132
    %v261 = vld [vmem:[#allocation5] sm:$0x3]
    %v263 = vlaneseq
    %v264 = vshrl.u32 %v263, 7
    %v265 = vsub.s32 0, %v264
    %v266 = vrot.slane %v261, %v265
    %v267 = vlaneseq
    %v268 = vshrl.u32 %v267, 7
    %v269 = vsub.s32 1, %v268
    %v270 = vrot.slane %v261, %v269
    %v273 = vsub.f32 %v133, %v266
    %v274 = vsub.f32 %v134, %v270
    %v275 = vsub.f32 %v135, %v266
    %v276 = vsub.f32 %v136, %v270
    %v277 = vsub.f32 %v137, %v266
    %v278 = vsub.f32 %v138, %v270
    %v279 = vsub.f32 %v139, %v266
    %v280 = vsub.f32 %v140, %v270
    %v281 = vsub.f32 %v141, %v266
    %v282 = vsub.f32 %v142, %v270
    %v283 = vsub.f32 %v143, %v266
    %v284 = vsub.f32 %v144, %v270
    %v285 = vsub.f32 %v145, %v266
    %v286 = vsub.f32 %v146, %v270
    %v287 = vsub.f32 %v147, %v266
    %v288 = vsub.f32 %v148, %v270
    %v289 = vsub.f32 %v149, %v266
    %v290 = vsub.f32 %v150, %v270
    %v291 = vsub.f32 %v151, %v266
    %v292 = vsub.f32 %v152, %v270
    %v293 = vsub.f32 %v153, %v266
    %v294 = vsub.f32 %v154, %v270
    %v295 = vsub.f32 %v155, %v266
    %v296 = vsub.f32 %v156, %v270
    %v297 = vsub.f32 %v157, %v266
    %v298 = vsub.f32 %v158, %v270
    %v299 = vsub.f32 %v159, %v266
    %v300 = vsub.f32 %v160, %v270
    %v301 = vsub.f32 %v161, %v266
    %v302 = vsub.f32 %v162, %v270
    %v303 = vsub.f32 %v163, %v266
    %v304 = vsub.f32 %v164, %v270
    %v305 = vsub.f32 %v165, %v266
    %v306 = vsub.f32 %v166, %v270
    %v307 = vsub.f32 %v167, %v266
    %v308 = vsub.f32 %v168, %v270
    %v309 = vsub.f32 %v169, %v266
    %v310 = vsub.f32 %v170, %v270
    %v311 = vsub.f32 %v171, %v266
    %v312 = vsub.f32 %v172, %v270
    %v313 = vsub.f32 %v173, %v266
    %v314 = vsub.f32 %v174, %v270
    %v315 = vsub.f32 %v175, %v266
    %v316 = vsub.f32 %v176, %v270
    %v317 = vsub.f32 %v177, %v266
    %v318 = vsub.f32 %v178, %v270
    %v319 = vsub.f32 %v179, %v266
    %v320 = vsub.f32 %v180, %v270
    %v321 = vsub.f32 %v181, %v266
    %v322 = vsub.f32 %v182, %v270
    %v323 = vsub.f32 %v183, %v266
    %v324 = vsub.f32 %v184, %v270
    %v325 = vsub.f32 %v185, %v266
    %v326 = vsub.f32 %v186, %v270
    %v327 = vsub.f32 %v187, %v266
    %v328 = vsub.f32 %v188, %v270
    %v329 = vsub.f32 %v189, %v266
    %v330 = vsub.f32 %v190, %v270
    %v331 = vsub.f32 %v191, %v266
    %v332 = vsub.f32 %v192, %v270
    %v333 = vsub.f32 %v193, %v266
    %v334 = vsub.f32 %v194, %v270
    %v335 = vsub.f32 %v195, %v266
    %v336 = vsub.f32 %v196, %v270
    %v337 = vsub.f32 %v197, %v266
    %v338 = vsub.f32 %v198, %v270
    %v339 = vsub.f32 %v199, %v266
    %v340 = vsub.f32 %v200, %v270
    %v341 = vsub.f32 %v201, %v266
    %v342 = vsub.f32 %v202, %v270
    %v343 = vsub.f32 %v203, %v266
    %v344 = vsub.f32 %v204, %v270
    %v345 = vsub.f32 %v205, %v266
    %v346 = vsub.f32 %v206, %v270
    %v347 = vsub.f32 %v207, %v266
    %v348 = vsub.f32 %v208, %v270
    %v349 = vsub.f32 %v209, %v266
    %v350 = vsub.f32 %v210, %v270
    %v351 = vsub.f32 %v211, %v266
    %v352 = vsub.f32 %v212, %v270
    %v353 = vsub.f32 %v213, %v266
    %v354 = vsub.f32 %v214, %v270
    %v355 = vsub.f32 %v215, %v266
    %v356 = vsub.f32 %v216, %v270
    %v357 = vsub.f32 %v217, %v266
    %v358 = vsub.f32 %v218, %v270
    %v359 = vsub.f32 %v219, %v266
    %v360 = vsub.f32 %v220, %v270
    %v361 = vsub.f32 %v221, %v266
    %v362 = vsub.f32 %v222, %v270
    %v363 = vsub.f32 %v223, %v266
    %v364 = vsub.f32 %v224, %v270
    %v365 = vsub.f32 %v225, %v266
    %v366 = vsub.f32 %v226, %v270
    %v367 = vsub.f32 %v227, %v266
    %v368 = vsub.f32 %v228, %v270
    %v369 = vsub.f32 %v229, %v266
    %v370 = vsub.f32 %v230, %v270
    %v371 = vsub.f32 %v231, %v266
    %v372 = vsub.f32 %v232, %v270
    %v373 = vsub.f32 %v233, %v266
    %v374 = vsub.f32 %v234, %v270
    %v375 = vsub.f32 %v235, %v266
    %v376 = vsub.f32 %v236, %v270
    %v377 = vsub.f32 %v237, %v266
    %v378 = vsub.f32 %v238, %v270
    %v379 = vsub.f32 %v239, %v266
    %v380 = vsub.f32 %v240, %v270
    %v381 = vsub.f32 %v241, %v266
    %v382 = vsub.f32 %v242, %v270
    %v383 = vsub.f32 %v243, %v266
    %v384 = vsub.f32 %v244, %v270
    %v385 = vsub.f32 %v245, %v266
    %v386 = vsub.f32 %v246, %v270
    %v387 = vsub.f32 %v247, %v266
    %v388 = vsub.f32 %v248, %v270
    %v389 = vsub.f32 %v249, %v266
    %v390 = vsub.f32 %v250, %v270
    %v391 = vsub.f32 %v251, %v266
    %v392 = vsub.f32 %v252, %v270
    %v393 = vsub.f32 %v253, %v266
    %v394 = vsub.f32 %v254, %v270
    %v395 = vsub.f32 %v255, %v266
    %v396 = vsub.f32 %v256, %v270
    %v397 = vsub.f32 %v257, %v266
    %v398 = vsub.f32 %v258, %v270
    %v399 = vsub.f32 %v259, %v266
    %v400 = vsub.f32 %v260, %v270
    %v401 = vld [vmem:[#allocation7] sm:$0x3]
    %v403 = vlaneseq
    %v404 = vshrl.u32 %v403, 7
    %v405 = vsub.s32 0, %v404
    %v406 = vrot.slane %v401, %v405
    %v407 = vlaneseq
    %v408 = vshrl.u32 %v407, 7
    %v409 = vsub.s32 1, %v408
    %v410 = vrot.slane %v401, %v409
    %v413 = vmul.f32 %v273, %v406
    %v414 = vmul.f32 %v274, %v410
    %v415 = vmul.f32 %v275, %v406
    %v416 = vmul.f32 %v276, %v410
    %v417 = vmul.f32 %v277, %v406
    %v418 = vmul.f32 %v278, %v410
    %v419 = vmul.f32 %v279, %v406
    %v420 = vmul.f32 %v280, %v410
    %v421 = vmul.f32 %v281, %v406
    %v422 = vmul.f32 %v282, %v410
    %v423 = vmul.f32 %v283, %v406
    %v424 = vmul.f32 %v284, %v410
    %v425 = vmul.f32 %v285, %v406
    %v426 = vmul.f32 %v286, %v410
    %v427 = vmul.f32 %v287, %v406
    %v428 = vmul.f32 %v288, %v410
    %v429 = vmul.f32 %v289, %v406
    %v430 = vmul.f32 %v290, %v410
    %v431 = vmul.f32 %v291, %v406
    %v432 = vmul.f32 %v292, %v410
    %v433 = vmul.f32 %v293, %v406
    %v434 = vmul.f32 %v294, %v410
    %v435 = vmul.f32 %v295, %v406
    %v436 = vmul.f32 %v296, %v410
    %v437 = vmul.f32 %v297, %v406
    %v438 = vmul.f32 %v298, %v410
    %v439 = vmul.f32 %v299, %v406
    %v440 = vmul.f32 %v300, %v410
    %v441 = vmul.f32 %v301, %v406
    %v442 = vmul.f32 %v302, %v410
    %v443 = vmul.f32 %v303, %v406
    %v444 = vmul.f32 %v304, %v410
    %v445 = vmul.f32 %v305, %v406
    %v446 = vmul.f32 %v306, %v410
    %v447 = vmul.f32 %v307, %v406
    %v448 = vmul.f32 %v308, %v410
    %v449 = vmul.f32 %v309, %v406
    %v450 = vmul.f32 %v310, %v410
    %v451 = vmul.f32 %v311, %v406
    %v452 = vmul.f32 %v312, %v410
    %v453 = vmul.f32 %v313, %v406
    %v454 = vmul.f32 %v314, %v410
    %v455 = vmul.f32 %v315, %v406
    %v456 = vmul.f32 %v316, %v410
    %v457 = vmul.f32 %v317, %v406
    %v458 = vmul.f32 %v318, %v410
    %v459 = vmul.f32 %v319, %v406
    %v460 = vmul.f32 %v320, %v410
    %v461 = vmul.f32 %v321, %v406
    %v462 = vmul.f32 %v322, %v410
    %v463 = vmul.f32 %v323, %v406
    %v464 = vmul.f32 %v324, %v410
    %v465 = vmul.f32 %v325, %v406
    %v466 = vmul.f32 %v326, %v410
    %v467 = vmul.f32 %v327, %v406
    %v468 = vmul.f32 %v328, %v410
    %v469 = vmul.f32 %v329, %v406
    %v470 = vmul.f32 %v330, %v410
    %v471 = vmul.f32 %v331, %v406
    %v472 = vmul.f32 %v332, %v410
    %v473 = vmul.f32 %v333, %v406
    %v474 = vmul.f32 %v334, %v410
    %v475 = vmul.f32 %v335, %v406
    %v476 = vmul.f32 %v336, %v410
    %v477 = vmul.f32 %v337, %v406
    %v478 = vmul.f32 %v338, %v410
    %v479 = vmul.f32 %v339, %v406
    %v480 = vmul.f32 %v340, %v410
    %v481 = vmul.f32 %v341, %v406
    %v482 = vmul.f32 %v342, %v410
    %v483 = vmul.f32 %v343, %v406
    %v484 = vmul.f32 %v344, %v410
    %v485 = vmul.f32 %v345, %v406
    %v486 = vmul.f32 %v346, %v410
    %v487 = vmul.f32 %v347, %v406
    %v488 = vmul.f32 %v348, %v410
    %v489 = vmul.f32 %v349, %v406
    %v490 = vmul.f32 %v350, %v410
    %v491 = vmul.f32 %v351, %v406
    %v492 = vmul.f32 %v352, %v410
    %v493 = vmul.f32 %v353, %v406
    %v494 = vmul.f32 %v354, %v410
    %v495 = vmul.f32 %v355, %v406
    %v496 = vmul.f32 %v356, %v410
    %v497 = vmul.f32 %v357, %v406
    %v498 = vmul.f32 %v358, %v410
    %v499 = vmul.f32 %v359, %v406
    %v500 = vmul.f32 %v360, %v410
    %v501 = vmul.f32 %v361, %v406
    %v502 = vmul.f32 %v362, %v410
    %v503 = vmul.f32 %v363, %v406
    %v504 = vmul.f32 %v364, %v410
    %v505 = vmul.f32 %v365, %v406
    %v506 = vmul.f32 %v366, %v410
    %v507 = vmul.f32 %v367, %v406
    %v508 = vmul.f32 %v368, %v410
    %v509 = vmul.f32 %v369, %v406
    %v510 = vmul.f32 %v370, %v410
    %v511 = vmul.f32 %v371, %v406
    %v512 = vmul.f32 %v372, %v410
    %v513 = vmul.f32 %v373, %v406
    %v514 = vmul.f32 %v374, %v410
    %v515 = vmul.f32 %v375, %v406
    %v516 = vmul.f32 %v376, %v410
    %v517 = vmul.f32 %v377, %v406
    %v518 = vmul.f32 %v378, %v410
    %v519 = vmul.f32 %v379, %v406
    %v520 = vmul.f32 %v380, %v410
    %v521 = vmul.f32 %v381, %v406
    %v522 = vmul.f32 %v382, %v410
    %v523 = vmul.f32 %v383, %v406
    %v524 = vmul.f32 %v384, %v410
    %v525 = vmul.f32 %v385, %v406
    %v526 = vmul.f32 %v386, %v410
    %v527 = vmul.f32 %v387, %v406
    %v528 = vmul.f32 %v388, %v410
    %v529 = vmul.f32 %v389, %v406
    %v530 = vmul.f32 %v390, %v410
    %v531 = vmul.f32 %v391, %v406
    %v532 = vmul.f32 %v392, %v410
    %v533 = vmul.f32 %v393, %v406
    %v534 = vmul.f32 %v394, %v410
    %v535 = vmul.f32 %v395, %v406
    %v536 = vmul.f32 %v396, %v410
    %v537 = vmul.f32 %v397, %v406
    %v538 = vmul.f32 %v398, %v410
    %v539 = vmul.f32 %v399, %v406
    %v540 = vmul.f32 %v400, %v410
    %v541 = vld [vmem:[#allocation8] sm:$0xff]
    %v542 = vld [vmem:[#allocation8 + $0x8] sm:$0xff]
    %v543 = vld [vmem:[#allocation8 + $0x10] sm:$0xff]
    %v544 = vld [vmem:[#allocation8 + $0x18] sm:$0xff]
    %v545 = vld [vmem:[#allocation8 + $0x20] sm:$0xff]
    %v546 = vld [vmem:[#allocation8 + $0x28] sm:$0xff]
    %v547 = vld [vmem:[#allocation8 + $0x30] sm:$0xff]
    %v548 = vld [vmem:[#allocation8 + $0x38] sm:$0xff]
    %v549 = vld [vmem:[#allocation8 + $0x40] sm:$0xff]
    %v550 = vld [vmem:[#allocation8 + $0x48] sm:$0xff]
    %v551 = vld [vmem:[#allocation8 + $0x50] sm:$0xff]
    %v552 = vld [vmem:[#allocation8 + $0x58] sm:$0xff]
    %v553 = vld [vmem:[#allocation8 + $0x60] sm:$0xff]
    %v554 = vld [vmem:[#allocation8 + $0x68] sm:$0xff]
    %v555 = vld [vmem:[#allocation8 + $0x70] sm:$0xff]
    %v556 = vld [vmem:[#allocation8 + $0x78] sm:$0xff]
    %v557 = vld [vmem:[#allocation8 + $0x80] sm:$0xff]
    %v558 = vld [vmem:[#allocation8 + $0x88] sm:$0xff]
    %v559 = vld [vmem:[#allocation8 + $0x90] sm:$0xff]
    %v560 = vld [vmem:[#allocation8 + $0x98] sm:$0xff]
    %v561 = vld [vmem:[#allocation8 + $0xa0] sm:$0xff]
    %v562 = vld [vmem:[#allocation8 + $0xa8] sm:$0xff]
    %v563 = vld [vmem:[#allocation8 + $0xb0] sm:$0xff]
    %v564 = vld [vmem:[#allocation8 + $0xb8] sm:$0xff]
    %v565 = vld [vmem:[#allocation8 + $0xc0] sm:$0xff]
    %v566 = vld [vmem:[#allocation8 + $0xc8] sm:$0xff]
    %v567 = vld [vmem:[#allocation8 + $0xd0] sm:$0xff]
    %v568 = vld [vmem:[#allocation8 + $0xd8] sm:$0xff]
    %v569 = vld [vmem:[#allocation8 + $0xe0] sm:$0xff]
    %v570 = vld [vmem:[#allocation8 + $0xe8] sm:$0xff]
    %v571 = vld [vmem:[#allocation8 + $0xf0] sm:$0xff]
    %v572 = vld [vmem:[#allocation8 + $0xf8] sm:$0xff]
    %v573 = vld [vmem:[#allocation8 + $0x100] sm:$0xff]
    %v574 = vld [vmem:[#allocation8 + $0x108] sm:$0xff]
    %v575 = vld [vmem:[#allocation8 + $0x110] sm:$0xff]
    %v576 = vld [vmem:[#allocation8 + $0x118] sm:$0xff]
    %v577 = vld [vmem:[#allocation8 + $0x120] sm:$0xff]
    %v578 = vld [vmem:[#allocation8 + $0x128] sm:$0xff]
    %v579 = vld [vmem:[#allocation8 + $0x130] sm:$0xff]
    %v580 = vld [vmem:[#allocation8 + $0x138] sm:$0xff]
    %v581 = vld [vmem:[#allocation8 + $0x140] sm:$0xff]
    %v582 = vld [vmem:[#allocation8 + $0x148] sm:$0xff]
    %v583 = vld [vmem:[#allocation8 + $0x150] sm:$0xff]
    %v584 = vld [vmem:[#allocation8 + $0x158] sm:$0xff]
    %v585 = vld [vmem:[#allocation8 + $0x160] sm:$0xff]
    %v586 = vld [vmem:[#allocation8 + $0x168] sm:$0xff]
    %v587 = vld [vmem:[#allocation8 + $0x170] sm:$0xff]
    %v588 = vld [vmem:[#allocation8 + $0x178] sm:$0xff]
    %v589 = vld [vmem:[#allocation8 + $0x180] sm:$0xff]
    %v590 = vld [vmem:[#allocation8 + $0x188] sm:$0xff]
    %v591 = vld [vmem:[#allocation8 + $0x190] sm:$0xff]
    %v592 = vld [vmem:[#allocation8 + $0x198] sm:$0xff]
    %v593 = vld [vmem:[#allocation8 + $0x1a0] sm:$0xff]
    %v594 = vld [vmem:[#allocation8 + $0x1a8] sm:$0xff]
    %v595 = vld [vmem:[#allocation8 + $0x1b0] sm:$0xff]
    %v596 = vld [vmem:[#allocation8 + $0x1b8] sm:$0xff]
    %v597 = vld [vmem:[#allocation8 + $0x1c0] sm:$0xff]
    %v598 = vld [vmem:[#allocation8 + $0x1c8] sm:$0xff]
    %v599 = vld [vmem:[#allocation8 + $0x1d0] sm:$0xff]
    %v600 = vld [vmem:[#allocation8 + $0x1d8] sm:$0xff]
    %v601 = vld [vmem:[#allocation8 + $0x1e0] sm:$0xff]
    %v602 = vld [vmem:[#allocation8 + $0x1e8] sm:$0xff]
    %v603 = vld [vmem:[#allocation8 + $0x1f0] sm:$0xff]
    %v604 = vld [vmem:[#allocation8 + $0x1f8] sm:$0xff]
    %v605 = vunpack.c.l.bf16 %v541
    %v606 = vunpack.c.h.bf16 %v541
    %v607 = vunpack.c.l.bf16 %v542
    %v608 = vunpack.c.h.bf16 %v542
    %v609 = vunpack.c.l.bf16 %v543
    %v610 = vunpack.c.h.bf16 %v543
    %v611 = vunpack.c.l.bf16 %v544
    %v612 = vunpack.c.h.bf16 %v544
    %v613 = vunpack.c.l.bf16 %v545
    %v614 = vunpack.c.h.bf16 %v545
    %v615 = vunpack.c.l.bf16 %v546
    %v616 = vunpack.c.h.bf16 %v546
    %v617 = vunpack.c.l.bf16 %v547
    %v618 = vunpack.c.h.bf16 %v547
    %v619 = vunpack.c.l.bf16 %v548
    %v620 = vunpack.c.h.bf16 %v548
    %v621 = vunpack.c.l.bf16 %v549
    %v622 = vunpack.c.h.bf16 %v549
    %v623 = vunpack.c.l.bf16 %v550
    %v624 = vunpack.c.h.bf16 %v550
    %v625 = vunpack.c.l.bf16 %v551
    %v626 = vunpack.c.h.bf16 %v551
    %v627 = vunpack.c.l.bf16 %v552
    %v628 = vunpack.c.h.bf16 %v552
    %v629 = vunpack.c.l.bf16 %v553
    %v630 = vunpack.c.h.bf16 %v553
    %v631 = vunpack.c.l.bf16 %v554
    %v632 = vunpack.c.h.bf16 %v554
    %v633 = vunpack.c.l.bf16 %v555
    %v634 = vunpack.c.h.bf16 %v555
    %v635 = vunpack.c.l.bf16 %v556
    %v636 = vunpack.c.h.bf16 %v556
    %v637 = vunpack.c.l.bf16 %v557
    %v638 = vunpack.c.h.bf16 %v557
    %v639 = vunpack.c.l.bf16 %v558
    %v640 = vunpack.c.h.bf16 %v558
    %v641 = vunpack.c.l.bf16 %v559
    %v642 = vunpack.c.h.bf16 %v559
    %v643 = vunpack.c.l.bf16 %v560
    %v644 = vunpack.c.h.bf16 %v560
    %v645 = vunpack.c.l.bf16 %v561
    %v646 = vunpack.c.h.bf16 %v561
    %v647 = vunpack.c.l.bf16 %v562
    %v648 = vunpack.c.h.bf16 %v562
    %v649 = vunpack.c.l.bf16 %v563
    %v650 = vunpack.c.h.bf16 %v563
    %v651 = vunpack.c.l.bf16 %v564
    %v652 = vunpack.c.h.bf16 %v564
    %v653 = vunpack.c.l.bf16 %v565
    %v654 = vunpack.c.h.bf16 %v565
    %v655 = vunpack.c.l.bf16 %v566
    %v656 = vunpack.c.h.bf16 %v566
    %v657 = vunpack.c.l.bf16 %v567
    %v658 = vunpack.c.h.bf16 %v567
    %v659 = vunpack.c.l.bf16 %v568
    %v660 = vunpack.c.h.bf16 %v568
    %v661 = vunpack.c.l.bf16 %v569
    %v662 = vunpack.c.h.bf16 %v569
    %v663 = vunpack.c.l.bf16 %v570
    %v664 = vunpack.c.h.bf16 %v570
    %v665 = vunpack.c.l.bf16 %v571
    %v666 = vunpack.c.h.bf16 %v571
    %v667 = vunpack.c.l.bf16 %v572
    %v668 = vunpack.c.h.bf16 %v572
    %v669 = vunpack.c.l.bf16 %v573
    %v670 = vunpack.c.h.bf16 %v573
    %v671 = vunpack.c.l.bf16 %v574
    %v672 = vunpack.c.h.bf16 %v574
    %v673 = vunpack.c.l.bf16 %v575
    %v674 = vunpack.c.h.bf16 %v575
    %v675 = vunpack.c.l.bf16 %v576
    %v676 = vunpack.c.h.bf16 %v576
    %v677 = vunpack.c.l.bf16 %v577
    %v678 = vunpack.c.h.bf16 %v577
    %v679 = vunpack.c.l.bf16 %v578
    %v680 = vunpack.c.h.bf16 %v578
    %v681 = vunpack.c.l.bf16 %v579
    %v682 = vunpack.c.h.bf16 %v579
    %v683 = vunpack.c.l.bf16 %v580
    %v684 = vunpack.c.h.bf16 %v580
    %v685 = vunpack.c.l.bf16 %v581
    %v686 = vunpack.c.h.bf16 %v581
    %v687 = vunpack.c.l.bf16 %v582
    %v688 = vunpack.c.h.bf16 %v582
    %v689 = vunpack.c.l.bf16 %v583
    %v690 = vunpack.c.h.bf16 %v583
    %v691 = vunpack.c.l.bf16 %v584
    %v692 = vunpack.c.h.bf16 %v584
    %v693 = vunpack.c.l.bf16 %v585
    %v694 = vunpack.c.h.bf16 %v585
    %v695 = vunpack.c.l.bf16 %v586
    %v696 = vunpack.c.h.bf16 %v586
    %v697 = vunpack.c.l.bf16 %v587
    %v698 = vunpack.c.h.bf16 %v587
    %v699 = vunpack.c.l.bf16 %v588
    %v700 = vunpack.c.h.bf16 %v588
    %v701 = vunpack.c.l.bf16 %v589
    %v702 = vunpack.c.h.bf16 %v589
    %v703 = vunpack.c.l.bf16 %v590
    %v704 = vunpack.c.h.bf16 %v590
    %v705 = vunpack.c.l.bf16 %v591
    %v706 = vunpack.c.h.bf16 %v591
    %v707 = vunpack.c.l.bf16 %v592
    %v708 = vunpack.c.h.bf16 %v592
    %v709 = vunpack.c.l.bf16 %v593
    %v710 = vunpack.c.h.bf16 %v593
    %v711 = vunpack.c.l.bf16 %v594
    %v712 = vunpack.c.h.bf16 %v594
    %v713 = vunpack.c.l.bf16 %v595
    %v714 = vunpack.c.h.bf16 %v595
    %v715 = vunpack.c.l.bf16 %v596
    %v716 = vunpack.c.h.bf16 %v596
    %v717 = vunpack.c.l.bf16 %v597
    %v718 = vunpack.c.h.bf16 %v597
    %v719 = vunpack.c.l.bf16 %v598
    %v720 = vunpack.c.h.bf16 %v598
    %v721 = vunpack.c.l.bf16 %v599
    %v722 = vunpack.c.h.bf16 %v599
    %v723 = vunpack.c.l.bf16 %v600
    %v724 = vunpack.c.h.bf16 %v600
    %v725 = vunpack.c.l.bf16 %v601
    %v726 = vunpack.c.h.bf16 %v601
    %v727 = vunpack.c.l.bf16 %v602
    %v728 = vunpack.c.h.bf16 %v602
    %v729 = vunpack.c.l.bf16 %v603
    %v730 = vunpack.c.h.bf16 %v603
    %v731 = vunpack.c.l.bf16 %v604
    %v732 = vunpack.c.h.bf16 %v604
    %v733 = vadd.f32 %v413, %v605
    %v734 = vadd.f32 %v414, %v606
    %v735 = vadd.f32 %v415, %v607
    %v736 = vadd.f32 %v416, %v608
    %v737 = vadd.f32 %v417, %v609
    %v738 = vadd.f32 %v418, %v610
    %v739 = vadd.f32 %v419, %v611
    %v740 = vadd.f32 %v420, %v612
    %v741 = vadd.f32 %v421, %v613
    %v742 = vadd.f32 %v422, %v614
    %v743 = vadd.f32 %v423, %v615
    %v744 = vadd.f32 %v424, %v616
    %v745 = vadd.f32 %v425, %v617
    %v746 = vadd.f32 %v426, %v618
    %v747 = vadd.f32 %v427, %v619
    %v748 = vadd.f32 %v428, %v620
    %v749 = vadd.f32 %v429, %v621
    %v750 = vadd.f32 %v430, %v622
    %v751 = vadd.f32 %v431, %v623
    %v752 = vadd.f32 %v432, %v624
    %v753 = vadd.f32 %v433, %v625
    %v754 = vadd.f32 %v434, %v626
    %v755 = vadd.f32 %v435, %v627
    %v756 = vadd.f32 %v436, %v628
    %v757 = vadd.f32 %v437, %v629
    %v758 = vadd.f32 %v438, %v630
    %v759 = vadd.f32 %v439, %v631
    %v760 = vadd.f32 %v440, %v632
    %v761 = vadd.f32 %v441, %v633
    %v762 = vadd.f32 %v442, %v634
    %v763 = vadd.f32 %v443, %v635
    %v764 = vadd.f32 %v444, %v636
    %v765 = vadd.f32 %v445, %v637
    %v766 = vadd.f32 %v446, %v638
    %v767 = vadd.f32 %v447, %v639
    %v768 = vadd.f32 %v448, %v640
    %v769 = vadd.f32 %v449, %v641
    %v770 = vadd.f32 %v450, %v642
    %v771 = vadd.f32 %v451, %v643
    %v772 = vadd.f32 %v452, %v644
    %v773 = vadd.f32 %v453, %v645
    %v774 = vadd.f32 %v454, %v646
    %v775 = vadd.f32 %v455, %v647
    %v776 = vadd.f32 %v456, %v648
    %v777 = vadd.f32 %v457, %v649
    %v778 = vadd.f32 %v458, %v650
    %v779 = vadd.f32 %v459, %v651
    %v780 = vadd.f32 %v460, %v652
    %v781 = vadd.f32 %v461, %v653
    %v782 = vadd.f32 %v462, %v654
    %v783 = vadd.f32 %v463, %v655
    %v784 = vadd.f32 %v464, %v656
    %v785 = vadd.f32 %v465, %v657
    %v786 = vadd.f32 %v466, %v658
    %v787 = vadd.f32 %v467, %v659
    %v788 = vadd.f32 %v468, %v660
    %v789 = vadd.f32 %v469, %v661
    %v790 = vadd.f32 %v470, %v662
    %v791 = vadd.f32 %v471, %v663
    %v792 = vadd.f32 %v472, %v664
    %v793 = vadd.f32 %v473, %v665
    %v794 = vadd.f32 %v474, %v666
    %v795 = vadd.f32 %v475, %v667
    %v796 = vadd.f32 %v476, %v668
    %v797 = vadd.f32 %v477, %v669
    %v798 = vadd.f32 %v478, %v670
    %v799 = vadd.f32 %v479, %v671
    %v800 = vadd.f32 %v480, %v672
    %v801 = vadd.f32 %v481, %v673
    %v802 = vadd.f32 %v482, %v674
    %v803 = vadd.f32 %v483, %v675
    %v804 = vadd.f32 %v484, %v676
    %v805 = vadd.f32 %v485, %v677
    %v806 = vadd.f32 %v486, %v678
    %v807 = vadd.f32 %v487, %v679
    %v808 = vadd.f32 %v488, %v680
    %v809 = vadd.f32 %v489, %v681
    %v810 = vadd.f32 %v490, %v682
    %v811 = vadd.f32 %v491, %v683
    %v812 = vadd.f32 %v492, %v684
    %v813 = vadd.f32 %v493, %v685
    %v814 = vadd.f32 %v494, %v686
    %v815 = vadd.f32 %v495, %v687
    %v816 = vadd.f32 %v496, %v688
    %v817 = vadd.f32 %v497, %v689
    %v818 = vadd.f32 %v498, %v690
    %v819 = vadd.f32 %v499, %v691
    %v820 = vadd.f32 %v500, %v692
    %v821 = vadd.f32 %v501, %v693
    %v822 = vadd.f32 %v502, %v694
    %v823 = vadd.f32 %v503, %v695
    %v824 = vadd.f32 %v504, %v696
    %v825 = vadd.f32 %v505, %v697
    %v826 = vadd.f32 %v506, %v698
    %v827 = vadd.f32 %v507, %v699
    %v828 = vadd.f32 %v508, %v700
    %v829 = vadd.f32 %v509, %v701
    %v830 = vadd.f32 %v510, %v702
    %v831 = vadd.f32 %v511, %v703
    %v832 = vadd.f32 %v512, %v704
    %v833 = vadd.f32 %v513, %v705
    %v834 = vadd.f32 %v514, %v706
    %v835 = vadd.f32 %v515, %v707
    %v836 = vadd.f32 %v516, %v708
    %v837 = vadd.f32 %v517, %v709
    %v838 = vadd.f32 %v518, %v710
    %v839 = vadd.f32 %v519, %v711
    %v840 = vadd.f32 %v520, %v712
    %v841 = vadd.f32 %v521, %v713
    %v842 = vadd.f32 %v522, %v714
    %v843 = vadd.f32 %v523, %v715
    %v844 = vadd.f32 %v524, %v716
    %v845 = vadd.f32 %v525, %v717
    %v846 = vadd.f32 %v526, %v718
    %v847 = vadd.f32 %v527, %v719
    %v848 = vadd.f32 %v528, %v720
    %v849 = vadd.f32 %v529, %v721
    %v850 = vadd.f32 %v530, %v722
    %v851 = vadd.f32 %v531, %v723
    %v852 = vadd.f32 %v532, %v724
    %v853 = vadd.f32 %v533, %v725
    %v854 = vadd.f32 %v534, %v726
    %v855 = vadd.f32 %v535, %v727
    %v856 = vadd.f32 %v536, %v728
    %v857 = vadd.f32 %v537, %v729
    %v858 = vadd.f32 %v538, %v730
    %v859 = vadd.f32 %v539, %v731
    %v860 = vadd.f32 %v540, %v732
    %v861 = vmax.f32 %v733, 0.0
    %v862 = vmax.f32 %v734, 0.0
    %v863 = vmax.f32 %v735, 0.0
    %v864 = vmax.f32 %v736, 0.0
    %v865 = vmax.f32 %v737, 0.0
    %v866 = vmax.f32 %v738, 0.0
    %v867 = vmax.f32 %v739, 0.0
    %v868 = vmax.f32 %v740, 0.0
    %v869 = vmax.f32 %v741, 0.0
    %v870 = vmax.f32 %v742, 0.0
    %v871 = vmax.f32 %v743, 0.0
    %v872 = vmax.f32 %v744, 0.0
    %v873 = vmax.f32 %v745, 0.0
    %v874 = vmax.f32 %v746, 0.0
    %v875 = vmax.f32 %v747, 0.0
    %v876 = vmax.f32 %v748, 0.0
    %v877 = vmax.f32 %v749, 0.0
    %v878 = vmax.f32 %v750, 0.0
    %v879 = vmax.f32 %v751, 0.0
    %v880 = vmax.f32 %v752, 0.0
    %v881 = vmax.f32 %v753, 0.0
    %v882 = vmax.f32 %v754, 0.0
    %v883 = vmax.f32 %v755, 0.0
    %v884 = vmax.f32 %v756, 0.0
    %v885 = vmax.f32 %v757, 0.0
    %v886 = vmax.f32 %v758, 0.0
    %v887 = vmax.f32 %v759, 0.0
    %v888 = vmax.f32 %v760, 0.0
    %v889 = vmax.f32 %v761, 0.0
    %v890 = vmax.f32 %v762, 0.0
    %v891 = vmax.f32 %v763, 0.0
    %v892 = vmax.f32 %v764, 0.0
    %v893 = vmax.f32 %v765, 0.0
    %v894 = vmax.f32 %v766, 0.0
    %v895 = vmax.f32 %v767, 0.0
    %v896 = vmax.f32 %v768, 0.0
    %v897 = vmax.f32 %v769, 0.0
    %v898 = vmax.f32 %v770, 0.0
    %v899 = vmax.f32 %v771, 0.0
    %v900 = vmax.f32 %v772, 0.0
    %v901 = vmax.f32 %v773, 0.0
    %v902 = vmax.f32 %v774, 0.0
    %v903 = vmax.f32 %v775, 0.0
    %v904 = vmax.f32 %v776, 0.0
    %v905 = vmax.f32 %v777, 0.0
    %v906 = vmax.f32 %v778, 0.0
    %v907 = vmax.f32 %v779, 0.0
    %v908 = vmax.f32 %v780, 0.0
    %v909 = vmax.f32 %v781, 0.0
    %v910 = vmax.f32 %v782, 0.0
    %v911 = vmax.f32 %v783, 0.0
    %v912 = vmax.f32 %v784, 0.0
    %v913 = vmax.f32 %v785, 0.0
    %v914 = vmax.f32 %v786, 0.0
    %v915 = vmax.f32 %v787, 0.0
    %v916 = vmax.f32 %v788, 0.0
    %v917 = vmax.f32 %v789, 0.0
    %v918 = vmax.f32 %v790, 0.0
    %v919 = vmax.f32 %v791, 0.0
    %v920 = vmax.f32 %v792, 0.0
    %v921 = vmax.f32 %v793, 0.0
    %v922 = vmax.f32 %v794, 0.0
    %v923 = vmax.f32 %v795, 0.0
    %v924 = vmax.f32 %v796, 0.0
    %v925 = vmax.f32 %v797, 0.0
    %v926 = vmax.f32 %v798, 0.0
    %v927 = vmax.f32 %v799, 0.0
    %v928 = vmax.f32 %v800, 0.0
    %v929 = vmax.f32 %v801, 0.0
    %v930 = vmax.f32 %v802, 0.0
    %v931 = vmax.f32 %v803, 0.0
    %v932 = vmax.f32 %v804, 0.0
    %v933 = vmax.f32 %v805, 0.0
    %v934 = vmax.f32 %v806, 0.0
    %v935 = vmax.f32 %v807, 0.0
    %v936 = vmax.f32 %v808, 0.0
    %v937 = vmax.f32 %v809, 0.0
    %v938 = vmax.f32 %v810, 0.0
    %v939 = vmax.f32 %v811, 0.0
    %v940 = vmax.f32 %v812, 0.0
    %v941 = vmax.f32 %v813, 0.0
    %v942 = vmax.f32 %v814, 0.0
    %v943 = vmax.f32 %v815, 0.0
    %v944 = vmax.f32 %v816, 0.0
    %v945 = vmax.f32 %v817, 0.0
    %v946 = vmax.f32 %v818, 0.0
    %v947 = vmax.f32 %v819, 0.0
    %v948 = vmax.f32 %v820, 0.0
    %v949 = vmax.f32 %v821, 0.0
    %v950 = vmax.f32 %v822, 0.0
    %v951 = vmax.f32 %v823, 0.0
    %v952 = vmax.f32 %v824, 0.0
    %v953 = vmax.f32 %v825, 0.0
    %v954 = vmax.f32 %v826, 0.0
    %v955 = vmax.f32 %v827, 0.0
    %v956 = vmax.f32 %v828, 0.0
    %v957 = vmax.f32 %v829, 0.0
    %v958 = vmax.f32 %v830, 0.0
    %v959 = vmax.f32 %v831, 0.0
    %v960 = vmax.f32 %v832, 0.0
    %v961 = vmax.f32 %v833, 0.0
    %v962 = vmax.f32 %v834, 0.0
    %v963 = vmax.f32 %v835, 0.0
    %v964 = vmax.f32 %v836, 0.0
    %v965 = vmax.f32 %v837, 0.0
    %v966 = vmax.f32 %v838, 0.0
    %v967 = vmax.f32 %v839, 0.0
    %v968 = vmax.f32 %v840, 0.0
    %v969 = vmax.f32 %v841, 0.0
    %v970 = vmax.f32 %v842, 0.0
    %v971 = vmax.f32 %v843, 0.0
    %v972 = vmax.f32 %v844, 0.0
    %v973 = vmax.f32 %v845, 0.0
    %v974 = vmax.f32 %v846, 0.0
    %v975 = vmax.f32 %v847, 0.0
    %v976 = vmax.f32 %v848, 0.0
    %v977 = vmax.f32 %v849, 0.0
    %v978 = vmax.f32 %v850, 0.0
    %v979 = vmax.f32 %v851, 0.0
    %v980 = vmax.f32 %v852, 0.0
    %v981 = vmax.f32 %v853, 0.0
    %v982 = vmax.f32 %v854, 0.0
    %v983 = vmax.f32 %v855, 0.0
    %v984 = vmax.f32 %v856, 0.0
    %v985 = vmax.f32 %v857, 0.0
    %v986 = vmax.f32 %v858, 0.0
    %v987 = vmax.f32 %v859, 0.0
    %v988 = vmax.f32 %v860, 0.0
    %989 = vst [vmem:[#allocation10] sm:$0xff] %v861
    %990 = vst [vmem:[#allocation10 + $0x8] sm:$0xff] %v862
    %991 = vst [vmem:[#allocation10 + $0x10] sm:$0xff] %v863
    %992 = vst [vmem:[#allocation10 + $0x18] sm:$0xff] %v864
    %993 = vst [vmem:[#allocation10 + $0x20] sm:$0xff] %v865
    %994 = vst [vmem:[#allocation10 + $0x28] sm:$0xff] %v866
    %995 = vst [vmem:[#allocation10 + $0x30] sm:$0xff] %v867
    %996 = vst [vmem:[#allocation10 + $0x38] sm:$0xff] %v868
    %997 = vst [vmem:[#allocation10 + $0x40] sm:$0xff] %v869
    %998 = vst [vmem:[#allocation10 + $0x48] sm:$0xff] %v870
    %999 = vst [vmem:[#allocation10 + $0x50] sm:$0xff] %v871
    %1000 = vst [vmem:[#allocation10 + $0x58] sm:$0xff] %v872
    %1001 = vst [vmem:[#allocation10 + $0x60] sm:$0xff] %v873
    %1002 = vst [vmem:[#allocation10 + $0x68] sm:$0xff] %v874
    %1003 = vst [vmem:[#allocation10 + $0x70] sm:$0xff] %v875
    %1004 = vst [vmem:[#allocation10 + $0x78] sm:$0xff] %v876
    %1005 = vst [vmem:[#allocation10 + $0x80] sm:$0xff] %v877
    %1006 = vst [vmem:[#allocation10 + $0x88] sm:$0xff] %v878
    %1007 = vst [vmem:[#allocation10 + $0x90] sm:$0xff] %v879
    %1008 = vst [vmem:[#allocation10 + $0x98] sm:$0xff] %v880
    %1009 = vst [vmem:[#allocation10 + $0xa0] sm:$0xff] %v881
    %1010 = vst [vmem:[#allocation10 + $0xa8] sm:$0xff] %v882
    %1011 = vst [vmem:[#allocation10 + $0xb0] sm:$0xff] %v883
    %1012 = vst [vmem:[#allocation10 + $0xb8] sm:$0xff] %v884
    %1013 = vst [vmem:[#allocation10 + $0xc0] sm:$0xff] %v885
    %1014 = vst [vmem:[#allocation10 + $0xc8] sm:$0xff] %v886
    %1015 = vst [vmem:[#allocation10 + $0xd0] sm:$0xff] %v887
    %1016 = vst [vmem:[#allocation10 + $0xd8] sm:$0xff] %v888
    %1017 = vst [vmem:[#allocation10 + $0xe0] sm:$0xff] %v889
    %1018 = vst [vmem:[#allocation10 + $0xe8] sm:$0xff] %v890
    %1019 = vst [vmem:[#allocation10 + $0xf0] sm:$0xff] %v891
    %1020 = vst [vmem:[#allocation10 + $0xf8] sm:$0xff] %v892
    %1021 = vst [vmem:[#allocation10 + $0x100] sm:$0xff] %v893
    %1022 = vst [vmem:[#allocation10 + $0x108] sm:$0xff] %v894
    %1023 = vst [vmem:[#allocation10 + $0x110] sm:$0xff] %v895
    %1024 = vst [vmem:[#allocation10 + $0x118] sm:$0xff] %v896
    %1025 = vst [vmem:[#allocation10 + $0x120] sm:$0xff] %v897
    %1026 = vst [vmem:[#allocation10 + $0x128] sm:$0xff] %v898
    %1027 = vst [vmem:[#allocation10 + $0x130] sm:$0xff] %v899
    %1028 = vst [vmem:[#allocation10 + $0x138] sm:$0xff] %v900
    %1029 = vst [vmem:[#allocation10 + $0x140] sm:$0xff] %v901
    %1030 = vst [vmem:[#allocation10 + $0x148] sm:$0xff] %v902
    %1031 = vst [vmem:[#allocation10 + $0x150] sm:$0xff] %v903
    %1032 = vst [vmem:[#allocation10 + $0x158] sm:$0xff] %v904
    %1033 = vst [vmem:[#allocation10 + $0x160] sm:$0xff] %v905
    %1034 = vst [vmem:[#allocation10 + $0x168] sm:$0xff] %v906
    %1035 = vst [vmem:[#allocation10 + $0x170] sm:$0xff] %v907
    %1036 = vst [vmem:[#allocation10 + $0x178] sm:$0xff] %v908
    %1037 = vst [vmem:[#allocation10 + $0x180] sm:$0xff] %v909
    %1038 = vst [vmem:[#allocation10 + $0x188] sm:$0xff] %v910
    %1039 = vst [vmem:[#allocation10 + $0x190] sm:$0xff] %v911
    %1040 = vst [vmem:[#allocation10 + $0x198] sm:$0xff] %v912
    %1041 = vst [vmem:[#allocation10 + $0x1a0] sm:$0xff] %v913
    %1042 = vst [vmem:[#allocation10 + $0x1a8] sm:$0xff] %v914
    %1043 = vst [vmem:[#allocation10 + $0x1b0] sm:$0xff] %v915
    %1044 = vst [vmem:[#allocation10 + $0x1b8] sm:$0xff] %v916
    %1045 = vst [vmem:[#allocation10 + $0x1c0] sm:$0xff] %v917
    %1046 = vst [vmem:[#allocation10 + $0x1c8] sm:$0xff] %v918
    %1047 = vst [vmem:[#allocation10 + $0x1d0] sm:$0xff] %v919
    %1048 = vst [vmem:[#allocation10 + $0x1d8] sm:$0xff] %v920
    %1049 = vst [vmem:[#allocation10 + $0x1e0] sm:$0xff] %v921
    %1050 = vst [vmem:[#allocation10 + $0x1e8] sm:$0xff] %v922
    %1051 = vst [vmem:[#allocation10 + $0x1f0] sm:$0xff] %v923
    %1052 = vst [vmem:[#allocation10 + $0x1f8] sm:$0xff] %v924
    %1053 = vst [vmem:[#allocation10 + $0x200] sm:$0xff] %v925
    %1054 = vst [vmem:[#allocation10 + $0x208] sm:$0xff] %v926
    %1055 = vst [vmem:[#allocation10 + $0x210] sm:$0xff] %v927
    %1056 = vst [vmem:[#allocation10 + $0x218] sm:$0xff] %v928
    %1057 = vst [vmem:[#allocation10 + $0x220] sm:$0xff] %v929
    %1058 = vst [vmem:[#allocation10 + $0x228] sm:$0xff] %v930
    %1059 = vst [vmem:[#allocation10 + $0x230] sm:$0xff] %v931
    %1060 = vst [vmem:[#allocation10 + $0x238] sm:$0xff] %v932
    %1061 = vst [vmem:[#allocation10 + $0x240] sm:$0xff] %v933
    %1062 = vst [vmem:[#allocation10 + $0x248] sm:$0xff] %v934
    %1063 = vst [vmem:[#allocation10 + $0x250] sm:$0xff] %v935
    %1064 = vst [vmem:[#allocation10 + $0x258] sm:$0xff] %v936
    %1065 = vst [vmem:[#allocation10 + $0x260] sm:$0xff] %v937
    %1066 = vst [vmem:[#allocation10 + $0x268] sm:$0xff] %v938
    %1067 = vst [vmem:[#allocation10 + $0x270] sm:$0xff] %v939
    %1068 = vst [vmem:[#allocation10 + $0x278] sm:$0xff] %v940
    %1069 = vst [vmem:[#allocation10 + $0x280] sm:$0xff] %v941
    %1070 = vst [vmem:[#allocation10 + $0x288] sm:$0xff] %v942
    %1071 = vst [vmem:[#allocation10 + $0x290] sm:$0xff] %v943
    %1072 = vst [vmem:[#allocation10 + $0x298] sm:$0xff] %v944
    %1073 = vst [vmem:[#allocation10 + $0x2a0] sm:$0xff] %v945
    %1074 = vst [vmem:[#allocation10 + $0x2a8] sm:$0xff] %v946
    %1075 = vst [vmem:[#allocation10 + $0x2b0] sm:$0xff] %v947
    %1076 = vst [vmem:[#allocation10 + $0x2b8] sm:$0xff] %v948
    %1077 = vst [vmem:[#allocation10 + $0x2c0] sm:$0xff] %v949
    %1078 = vst [vmem:[#allocation10 + $0x2c8] sm:$0xff] %v950
    %1079 = vst [vmem:[#allocation10 + $0x2d0] sm:$0xff] %v951
    %1080 = vst [vmem:[#allocation10 + $0x2d8] sm:$0xff] %v952
    %1081 = vst [vmem:[#allocation10 + $0x2e0] sm:$0xff] %v953
    %1082 = vst [vmem:[#allocation10 + $0x2e8] sm:$0xff] %v954
    %1083 = vst [vmem:[#allocation10 + $0x2f0] sm:$0xff] %v955
    %1084 = vst [vmem:[#allocation10 + $0x2f8] sm:$0xff] %v956
    %1085 = vst [vmem:[#allocation10 + $0x300] sm:$0xff] %v957
    %1086 = vst [vmem:[#allocation10 + $0x308] sm:$0xff] %v958
    %1087 = vst [vmem:[#allocation10 + $0x310] sm:$0xff] %v959
    %1088 = vst [vmem:[#allocation10 + $0x318] sm:$0xff] %v960
    %1089 = vst [vmem:[#allocation10 + $0x320] sm:$0xff] %v961
    %1090 = vst [vmem:[#allocation10 + $0x328] sm:$0xff] %v962
    %1091 = vst [vmem:[#allocation10 + $0x330] sm:$0xff] %v963
    %1092 = vst [vmem:[#allocation10 + $0x338] sm:$0xff] %v964
    %1093 = vst [vmem:[#allocation10 + $0x340] sm:$0xff] %v965
    %1094 = vst [vmem:[#allocation10 + $0x348] sm:$0xff] %v966
    %1095 = vst [vmem:[#allocation10 + $0x350] sm:$0xff] %v967
    %1096 = vst [vmem:[#allocation10 + $0x358] sm:$0xff] %v968
    %1097 = vst [vmem:[#allocation10 + $0x360] sm:$0xff] %v969
    %1098 = vst [vmem:[#allocation10 + $0x368] sm:$0xff] %v970
    %1099 = vst [vmem:[#allocation10 + $0x370] sm:$0xff] %v971
    %1100 = vst [vmem:[#allocation10 + $0x378] sm:$0xff] %v972
    %1101 = vst [vmem:[#allocation10 + $0x380] sm:$0xff] %v973
    %1102 = vst [vmem:[#allocation10 + $0x388] sm:$0xff] %v974
    %1103 = vst [vmem:[#allocation10 + $0x390] sm:$0xff] %v975
    %1104 = vst [vmem:[#allocation10 + $0x398] sm:$0xff] %v976
    %1105 = vst [vmem:[#allocation10 + $0x3a0] sm:$0xff] %v977
    %1106 = vst [vmem:[#allocation10 + $0x3a8] sm:$0xff] %v978
    %1107 = vst [vmem:[#allocation10 + $0x3b0] sm:$0xff] %v979
    %1108 = vst [vmem:[#allocation10 + $0x3b8] sm:$0xff] %v980
    %1109 = vst [vmem:[#allocation10 + $0x3c0] sm:$0xff] %v981
    %1110 = vst [vmem:[#allocation10 + $0x3c8] sm:$0xff] %v982
    %1111 = vst [vmem:[#allocation10 + $0x3d0] sm:$0xff] %v983
    %1112 = vst [vmem:[#allocation10 + $0x3d8] sm:$0xff] %v984
    %1113 = vst [vmem:[#allocation10 + $0x3e0] sm:$0xff] %v985
    %1114 = vst [vmem:[#allocation10 + $0x3e8] sm:$0xff] %v986
    %1115 = vst [vmem:[#allocation10 + $0x3f0] sm:$0xff] %v987
    %1116 = vst [vmem:[#allocation10 + $0x3f8] sm:$0xff] %v988
    // Predicated region
    $region34: #{bottleneck_forward.15} parent=1 // pred_check
      _
    $region35: #{bottleneck_forward.15} parent=1 // pred_check_branch
      %1118 = sbr.rel (0) target = $region37
    $region36: #{bottleneck_forward.15} parent=1 // pred_region
      %s1120 = ssub.s32 16384, 16384
      %1121 = vsyncadd [#allocation4], %s1120
      %s1122 = sshll.u32 [#allocation10], 4
      %s1123 = int_to_ptr.vmem [resolvable:$true] %s1122
      %1128 = dma.vmem_to_hbm [thread:$0]  %s1123, 16384, %s4, [#allocation4], 256, 256, 16
    $region37: #{bottleneck_forward.15} parent=1 // pred_fallthru
      _
    // Predicated region
    $region38: #{bottleneck_forward.15} parent=1 // pred_check
      _
    $region39: #{bottleneck_forward.15} parent=1 // pred_check_branch
      %1130 = sbr.rel (0) target = $region41
    $region40: #{bottleneck_forward.15} parent=1 // pred_region
      %1131 = dma.done [#allocation4], 16384
    $region41: #{bottleneck_forward.15} parent=1 // pred_fallthru
      _
    %1132 = vsyncpa [#allocation3], 1
    %1133 = vsyncpa [#allocation6], 1
    %1134 = vsyncpa [#allocation9], 1
    %1135 = vsyncpa [#allocation4], 1

</llo_original>
